<compile_context>
chip_gen: v6e
topology: v6e:2x2x1
jax: 0.10.0
libtpu: 0.0.40
codegen_flags: <defaults>
</compile_context>

<pallas_src>
import math

import jax
import jax.numpy as jnp
from jax.experimental import pallas as pl
from jax.experimental.pallas import tpu as pltpu


# -----------------------------------------------------------------------------
# Kernels
# -----------------------------------------------------------------------------
def _make_conv_kernel(ho, stride, hh2):
    """3x3 conv (BN folded) + ReLU on a W/C-merged, row-reordered padded map.

    x_ref : (B, Hp, Wp*Cin)      bf16   (stride 2: rows are [even-H ; odd-H])
    w_ref : (3, Wp*Cin, Wo*Cout) bf16   banded weights (kx folded into the band)
    b_ref : (1, Wo*Cout)         f32
    o_ref : (B, Ho, Wo*Cout)     bf16   lane-dense output rows
    """

    def kernel(x_ref, w_ref, b_ref, o_ref):
        nimg = x_ref.shape[0]
        for b in range(nimg):                       # static unroll, nimg <= 8
            acc = None
            for ky in range(3):                     # 3 row taps; kx is in the band
                r0 = ky if stride == 1 else (ky % 2) * hh2 + ky // 2
                rows = x_ref[b, r0:r0 + ho, :]      # contiguous (Ho, Wp*Cin)
                d = jnp.dot(rows, w_ref[ky], preferred_element_type=jnp.float32)
                acc = d if acc is None else acc + d
            y = jnp.maximum(acc + b_ref[...], 0.0)  # (Ho, Wo*Cout) f32
            o_ref[b] = y.astype(o_ref.dtype)        # unmasked 512-lane stores

    return kernel


def _make_head_kernel(ho, hh2, inv_pool):
    """Last conv (stride 2) + ReLU + AvgPool(full map) + Linear(128->10) fused.

    mean(relu(conv)) @ W_fc is computed as mean(relu(conv) @ W_fc_tiled), which
    is exact by linearity and keeps the epilogue a single small matmul.
    """

    def kernel(x_ref, w_ref, b_ref, fcw_ref, fcb_ref, o_ref):
        nimg = x_ref.shape[0]
        for b in range(nimg):
            acc = None
            for ky in range(3):
                r0 = (ky % 2) * hh2 + ky // 2
                rows = x_ref[b, r0:r0 + ho, :]
                d = jnp.dot(rows, w_ref[ky], preferred_element_type=jnp.float32)
                acc = d if acc is None else acc + d
            y = jnp.maximum(acc + b_ref[...], 0.0)                    # (Ho, Wo*128)
            s = jnp.dot(y, fcw_ref[...], preferred_element_type=jnp.float32)  # (Ho, 10)
            o_ref[b] = jnp.sum(s, axis=0, keepdims=True) * inv_pool + fcb_ref[...]

    return kernel


# -----------------------------------------------------------------------------
# Wrapper-side layout prep (cheap XLA glue: pad, merge W/C, reorder rows)
# -----------------------------------------------------------------------------
def _prep_rows(x_nhwc, stride):
    """Zero-pad H/W by 1, merge (W, C) into the lane dim, and for stride 2
    reorder padded rows as [even-H ; odd-H] so every 3x3 row tap the kernel
    needs is a contiguous row range.  Returns (N, H+2, (W+2)*C)."""
    n, h, w, c = x_nhwc.shape
    xp = jnp.pad(x_nhwc, ((0, 0), (1, 1), (1, 1), (0, 0)))
    xp = xp.reshape(n, h + 2, (w + 2) * c)
    if stride == 2:
        xp = jnp.concatenate([xp[:, 0::2, :], xp[:, 1::2, :]], axis=1)
    return xp


def _band_weights(w9, wp, wo, stride):
    """Fold the kx taps into a block-banded matrix.

    w9: (9, Cin, Cout), tap-major (ky, kx).  Returns (3, Wp*Cin, Wo*Cout) with
    band[ky, w*Cin + c, j*Cout + co] = w9[3*ky + kx, c, co] iff w == stride*j + kx.
    Each output element has at most one non-zero contribution -> exact in bf16.
    """
    _, cin, cout = w9.shape
    wk = w9.reshape(3, 3, cin, cout)                               # (ky, kx, c, co)
    w_idx = jnp.arange(wp)[:, None, None]
    j_idx = jnp.arange(wo)[None, :, None]
    kx_idx = jnp.arange(3)[None, None, :]
    ind = (w_idx == stride * j_idx + kx_idx).astype(w9.dtype)      # (Wp, Wo, 3)
    band = jnp.einsum("wjx,kxcd->kwcjd", ind, wk)                  # (3,Wp,Cin,Wo,Cout)
    return band.reshape(3, wp * cin, wo * cout)


def _pick_block(n, max_block=8):
    """Images per grid step: divides N, <= 8, and gives >= 2 grid steps when
    N >= 2 so both v7x TensorCores get balanced work."""
    if n <= 1:
        return 1
    cap = max(1, min(max_block, n // 2))
    for b in range(cap, 0, -1):
        if n % b == 0:
            return b
    return 1


# -----------------------------------------------------------------------------
# Layer wrappers (one pallas_call each)
# -----------------------------------------------------------------------------
def conv_bn_relu(x, w9, b, *, stride, block):
    """x: (N,H,W,Cin) bf16; w9: (9,Cin,Cout) bf16 (BN folded); b: (1,Cout) f32."""
    n, h, w, c = x.shape
    ho, wo = h // stride, w // stride
    cout = w9.shape[-1]
    wp = w + 2
    xr = _prep_rows(x, stride)                       # (N, H+2, Wp*C) bf16
    wband = _band_weights(w9, wp, wo, stride)        # (3, Wp*C, Wo*Cout) bf16
    brow = jnp.tile(b, (1, wo))                      # (1, Wo*Cout) f32
    hh2 = (h + 2) // 2

    out = pl.pallas_call(
        _make_conv_kernel(ho, stride, hh2),
        out_shape=jax.ShapeDtypeStruct((n, ho, wo * cout), jnp.bfloat16),
        grid=(n // block,),
        in_specs=[
            pl.BlockSpec((block, h + 2, wp * c), lambda i: (i, 0, 0)),
            pl.BlockSpec(wband.shape, lambda i: (0, 0, 0)),      # resident weights
            pl.BlockSpec((1, wo * cout), lambda i: (0, 0)),      # folded BN bias
        ],
        out_specs=pl.BlockSpec((block, ho, wo * cout), lambda i: (i, 0, 0)),
        compiler_params=pltpu.CompilerParams(dimension_semantics=("parallel",)),
    )(xr, wband, brow)
    return out.reshape(n, ho, wo, cout)


def conv_bn_relu_pool_fc(x, w9, b, fcw, fcb, *, block):
    """Final conv layer + ReLU + AvgPool(4) + Dropout(eval) + Linear, fused."""
    n, h, w, c = x.shape
    ho, wo = h // 2, w // 2
    cout = w9.shape[-1]
    o = fcw.shape[-1]
    wp = w + 2
    xr = _prep_rows(x, 2)
    wband = _band_weights(w9, wp, wo, 2)
    brow = jnp.tile(b, (1, wo))
    fcw_t = jnp.tile(fcw, (wo, 1))                   # (Wo*Cout, O): row j*Cout+co
    hh2 = (h + 2) // 2

    out = pl.pallas_call(
        _make_head_kernel(ho, hh2, 1.0 / (ho * wo)),
        out_shape=jax.ShapeDtypeStruct((n, 1, o), jnp.float32),
        grid=(n // block,),
        in_specs=[
            pl.BlockSpec((block, h + 2, wp * c), lambda i: (i, 0, 0)),
            pl.BlockSpec(wband.shape, lambda i: (0, 0, 0)),
            pl.BlockSpec((1, wo * cout), lambda i: (0, 0)),
            pl.BlockSpec((wo * cout, o), lambda i: (0, 0)),
            pl.BlockSpec((1, o), lambda i: (0, 0)),
        ],
        out_specs=pl.BlockSpec((block, 1, o), lambda i: (i, 0, 0)),
        compiler_params=pltpu.CompilerParams(dimension_semantics=("parallel",)),
    )(xr, wband, brow, fcw_t, fcb)
    return out.reshape(n, o)


# -----------------------------------------------------------------------------
# Parameter init (mirrors the PyTorch __init__), BN folded into conv weights.
# -----------------------------------------------------------------------------
def init_params(key):
    ks = jax.random.split(key, 6)

    def conv_w(k, cin, cout, cin_pad=None):
        fan = 3 * 3 * cout
        w = jax.random.normal(k, (cout, cin, 3, 3), jnp.float32) * math.sqrt(2.0 / fan)
        w = jnp.transpose(w, (2, 3, 1, 0))                  # (kh, kw, cin, cout)
        if cin_pad is not None and cin_pad > cin:
            w = jnp.pad(w, ((0, 0), (0, 0), (0, cin_pad - cin), (0, 0)))
        return w.reshape(9, w.shape[2], cout)               # tap-major, channel-minor

    def bn_fold(w, cout, eps=1e-5):
        # Inference-mode BN with freshly-initialized buffers:
        # gamma=1, beta=0, running_mean=0, running_var=1.
        gamma = jnp.ones((cout,), jnp.float32)
        beta = jnp.zeros((cout,), jnp.float32)
        mean = jnp.zeros((cout,), jnp.float32)
        var = jnp.ones((cout,), jnp.float32)
        scale = gamma / jnp.sqrt(var + eps)
        bias = beta - mean * scale
        return ((w * scale[None, None, :]).astype(jnp.bfloat16),
                bias.reshape(1, cout))

    p = {}
    p["w1"], p["b1"] = bn_fold(conv_w(ks[0], 3, 32, cin_pad=8), 32)   # conv1 + bn1
    p["w2"], p["b2"] = bn_fold(conv_w(ks[1], 32, 32), 32)             # layer1
    p["w3"], p["b3"] = bn_fold(conv_w(ks[2], 32, 64), 64)             # layer2
    p["w4"], p["b4"] = bn_fold(conv_w(ks[3], 64, 128), 128)           # layer3

    bound = 1.0 / math.sqrt(128.0)                                    # nn.Linear default
    p["fc_w"] = jax.random.uniform(ks[4], (128, 10), jnp.float32, -bound, bound)
    p["fc_b"] = jax.random.uniform(ks[5], (10,), jnp.float32,
                                   -bound, bound).reshape(1, 10)
    return p


# -----------------------------------------------------------------------------
# Full forward pass (ConvNet4)
# -----------------------------------------------------------------------------
def convnet4_forward(x_nchw, p):
    x = jnp.transpose(x_nchw, (0, 2, 3, 1)).astype(jnp.float32)   # NCHW -> NHWC
    n, _, _, c = x.shape
    block = _pick_block(n)
    # Zero-pad Cin 3 -> 8 (weight rows padded to match) and go bf16 for the MXU.
    x = jnp.pad(x, ((0, 0), (0, 0), (0, 0), (0, 8 - c))).astype(jnp.bfloat16)

    x = conv_bn_relu(x, p["w1"], p["b1"], stride=2, block=block)  # 32x32x3 -> 16x16x32
    x = conv_bn_relu(x, p["w2"], p["b2"], stride=1, block=block)  # 16x16x32
    x = conv_bn_relu(x, p["w3"], p["b3"], stride=2, block=block)  # 8x8x64
    # layer3 + relu + AvgPool2d(4) + flatten + Dropout(eval=identity) + fc
    return conv_bn_relu_pool_fc(x, p["w4"], p["b4"], p["fc_w"], p["fc_b"],
                                block=block)                      # -> (N, 10)


if __name__ == "__main__":
    key = jax.random.PRNGKey(0)
    k_x, k_p = jax.random.split(key)
    # AvgPool2d(4) on the final 4x4 map implies a 32x32 spatial input.
    x = jax.random.normal(k_x, (2, 3, 32, 32), jnp.float32)
    params = init_params(k_p)

    logits = jax.jit(convnet4_forward)(x, params)
    logits = jax.block_until_ready(logits)
    assert logits.shape == (2, 10) and logits.dtype == jnp.float32
    print("KERNEL_OK")
</pallas_src>

<mosaic_0001>
module attributes {stable_mosaic.version = 11 : i64} {
  func.func @kernel(%arg0: i32, %arg1: memref<1x34x272xbf16, #tpu.memory_space<vmem>>, %arg2: memref<3x272x512xbf16, #tpu.memory_space<vmem>>, %arg3: memref<1x512xf32, #tpu.memory_space<vmem>>, %arg4: memref<1x16x512xbf16, #tpu.memory_space<vmem>>) attributes {dimension_semantics = [#tpu.dimension_semantics<parallel>], iteration_bounds = array<i64: 2>, scalar_prefetch = 0 : i64, scratch_operands = 0 : i64, tpu.core_type = #tpu.core_type<tc>, window_params = [{transform_indices = @transform_0, window_bounds = array<i64: 1, 34, 272>}, {pipeline_mode = #tpu.pipeline_mode<synchronous>, transform_indices = @transform_1, window_bounds = array<i64: 3, 272, 512>}, {pipeline_mode = #tpu.pipeline_mode<synchronous>, transform_indices = @transform_2, window_bounds = array<i64: 1, 512>}, {transform_indices = @transform_3, window_bounds = array<i64: 1, 16, 512>}]} {
    %c0 = arith.constant 0 : index
    %c0_0 = arith.constant 0 : index
    %c0_1 = arith.constant 0 : index
    %0 = vector.load %arg1[%c0, %c0_0, %c0_1] : memref<1x34x272xbf16, #tpu.memory_space<vmem>>, vector<1x16x272xbf16>
    %1 = vector.shape_cast %0 : vector<1x16x272xbf16> to vector<16x272xbf16>
    %c0_2 = arith.constant 0 : index
    %c0_3 = arith.constant 0 : index
    %c0_4 = arith.constant 0 : index
    %2 = vector.load %arg2[%c0_2, %c0_3, %c0_4] : memref<3x272x512xbf16, #tpu.memory_space<vmem>>, vector<1x272x512xbf16>
    %3 = vector.shape_cast %2 : vector<1x272x512xbf16> to vector<272x512xbf16>
    %cst = arith.constant dense<0.000000e+00> : vector<16x512xf32>
    %4 = tpu.matmul %1, %3, %cst {dimension_numbers = #tpu.dot_dimension_numbers<[1], [0], [0], [1], [0, 0, 1, 1], [], []>} : vector<16x272xbf16>, vector<272x512xbf16>, vector<16x512xf32> -> vector<16x512xf32>
    %c0_5 = arith.constant 0 : index
    %c17 = arith.constant 17 : index
    %c0_6 = arith.constant 0 : index
    %5 = vector.load %arg1[%c0_5, %c17, %c0_6] : memref<1x34x272xbf16, #tpu.memory_space<vmem>>, vector<1x16x272xbf16>
    %6 = vector.shape_cast %5 : vector<1x16x272xbf16> to vector<16x272xbf16>
    %c1 = arith.constant 1 : index
    %c0_7 = arith.constant 0 : index
    %c0_8 = arith.constant 0 : index
    %7 = vector.load %arg2[%c1, %c0_7, %c0_8] : memref<3x272x512xbf16, #tpu.memory_space<vmem>>, vector<1x272x512xbf16>
    %8 = vector.shape_cast %7 : vector<1x272x512xbf16> to vector<272x512xbf16>
    %cst_9 = arith.constant dense<0.000000e+00> : vector<16x512xf32>
    %9 = tpu.matmul %6, %8, %cst_9 {dimension_numbers = #tpu.dot_dimension_numbers<[1], [0], [0], [1], [0, 0, 1, 1], [], []>} : vector<16x272xbf16>, vector<272x512xbf16>, vector<16x512xf32> -> vector<16x512xf32>
    %10 = arith.addf %4, %9 : vector<16x512xf32>
    %c0_10 = arith.constant 0 : index
    %c1_11 = arith.constant 1 : index
    %c0_12 = arith.constant 0 : index
    %11 = vector.load %arg1[%c0_10, %c1_11, %c0_12] : memref<1x34x272xbf16, #tpu.memory_space<vmem>>, vector<1x16x272xbf16>
    %12 = vector.shape_cast %11 : vector<1x16x272xbf16> to vector<16x272xbf16>
    %c2 = arith.constant 2 : index
    %c0_13 = arith.constant 0 : index
    %c0_14 = arith.constant 0 : index
    %13 = vector.load %arg2[%c2, %c0_13, %c0_14] : memref<3x272x512xbf16, #tpu.memory_space<vmem>>, vector<1x272x512xbf16>
    %14 = vector.shape_cast %13 : vector<1x272x512xbf16> to vector<272x512xbf16>
    %cst_15 = arith.constant dense<0.000000e+00> : vector<16x512xf32>
    %15 = tpu.matmul %12, %14, %cst_15 {dimension_numbers = #tpu.dot_dimension_numbers<[1], [0], [0], [1], [0, 0, 1, 1], [], []>} : vector<16x272xbf16>, vector<272x512xbf16>, vector<16x512xf32> -> vector<16x512xf32>
    %16 = arith.addf %10, %15 : vector<16x512xf32>
    %c0_16 = arith.constant 0 : index
    %c0_17 = arith.constant 0 : index
    %17 = vector.load %arg3[%c0_16, %c0_17] : memref<1x512xf32, #tpu.memory_space<vmem>>, vector<1x512xf32>
    %18 = vector.broadcast %17 : vector<1x512xf32> to vector<16x512xf32>
    %19 = arith.addf %16, %18 : vector<16x512xf32>
    %cst_18 = arith.constant 0.000000e+00 : f32
    %20 = vector.broadcast %cst_18 : f32 to vector<16x512xf32>
    %21 = arith.maximumf %19, %20 : vector<16x512xf32>
    %22 = arith.truncf %21 : vector<16x512xf32> to vector<16x512xbf16>
    %c0_19 = arith.constant 0 : index
    %c0_20 = arith.constant 0 : index
    %c0_21 = arith.constant 0 : index
    %23 = vector.load %arg4[%c0_19, %c0_20, %c0_21] : memref<1x16x512xbf16, #tpu.memory_space<vmem>>, vector<1x16x512xbf16>
    %24 = vector.shape_cast %23 : vector<1x16x512xbf16> to vector<16x512xbf16>
    %25 = vector.shape_cast %22 : vector<16x512xbf16> to vector<1x16x512xbf16>
    tpu.vector_store %arg4[%c0_19, %c0_20, %c0_21], %25 {strides = array<i32>} : memref<1x16x512xbf16, #tpu.memory_space<vmem>>, vector<1x16x512xbf16>,
    return
  }
  func.func @transform_0(%arg0: i32) -> (i32, i32, i32) {
    %c0_i32 = arith.constant 0 : i32
    %c0_i32_0 = arith.constant 0 : i32
    %c0_i32_1 = arith.constant 0 : i32
    return %arg0, %c0_i32, %c0_i32_0 : i32, i32, i32
  }
  func.func @transform_1(%arg0: i32) -> (i32, i32, i32) {
    %c0_i32 = arith.constant 0 : i32
    %c0_i32_0 = arith.constant 0 : i32
    %c0_i32_1 = arith.constant 0 : i32
    %c0_i32_2 = arith.constant 0 : i32
    return %c0_i32, %c0_i32_0, %c0_i32_1 : i32, i32, i32
  }
  func.func @transform_2(%arg0: i32) -> (i32, i32) {
    %c0_i32 = arith.constant 0 : i32
    %c0_i32_0 = arith.constant 0 : i32
    %c0_i32_1 = arith.constant 0 : i32
    return %c0_i32, %c0_i32_0 : i32, i32
  }
  func.func @transform_3(%arg0: i32) -> (i32, i32, i32) {
    %c0_i32 = arith.constant 0 : i32
    %c0_i32_0 = arith.constant 0 : i32
    %c0_i32_1 = arith.constant 0 : i32
    return %arg0, %c0_i32, %c0_i32_0 : i32, i32, i32
  }
}

module attributes {stable_mosaic.version = 11 : i64} {
  func.func @kernel(%arg0: i32, %arg1: memref<1x18x576xbf16, #tpu.memory_space<vmem>>, %arg2: memref<3x576x512xbf16, #tpu.memory_space<vmem>>, %arg3: memref<1x512xf32, #tpu.memory_space<vmem>>, %arg4: memref<1x16x512xbf16, #tpu.memory_space<vmem>>) attributes {dimension_semantics = [#tpu.dimension_semantics<parallel>], iteration_bounds = array<i64: 2>, scalar_prefetch = 0 : i64, scratch_operands = 0 : i64, tpu.core_type = #tpu.core_type<tc>, window_params = [{transform_indices = @transform_0, window_bounds = array<i64: 1, 18, 576>}, {pipeline_mode = #tpu.pipeline_mode<synchronous>, transform_indices = @transform_1, window_bounds = array<i64: 3, 576, 512>}, {pipeline_mode = #tpu.pipeline_mode<synchronous>, transform_indices = @transform_2, window_bounds = array<i64: 1, 512>}, {transform_indices = @transform_3, window_bounds = array<i64: 1, 16, 512>}]} {
    %c0 = arith.constant 0 : index
    %c0_0 = arith.constant 0 : index
    %c0_1 = arith.constant 0 : index
    %0 = vector.load %arg1[%c0, %c0_0, %c0_1] : memref<1x18x576xbf16, #tpu.memory_space<vmem>>, vector<1x16x576xbf16>
    %1 = vector.shape_cast %0 : vector<1x16x576xbf16> to vector<16x576xbf16>
    %c0_2 = arith.constant 0 : index
    %c0_3 = arith.constant 0 : index
    %c0_4 = arith.constant 0 : index
    %2 = vector.load %arg2[%c0_2, %c0_3, %c0_4] : memref<3x576x512xbf16, #tpu.memory_space<vmem>>, vector<1x576x512xbf16>
    %3 = vector.shape_cast %2 : vector<1x576x512xbf16> to vector<576x512xbf16>
    %cst = arith.constant dense<0.000000e+00> : vector<16x512xf32>
    %4 = tpu.matmul %1, %3, %cst {dimension_numbers = #tpu.dot_dimension_numbers<[1], [0], [0], [1], [0, 0, 1, 1], [], []>} : vector<16x576xbf16>, vector<576x512xbf16>, vector<16x512xf32> -> vector<16x512xf32>
    %c0_5 = arith.constant 0 : index
    %c1 = arith.constant 1 : index
    %c0_6 = arith.constant 0 : index
    %5 = vector.load %arg1[%c0_5, %c1, %c0_6] : memref<1x18x576xbf16, #tpu.memory_space<vmem>>, vector<1x16x576xbf16>
    %6 = vector.shape_cast %5 : vector<1x16x576xbf16> to vector<16x576xbf16>
    %c1_7 = arith.constant 1 : index
    %c0_8 = arith.constant 0 : index
    %c0_9 = arith.constant 0 : index
    %7 = vector.load %arg2[%c1_7, %c0_8, %c0_9] : memref<3x576x512xbf16, #tpu.memory_space<vmem>>, vector<1x576x512xbf16>
    %8 = vector.shape_cast %7 : vector<1x576x512xbf16> to vector<576x512xbf16>
    %cst_10 = arith.constant dense<0.000000e+00> : vector<16x512xf32>
    %9 = tpu.matmul %6, %8, %cst_10 {dimension_numbers = #tpu.dot_dimension_numbers<[1], [0], [0], [1], [0, 0, 1, 1], [], []>} : vector<16x576xbf16>, vector<576x512xbf16>, vector<16x512xf32> -> vector<16x512xf32>
    %10 = arith.addf %4, %9 : vector<16x512xf32>
    %c0_11 = arith.constant 0 : index
    %c2 = arith.constant 2 : index
    %c0_12 = arith.constant 0 : index
    %11 = vector.load %arg1[%c0_11, %c2, %c0_12] : memref<1x18x576xbf16, #tpu.memory_space<vmem>>, vector<1x16x576xbf16>
    %12 = vector.shape_cast %11 : vector<1x16x576xbf16> to vector<16x576xbf16>
    %c2_13 = arith.constant 2 : index
    %c0_14 = arith.constant 0 : index
    %c0_15 = arith.constant 0 : index
    %13 = vector.load %arg2[%c2_13, %c0_14, %c0_15] : memref<3x576x512xbf16, #tpu.memory_space<vmem>>, vector<1x576x512xbf16>
    %14 = vector.shape_cast %13 : vector<1x576x512xbf16> to vector<576x512xbf16>
    %cst_16 = arith.constant dense<0.000000e+00> : vector<16x512xf32>
    %15 = tpu.matmul %12, %14, %cst_16 {dimension_numbers = #tpu.dot_dimension_numbers<[1], [0], [0], [1], [0, 0, 1, 1], [], []>} : vector<16x576xbf16>, vector<576x512xbf16>, vector<16x512xf32> -> vector<16x512xf32>
    %16 = arith.addf %10, %15 : vector<16x512xf32>
    %c0_17 = arith.constant 0 : index
    %c0_18 = arith.constant 0 : index
    %17 = vector.load %arg3[%c0_17, %c0_18] : memref<1x512xf32, #tpu.memory_space<vmem>>, vector<1x512xf32>
    %18 = vector.broadcast %17 : vector<1x512xf32> to vector<16x512xf32>
    %19 = arith.addf %16, %18 : vector<16x512xf32>
    %cst_19 = arith.constant 0.000000e+00 : f32
    %20 = vector.broadcast %cst_19 : f32 to vector<16x512xf32>
    %21 = arith.maximumf %19, %20 : vector<16x512xf32>
    %22 = arith.truncf %21 : vector<16x512xf32> to vector<16x512xbf16>
    %c0_20 = arith.constant 0 : index
    %c0_21 = arith.constant 0 : index
    %c0_22 = arith.constant 0 : index
    %23 = vector.load %arg4[%c0_20, %c0_21, %c0_22] : memref<1x16x512xbf16, #tpu.memory_space<vmem>>, vector<1x16x512xbf16>
    %24 = vector.shape_cast %23 : vector<1x16x512xbf16> to vector<16x512xbf16>
    %25 = vector.shape_cast %22 : vector<16x512xbf16> to vector<1x16x512xbf16>
    tpu.vector_store %arg4[%c0_20, %c0_21, %c0_22], %25 {strides = array<i32>} : memref<1x16x512xbf16, #tpu.memory_space<vmem>>, vector<1x16x512xbf16>,
    return
  }
  func.func @transform_0(%arg0: i32) -> (i32, i32, i32) {
    %c0_i32 = arith.constant 0 : i32
    %c0_i32_0 = arith.constant 0 : i32
    %c0_i32_1 = arith.constant 0 : i32
    return %arg0, %c0_i32, %c0_i32_0 : i32, i32, i32
  }
  func.func @transform_1(%arg0: i32) -> (i32, i32, i32) {
    %c0_i32 = arith.constant 0 : i32
    %c0_i32_0 = arith.constant 0 : i32
    %c0_i32_1 = arith.constant 0 : i32
    %c0_i32_2 = arith.constant 0 : i32
    return %c0_i32, %c0_i32_0, %c0_i32_1 : i32, i32, i32
  }
  func.func @transform_2(%arg0: i32) -> (i32, i32) {
    %c0_i32 = arith.constant 0 : i32
    %c0_i32_0 = arith.constant 0 : i32
    %c0_i32_1 = arith.constant 0 : i32
    return %c0_i32, %c0_i32_0 : i32, i32
  }
  func.func @transform_3(%arg0: i32) -> (i32, i32, i32) {
    %c0_i32 = arith.constant 0 : i32
    %c0_i32_0 = arith.constant 0 : i32
    %c0_i32_1 = arith.constant 0 : i32
    return %arg0, %c0_i32, %c0_i32_0 : i32, i32, i32
  }
}

module attributes {stable_mosaic.version = 11 : i64} {
  func.func @kernel(%arg0: i32, %arg1: memref<1x18x576xbf16, #tpu.memory_space<vmem>>, %arg2: memref<3x576x512xbf16, #tpu.memory_space<vmem>>, %arg3: memref<1x512xf32, #tpu.memory_space<vmem>>, %arg4: memref<1x8x512xbf16, #tpu.memory_space<vmem>>) attributes {dimension_semantics = [#tpu.dimension_semantics<parallel>], iteration_bounds = array<i64: 2>, scalar_prefetch = 0 : i64, scratch_operands = 0 : i64, tpu.core_type = #tpu.core_type<tc>, window_params = [{transform_indices = @transform_0, window_bounds = array<i64: 1, 18, 576>}, {pipeline_mode = #tpu.pipeline_mode<synchronous>, transform_indices = @transform_1, window_bounds = array<i64: 3, 576, 512>}, {pipeline_mode = #tpu.pipeline_mode<synchronous>, transform_indices = @transform_2, window_bounds = array<i64: 1, 512>}, {transform_indices = @transform_3, window_bounds = array<i64: 1, 8, 512>}]} {
    %c0 = arith.constant 0 : index
    %c0_0 = arith.constant 0 : index
    %c0_1 = arith.constant 0 : index
    %0 = vector.load %arg1[%c0, %c0_0, %c0_1] : memref<1x18x576xbf16, #tpu.memory_space<vmem>>, vector<1x8x576xbf16>
    %1 = vector.shape_cast %0 : vector<1x8x576xbf16> to vector<8x576xbf16>
    %c0_2 = arith.constant 0 : index
    %c0_3 = arith.constant 0 : index
    %c0_4 = arith.constant 0 : index
    %2 = vector.load %arg2[%c0_2, %c0_3, %c0_4] : memref<3x576x512xbf16, #tpu.memory_space<vmem>>, vector<1x576x512xbf16>
    %3 = vector.shape_cast %2 : vector<1x576x512xbf16> to vector<576x512xbf16>
    %cst = arith.constant dense<0.000000e+00> : vector<8x512xf32>
    %4 = tpu.matmul %1, %3, %cst {dimension_numbers = #tpu.dot_dimension_numbers<[1], [0], [0], [1], [0, 0, 1, 1], [], []>} : vector<8x576xbf16>, vector<576x512xbf16>, vector<8x512xf32> -> vector<8x512xf32>
    %c0_5 = arith.constant 0 : index
    %c9 = arith.constant 9 : index
    %c0_6 = arith.constant 0 : index
    %5 = vector.load %arg1[%c0_5, %c9, %c0_6] : memref<1x18x576xbf16, #tpu.memory_space<vmem>>, vector<1x8x576xbf16>
    %6 = vector.shape_cast %5 : vector<1x8x576xbf16> to vector<8x576xbf16>
    %c1 = arith.constant 1 : index
    %c0_7 = arith.constant 0 : index
    %c0_8 = arith.constant 0 : index
    %7 = vector.load %arg2[%c1, %c0_7, %c0_8] : memref<3x576x512xbf16, #tpu.memory_space<vmem>>, vector<1x576x512xbf16>
    %8 = vector.shape_cast %7 : vector<1x576x512xbf16> to vector<576x512xbf16>
    %cst_9 = arith.constant dense<0.000000e+00> : vector<8x512xf32>
    %9 = tpu.matmul %6, %8, %cst_9 {dimension_numbers = #tpu.dot_dimension_numbers<[1], [0], [0], [1], [0, 0, 1, 1], [], []>} : vector<8x576xbf16>, vector<576x512xbf16>, vector<8x512xf32> -> vector<8x512xf32>
    %10 = arith.addf %4, %9 : vector<8x512xf32>
    %c0_10 = arith.constant 0 : index
    %c1_11 = arith.constant 1 : index
    %c0_12 = arith.constant 0 : index
    %11 = vector.load %arg1[%c0_10, %c1_11, %c0_12] : memref<1x18x576xbf16, #tpu.memory_space<vmem>>, vector<1x8x576xbf16>
    %12 = vector.shape_cast %11 : vector<1x8x576xbf16> to vector<8x576xbf16>
    %c2 = arith.constant 2 : index
    %c0_13 = arith.constant 0 : index
    %c0_14 = arith.constant 0 : index
    %13 = vector.load %arg2[%c2, %c0_13, %c0_14] : memref<3x576x512xbf16, #tpu.memory_space<vmem>>, vector<1x576x512xbf16>
    %14 = vector.shape_cast %13 : vector<1x576x512xbf16> to vector<576x512xbf16>
    %cst_15 = arith.constant dense<0.000000e+00> : vector<8x512xf32>
    %15 = tpu.matmul %12, %14, %cst_15 {dimension_numbers = #tpu.dot_dimension_numbers<[1], [0], [0], [1], [0, 0, 1, 1], [], []>} : vector<8x576xbf16>, vector<576x512xbf16>, vector<8x512xf32> -> vector<8x512xf32>
    %16 = arith.addf %10, %15 : vector<8x512xf32>
    %c0_16 = arith.constant 0 : index
    %c0_17 = arith.constant 0 : index
    %17 = vector.load %arg3[%c0_16, %c0_17] : memref<1x512xf32, #tpu.memory_space<vmem>>, vector<1x512xf32>
    %18 = vector.broadcast %17 : vector<1x512xf32> to vector<8x512xf32>
    %19 = arith.addf %16, %18 : vector<8x512xf32>
    %cst_18 = arith.constant 0.000000e+00 : f32
    %20 = vector.broadcast %cst_18 : f32 to vector<8x512xf32>
    %21 = arith.maximumf %19, %20 : vector<8x512xf32>
    %22 = arith.truncf %21 : vector<8x512xf32> to vector<8x512xbf16>
    %c0_19 = arith.constant 0 : index
    %c0_20 = arith.constant 0 : index
    %c0_21 = arith.constant 0 : index
    %23 = vector.load %arg4[%c0_19, %c0_20, %c0_21] : memref<1x8x512xbf16, #tpu.memory_space<vmem>>, vector<1x8x512xbf16>
    %24 = vector.shape_cast %23 : vector<1x8x512xbf16> to vector<8x512xbf16>
    %25 = vector.shape_cast %22 : vector<8x512xbf16> to vector<1x8x512xbf16>
    tpu.vector_store %arg4[%c0_19, %c0_20, %c0_21], %25 {strides = array<i32>} : memref<1x8x512xbf16, #tpu.memory_space<vmem>>, vector<1x8x512xbf16>,
    return
  }
  func.func @transform_0(%arg0: i32) -> (i32, i32, i32) {
    %c0_i32 = arith.constant 0 : i32
    %c0_i32_0 = arith.constant 0 : i32
    %c0_i32_1 = arith.constant 0 : i32
    return %arg0, %c0_i32, %c0_i32_0 : i32, i32, i32
  }
  func.func @transform_1(%arg0: i32) -> (i32, i32, i32) {
    %c0_i32 = arith.constant 0 : i32
    %c0_i32_0 = arith.constant 0 : i32
    %c0_i32_1 = arith.constant 0 : i32
    %c0_i32_2 = arith.constant 0 : i32
    return %c0_i32, %c0_i32_0, %c0_i32_1 : i32, i32, i32
  }
  func.func @transform_2(%arg0: i32) -> (i32, i32) {
    %c0_i32 = arith.constant 0 : i32
    %c0_i32_0 = arith.constant 0 : i32
    %c0_i32_1 = arith.constant 0 : i32
    return %c0_i32, %c0_i32_0 : i32, i32
  }
  func.func @transform_3(%arg0: i32) -> (i32, i32, i32) {
    %c0_i32 = arith.constant 0 : i32
    %c0_i32_0 = arith.constant 0 : i32
    %c0_i32_1 = arith.constant 0 : i32
    return %arg0, %c0_i32, %c0_i32_0 : i32, i32, i32
  }
}

module attributes {stable_mosaic.version = 11 : i64} {
  func.func @kernel(%arg0: i32, %arg1: memref<1x10x640xbf16, #tpu.memory_space<vmem>>, %arg2: memref<3x640x512xbf16, #tpu.memory_space<vmem>>, %arg3: memref<1x512xf32, #tpu.memory_space<vmem>>, %arg4: memref<512x10xf32, #tpu.memory_space<vmem>>, %arg5: memref<1x10xf32, #tpu.memory_space<vmem>>, %arg6: memref<1x1x10xf32, #tpu.memory_space<vmem>>) attributes {dimension_semantics = [#tpu.dimension_semantics<parallel>], iteration_bounds = array<i64: 2>, scalar_prefetch = 0 : i64, scratch_operands = 0 : i64, tpu.core_type = #tpu.core_type<tc>, window_params = [{transform_indices = @transform_0, window_bounds = array<i64: 1, 10, 640>}, {pipeline_mode = #tpu.pipeline_mode<synchronous>, transform_indices = @transform_1, window_bounds = array<i64: 3, 640, 512>}, {pipeline_mode = #tpu.pipeline_mode<synchronous>, transform_indices = @transform_2, window_bounds = array<i64: 1, 512>}, {pipeline_mode = #tpu.pipeline_mode<synchronous>, transform_indices = @transform_3, window_bounds = array<i64: 512, 10>}, {pipeline_mode = #tpu.pipeline_mode<synchronous>, transform_indices = @transform_4, window_bounds = array<i64: 1, 10>}, {transform_indices = @transform_5, window_bounds = array<i64: 1, 1, 10>}]} {
    %c0 = arith.constant 0 : index
    %c0_0 = arith.constant 0 : index
    %c0_1 = arith.constant 0 : index
    %0 = vector.load %arg1[%c0, %c0_0, %c0_1] : memref<1x10x640xbf16, #tpu.memory_space<vmem>>, vector<1x4x640xbf16>
    %1 = vector.shape_cast %0 : vector<1x4x640xbf16> to vector<4x640xbf16>
    %c0_2 = arith.constant 0 : index
    %c0_3 = arith.constant 0 : index
    %c0_4 = arith.constant 0 : index
    %2 = vector.load %arg2[%c0_2, %c0_3, %c0_4] : memref<3x640x512xbf16, #tpu.memory_space<vmem>>, vector<1x640x512xbf16>
    %3 = vector.shape_cast %2 : vector<1x640x512xbf16> to vector<640x512xbf16>
    %cst = arith.constant dense<0.000000e+00> : vector<4x512xf32>
    %4 = tpu.matmul %1, %3, %cst {dimension_numbers = #tpu.dot_dimension_numbers<[1], [0], [0], [1], [0, 0, 1, 1], [], []>} : vector<4x640xbf16>, vector<640x512xbf16>, vector<4x512xf32> -> vector<4x512xf32>
    %c0_5 = arith.constant 0 : index
    %c5 = arith.constant 5 : index
    %c0_6 = arith.constant 0 : index
    %5 = vector.load %arg1[%c0_5, %c5, %c0_6] : memref<1x10x640xbf16, #tpu.memory_space<vmem>>, vector<1x4x640xbf16>
    %6 = vector.shape_cast %5 : vector<1x4x640xbf16> to vector<4x640xbf16>
    %c1 = arith.constant 1 : index
    %c0_7 = arith.constant 0 : index
    %c0_8 = arith.constant 0 : index
    %7 = vector.load %arg2[%c1, %c0_7, %c0_8] : memref<3x640x512xbf16, #tpu.memory_space<vmem>>, vector<1x640x512xbf16>
    %8 = vector.shape_cast %7 : vector<1x640x512xbf16> to vector<640x512xbf16>
    %cst_9 = arith.constant dense<0.000000e+00> : vector<4x512xf32>
    %9 = tpu.matmul %6, %8, %cst_9 {dimension_numbers = #tpu.dot_dimension_numbers<[1], [0], [0], [1], [0, 0, 1, 1], [], []>} : vector<4x640xbf16>, vector<640x512xbf16>, vector<4x512xf32> -> vector<4x512xf32>
    %10 = arith.addf %4, %9 : vector<4x512xf32>
    %c0_10 = arith.constant 0 : index
    %c1_11 = arith.constant 1 : index
    %c0_12 = arith.constant 0 : index
    %11 = vector.load %arg1[%c0_10, %c1_11, %c0_12] : memref<1x10x640xbf16, #tpu.memory_space<vmem>>, vector<1x4x640xbf16>
    %12 = vector.shape_cast %11 : vector<1x4x640xbf16> to vector<4x640xbf16>
    %c2 = arith.constant 2 : index
    %c0_13 = arith.constant 0 : index
    %c0_14 = arith.constant 0 : index
    %13 = vector.load %arg2[%c2, %c0_13, %c0_14] : memref<3x640x512xbf16, #tpu.memory_space<vmem>>, vector<1x640x512xbf16>
    %14 = vector.shape_cast %13 : vector<1x640x512xbf16> to vector<640x512xbf16>
    %cst_15 = arith.constant dense<0.000000e+00> : vector<4x512xf32>
    %15 = tpu.matmul %12, %14, %cst_15 {dimension_numbers = #tpu.dot_dimension_numbers<[1], [0], [0], [1], [0, 0, 1, 1], [], []>} : vector<4x640xbf16>, vector<640x512xbf16>, vector<4x512xf32> -> vector<4x512xf32>
    %16 = arith.addf %10, %15 : vector<4x512xf32>
    %c0_16 = arith.constant 0 : index
    %c0_17 = arith.constant 0 : index
    %17 = vector.load %arg3[%c0_16, %c0_17] : memref<1x512xf32, #tpu.memory_space<vmem>>, vector<1x512xf32>
    %18 = vector.broadcast %17 : vector<1x512xf32> to vector<4x512xf32>
    %19 = arith.addf %16, %18 : vector<4x512xf32>
    %cst_18 = arith.constant 0.000000e+00 : f32
    %20 = vector.broadcast %cst_18 : f32 to vector<4x512xf32>
    %21 = arith.maximumf %19, %20 : vector<4x512xf32>
    %c0_19 = arith.constant 0 : index
    %c0_20 = arith.constant 0 : index
    %22 = vector.load %arg4[%c0_19, %c0_20] : memref<512x10xf32, #tpu.memory_space<vmem>>, vector<512x10xf32>
    %cst_21 = arith.constant dense<0.000000e+00> : vector<4x10xf32>
    %23 = tpu.matmul %21, %22, %cst_21 {dimension_numbers = #tpu.dot_dimension_numbers<[1], [0], [0], [1], [0, 0, 1, 1], [], []>} : vector<4x512xf32>, vector<512x10xf32>, vector<4x10xf32> -> vector<4x10xf32>
    %cst_22 = arith.constant dense<0.000000e+00> : vector<10xf32>
    %24 = vector.multi_reduction <add>, %23, %cst_22 [0] : vector<4x10xf32> to vector<10xf32>
    %25 = vector.shape_cast %24 : vector<10xf32> to vector<1x10xf32>
    %cst_23 = arith.constant 6.250000e-02 : f32
    %26 = vector.broadcast %cst_23 : f32 to vector<1x10xf32>
    %27 = arith.mulf %25, %26 : vector<1x10xf32>
    %c0_24 = arith.constant 0 : index
    %c0_25 = arith.constant 0 : index
    %28 = vector.load %arg5[%c0_24, %c0_25] : memref<1x10xf32, #tpu.memory_space<vmem>>, vector<1x10xf32>
    %29 = arith.addf %27, %28 : vector<1x10xf32>
    %c0_26 = arith.constant 0 : index
    %c0_27 = arith.constant 0 : index
    %c0_28 = arith.constant 0 : index
    %30 = vector.load %arg6[%c0_26, %c0_27, %c0_28] : memref<1x1x10xf32, #tpu.memory_space<vmem>>, vector<1x1x10xf32>
    %31 = vector.shape_cast %30 : vector<1x1x10xf32> to vector<1x10xf32>
    %32 = vector.shape_cast %29 : vector<1x10xf32> to vector<1x1x10xf32>
    tpu.vector_store %arg6[%c0_26, %c0_27, %c0_28], %32 {strides = array<i32>} : memref<1x1x10xf32, #tpu.memory_space<vmem>>, vector<1x1x10xf32>,
    return
  }
  func.func @transform_0(%arg0: i32) -> (i32, i32, i32) {
    %c0_i32 = arith.constant 0 : i32
    %c0_i32_0 = arith.constant 0 : i32
    %c0_i32_1 = arith.constant 0 : i32
    return %arg0, %c0_i32, %c0_i32_0 : i32, i32, i32
  }
  func.func @transform_1(%arg0: i32) -> (i32, i32, i32) {
    %c0_i32 = arith.constant 0 : i32
    %c0_i32_0 = arith.constant 0 : i32
    %c0_i32_1 = arith.constant 0 : i32
    %c0_i32_2 = arith.constant 0 : i32
    return %c0_i32, %c0_i32_0, %c0_i32_1 : i32, i32, i32
  }
  func.func @transform_2(%arg0: i32) -> (i32, i32) {
    %c0_i32 = arith.constant 0 : i32
    %c0_i32_0 = arith.constant 0 : i32
    %c0_i32_1 = arith.constant 0 : i32
    return %c0_i32, %c0_i32_0 : i32, i32
  }
  func.func @transform_3(%arg0: i32) -> (i32, i32) {
    %c0_i32 = arith.constant 0 : i32
    %c0_i32_0 = arith.constant 0 : i32
    %c0_i32_1 = arith.constant 0 : i32
    return %c0_i32, %c0_i32_0 : i32, i32
  }
  func.func @transform_4(%arg0: i32) -> (i32, i32) {
    %c0_i32 = arith.constant 0 : i32
    %c0_i32_0 = arith.constant 0 : i32
    %c0_i32_1 = arith.constant 0 : i32
    return %c0_i32, %c0_i32_0 : i32, i32
  }
  func.func @transform_5(%arg0: i32) -> (i32, i32, i32) {
    %c0_i32 = arith.constant 0 : i32
    %c0_i32_0 = arith.constant 0 : i32
    %c0_i32_1 = arith.constant 0 : i32
    return %arg0, %c0_i32, %c0_i32_0 : i32, i32, i32
  }
}

</mosaic_0001>

<llo_original>
// kernel: convnet4_forward.4
$region0: #{convnet4_forward.4}
  #allocation0 [shape = 'u32[]', space=smem, size = 0x4, offset = 0x4, fixed_abs, tag = 'smem constant byte address 0x4 - core index']
  #allocation1 [shape = 'u32[144,128]{1,0:T(1,128)}', space=vmem, size = 0x12000, scoped, tag = 'internal scratch']
  %s0 = inlined_call_operand.vmem [shape: bf16[2,34,272], index: 0, kind: input, shape index: {}]
  %s1 = inlined_call_operand.vmem [shape: bf16[3,272,512], index: 1, kind: input, shape index: {}]
  %s2 = inlined_call_operand.vmem [shape: f32[1,512], index: 2, kind: input, shape index: {}]
  %s3 = inlined_call_operand.vmem [shape: bf16[2,16,512], index: 3, kind: output, shape index: {}]
  %s4 = sld [smem:[#allocation0]]
  $region45: #{convnet4_forward.4} parent=0
    _
  %s6 = ssub.s32 1, %s4
  %s7 = scalar_select 0, %s6, %s4
  loop: start=0, step=1, limit=4
  $region2: #{convnet4_forward.4} parent=0 // loop_pre_header
    _
  $region3: #{convnet4_forward.4} parent=0 // loop_header
    %s9 = sphi 0, %s13
    %p10 = scmp.ge.s32.totalorder %s9, 4
    %s19 = sphi 0, %s21
    %s22 = sphi 0, %s19
    %s23 = sphi 0, %s22
    %s39 = sphi 0, %s23
    %s43 = sphi 0, %s43
    %s45 = sphi 0, %s43
    %s46 = sphi 0, %s45
    %s60 = sphi 0, %s46
    %s64 = sphi 0, %s64
    %s66 = sphi 0, %s64
    %s67 = sphi 0, %s66
    %s81 = sphi 0, %s67
    %s87 = sphi 0, %s89
    %s90 = sphi 0, %s87
    %s91 = sphi 0, %s90
    %s107 = sphi 0, %s91
  $region4: #{convnet4_forward.4} parent=0 // loop_header_branch
    %12 = sbr.rel (%p10) target = $region8
  $region5: #{convnet4_forward.4} parent=0 // loop_body
    %s14 = ssub.s32 %s9, 1
    %s15 = ssub.s32 %s9, 2
    %s16 = sadd.s32 %s9, 1
    %s17 = ssub.s32 %s9, %s16
    %p18 = scmp.eq.s32.totalorder %s17, 0
    %s20 = sadd.s32 %s19, 1
    %s21 = scalar_select %p18, %s19, %s20
    %p24 = pneg %p18
    %p25 = scmp.eq.s32.totalorder %s9, 1
    %p26 = por %p24, %p25
    %p27 = scmp.ne.s32.totalorder %s19, %s22
    %p28 = scmp.eq.s32.totalorder %s9, 0
    %p29 = por %p27, %p28
    %p30 = scmp.ne.s32.totalorder %s19, %s22
    %p31 = scmp.eq.s32.totalorder %s14, 1
    %p32 = por %p30, %p31
    %p33 = scmp.ne.s32.totalorder %s22, %s23
    %p34 = scmp.eq.s32.totalorder %s14, 0
    %p35 = por %p33, %p34
    %p36 = scmp.ne.s32.totalorder %s22, %s23
    %p37 = scmp.eq.s32.totalorder %s15, 1
    %p38 = por %p36, %p37
    %p40 = scmp.ne.s32.totalorder %s23, %s39
    %p41 = scmp.eq.s32.totalorder %s15, 0
    %p42 = por %p40, %p41
    %s44 = sadd.s32 %s43, 1
    %p47 = scmp.eq.s32.totalorder %s9, 1
    %p48 = scmp.ne.s32.totalorder %s43, %s45
    %p49 = scmp.eq.s32.totalorder %s9, 0
    %p50 = por %p48, %p49
    %p51 = scmp.ne.s32.totalorder %s43, %s45
    %p52 = scmp.eq.s32.totalorder %s14, 1
    %p53 = por %p51, %p52
    %p54 = scmp.ne.s32.totalorder %s45, %s46
    %p55 = scmp.eq.s32.totalorder %s14, 0
    %p56 = por %p54, %p55
    %p57 = scmp.ne.s32.totalorder %s45, %s46
    %p58 = scmp.eq.s32.totalorder %s15, 1
    %p59 = por %p57, %p58
    %p61 = scmp.ne.s32.totalorder %s46, %s60
    %p62 = scmp.eq.s32.totalorder %s15, 0
    %p63 = por %p61, %p62
    %s65 = sadd.s32 %s64, 1
    %p68 = scmp.eq.s32.totalorder %s9, 1
    %p69 = scmp.ne.s32.totalorder %s64, %s66
    %p70 = scmp.eq.s32.totalorder %s9, 0
    %p71 = por %p69, %p70
    %p72 = scmp.ne.s32.totalorder %s64, %s66
    %p73 = scmp.eq.s32.totalorder %s14, 1
    %p74 = por %p72, %p73
    %p75 = scmp.ne.s32.totalorder %s66, %s67
    %p76 = scmp.eq.s32.totalorder %s14, 0
    %p77 = por %p75, %p76
    %p78 = scmp.ne.s32.totalorder %s66, %s67
    %p79 = scmp.eq.s32.totalorder %s15, 1
    %p80 = por %p78, %p79
    %p82 = scmp.ne.s32.totalorder %s67, %s81
    %p83 = scmp.eq.s32.totalorder %s15, 0
    %p84 = por %p82, %p83
    %s85 = ssub.s32 %s9, %s16
    %p86 = scmp.eq.s32.totalorder %s85, 0
    %s88 = sadd.s32 %s87, 1
    %s89 = scalar_select %p86, %s87, %s88
    %p92 = pneg %p86
    %p93 = scmp.eq.s32.totalorder %s9, 1
    %p94 = por %p92, %p93
    %p95 = scmp.ne.s32.totalorder %s87, %s90
    %p96 = scmp.eq.s32.totalorder %s9, 0
    %p97 = por %p95, %p96
    %p98 = scmp.ne.s32.totalorder %s87, %s90
    %p99 = scmp.eq.s32.totalorder %s14, 1
    %p100 = por %p98, %p99
    %p101 = scmp.ne.s32.totalorder %s90, %s91
    %p102 = scmp.eq.s32.totalorder %s14, 0
    %p103 = por %p101, %p102
    %p104 = scmp.ne.s32.totalorder %s90, %s91
    %p105 = scmp.eq.s32.totalorder %s15, 1
    %p106 = por %p104, %p105
    %p108 = scmp.ne.s32.totalorder %s91, %s107
    %p109 = scmp.eq.s32.totalorder %s15, 0
    %p110 = por %p108, %p109
    %p111 = scmp.le.s32.totalorder 1, %s9
    %p112 = scmp.lt.s32.totalorder %s9, 3
    %p113 = pnand %p111, %p112
    %p114 = pneg %p113
    // Predicated region
    $region9: #{convnet4_forward.4} parent=5 // pred_check
      _
    $region10: #{convnet4_forward.4} parent=5 // pred_check_branch
      %116 = sbr.rel (%p113) target = $region12
    $region11: #{convnet4_forward.4} parent=5 // pred_region
      %s117 = ssub.s32 %s9, 1
      // Predicated region
      $region13: #{convnet4_forward.4} parent=11 // pred_check
        %p118 = pneg %p56
      $region14: #{convnet4_forward.4} parent=11 // pred_check_branch
        %120 = sbr.rel (%p118) target = $region16
      $region15: #{convnet4_forward.4} parent=11 // pred_region
        _
      $region16: #{convnet4_forward.4} parent=11 // pred_fallthru
        _
      // Predicated region
      $region17: #{convnet4_forward.4} parent=11 // pred_check
        %p121 = pneg %p77
      $region18: #{convnet4_forward.4} parent=11 // pred_check_branch
        %123 = sbr.rel (%p121) target = $region20
      $region19: #{convnet4_forward.4} parent=11 // pred_region
        _
      $region20: #{convnet4_forward.4} parent=11 // pred_fallthru
        _
    $region12: #{convnet4_forward.4} parent=5 // pred_fallthru
      _
    %p124 = scmp.lt.s32.totalorder %s9, 2
    // Predicated region
    $region21: #{convnet4_forward.4} parent=5 // pred_check
      %p125 = pneg %p124
    $region22: #{convnet4_forward.4} parent=5 // pred_check_branch
      %127 = sbr.rel (%p125) target = $region24
    $region23: #{convnet4_forward.4} parent=5 // pred_region
      // Predicated region
      $region25: #{convnet4_forward.4} parent=23 // pred_check
        %p128 = pneg %p29
      $region26: #{convnet4_forward.4} parent=23 // pred_check_branch
        %130 = sbr.rel (%p128) target = $region28
      $region27: #{convnet4_forward.4} parent=23 // pred_region
        %p131 = scmp.lt.s32.totalorder %s9, 1
        %s132 = scalar_select %p131, %s9, 1
        %s133 = smul.addr %s132, 15
        %s134 = smul.addr %s133, 4
        %s135 = scalar_lea.vmem %s0, %s134
      $region28: #{convnet4_forward.4} parent=23 // pred_fallthru
        _
    $region24: #{convnet4_forward.4} parent=5 // pred_fallthru
      _
    %p136 = scmp.le.s32.totalorder 1, %s9
    %p137 = scmp.lt.s32.totalorder %s9, 3
    %p138 = pnand %p136, %p137
    %p139 = pneg %p138
    // Predicated region
    $region29: #{convnet4_forward.4} parent=5 // pred_check
      _
    $region30: #{convnet4_forward.4} parent=5 // pred_check_branch
      %141 = sbr.rel (%p138) target = $region32
    $region31: #{convnet4_forward.4} parent=5 // pred_region
      %s142 = ssub.s32 %s9, 1
      %p143 = scmp.lt.s32.totalorder %s14, 1
      %s144 = scalar_select %p143, %s14, 1
      %s145 = smul.addr %s144, 15
      %s146 = smul.addr %s145, 4
      %s147 = scalar_lea.vmem %s0, %s146
      %p148 = pneg %p35
      %p149 = pneg %p32
      %p150 = pneg %p56
      %p151 = pneg %p53
      %p152 = pneg %p77
      %p153 = pneg %p74
      %p154 = pneg %p103
      %p155 = pneg %p100
      %p156 = scmp.lt.s32.totalorder %s14, 1
      %s157 = scalar_select %p156, %s14, 1
      %s158 = smul.addr %s157, 8
      %s159 = smul.addr %s158, 4
      %s160 = scalar_lea.vmem %s3, %s159
      %p161 = scmp.lt.s32.totalorder %s14, 1
      %s162 = scalar_select %p161, %s14, 1
      %s163 = smul.addr %s162, 15
      %s164 = smul.addr %s163, 4
      %s165 = scalar_lea.vmem %s0, %s164
      %p166 = scmp.lt.s32.totalorder %s14, 1
      %s167 = scalar_select %p166, %s14, 1
      %s168 = smul.addr %s167, 8
      %s169 = smul.addr %s168, 4
      %s170 = scalar_lea.vmem %s3, %s169
      %v172 = vld [vmem:[%s165] sm:$0xff]
      %v173 = vld [vmem:[%s165 + $0x8] sm:$0xf]
      %v174 = vld [vmem:[%s165 + $0xc] sm:$0xff]
      %v175 = vld [vmem:[%s165 + $0x14] sm:$0xf]
      %v176 = vld [vmem:[%s1] sm:$0xff]
      %v177 = vld [vmem:[%s1 + $0x8] sm:$0xff]
      %v178 = vld [vmem:[%s1 + $0x10] sm:$0xff]
      %v179 = vld [vmem:[%s1 + $0x18] sm:$0xff]
      %v180 = vld [vmem:[%s1 + $0x20] sm:$0xff]
      %v181 = vld [vmem:[%s1 + $0x28] sm:$0xff]
      %v182 = vld [vmem:[%s1 + $0x30] sm:$0xff]
      %v183 = vld [vmem:[%s1 + $0x38] sm:$0xff]
      %v184 = vld [vmem:[%s1 + $0x40] sm:$0xff]
      %v185 = vld [vmem:[%s1 + $0x48] sm:$0xff]
      %v186 = vld [vmem:[%s1 + $0x50] sm:$0xff]
      %v187 = vld [vmem:[%s1 + $0x58] sm:$0xff]
      %v188 = vld [vmem:[%s1 + $0x60] sm:$0xff]
      %v189 = vld [vmem:[%s1 + $0x68] sm:$0xff]
      %v190 = vld [vmem:[%s1 + $0x70] sm:$0xff]
      %v191 = vld [vmem:[%s1 + $0x78] sm:$0xff]
      %v192 = vld [vmem:[%s1 + $0x80] sm:$0xff]
      %v193 = vld [vmem:[%s1 + $0x88] sm:$0xff]
      %v194 = vld [vmem:[%s1 + $0x90] sm:$0xff]
      %v195 = vld [vmem:[%s1 + $0x98] sm:$0xff]
      %v196 = vld [vmem:[%s1 + $0xa0] sm:$0xff]
      %v197 = vld [vmem:[%s1 + $0xa8] sm:$0xff]
      %v198 = vld [vmem:[%s1 + $0xb0] sm:$0xff]
      %v199 = vld [vmem:[%s1 + $0xb8] sm:$0xff]
      %v200 = vld [vmem:[%s1 + $0xc0] sm:$0xff]
      %v201 = vld [vmem:[%s1 + $0xc8] sm:$0xff]
      %v202 = vld [vmem:[%s1 + $0xd0] sm:$0xff]
      %v203 = vld [vmem:[%s1 + $0xd8] sm:$0xff]
      %v204 = vld [vmem:[%s1 + $0xe0] sm:$0xff]
      %v205 = vld [vmem:[%s1 + $0xe8] sm:$0xff]
      %v206 = vld [vmem:[%s1 + $0xf0] sm:$0xff]
      %v207 = vld [vmem:[%s1 + $0xf8] sm:$0xff]
      %v208 = vld [vmem:[%s1 + $0x100] sm:$0xff]
      %v209 = vld [vmem:[%s1 + $0x108] sm:$0xff]
      %v210 = vld [vmem:[%s1 + $0x110] sm:$0xff]
      %v211 = vld [vmem:[%s1 + $0x118] sm:$0xff]
      %v212 = vld [vmem:[%s1 + $0x120] sm:$0xff]
      %v213 = vld [vmem:[%s1 + $0x128] sm:$0xff]
      %v214 = vld [vmem:[%s1 + $0x130] sm:$0xff]
      %v215 = vld [vmem:[%s1 + $0x138] sm:$0xff]
      %v216 = vld [vmem:[%s1 + $0x140] sm:$0xff]
      %v217 = vld [vmem:[%s1 + $0x148] sm:$0xff]
      %v218 = vld [vmem:[%s1 + $0x150] sm:$0xff]
      %v219 = vld [vmem:[%s1 + $0x158] sm:$0xff]
      %v220 = vld [vmem:[%s1 + $0x160] sm:$0xff]
      %v221 = vld [vmem:[%s1 + $0x168] sm:$0xff]
      %v222 = vld [vmem:[%s1 + $0x170] sm:$0xff]
      %v223 = vld [vmem:[%s1 + $0x178] sm:$0xff]
      %v224 = vld [vmem:[%s1 + $0x180] sm:$0xff]
      %v225 = vld [vmem:[%s1 + $0x188] sm:$0xff]
      %v226 = vld [vmem:[%s1 + $0x190] sm:$0xff]
      %v227 = vld [vmem:[%s1 + $0x198] sm:$0xff]
      %v228 = vld [vmem:[%s1 + $0x1a0] sm:$0xff]
      %v229 = vld [vmem:[%s1 + $0x1a8] sm:$0xff]
      %v230 = vld [vmem:[%s1 + $0x1b0] sm:$0xff]
      %v231 = vld [vmem:[%s1 + $0x1b8] sm:$0xff]
      %v232 = vld [vmem:[%s1 + $0x1c0] sm:$0xff]
      %v233 = vld [vmem:[%s1 + $0x1c8] sm:$0xff]
      %v234 = vld [vmem:[%s1 + $0x1d0] sm:$0xff]
      %v235 = vld [vmem:[%s1 + $0x1d8] sm:$0xff]
      %v236 = vld [vmem:[%s1 + $0x1e0] sm:$0xff]
      %v237 = vld [vmem:[%s1 + $0x1e8] sm:$0xff]
      %v238 = vld [vmem:[%s1 + $0x1f0] sm:$0xff]
      %v239 = vld [vmem:[%s1 + $0x1f8] sm:$0xff]
      %v240 = vld [vmem:[%s1 + $0x200] sm:$0xff]
      %v241 = vld [vmem:[%s1 + $0x208] sm:$0xff]
      %v242 = vld [vmem:[%s1 + $0x210] sm:$0xff]
      %v243 = vld [vmem:[%s1 + $0x218] sm:$0xff]
      %v244 = vld [vmem:[%s165 + $0x18] sm:$0xff]
      %v245 = vld [vmem:[%s165 + $0x20] sm:$0xf]
      %v246 = vld [vmem:[%s165 + $0x24] sm:$0xff]
      %v247 = vld [vmem:[%s165 + $0x2c] sm:$0xf]
      %v248 = vld [vmem:[%s165 + $0x30] sm:$0x11]
      %v249 = vld [vmem:[%s165 + $0x38] sm:$0x1]
      %s250 = scalar_lea.vmem %s1, 544
      %v251 = vld [vmem:[%s250] sm:$0xff]
      %v252 = vld [vmem:[%s250 + $0x8] sm:$0xff]
      %v253 = vld [vmem:[%s250 + $0x10] sm:$0xff]
      %v254 = vld [vmem:[%s250 + $0x18] sm:$0xff]
      %v255 = vld [vmem:[%s250 + $0x20] sm:$0xff]
      %v256 = vld [vmem:[%s250 + $0x28] sm:$0xff]
      %v257 = vld [vmem:[%s250 + $0x30] sm:$0xff]
      %v258 = vld [vmem:[%s250 + $0x38] sm:$0xff]
      %v259 = vld [vmem:[%s250 + $0x40] sm:$0xff]
      %v260 = vld [vmem:[%s250 + $0x48] sm:$0xff]
      %v261 = vld [vmem:[%s250 + $0x50] sm:$0xff]
      %v262 = vld [vmem:[%s250 + $0x58] sm:$0xff]
      %v263 = vld [vmem:[%s250 + $0x60] sm:$0xff]
      %v264 = vld [vmem:[%s250 + $0x68] sm:$0xff]
      %v265 = vld [vmem:[%s250 + $0x70] sm:$0xff]
      %v266 = vld [vmem:[%s250 + $0x78] sm:$0xff]
      %v267 = vld [vmem:[%s250 + $0x80] sm:$0xff]
      %v268 = vld [vmem:[%s250 + $0x88] sm:$0xff]
      %v269 = vld [vmem:[%s250 + $0x90] sm:$0xff]
      %v270 = vld [vmem:[%s250 + $0x98] sm:$0xff]
      %v271 = vld [vmem:[%s250 + $0xa0] sm:$0xff]
      %v272 = vld [vmem:[%s250 + $0xa8] sm:$0xff]
      %v273 = vld [vmem:[%s250 + $0xb0] sm:$0xff]
      %v274 = vld [vmem:[%s250 + $0xb8] sm:$0xff]
      %v275 = vld [vmem:[%s250 + $0xc0] sm:$0xff]
      %v276 = vld [vmem:[%s250 + $0xc8] sm:$0xff]
      %v277 = vld [vmem:[%s250 + $0xd0] sm:$0xff]
      %v278 = vld [vmem:[%s250 + $0xd8] sm:$0xff]
      %v279 = vld [vmem:[%s250 + $0xe0] sm:$0xff]
      %v280 = vld [vmem:[%s250 + $0xe8] sm:$0xff]
      %v281 = vld [vmem:[%s250 + $0xf0] sm:$0xff]
      %v282 = vld [vmem:[%s250 + $0xf8] sm:$0xff]
      %v283 = vld [vmem:[%s250 + $0x100] sm:$0xff]
      %v284 = vld [vmem:[%s250 + $0x108] sm:$0xff]
      %v285 = vld [vmem:[%s250 + $0x110] sm:$0xff]
      %v286 = vld [vmem:[%s250 + $0x118] sm:$0xff]
      %v287 = vld [vmem:[%s250 + $0x120] sm:$0xff]
      %v288 = vld [vmem:[%s250 + $0x128] sm:$0xff]
      %v289 = vld [vmem:[%s250 + $0x130] sm:$0xff]
      %v290 = vld [vmem:[%s250 + $0x138] sm:$0xff]
      %v291 = vld [vmem:[%s250 + $0x140] sm:$0xff]
      %v292 = vld [vmem:[%s250 + $0x148] sm:$0xff]
      %v293 = vld [vmem:[%s250 + $0x150] sm:$0xff]
      %v294 = vld [vmem:[%s250 + $0x158] sm:$0xff]
      %v295 = vld [vmem:[%s250 + $0x160] sm:$0xff]
      %v296 = vld [vmem:[%s250 + $0x168] sm:$0xff]
      %v297 = vld [vmem:[%s250 + $0x170] sm:$0xff]
      %v298 = vld [vmem:[%s250 + $0x178] sm:$0xff]
      %v299 = vld [vmem:[%s250 + $0x180] sm:$0xff]
      %v300 = vld [vmem:[%s250 + $0x188] sm:$0xff]
      %v301 = vld [vmem:[%s250 + $0x190] sm:$0xff]
      %v302 = vld [vmem:[%s250 + $0x198] sm:$0xff]
      %v303 = vld [vmem:[%s250 + $0x1a0] sm:$0xff]
      %v304 = vld [vmem:[%s250 + $0x1a8] sm:$0xff]
      %v305 = vld [vmem:[%s250 + $0x1b0] sm:$0xff]
      %v306 = vld [vmem:[%s250 + $0x1b8] sm:$0xff]
      %v307 = vld [vmem:[%s250 + $0x1c0] sm:$0xff]
      %v308 = vld [vmem:[%s250 + $0x1c8] sm:$0xff]
      %v309 = vld [vmem:[%s250 + $0x1d0] sm:$0xff]
      %v310 = vld [vmem:[%s250 + $0x1d8] sm:$0xff]
      %v311 = vld [vmem:[%s250 + $0x1e0] sm:$0xff]
      %v312 = vld [vmem:[%s250 + $0x1e8] sm:$0xff]
      %v313 = vld [vmem:[%s250 + $0x1f0] sm:$0xff]
      %v314 = vld [vmem:[%s250 + $0x1f8] sm:$0xff]
      %v315 = vld [vmem:[%s250 + $0x200] sm:$0xff]
      %v316 = vld [vmem:[%s250 + $0x208] sm:$0xff]
      %v317 = vld [vmem:[%s250 + $0x210] sm:$0xff]
      %v318 = vld [vmem:[%s250 + $0x218] sm:$0xff]
      %v325 = vunpack.c.l.b16 %v244
      %v326 = vunpack.c.h.b16 %v244
      %v327 = vunpack.c.l.b16 %v245
      %v328 = vunpack.c.l.b16 %v246
      %v329 = vunpack.c.h.b16 %v246
      %v330 = vunpack.c.l.b16 %v247
      %v331 = vunpack.c.l.b16 %v248
      %v332 = vunpack.c.h.b16 %v248
      %v333 = vunpack.c.l.b16 %v249
      %v334 = vpack.c.b16 %v328, %v325
      %v335 = vpack.c.b16 %v329, %v326
      %v336 = vpack.c.b16 %v330, %v327
      %v337 = vpack.c.b16 %v331, %v331
      %v338 = vpack.c.b16 %v332, %v332
      %v339 = vpack.c.b16 %v333, %v333
      %vm340 = vsmask.f32 7424
      %v342 = vshrl.u32 %v334, 16
      %v344 = vshll.u32 %v334, 16
      %v346 = vrot.slane %v344, 1
      %v347 = vor.u32 %v342, %v346
      %v349 = vshll.u32 %v337, 16
      %v351 = vrot.slane %v349, 1
      %v352 = vsel %vm340, %v347, %v351
      %v354 = vshrl.u32 %v335, 16
      %v356 = vshll.u32 %v335, 16
      %v358 = vrot.slane %v356, 1
      %v359 = vor.u32 %v354, %v358
      %v361 = vshll.u32 %v338, 16
      %v363 = vrot.slane %v361, 1
      %v364 = vsel %vm340, %v359, %v363
      %v366 = vshrl.u32 %v336, 16
      %v368 = vshll.u32 %v336, 16
      %v370 = vrot.slane %v368, 1
      %v371 = vor.u32 %v366, %v370
      %v373 = vshll.u32 %v339, 16
      %v375 = vrot.slane %v373, 1
      %v376 = vsel %vm340, %v371, %v375
      %v447 = vunpack.c.l.b16 %v251
      %v448 = vunpack.c.h.b16 %v251
      %v449 = vunpack.c.l.b16 %v252
      %v450 = vunpack.c.h.b16 %v252
      %v451 = vunpack.c.l.b16 %v253
      %v452 = vunpack.c.h.b16 %v253
      %v453 = vunpack.c.l.b16 %v254
      %v454 = vunpack.c.h.b16 %v254
      %v455 = vunpack.c.l.b16 %v255
      %v456 = vunpack.c.h.b16 %v255
      %v457 = vunpack.c.l.b16 %v256
      %v458 = vunpack.c.h.b16 %v256
      %v459 = vunpack.c.l.b16 %v257
      %v460 = vunpack.c.h.b16 %v257
      %v461 = vunpack.c.l.b16 %v258
      %v462 = vunpack.c.h.b16 %v258
      %v463 = vunpack.c.l.b16 %v259
      %v464 = vunpack.c.h.b16 %v259
      %v465 = vunpack.c.l.b16 %v260
      %v466 = vunpack.c.h.b16 %v260
      %v467 = vunpack.c.l.b16 %v261
      %v468 = vunpack.c.h.b16 %v261
      %v469 = vunpack.c.l.b16 %v262
      %v470 = vunpack.c.h.b16 %v262
      %v471 = vunpack.c.l.b16 %v263
      %v472 = vunpack.c.h.b16 %v263
      %v473 = vunpack.c.l.b16 %v264
      %v474 = vunpack.c.h.b16 %v264
      %v475 = vunpack.c.l.b16 %v265
      %v476 = vunpack.c.h.b16 %v265
      %v477 = vunpack.c.l.b16 %v266
      %v478 = vunpack.c.h.b16 %v266
      %v479 = vunpack.c.l.b16 %v267
      %v480 = vunpack.c.h.b16 %v267
      %v481 = vunpack.c.l.b16 %v268
      %v482 = vunpack.c.h.b16 %v268
      %v483 = vunpack.c.l.b16 %v269
      %v484 = vunpack.c.h.b16 %v269
      %v485 = vunpack.c.l.b16 %v270
      %v486 = vunpack.c.h.b16 %v270
      %v487 = vunpack.c.l.b16 %v271
      %v488 = vunpack.c.h.b16 %v271
      %v489 = vunpack.c.l.b16 %v272
      %v490 = vunpack.c.h.b16 %v272
      %v491 = vunpack.c.l.b16 %v273
      %v492 = vunpack.c.h.b16 %v273
      %v493 = vunpack.c.l.b16 %v274
      %v494 = vunpack.c.h.b16 %v274
      %v495 = vunpack.c.l.b16 %v275
      %v496 = vunpack.c.h.b16 %v275
      %v497 = vunpack.c.l.b16 %v276
      %v498 = vunpack.c.h.b16 %v276
      %v499 = vunpack.c.l.b16 %v277
      %v500 = vunpack.c.h.b16 %v277
      %v501 = vunpack.c.l.b16 %v278
      %v502 = vunpack.c.h.b16 %v278
      %v503 = vunpack.c.l.b16 %v279
      %v504 = vunpack.c.h.b16 %v279
      %v505 = vunpack.c.l.b16 %v280
      %v506 = vunpack.c.h.b16 %v280
      %v507 = vunpack.c.l.b16 %v281
      %v508 = vunpack.c.h.b16 %v281
      %v509 = vunpack.c.l.b16 %v282
      %v510 = vunpack.c.h.b16 %v282
      %v511 = vunpack.c.l.b16 %v283
      %v512 = vunpack.c.h.b16 %v283
      %v513 = vunpack.c.l.b16 %v284
      %v514 = vunpack.c.h.b16 %v284
      %v515 = vunpack.c.l.b16 %v285
      %v516 = vunpack.c.h.b16 %v285
      %v517 = vunpack.c.l.b16 %v286
      %v518 = vunpack.c.h.b16 %v286
      %v519 = vunpack.c.l.b16 %v287
      %v520 = vunpack.c.h.b16 %v287
      %v521 = vunpack.c.l.b16 %v288
      %v522 = vunpack.c.h.b16 %v288
      %v523 = vunpack.c.l.b16 %v289
      %v524 = vunpack.c.h.b16 %v289
      %v525 = vunpack.c.l.b16 %v290
      %v526 = vunpack.c.h.b16 %v290
      %v527 = vunpack.c.l.b16 %v291
      %v528 = vunpack.c.h.b16 %v291
      %v529 = vunpack.c.l.b16 %v292
      %v530 = vunpack.c.h.b16 %v292
      %v531 = vunpack.c.l.b16 %v293
      %v532 = vunpack.c.h.b16 %v293
      %v533 = vunpack.c.l.b16 %v294
      %v534 = vunpack.c.h.b16 %v294
      %v535 = vunpack.c.l.b16 %v295
      %v536 = vunpack.c.h.b16 %v295
      %v537 = vunpack.c.l.b16 %v296
      %v538 = vunpack.c.h.b16 %v296
      %v539 = vunpack.c.l.b16 %v297
      %v540 = vunpack.c.h.b16 %v297
      %v541 = vunpack.c.l.b16 %v298
      %v542 = vunpack.c.h.b16 %v298
      %v543 = vunpack.c.l.b16 %v299
      %v544 = vunpack.c.h.b16 %v299
      %v545 = vunpack.c.l.b16 %v300
      %v546 = vunpack.c.h.b16 %v300
      %v547 = vunpack.c.l.b16 %v301
      %v548 = vunpack.c.h.b16 %v301
      %v549 = vunpack.c.l.b16 %v302
      %v550 = vunpack.c.h.b16 %v302
      %v551 = vunpack.c.l.b16 %v303
      %v552 = vunpack.c.h.b16 %v303
      %v553 = vunpack.c.l.b16 %v304
      %v554 = vunpack.c.h.b16 %v304
      %v555 = vunpack.c.l.b16 %v305
      %v556 = vunpack.c.h.b16 %v305
      %v557 = vunpack.c.l.b16 %v306
      %v558 = vunpack.c.h.b16 %v306
      %v559 = vunpack.c.l.b16 %v307
      %v560 = vunpack.c.h.b16 %v307
      %v561 = vunpack.c.l.b16 %v308
      %v562 = vunpack.c.h.b16 %v308
      %v563 = vunpack.c.l.b16 %v309
      %v564 = vunpack.c.h.b16 %v309
      %v565 = vunpack.c.l.b16 %v310
      %v566 = vunpack.c.h.b16 %v310
      %v567 = vunpack.c.l.b16 %v311
      %v568 = vunpack.c.h.b16 %v311
      %v569 = vunpack.c.l.b16 %v312
      %v570 = vunpack.c.h.b16 %v312
      %v571 = vunpack.c.l.b16 %v313
      %v572 = vunpack.c.h.b16 %v313
      %v573 = vunpack.c.l.b16 %v314
      %v574 = vunpack.c.h.b16 %v314
      %v575 = vunpack.c.l.b16 %v315
      %v576 = vunpack.c.h.b16 %v315
      %v577 = vunpack.c.l.b16 %v316
      %v578 = vunpack.c.h.b16 %v316
      %v579 = vunpack.c.l.b16 %v317
      %v580 = vunpack.c.h.b16 %v317
      %v581 = vunpack.c.l.b16 %v318
      %v582 = vunpack.c.h.b16 %v318
      %v583 = vpack.c.b16 %v451, %v447
      %v584 = vpack.c.b16 %v452, %v448
      %v585 = vpack.c.b16 %v453, %v449
      %v586 = vpack.c.b16 %v454, %v450
      %v587 = vpack.c.b16 %v459, %v455
      %v588 = vpack.c.b16 %v460, %v456
      %v589 = vpack.c.b16 %v461, %v457
      %v590 = vpack.c.b16 %v462, %v458
      %v591 = vpack.c.b16 %v467, %v463
      %v592 = vpack.c.b16 %v468, %v464
      %v593 = vpack.c.b16 %v469, %v465
      %v594 = vpack.c.b16 %v470, %v466
      %v595 = vpack.c.b16 %v475, %v471
      %v596 = vpack.c.b16 %v476, %v472
      %v597 = vpack.c.b16 %v477, %v473
      %v598 = vpack.c.b16 %v478, %v474
      %v599 = vpack.c.b16 %v483, %v479
      %v600 = vpack.c.b16 %v484, %v480
      %v601 = vpack.c.b16 %v485, %v481
      %v602 = vpack.c.b16 %v486, %v482
      %v603 = vpack.c.b16 %v491, %v487
      %v604 = vpack.c.b16 %v492, %v488
      %v605 = vpack.c.b16 %v493, %v489
      %v606 = vpack.c.b16 %v494, %v490
      %v607 = vpack.c.b16 %v499, %v495
      %v608 = vpack.c.b16 %v500, %v496
      %v609 = vpack.c.b16 %v501, %v497
      %v610 = vpack.c.b16 %v502, %v498
      %v611 = vpack.c.b16 %v507, %v503
      %v612 = vpack.c.b16 %v508, %v504
      %v613 = vpack.c.b16 %v509, %v505
      %v614 = vpack.c.b16 %v510, %v506
      %v615 = vpack.c.b16 %v515, %v511
      %v616 = vpack.c.b16 %v516, %v512
      %v617 = vpack.c.b16 %v517, %v513
      %v618 = vpack.c.b16 %v518, %v514
      %v619 = vpack.c.b16 %v523, %v519
      %v620 = vpack.c.b16 %v524, %v520
      %v621 = vpack.c.b16 %v525, %v521
      %v622 = vpack.c.b16 %v526, %v522
      %v623 = vpack.c.b16 %v531, %v527
      %v624 = vpack.c.b16 %v532, %v528
      %v625 = vpack.c.b16 %v533, %v529
      %v626 = vpack.c.b16 %v534, %v530
      %v627 = vpack.c.b16 %v539, %v535
      %v628 = vpack.c.b16 %v540, %v536
      %v629 = vpack.c.b16 %v541, %v537
      %v630 = vpack.c.b16 %v542, %v538
      %v631 = vpack.c.b16 %v547, %v543
      %v632 = vpack.c.b16 %v548, %v544
      %v633 = vpack.c.b16 %v549, %v545
      %v634 = vpack.c.b16 %v550, %v546
      %v635 = vpack.c.b16 %v555, %v551
      %v636 = vpack.c.b16 %v556, %v552
      %v637 = vpack.c.b16 %v557, %v553
      %v638 = vpack.c.b16 %v558, %v554
      %v639 = vpack.c.b16 %v563, %v559
      %v640 = vpack.c.b16 %v564, %v560
      %v641 = vpack.c.b16 %v565, %v561
      %v642 = vpack.c.b16 %v566, %v562
      %v643 = vpack.c.b16 %v571, %v567
      %v644 = vpack.c.b16 %v572, %v568
      %v645 = vpack.c.b16 %v573, %v569
      %v646 = vpack.c.b16 %v574, %v570
      %v647 = vpack.c.b16 %v579, %v575
      %v648 = vpack.c.b16 %v580, %v576
      %v649 = vpack.c.b16 %v581, %v577
      %v650 = vpack.c.b16 %v582, %v578
      %vm719 = vcmask 130048
      %v721 = vsel %vm719, %v376, 0
      %723 = vmatprep.subr.bf16.mxu0 %v612
      %724 = vmatpush1.bf16.msra.mxu0 %v611
      %725 = vmatprep.subr.bf16.mxu0 %v608
      %726 = vmatpush1.bf16.msra.mxu0 %v607
      %727 = vmatprep.subr.bf16.mxu0 %v604
      %728 = vmatpush1.bf16.msra.mxu0 %v603
      %729 = vmatprep.subr.bf16.mxu0 %v600
      %730 = vmatpush1.bf16.msra.mxu0 %v599
      %731 = vmatprep.subr.bf16.mxu0 %v596
      %732 = vmatpush1.bf16.msra.mxu0 %v595
      %733 = vmatprep.subr.bf16.mxu0 %v592
      %734 = vmatpush1.bf16.msra.mxu0 %v591
      %735 = vmatprep.subr.bf16.mxu0 %v588
      %736 = vmatpush1.bf16.msra.mxu0 %v587
      %737 = vmatprep.subr.bf16.mxu0 %v584
      %738 = vmatpush1.bf16.msra.mxu0 %v583
      %739 = vmatprep.subr.bf16.mxu0 %v644
      %740 = vmatpush2.bf16.msra.mxu0 %v643
      %741 = vmatprep.subr.bf16.mxu0 %v640
      %742 = vmatpush2.bf16.msra.mxu0 %v639
      %743 = vmatprep.subr.bf16.mxu0 %v636
      %744 = vmatpush2.bf16.msra.mxu0 %v635
      %745 = vmatprep.subr.bf16.mxu0 %v632
      %746 = vmatpush2.bf16.msra.mxu0 %v631
      %747 = vmatprep.subr.bf16.mxu0 %v628
      %748 = vmatpush2.bf16.msra.mxu0 %v627
      %749 = vmatprep.subr.bf16.mxu0 %v624
      %750 = vmatpush2.bf16.msra.mxu0 %v623
      %751 = vmatprep.subr.bf16.mxu0 %v620
      %752 = vmatpush2.bf16.msra.mxu0 %v619
      %753 = vmatprep.subr.bf16.mxu0 %v616
      %754 = vmatpush2.bf16.msra.mxu0 %v615
      %755 = vmatprep.mubr.bf16.mxu0 %v364
      %756 = vmatmul.mubr.bf16.gmra.mxu0 %v352
      %v757 = vpop.f32.mrf.mxu0
      %v758 = vadd.f32 0.0, %v757
      %v759 = vpop.f32.mrf.mxu0
      %v760 = vadd.f32 0.0, %v759
      %v761 = vpop.f32.mrf.mxu0
      %v762 = vadd.f32 0.0, %v761
      %v763 = vpop.f32.mrf.mxu0
      %v764 = vadd.f32 0.0, %v763
      %765 = vdwg.mxu0
      %766 = vmatprep.subr.bf16.mxu0 0
      %767 = vmatpush1.bf16.msra.mxu0 0
      %768 = vmatprep.subr.bf16.mxu0 0
      %769 = vmatpush1.bf16.msra.mxu0 0
      %770 = vmatprep.subr.bf16.mxu0 0
      %771 = vmatpush1.bf16.msra.mxu0 0
      %772 = vmatprep.subr.bf16.mxu0 0
      %773 = vmatpush1.bf16.msra.mxu0 0
      %774 = vmatprep.subr.bf16.mxu0 0
      %775 = vmatpush1.bf16.msra.mxu0 0
      %776 = vmatprep.subr.bf16.mxu0 0
      %777 = vmatpush1.bf16.msra.mxu0 0
      %778 = vmatprep.subr.bf16.mxu0 0
      %779 = vmatpush1.bf16.msra.mxu0 0
      %780 = vmatprep.subr.bf16.mxu0 %v648
      %781 = vmatpush1.bf16.msra.mxu0 %v647
      %782 = vmatprep.subr.bf16.mxu0 0
      %783 = vmatpush2.bf16.msra.mxu0 0
      %784 = vmatprep.subr.bf16.mxu0 0
      %785 = vmatpush2.bf16.msra.mxu0 0
      %786 = vmatprep.subr.bf16.mxu0 0
      %787 = vmatpush2.bf16.msra.mxu0 0
      %788 = vmatprep.subr.bf16.mxu0 0
      %789 = vmatpush2.bf16.msra.mxu0 0
      %790 = vmatprep.subr.bf16.mxu0 0
      %791 = vmatpush2.bf16.msra.mxu0 0
      %792 = vmatprep.subr.bf16.mxu0 0
      %793 = vmatpush2.bf16.msra.mxu0 0
      %794 = vmatprep.subr.bf16.mxu0 0
      %795 = vmatpush2.bf16.msra.mxu0 0
      %796 = vmatprep.subr.bf16.mxu0 0
      %797 = vmatpush2.bf16.msra.mxu0 0
      %798 = vmatprep.mubr.bf16.mxu0 0
      %799 = vmatmul.mubr.bf16.gmra.mxu0 %v721
      %v800 = vpop.f32.mrf.mxu0
      %v801 = vadd.f32 %v758, %v800
      %v802 = vpop.f32.mrf.mxu0
      %v803 = vadd.f32 %v760, %v802
      %v804 = vpop.f32.mrf.mxu0
      %v805 = vadd.f32 %v762, %v804
      %v806 = vpop.f32.mrf.mxu0
      %v807 = vadd.f32 %v764, %v806
      %808 = vdwg.mxu0
      %809 = vmatprep.subr.bf16.mxu0 %v614
      %810 = vmatpush1.bf16.msra.mxu0 %v613
      %811 = vmatprep.subr.bf16.mxu0 %v610
      %812 = vmatpush1.bf16.msra.mxu0 %v609
      %813 = vmatprep.subr.bf16.mxu0 %v606
      %814 = vmatpush1.bf16.msra.mxu0 %v605
      %815 = vmatprep.subr.bf16.mxu0 %v602
      %816 = vmatpush1.bf16.msra.mxu0 %v601
      %817 = vmatprep.subr.bf16.mxu0 %v598
      %818 = vmatpush1.bf16.msra.mxu0 %v597
      %819 = vmatprep.subr.bf16.mxu0 %v594
      %820 = vmatpush1.bf16.msra.mxu0 %v593
      %821 = vmatprep.subr.bf16.mxu0 %v590
      %822 = vmatpush1.bf16.msra.mxu0 %v589
      %823 = vmatprep.subr.bf16.mxu0 %v586
      %824 = vmatpush1.bf16.msra.mxu0 %v585
      %825 = vmatprep.subr.bf16.mxu0 %v646
      %826 = vmatpush2.bf16.msra.mxu0 %v645
      %827 = vmatprep.subr.bf16.mxu0 %v642
      %828 = vmatpush2.bf16.msra.mxu0 %v641
      %829 = vmatprep.subr.bf16.mxu0 %v638
      %830 = vmatpush2.bf16.msra.mxu0 %v637
      %831 = vmatprep.subr.bf16.mxu0 %v634
      %832 = vmatpush2.bf16.msra.mxu0 %v633
      %833 = vmatprep.subr.bf16.mxu0 %v630
      %834 = vmatpush2.bf16.msra.mxu0 %v629
      %835 = vmatprep.subr.bf16.mxu0 %v626
      %836 = vmatpush2.bf16.msra.mxu0 %v625
      %837 = vmatprep.subr.bf16.mxu0 %v622
      %838 = vmatpush2.bf16.msra.mxu0 %v621
      %839 = vmatprep.subr.bf16.mxu0 %v618
      %840 = vmatpush2.bf16.msra.mxu0 %v617
      %841 = vmatprep.mubr.bf16.mxu0 %v364
      %842 = vmatmul.mubr.bf16.gmra.mxu0 %v352
      %v843 = vpop.f32.mrf.mxu0
      %v844 = vadd.f32 0.0, %v843
      %v845 = vpop.f32.mrf.mxu0
      %v846 = vadd.f32 0.0, %v845
      %v847 = vpop.f32.mrf.mxu0
      %v848 = vadd.f32 0.0, %v847
      %v849 = vpop.f32.mrf.mxu0
      %v850 = vadd.f32 0.0, %v849
      %851 = vdwg.mxu0
      %852 = vmatprep.subr.bf16.mxu0 0
      %853 = vmatpush1.bf16.msra.mxu0 0
      %854 = vmatprep.subr.bf16.mxu0 0
      %855 = vmatpush1.bf16.msra.mxu0 0
      %856 = vmatprep.subr.bf16.mxu0 0
      %857 = vmatpush1.bf16.msra.mxu0 0
      %858 = vmatprep.subr.bf16.mxu0 0
      %859 = vmatpush1.bf16.msra.mxu0 0
      %860 = vmatprep.subr.bf16.mxu0 0
      %861 = vmatpush1.bf16.msra.mxu0 0
      %862 = vmatprep.subr.bf16.mxu0 0
      %863 = vmatpush1.bf16.msra.mxu0 0
      %864 = vmatprep.subr.bf16.mxu0 0
      %865 = vmatpush1.bf16.msra.mxu0 0
      %866 = vmatprep.subr.bf16.mxu0 %v650
      %867 = vmatpush1.bf16.msra.mxu0 %v649
      %868 = vmatprep.subr.bf16.mxu0 0
      %869 = vmatpush2.bf16.msra.mxu0 0
      %870 = vmatprep.subr.bf16.mxu0 0
      %871 = vmatpush2.bf16.msra.mxu0 0
      %872 = vmatprep.subr.bf16.mxu0 0
      %873 = vmatpush2.bf16.msra.mxu0 0
      %874 = vmatprep.subr.bf16.mxu0 0
      %875 = vmatpush2.bf16.msra.mxu0 0
      %876 = vmatprep.subr.bf16.mxu0 0
      %877 = vmatpush2.bf16.msra.mxu0 0
      %878 = vmatprep.subr.bf16.mxu0 0
      %879 = vmatpush2.bf16.msra.mxu0 0
      %880 = vmatprep.subr.bf16.mxu0 0
      %881 = vmatpush2.bf16.msra.mxu0 0
      %882 = vmatprep.subr.bf16.mxu0 0
      %883 = vmatpush2.bf16.msra.mxu0 0
      %884 = vmatprep.mubr.bf16.mxu0 0
      %885 = vmatmul.mubr.bf16.gmra.mxu0 %v721
      %v886 = vpop.f32.mrf.mxu0
      %v887 = vadd.f32 %v844, %v886
      %v888 = vpop.f32.mrf.mxu0
      %v889 = vadd.f32 %v846, %v888
      %v890 = vpop.f32.mrf.mxu0
      %v891 = vadd.f32 %v848, %v890
      %v892 = vpop.f32.mrf.mxu0
      %v893 = vadd.f32 %v850, %v892
      %894 = vdwg.mxu0
      %v899 = vunpack.c.l.b16 %v172
      %v900 = vunpack.c.h.b16 %v172
      %v901 = vunpack.c.l.b16 %v173
      %v902 = vunpack.c.l.b16 %v174
      %v903 = vunpack.c.h.b16 %v174
      %v904 = vunpack.c.l.b16 %v175
      %v905 = vpack.c.b16 %v902, %v899
      %v906 = vpack.c.b16 %v903, %v900
      %v907 = vpack.c.b16 %v904, %v901
      %v978 = vunpack.c.l.b16 %v176
      %v979 = vunpack.c.h.b16 %v176
      %v980 = vunpack.c.l.b16 %v177
      %v981 = vunpack.c.h.b16 %v177
      %v982 = vunpack.c.l.b16 %v178
      %v983 = vunpack.c.h.b16 %v178
      %v984 = vunpack.c.l.b16 %v179
      %v985 = vunpack.c.h.b16 %v179
      %v986 = vunpack.c.l.b16 %v180
      %v987 = vunpack.c.h.b16 %v180
      %v988 = vunpack.c.l.b16 %v181
      %v989 = vunpack.c.h.b16 %v181
      %v990 = vunpack.c.l.b16 %v182
      %v991 = vunpack.c.h.b16 %v182
      %v992 = vunpack.c.l.b16 %v183
      %v993 = vunpack.c.h.b16 %v183
      %v994 = vunpack.c.l.b16 %v184
      %v995 = vunpack.c.h.b16 %v184
      %v996 = vunpack.c.l.b16 %v185
      %v997 = vunpack.c.h.b16 %v185
      %v998 = vunpack.c.l.b16 %v186
      %v999 = vunpack.c.h.b16 %v186
      %v1000 = vunpack.c.l.b16 %v187
      %v1001 = vunpack.c.h.b16 %v187
      %v1002 = vunpack.c.l.b16 %v188
      %v1003 = vunpack.c.h.b16 %v188
      %v1004 = vunpack.c.l.b16 %v189
      %v1005 = vunpack.c.h.b16 %v189
      %v1006 = vunpack.c.l.b16 %v190
      %v1007 = vunpack.c.h.b16 %v190
      %v1008 = vunpack.c.l.b16 %v191
      %v1009 = vunpack.c.h.b16 %v191
      %v1010 = vunpack.c.l.b16 %v192
      %v1011 = vunpack.c.h.b16 %v192
      %v1012 = vunpack.c.l.b16 %v193
      %v1013 = vunpack.c.h.b16 %v193
      %v1014 = vunpack.c.l.b16 %v194
      %v1015 = vunpack.c.h.b16 %v194
      %v1016 = vunpack.c.l.b16 %v195
      %v1017 = vunpack.c.h.b16 %v195
      %v1018 = vunpack.c.l.b16 %v196
      %v1019 = vunpack.c.h.b16 %v196
      %v1020 = vunpack.c.l.b16 %v197
      %v1021 = vunpack.c.h.b16 %v197
      %v1022 = vunpack.c.l.b16 %v198
      %v1023 = vunpack.c.h.b16 %v198
      %v1024 = vunpack.c.l.b16 %v199
      %v1025 = vunpack.c.h.b16 %v199
      %v1026 = vunpack.c.l.b16 %v200
      %v1027 = vunpack.c.h.b16 %v200
      %v1028 = vunpack.c.l.b16 %v201
      %v1029 = vunpack.c.h.b16 %v201
      %v1030 = vunpack.c.l.b16 %v202
      %v1031 = vunpack.c.h.b16 %v202
      %v1032 = vunpack.c.l.b16 %v203
      %v1033 = vunpack.c.h.b16 %v203
      %v1034 = vunpack.c.l.b16 %v204
      %v1035 = vunpack.c.h.b16 %v204
      %v1036 = vunpack.c.l.b16 %v205
      %v1037 = vunpack.c.h.b16 %v205
      %v1038 = vunpack.c.l.b16 %v206
      %v1039 = vunpack.c.h.b16 %v206
      %v1040 = vunpack.c.l.b16 %v207
      %v1041 = vunpack.c.h.b16 %v207
      %v1042 = vunpack.c.l.b16 %v208
      %v1043 = vunpack.c.h.b16 %v208
      %v1044 = vunpack.c.l.b16 %v209
      %v1045 = vunpack.c.h.b16 %v209
      %v1046 = vunpack.c.l.b16 %v210
      %v1047 = vunpack.c.h.b16 %v210
      %v1048 = vunpack.c.l.b16 %v211
      %v1049 = vunpack.c.h.b16 %v211
      %v1050 = vunpack.c.l.b16 %v212
      %v1051 = vunpack.c.h.b16 %v212
      %v1052 = vunpack.c.l.b16 %v213
      %v1053 = vunpack.c.h.b16 %v213
      %v1054 = vunpack.c.l.b16 %v214
      %v1055 = vunpack.c.h.b16 %v214
      %v1056 = vunpack.c.l.b16 %v215
      %v1057 = vunpack.c.h.b16 %v215
      %v1058 = vunpack.c.l.b16 %v216
      %v1059 = vunpack.c.h.b16 %v216
      %v1060 = vunpack.c.l.b16 %v217
      %v1061 = vunpack.c.h.b16 %v217
      %v1062 = vunpack.c.l.b16 %v218
      %v1063 = vunpack.c.h.b16 %v218
      %v1064 = vunpack.c.l.b16 %v219
      %v1065 = vunpack.c.h.b16 %v219
      %v1066 = vunpack.c.l.b16 %v220
      %v1067 = vunpack.c.h.b16 %v220
      %v1068 = vunpack.c.l.b16 %v221
      %v1069 = vunpack.c.h.b16 %v221
      %v1070 = vunpack.c.l.b16 %v222
      %v1071 = vunpack.c.h.b16 %v222
      %v1072 = vunpack.c.l.b16 %v223
      %v1073 = vunpack.c.h.b16 %v223
      %v1074 = vunpack.c.l.b16 %v224
      %v1075 = vunpack.c.h.b16 %v224
      %v1076 = vunpack.c.l.b16 %v225
      %v1077 = vunpack.c.h.b16 %v225
      %v1078 = vunpack.c.l.b16 %v226
      %v1079 = vunpack.c.h.b16 %v226
      %v1080 = vunpack.c.l.b16 %v227
      %v1081 = vunpack.c.h.b16 %v227
      %v1082 = vunpack.c.l.b16 %v228
      %v1083 = vunpack.c.h.b16 %v228
      %v1084 = vunpack.c.l.b16 %v229
      %v1085 = vunpack.c.h.b16 %v229
      %v1086 = vunpack.c.l.b16 %v230
      %v1087 = vunpack.c.h.b16 %v230
      %v1088 = vunpack.c.l.b16 %v231
      %v1089 = vunpack.c.h.b16 %v231
      %v1090 = vunpack.c.l.b16 %v232
      %v1091 = vunpack.c.h.b16 %v232
      %v1092 = vunpack.c.l.b16 %v233
      %v1093 = vunpack.c.h.b16 %v233
      %v1094 = vunpack.c.l.b16 %v234
      %v1095 = vunpack.c.h.b16 %v234
      %v1096 = vunpack.c.l.b16 %v235
      %v1097 = vunpack.c.h.b16 %v235
      %v1098 = vunpack.c.l.b16 %v236
      %v1099 = vunpack.c.h.b16 %v236
      %v1100 = vunpack.c.l.b16 %v237
      %v1101 = vunpack.c.h.b16 %v237
      %v1102 = vunpack.c.l.b16 %v238
      %v1103 = vunpack.c.h.b16 %v238
      %v1104 = vunpack.c.l.b16 %v239
      %v1105 = vunpack.c.h.b16 %v239
      %v1106 = vunpack.c.l.b16 %v240
      %v1107 = vunpack.c.h.b16 %v240
      %v1108 = vunpack.c.l.b16 %v241
      %v1109 = vunpack.c.h.b16 %v241
      %v1110 = vunpack.c.l.b16 %v242
      %v1111 = vunpack.c.h.b16 %v242
      %v1112 = vunpack.c.l.b16 %v243
      %v1113 = vunpack.c.h.b16 %v243
      %v1114 = vpack.c.b16 %v982, %v978
      %v1115 = vpack.c.b16 %v983, %v979
      %v1116 = vpack.c.b16 %v984, %v980
      %v1117 = vpack.c.b16 %v985, %v981
      %v1118 = vpack.c.b16 %v990, %v986
      %v1119 = vpack.c.b16 %v991, %v987
      %v1120 = vpack.c.b16 %v992, %v988
      %v1121 = vpack.c.b16 %v993, %v989
      %v1122 = vpack.c.b16 %v998, %v994
      %v1123 = vpack.c.b16 %v999, %v995
      %v1124 = vpack.c.b16 %v1000, %v996
      %v1125 = vpack.c.b16 %v1001, %v997
      %v1126 = vpack.c.b16 %v1006, %v1002
      %v1127 = vpack.c.b16 %v1007, %v1003
      %v1128 = vpack.c.b16 %v1008, %v1004
      %v1129 = vpack.c.b16 %v1009, %v1005
      %v1130 = vpack.c.b16 %v1014, %v1010
      %v1131 = vpack.c.b16 %v1015, %v1011
      %v1132 = vpack.c.b16 %v1016, %v1012
      %v1133 = vpack.c.b16 %v1017, %v1013
      %v1134 = vpack.c.b16 %v1022, %v1018
      %v1135 = vpack.c.b16 %v1023, %v1019
      %v1136 = vpack.c.b16 %v1024, %v1020
      %v1137 = vpack.c.b16 %v1025, %v1021
      %v1138 = vpack.c.b16 %v1030, %v1026
      %v1139 = vpack.c.b16 %v1031, %v1027
      %v1140 = vpack.c.b16 %v1032, %v1028
      %v1141 = vpack.c.b16 %v1033, %v1029
      %v1142 = vpack.c.b16 %v1038, %v1034
      %v1143 = vpack.c.b16 %v1039, %v1035
      %v1144 = vpack.c.b16 %v1040, %v1036
      %v1145 = vpack.c.b16 %v1041, %v1037
      %v1146 = vpack.c.b16 %v1046, %v1042
      %v1147 = vpack.c.b16 %v1047, %v1043
      %v1148 = vpack.c.b16 %v1048, %v1044
      %v1149 = vpack.c.b16 %v1049, %v1045
      %v1150 = vpack.c.b16 %v1054, %v1050
      %v1151 = vpack.c.b16 %v1055, %v1051
      %v1152 = vpack.c.b16 %v1056, %v1052
      %v1153 = vpack.c.b16 %v1057, %v1053
      %v1154 = vpack.c.b16 %v1062, %v1058
      %v1155 = vpack.c.b16 %v1063, %v1059
      %v1156 = vpack.c.b16 %v1064, %v1060
      %v1157 = vpack.c.b16 %v1065, %v1061
      %v1158 = vpack.c.b16 %v1070, %v1066
      %v1159 = vpack.c.b16 %v1071, %v1067
      %v1160 = vpack.c.b16 %v1072, %v1068
      %v1161 = vpack.c.b16 %v1073, %v1069
      %v1162 = vpack.c.b16 %v1078, %v1074
      %v1163 = vpack.c.b16 %v1079, %v1075
      %v1164 = vpack.c.b16 %v1080, %v1076
      %v1165 = vpack.c.b16 %v1081, %v1077
      %v1166 = vpack.c.b16 %v1086, %v1082
      %v1167 = vpack.c.b16 %v1087, %v1083
      %v1168 = vpack.c.b16 %v1088, %v1084
      %v1169 = vpack.c.b16 %v1089, %v1085
      %v1170 = vpack.c.b16 %v1094, %v1090
      %v1171 = vpack.c.b16 %v1095, %v1091
      %v1172 = vpack.c.b16 %v1096, %v1092
      %v1173 = vpack.c.b16 %v1097, %v1093
      %v1174 = vpack.c.b16 %v1102, %v1098
      %v1175 = vpack.c.b16 %v1103, %v1099
      %v1176 = vpack.c.b16 %v1104, %v1100
      %v1177 = vpack.c.b16 %v1105, %v1101
      %v1178 = vpack.c.b16 %v1110, %v1106
      %v1179 = vpack.c.b16 %v1111, %v1107
      %v1180 = vpack.c.b16 %v1112, %v1108
      %v1181 = vpack.c.b16 %v1113, %v1109
      %v1251 = vsel %vm719, %v907, 0
      %1253 = vmatprep.subr.bf16.mxu0 %v1143
      %1254 = vmatpush1.bf16.msra.mxu0 %v1142
      %1255 = vmatprep.subr.bf16.mxu0 %v1139
      %1256 = vmatpush1.bf16.msra.mxu0 %v1138
      %1257 = vmatprep.subr.bf16.mxu0 %v1135
      %1258 = vmatpush1.bf16.msra.mxu0 %v1134
      %1259 = vmatprep.subr.bf16.mxu0 %v1131
      %1260 = vmatpush1.bf16.msra.mxu0 %v1130
      %1261 = vmatprep.subr.bf16.mxu0 %v1127
      %1262 = vmatpush1.bf16.msra.mxu0 %v1126
      %1263 = vmatprep.subr.bf16.mxu0 %v1123
      %1264 = vmatpush1.bf16.msra.mxu0 %v1122
      %1265 = vmatprep.subr.bf16.mxu0 %v1119
      %1266 = vmatpush1.bf16.msra.mxu0 %v1118
      %1267 = vmatprep.subr.bf16.mxu0 %v1115
      %1268 = vmatpush1.bf16.msra.mxu0 %v1114
      %1269 = vmatprep.subr.bf16.mxu0 %v1175
      %1270 = vmatpush2.bf16.msra.mxu0 %v1174
      %1271 = vmatprep.subr.bf16.mxu0 %v1171
      %1272 = vmatpush2.bf16.msra.mxu0 %v1170
      %1273 = vmatprep.subr.bf16.mxu0 %v1167
      %1274 = vmatpush2.bf16.msra.mxu0 %v1166
      %1275 = vmatprep.subr.bf16.mxu0 %v1163
      %1276 = vmatpush2.bf16.msra.mxu0 %v1162
      %1277 = vmatprep.subr.bf16.mxu0 %v1159
      %1278 = vmatpush2.bf16.msra.mxu0 %v1158
      %1279 = vmatprep.subr.bf16.mxu0 %v1155
      %1280 = vmatpush2.bf16.msra.mxu0 %v1154
      %1281 = vmatprep.subr.bf16.mxu0 %v1151
      %1282 = vmatpush2.bf16.msra.mxu0 %v1150
      %1283 = vmatprep.subr.bf16.mxu0 %v1147
      %1284 = vmatpush2.bf16.msra.mxu0 %v1146
      %1285 = vmatprep.mubr.bf16.mxu0 %v906
      %1286 = vmatmul.mubr.bf16.gmra.mxu0 %v905
      %v1287 = vpop.f32.mrf.mxu0
      %v1288 = vadd.f32 %v801, %v1287
      %v1289 = vpop.f32.mrf.mxu0
      %v1290 = vadd.f32 %v803, %v1289
      %v1291 = vpop.f32.mrf.mxu0
      %v1292 = vadd.f32 %v805, %v1291
      %v1293 = vpop.f32.mrf.mxu0
      %v1294 = vadd.f32 %v807, %v1293
      %1295 = vdwg.mxu0
      %1296 = vmatprep.subr.bf16.mxu0 0
      %1297 = vmatpush1.bf16.msra.mxu0 0
      %1298 = vmatprep.subr.bf16.mxu0 0
      %1299 = vmatpush1.bf16.msra.mxu0 0
      %1300 = vmatprep.subr.bf16.mxu0 0
      %1301 = vmatpush1.bf16.msra.mxu0 0
      %1302 = vmatprep.subr.bf16.mxu0 0
      %1303 = vmatpush1.bf16.msra.mxu0 0
      %1304 = vmatprep.subr.bf16.mxu0 0
      %1305 = vmatpush1.bf16.msra.mxu0 0
      %1306 = vmatprep.subr.bf16.mxu0 0
      %1307 = vmatpush1.bf16.msra.mxu0 0
      %1308 = vmatprep.subr.bf16.mxu0 0
      %1309 = vmatpush1.bf16.msra.mxu0 0
      %1310 = vmatprep.subr.bf16.mxu0 %v1179
      %1311 = vmatpush1.bf16.msra.mxu0 %v1178
      %1312 = vmatprep.subr.bf16.mxu0 0
      %1313 = vmatpush2.bf16.msra.mxu0 0
      %1314 = vmatprep.subr.bf16.mxu0 0
      %1315 = vmatpush2.bf16.msra.mxu0 0
      %1316 = vmatprep.subr.bf16.mxu0 0
      %1317 = vmatpush2.bf16.msra.mxu0 0
      %1318 = vmatprep.subr.bf16.mxu0 0
      %1319 = vmatpush2.bf16.msra.mxu0 0
      %1320 = vmatprep.subr.bf16.mxu0 0
      %1321 = vmatpush2.bf16.msra.mxu0 0
      %1322 = vmatprep.subr.bf16.mxu0 0
      %1323 = vmatpush2.bf16.msra.mxu0 0
      %1324 = vmatprep.subr.bf16.mxu0 0
      %1325 = vmatpush2.bf16.msra.mxu0 0
      %1326 = vmatprep.subr.bf16.mxu0 0
      %1327 = vmatpush2.bf16.msra.mxu0 0
      %1328 = vmatprep.mubr.bf16.mxu0 0
      %1329 = vmatmul.mubr.bf16.gmra.mxu0 %v1251
      %v1330 = vpop.f32.mrf.mxu0
      %v1331 = vadd.f32 %v1288, %v1330
      %v1332 = vpop.f32.mrf.mxu0
      %v1333 = vadd.f32 %v1290, %v1332
      %v1334 = vpop.f32.mrf.mxu0
      %v1335 = vadd.f32 %v1292, %v1334
      %v1336 = vpop.f32.mrf.mxu0
      %v1337 = vadd.f32 %v1294, %v1336
      %1338 = vdwg.mxu0
      %1339 = vmatprep.subr.bf16.mxu0 %v1145
      %1340 = vmatpush1.bf16.msra.mxu0 %v1144
      %1341 = vmatprep.subr.bf16.mxu0 %v1141
      %1342 = vmatpush1.bf16.msra.mxu0 %v1140
      %1343 = vmatprep.subr.bf16.mxu0 %v1137
      %1344 = vmatpush1.bf16.msra.mxu0 %v1136
      %1345 = vmatprep.subr.bf16.mxu0 %v1133
      %1346 = vmatpush1.bf16.msra.mxu0 %v1132
      %1347 = vmatprep.subr.bf16.mxu0 %v1129
      %1348 = vmatpush1.bf16.msra.mxu0 %v1128
      %1349 = vmatprep.subr.bf16.mxu0 %v1125
      %1350 = vmatpush1.bf16.msra.mxu0 %v1124
      %1351 = vmatprep.subr.bf16.mxu0 %v1121
      %1352 = vmatpush1.bf16.msra.mxu0 %v1120
      %1353 = vmatprep.subr.bf16.mxu0 %v1117
      %1354 = vmatpush1.bf16.msra.mxu0 %v1116
      %1355 = vmatprep.subr.bf16.mxu0 %v1177
      %1356 = vmatpush2.bf16.msra.mxu0 %v1176
      %1357 = vmatprep.subr.bf16.mxu0 %v1173
      %1358 = vmatpush2.bf16.msra.mxu0 %v1172
      %1359 = vmatprep.subr.bf16.mxu0 %v1169
      %1360 = vmatpush2.bf16.msra.mxu0 %v1168
      %1361 = vmatprep.subr.bf16.mxu0 %v1165
      %1362 = vmatpush2.bf16.msra.mxu0 %v1164
      %1363 = vmatprep.subr.bf16.mxu0 %v1161
      %1364 = vmatpush2.bf16.msra.mxu0 %v1160
      %1365 = vmatprep.subr.bf16.mxu0 %v1157
      %1366 = vmatpush2.bf16.msra.mxu0 %v1156
      %1367 = vmatprep.subr.bf16.mxu0 %v1153
      %1368 = vmatpush2.bf16.msra.mxu0 %v1152
      %1369 = vmatprep.subr.bf16.mxu0 %v1149
      %1370 = vmatpush2.bf16.msra.mxu0 %v1148
      %1371 = vmatprep.mubr.bf16.mxu0 %v906
      %1372 = vmatmul.mubr.bf16.gmra.mxu0 %v905
      %v1373 = vpop.f32.mrf.mxu0
      %v1374 = vadd.f32 %v887, %v1373
      %v1375 = vpop.f32.mrf.mxu0
      %v1376 = vadd.f32 %v889, %v1375
      %v1377 = vpop.f32.mrf.mxu0
      %v1378 = vadd.f32 %v891, %v1377
      %v1379 = vpop.f32.mrf.mxu0
      %v1380 = vadd.f32 %v893, %v1379
      %1381 = vdwg.mxu0
      %1382 = vmatprep.subr.bf16.mxu0 0
      %1383 = vmatpush1.bf16.msra.mxu0 0
      %1384 = vmatprep.subr.bf16.mxu0 0
      %1385 = vmatpush1.bf16.msra.mxu0 0
      %1386 = vmatprep.subr.bf16.mxu0 0
      %1387 = vmatpush1.bf16.msra.mxu0 0
      %1388 = vmatprep.subr.bf16.mxu0 0
      %1389 = vmatpush1.bf16.msra.mxu0 0
      %1390 = vmatprep.subr.bf16.mxu0 0
      %1391 = vmatpush1.bf16.msra.mxu0 0
      %1392 = vmatprep.subr.bf16.mxu0 0
      %1393 = vmatpush1.bf16.msra.mxu0 0
      %1394 = vmatprep.subr.bf16.mxu0 0
      %1395 = vmatpush1.bf16.msra.mxu0 0
      %1396 = vmatprep.subr.bf16.mxu0 %v1181
      %1397 = vmatpush1.bf16.msra.mxu0 %v1180
      %1398 = vmatprep.subr.bf16.mxu0 0
      %1399 = vmatpush2.bf16.msra.mxu0 0
      %1400 = vmatprep.subr.bf16.mxu0 0
      %1401 = vmatpush2.bf16.msra.mxu0 0
      %1402 = vmatprep.subr.bf16.mxu0 0
      %1403 = vmatpush2.bf16.msra.mxu0 0
      %1404 = vmatprep.subr.bf16.mxu0 0
      %1405 = vmatpush2.bf16.msra.mxu0 0
      %1406 = vmatprep.subr.bf16.mxu0 0
      %1407 = vmatpush2.bf16.msra.mxu0 0
      %1408 = vmatprep.subr.bf16.mxu0 0
      %1409 = vmatpush2.bf16.msra.mxu0 0
      %1410 = vmatprep.subr.bf16.mxu0 0
      %1411 = vmatpush2.bf16.msra.mxu0 0
      %1412 = vmatprep.subr.bf16.mxu0 0
      %1413 = vmatpush2.bf16.msra.mxu0 0
      %1414 = vmatprep.mubr.bf16.mxu0 0
      %1415 = vmatmul.mubr.bf16.gmra.mxu0 %v1251
      %v1416 = vpop.f32.mrf.mxu0
      %v1417 = vadd.f32 %v1374, %v1416
      %v1418 = vpop.f32.mrf.mxu0
      %v1419 = vadd.f32 %v1376, %v1418
      %v1420 = vpop.f32.mrf.mxu0
      %v1421 = vadd.f32 %v1378, %v1420
      %v1422 = vpop.f32.mrf.mxu0
      %v1423 = vadd.f32 %v1380, %v1422
      %1424 = vdwg.mxu0
      %v1425 = vld [vmem:[%s165] sm:$0xff]
      %v1426 = vld [vmem:[%s165 + $0x8] sm:$0xf]
      %v1427 = vld [vmem:[%s165 + $0xc] sm:$0xff]
      %v1428 = vld [vmem:[%s165 + $0x14] sm:$0xf]
      %v1429 = vld [vmem:[%s165 + $0x18] sm:$0x11]
      %v1430 = vld [vmem:[%s165 + $0x20] sm:$0x1]
      %s1431 = scalar_lea.vmem %s1, 1088
      %v1432 = vld [vmem:[%s1431] sm:$0xff]
      %v1433 = vld [vmem:[%s1431 + $0x8] sm:$0xff]
      %v1434 = vld [vmem:[%s1431 + $0x10] sm:$0xff]
      %v1435 = vld [vmem:[%s1431 + $0x18] sm:$0xff]
      %v1436 = vld [vmem:[%s1431 + $0x20] sm:$0xff]
      %v1437 = vld [vmem:[%s1431 + $0x28] sm:$0xff]
      %v1438 = vld [vmem:[%s1431 + $0x30] sm:$0xff]
      %v1439 = vld [vmem:[%s1431 + $0x38] sm:$0xff]
      %v1440 = vld [vmem:[%s1431 + $0x40] sm:$0xff]
      %v1441 = vld [vmem:[%s1431 + $0x48] sm:$0xff]
      %v1442 = vld [vmem:[%s1431 + $0x50] sm:$0xff]
      %v1443 = vld [vmem:[%s1431 + $0x58] sm:$0xff]
      %v1444 = vld [vmem:[%s1431 + $0x60] sm:$0xff]
      %v1445 = vld [vmem:[%s1431 + $0x68] sm:$0xff]
      %v1446 = vld [vmem:[%s1431 + $0x70] sm:$0xff]
      %v1447 = vld [vmem:[%s1431 + $0x78] sm:$0xff]
      %v1448 = vld [vmem:[%s1431 + $0x80] sm:$0xff]
      %v1449 = vld [vmem:[%s1431 + $0x88] sm:$0xff]
      %v1450 = vld [vmem:[%s1431 + $0x90] sm:$0xff]
      %v1451 = vld [vmem:[%s1431 + $0x98] sm:$0xff]
      %v1452 = vld [vmem:[%s1431 + $0xa0] sm:$0xff]
      %v1453 = vld [vmem:[%s1431 + $0xa8] sm:$0xff]
      %v1454 = vld [vmem:[%s1431 + $0xb0] sm:$0xff]
      %v1455 = vld [vmem:[%s1431 + $0xb8] sm:$0xff]
      %v1456 = vld [vmem:[%s1431 + $0xc0] sm:$0xff]
      %v1457 = vld [vmem:[%s1431 + $0xc8] sm:$0xff]
      %v1458 = vld [vmem:[%s1431 + $0xd0] sm:$0xff]
      %v1459 = vld [vmem:[%s1431 + $0xd8] sm:$0xff]
      %v1460 = vld [vmem:[%s1431 + $0xe0] sm:$0xff]
      %v1461 = vld [vmem:[%s1431 + $0xe8] sm:$0xff]
      %v1462 = vld [vmem:[%s1431 + $0xf0] sm:$0xff]
      %v1463 = vld [vmem:[%s1431 + $0xf8] sm:$0xff]
      %v1464 = vld [vmem:[%s1431 + $0x100] sm:$0xff]
      %v1465 = vld [vmem:[%s1431 + $0x108] sm:$0xff]
      %v1466 = vld [vmem:[%s1431 + $0x110] sm:$0xff]
      %v1467 = vld [vmem:[%s1431 + $0x118] sm:$0xff]
      %v1468 = vld [vmem:[%s1431 + $0x120] sm:$0xff]
      %v1469 = vld [vmem:[%s1431 + $0x128] sm:$0xff]
      %v1470 = vld [vmem:[%s1431 + $0x130] sm:$0xff]
      %v1471 = vld [vmem:[%s1431 + $0x138] sm:$0xff]
      %v1472 = vld [vmem:[%s1431 + $0x140] sm:$0xff]
      %v1473 = vld [vmem:[%s1431 + $0x148] sm:$0xff]
      %v1474 = vld [vmem:[%s1431 + $0x150] sm:$0xff]
      %v1475 = vld [vmem:[%s1431 + $0x158] sm:$0xff]
      %v1476 = vld [vmem:[%s1431 + $0x160] sm:$0xff]
      %v1477 = vld [vmem:[%s1431 + $0x168] sm:$0xff]
      %v1478 = vld [vmem:[%s1431 + $0x170] sm:$0xff]
      %v1479 = vld [vmem:[%s1431 + $0x178] sm:$0xff]
      %v1480 = vld [vmem:[%s1431 + $0x180] sm:$0xff]
      %v1481 = vld [vmem:[%s1431 + $0x188] sm:$0xff]
      %v1482 = vld [vmem:[%s1431 + $0x190] sm:$0xff]
      %v1483 = vld [vmem:[%s1431 + $0x198] sm:$0xff]
      %v1484 = vld [vmem:[%s1431 + $0x1a0] sm:$0xff]
      %v1485 = vld [vmem:[%s1431 + $0x1a8] sm:$0xff]
      %v1486 = vld [vmem:[%s1431 + $0x1b0] sm:$0xff]
      %v1487 = vld [vmem:[%s1431 + $0x1b8] sm:$0xff]
      %v1488 = vld [vmem:[%s1431 + $0x1c0] sm:$0xff]
      %v1489 = vld [vmem:[%s1431 + $0x1c8] sm:$0xff]
      %v1490 = vld [vmem:[%s1431 + $0x1d0] sm:$0xff]
      %v1491 = vld [vmem:[%s1431 + $0x1d8] sm:$0xff]
      %v1492 = vld [vmem:[%s1431 + $0x1e0] sm:$0xff]
      %v1493 = vld [vmem:[%s1431 + $0x1e8] sm:$0xff]
      %v1494 = vld [vmem:[%s1431 + $0x1f0] sm:$0xff]
      %v1495 = vld [vmem:[%s1431 + $0x1f8] sm:$0xff]
      %v1496 = vld [vmem:[%s1431 + $0x200] sm:$0xff]
      %v1497 = vld [vmem:[%s1431 + $0x208] sm:$0xff]
      %v1498 = vld [vmem:[%s1431 + $0x210] sm:$0xff]
      %v1499 = vld [vmem:[%s1431 + $0x218] sm:$0xff]
      %v1506 = vunpack.c.l.b16 %v1425
      %v1507 = vunpack.c.h.b16 %v1425
      %v1508 = vunpack.c.l.b16 %v1426
      %v1509 = vunpack.c.l.b16 %v1427
      %v1510 = vunpack.c.h.b16 %v1427
      %v1511 = vunpack.c.l.b16 %v1428
      %v1512 = vunpack.c.l.b16 %v1429
      %v1513 = vunpack.c.h.b16 %v1429
      %v1514 = vunpack.c.l.b16 %v1430
      %v1515 = vpack.c.b16 %v1509, %v1506
      %v1516 = vpack.c.b16 %v1510, %v1507
      %v1517 = vpack.c.b16 %v1511, %v1508
      %v1518 = vpack.c.b16 %v1512, %v1512
      %v1519 = vpack.c.b16 %v1513, %v1513
      %v1520 = vpack.c.b16 %v1514, %v1514
      %v1522 = vshrl.u32 %v1515, 16
      %v1524 = vshll.u32 %v1515, 16
      %v1526 = vrot.slane %v1524, 1
      %v1527 = vor.u32 %v1522, %v1526
      %v1529 = vshll.u32 %v1518, 16
      %v1531 = vrot.slane %v1529, 1
      %v1532 = vsel %vm340, %v1527, %v1531
      %v1534 = vshrl.u32 %v1516, 16
      %v1536 = vshll.u32 %v1516, 16
      %v1538 = vrot.slane %v1536, 1
      %v1539 = vor.u32 %v1534, %v1538
      %v1541 = vshll.u32 %v1519, 16
      %v1543 = vrot.slane %v1541, 1
      %v1544 = vsel %vm340, %v1539, %v1543
      %v1546 = vshrl.u32 %v1517, 16
      %v1548 = vshll.u32 %v1517, 16
      %v1550 = vrot.slane %v1548, 1
      %v1551 = vor.u32 %v1546, %v1550
      %v1553 = vshll.u32 %v1520, 16
      %v1555 = vrot.slane %v1553, 1
      %v1556 = vsel %vm340, %v1551, %v1555
      %v1627 = vunpack.c.l.b16 %v1432
      %v1628 = vunpack.c.h.b16 %v1432
      %v1629 = vunpack.c.l.b16 %v1433
      %v1630 = vunpack.c.h.b16 %v1433
      %v1631 = vunpack.c.l.b16 %v1434
      %v1632 = vunpack.c.h.b16 %v1434
      %v1633 = vunpack.c.l.b16 %v1435
      %v1634 = vunpack.c.h.b16 %v1435
      %v1635 = vunpack.c.l.b16 %v1436
      %v1636 = vunpack.c.h.b16 %v1436
      %v1637 = vunpack.c.l.b16 %v1437
      %v1638 = vunpack.c.h.b16 %v1437
      %v1639 = vunpack.c.l.b16 %v1438
      %v1640 = vunpack.c.h.b16 %v1438
      %v1641 = vunpack.c.l.b16 %v1439
      %v1642 = vunpack.c.h.b16 %v1439
      %v1643 = vunpack.c.l.b16 %v1440
      %v1644 = vunpack.c.h.b16 %v1440
      %v1645 = vunpack.c.l.b16 %v1441
      %v1646 = vunpack.c.h.b16 %v1441
      %v1647 = vunpack.c.l.b16 %v1442
      %v1648 = vunpack.c.h.b16 %v1442
      %v1649 = vunpack.c.l.b16 %v1443
      %v1650 = vunpack.c.h.b16 %v1443
      %v1651 = vunpack.c.l.b16 %v1444
      %v1652 = vunpack.c.h.b16 %v1444
      %v1653 = vunpack.c.l.b16 %v1445
      %v1654 = vunpack.c.h.b16 %v1445
      %v1655 = vunpack.c.l.b16 %v1446
      %v1656 = vunpack.c.h.b16 %v1446
      %v1657 = vunpack.c.l.b16 %v1447
      %v1658 = vunpack.c.h.b16 %v1447
      %v1659 = vunpack.c.l.b16 %v1448
      %v1660 = vunpack.c.h.b16 %v1448
      %v1661 = vunpack.c.l.b16 %v1449
      %v1662 = vunpack.c.h.b16 %v1449
      %v1663 = vunpack.c.l.b16 %v1450
      %v1664 = vunpack.c.h.b16 %v1450
      %v1665 = vunpack.c.l.b16 %v1451
      %v1666 = vunpack.c.h.b16 %v1451
      %v1667 = vunpack.c.l.b16 %v1452
      %v1668 = vunpack.c.h.b16 %v1452
      %v1669 = vunpack.c.l.b16 %v1453
      %v1670 = vunpack.c.h.b16 %v1453
      %v1671 = vunpack.c.l.b16 %v1454
      %v1672 = vunpack.c.h.b16 %v1454
      %v1673 = vunpack.c.l.b16 %v1455
      %v1674 = vunpack.c.h.b16 %v1455
      %v1675 = vunpack.c.l.b16 %v1456
      %v1676 = vunpack.c.h.b16 %v1456
      %v1677 = vunpack.c.l.b16 %v1457
      %v1678 = vunpack.c.h.b16 %v1457
      %v1679 = vunpack.c.l.b16 %v1458
      %v1680 = vunpack.c.h.b16 %v1458
      %v1681 = vunpack.c.l.b16 %v1459
      %v1682 = vunpack.c.h.b16 %v1459
      %v1683 = vunpack.c.l.b16 %v1460
      %v1684 = vunpack.c.h.b16 %v1460
      %v1685 = vunpack.c.l.b16 %v1461
      %v1686 = vunpack.c.h.b16 %v1461
      %v1687 = vunpack.c.l.b16 %v1462
      %v1688 = vunpack.c.h.b16 %v1462
      %v1689 = vunpack.c.l.b16 %v1463
      %v1690 = vunpack.c.h.b16 %v1463
      %v1691 = vunpack.c.l.b16 %v1464
      %v1692 = vunpack.c.h.b16 %v1464
      %v1693 = vunpack.c.l.b16 %v1465
      %v1694 = vunpack.c.h.b16 %v1465
      %v1695 = vunpack.c.l.b16 %v1466
      %v1696 = vunpack.c.h.b16 %v1466
      %v1697 = vunpack.c.l.b16 %v1467
      %v1698 = vunpack.c.h.b16 %v1467
      %v1699 = vunpack.c.l.b16 %v1468
      %v1700 = vunpack.c.h.b16 %v1468
      %v1701 = vunpack.c.l.b16 %v1469
      %v1702 = vunpack.c.h.b16 %v1469
      %v1703 = vunpack.c.l.b16 %v1470
      %v1704 = vunpack.c.h.b16 %v1470
      %v1705 = vunpack.c.l.b16 %v1471
      %v1706 = vunpack.c.h.b16 %v1471
      %v1707 = vunpack.c.l.b16 %v1472
      %v1708 = vunpack.c.h.b16 %v1472
      %v1709 = vunpack.c.l.b16 %v1473
      %v1710 = vunpack.c.h.b16 %v1473
      %v1711 = vunpack.c.l.b16 %v1474
      %v1712 = vunpack.c.h.b16 %v1474
      %v1713 = vunpack.c.l.b16 %v1475
      %v1714 = vunpack.c.h.b16 %v1475
      %v1715 = vunpack.c.l.b16 %v1476
      %v1716 = vunpack.c.h.b16 %v1476
      %v1717 = vunpack.c.l.b16 %v1477
      %v1718 = vunpack.c.h.b16 %v1477
      %v1719 = vunpack.c.l.b16 %v1478
      %v1720 = vunpack.c.h.b16 %v1478
      %v1721 = vunpack.c.l.b16 %v1479
      %v1722 = vunpack.c.h.b16 %v1479
      %v1723 = vunpack.c.l.b16 %v1480
      %v1724 = vunpack.c.h.b16 %v1480
      %v1725 = vunpack.c.l.b16 %v1481
      %v1726 = vunpack.c.h.b16 %v1481
      %v1727 = vunpack.c.l.b16 %v1482
      %v1728 = vunpack.c.h.b16 %v1482
      %v1729 = vunpack.c.l.b16 %v1483
      %v1730 = vunpack.c.h.b16 %v1483
      %v1731 = vunpack.c.l.b16 %v1484
      %v1732 = vunpack.c.h.b16 %v1484
      %v1733 = vunpack.c.l.b16 %v1485
      %v1734 = vunpack.c.h.b16 %v1485
      %v1735 = vunpack.c.l.b16 %v1486
      %v1736 = vunpack.c.h.b16 %v1486
      %v1737 = vunpack.c.l.b16 %v1487
      %v1738 = vunpack.c.h.b16 %v1487
      %v1739 = vunpack.c.l.b16 %v1488
      %v1740 = vunpack.c.h.b16 %v1488
      %v1741 = vunpack.c.l.b16 %v1489
      %v1742 = vunpack.c.h.b16 %v1489
      %v1743 = vunpack.c.l.b16 %v1490
      %v1744 = vunpack.c.h.b16 %v1490
      %v1745 = vunpack.c.l.b16 %v1491
      %v1746 = vunpack.c.h.b16 %v1491
      %v1747 = vunpack.c.l.b16 %v1492
      %v1748 = vunpack.c.h.b16 %v1492
      %v1749 = vunpack.c.l.b16 %v1493
      %v1750 = vunpack.c.h.b16 %v1493
      %v1751 = vunpack.c.l.b16 %v1494
      %v1752 = vunpack.c.h.b16 %v1494
      %v1753 = vunpack.c.l.b16 %v1495
      %v1754 = vunpack.c.h.b16 %v1495
      %v1755 = vunpack.c.l.b16 %v1496
      %v1756 = vunpack.c.h.b16 %v1496
      %v1757 = vunpack.c.l.b16 %v1497
      %v1758 = vunpack.c.h.b16 %v1497
      %v1759 = vunpack.c.l.b16 %v1498
      %v1760 = vunpack.c.h.b16 %v1498
      %v1761 = vunpack.c.l.b16 %v1499
      %v1762 = vunpack.c.h.b16 %v1499
      %v1763 = vpack.c.b16 %v1631, %v1627
      %v1764 = vpack.c.b16 %v1632, %v1628
      %v1765 = vpack.c.b16 %v1633, %v1629
      %v1766 = vpack.c.b16 %v1634, %v1630
      %v1767 = vpack.c.b16 %v1639, %v1635
      %v1768 = vpack.c.b16 %v1640, %v1636
      %v1769 = vpack.c.b16 %v1641, %v1637
      %v1770 = vpack.c.b16 %v1642, %v1638
      %v1771 = vpack.c.b16 %v1647, %v1643
      %v1772 = vpack.c.b16 %v1648, %v1644
      %v1773 = vpack.c.b16 %v1649, %v1645
      %v1774 = vpack.c.b16 %v1650, %v1646
      %v1775 = vpack.c.b16 %v1655, %v1651
      %v1776 = vpack.c.b16 %v1656, %v1652
      %v1777 = vpack.c.b16 %v1657, %v1653
      %v1778 = vpack.c.b16 %v1658, %v1654
      %v1779 = vpack.c.b16 %v1663, %v1659
      %v1780 = vpack.c.b16 %v1664, %v1660
      %v1781 = vpack.c.b16 %v1665, %v1661
      %v1782 = vpack.c.b16 %v1666, %v1662
      %v1783 = vpack.c.b16 %v1671, %v1667
      %v1784 = vpack.c.b16 %v1672, %v1668
      %v1785 = vpack.c.b16 %v1673, %v1669
      %v1786 = vpack.c.b16 %v1674, %v1670
      %v1787 = vpack.c.b16 %v1679, %v1675
      %v1788 = vpack.c.b16 %v1680, %v1676
      %v1789 = vpack.c.b16 %v1681, %v1677
      %v1790 = vpack.c.b16 %v1682, %v1678
      %v1791 = vpack.c.b16 %v1687, %v1683
      %v1792 = vpack.c.b16 %v1688, %v1684
      %v1793 = vpack.c.b16 %v1689, %v1685
      %v1794 = vpack.c.b16 %v1690, %v1686
      %v1795 = vpack.c.b16 %v1695, %v1691
      %v1796 = vpack.c.b16 %v1696, %v1692
      %v1797 = vpack.c.b16 %v1697, %v1693
      %v1798 = vpack.c.b16 %v1698, %v1694
      %v1799 = vpack.c.b16 %v1703, %v1699
      %v1800 = vpack.c.b16 %v1704, %v1700
      %v1801 = vpack.c.b16 %v1705, %v1701
      %v1802 = vpack.c.b16 %v1706, %v1702
      %v1803 = vpack.c.b16 %v1711, %v1707
      %v1804 = vpack.c.b16 %v1712, %v1708
      %v1805 = vpack.c.b16 %v1713, %v1709
      %v1806 = vpack.c.b16 %v1714, %v1710
      %v1807 = vpack.c.b16 %v1719, %v1715
      %v1808 = vpack.c.b16 %v1720, %v1716
      %v1809 = vpack.c.b16 %v1721, %v1717
      %v1810 = vpack.c.b16 %v1722, %v1718
      %v1811 = vpack.c.b16 %v1727, %v1723
      %v1812 = vpack.c.b16 %v1728, %v1724
      %v1813 = vpack.c.b16 %v1729, %v1725
      %v1814 = vpack.c.b16 %v1730, %v1726
      %v1815 = vpack.c.b16 %v1735, %v1731
      %v1816 = vpack.c.b16 %v1736, %v1732
      %v1817 = vpack.c.b16 %v1737, %v1733
      %v1818 = vpack.c.b16 %v1738, %v1734
      %v1819 = vpack.c.b16 %v1743, %v1739
      %v1820 = vpack.c.b16 %v1744, %v1740
      %v1821 = vpack.c.b16 %v1745, %v1741
      %v1822 = vpack.c.b16 %v1746, %v1742
      %v1823 = vpack.c.b16 %v1751, %v1747
      %v1824 = vpack.c.b16 %v1752, %v1748
      %v1825 = vpack.c.b16 %v1753, %v1749
      %v1826 = vpack.c.b16 %v1754, %v1750
      %v1827 = vpack.c.b16 %v1759, %v1755
      %v1828 = vpack.c.b16 %v1760, %v1756
      %v1829 = vpack.c.b16 %v1761, %v1757
      %v1830 = vpack.c.b16 %v1762, %v1758
      %v1900 = vsel %vm719, %v1556, 0
      %1902 = vmatprep.subr.bf16.mxu0 %v1792
      %1903 = vmatpush1.bf16.msra.mxu0 %v1791
      %1904 = vmatprep.subr.bf16.mxu0 %v1788
      %1905 = vmatpush1.bf16.msra.mxu0 %v1787
      %1906 = vmatprep.subr.bf16.mxu0 %v1784
      %1907 = vmatpush1.bf16.msra.mxu0 %v1783
      %1908 = vmatprep.subr.bf16.mxu0 %v1780
      %1909 = vmatpush1.bf16.msra.mxu0 %v1779
      %1910 = vmatprep.subr.bf16.mxu0 %v1776
      %1911 = vmatpush1.bf16.msra.mxu0 %v1775
      %1912 = vmatprep.subr.bf16.mxu0 %v1772
      %1913 = vmatpush1.bf16.msra.mxu0 %v1771
      %1914 = vmatprep.subr.bf16.mxu0 %v1768
      %1915 = vmatpush1.bf16.msra.mxu0 %v1767
      %1916 = vmatprep.subr.bf16.mxu0 %v1764
      %1917 = vmatpush1.bf16.msra.mxu0 %v1763
      %1918 = vmatprep.subr.bf16.mxu0 %v1824
      %1919 = vmatpush2.bf16.msra.mxu0 %v1823
      %1920 = vmatprep.subr.bf16.mxu0 %v1820
      %1921 = vmatpush2.bf16.msra.mxu0 %v1819
      %1922 = vmatprep.subr.bf16.mxu0 %v1816
      %1923 = vmatpush2.bf16.msra.mxu0 %v1815
      %1924 = vmatprep.subr.bf16.mxu0 %v1812
      %1925 = vmatpush2.bf16.msra.mxu0 %v1811
      %1926 = vmatprep.subr.bf16.mxu0 %v1808
      %1927 = vmatpush2.bf16.msra.mxu0 %v1807
      %1928 = vmatprep.subr.bf16.mxu0 %v1804
      %1929 = vmatpush2.bf16.msra.mxu0 %v1803
      %1930 = vmatprep.subr.bf16.mxu0 %v1800
      %1931 = vmatpush2.bf16.msra.mxu0 %v1799
      %1932 = vmatprep.subr.bf16.mxu0 %v1796
      %1933 = vmatpush2.bf16.msra.mxu0 %v1795
      %1934 = vmatprep.mubr.bf16.mxu0 %v1544
      %1935 = vmatmul.mubr.bf16.gmra.mxu0 %v1532
      %v1936 = vpop.f32.mrf.mxu0
      %v1937 = vadd.f32 0.0, %v1936
      %v1938 = vpop.f32.mrf.mxu0
      %v1939 = vadd.f32 0.0, %v1938
      %v1940 = vpop.f32.mrf.mxu0
      %v1941 = vadd.f32 0.0, %v1940
      %v1942 = vpop.f32.mrf.mxu0
      %v1943 = vadd.f32 0.0, %v1942
      %1944 = vdwg.mxu0
      %1945 = vmatprep.subr.bf16.mxu0 0
      %1946 = vmatpush1.bf16.msra.mxu0 0
      %1947 = vmatprep.subr.bf16.mxu0 0
      %1948 = vmatpush1.bf16.msra.mxu0 0
      %1949 = vmatprep.subr.bf16.mxu0 0
      %1950 = vmatpush1.bf16.msra.mxu0 0
      %1951 = vmatprep.subr.bf16.mxu0 0
      %1952 = vmatpush1.bf16.msra.mxu0 0
      %1953 = vmatprep.subr.bf16.mxu0 0
      %1954 = vmatpush1.bf16.msra.mxu0 0
      %1955 = vmatprep.subr.bf16.mxu0 0
      %1956 = vmatpush1.bf16.msra.mxu0 0
      %1957 = vmatprep.subr.bf16.mxu0 0
      %1958 = vmatpush1.bf16.msra.mxu0 0
      %1959 = vmatprep.subr.bf16.mxu0 %v1828
      %1960 = vmatpush1.bf16.msra.mxu0 %v1827
      %1961 = vmatprep.subr.bf16.mxu0 0
      %1962 = vmatpush2.bf16.msra.mxu0 0
      %1963 = vmatprep.subr.bf16.mxu0 0
      %1964 = vmatpush2.bf16.msra.mxu0 0
      %1965 = vmatprep.subr.bf16.mxu0 0
      %1966 = vmatpush2.bf16.msra.mxu0 0
      %1967 = vmatprep.subr.bf16.mxu0 0
      %1968 = vmatpush2.bf16.msra.mxu0 0
      %1969 = vmatprep.subr.bf16.mxu0 0
      %1970 = vmatpush2.bf16.msra.mxu0 0
      %1971 = vmatprep.subr.bf16.mxu0 0
      %1972 = vmatpush2.bf16.msra.mxu0 0
      %1973 = vmatprep.subr.bf16.mxu0 0
      %1974 = vmatpush2.bf16.msra.mxu0 0
      %1975 = vmatprep.subr.bf16.mxu0 0
      %1976 = vmatpush2.bf16.msra.mxu0 0
      %1977 = vmatprep.mubr.bf16.mxu0 0
      %1978 = vmatmul.mubr.bf16.gmra.mxu0 %v1900
      %v1979 = vpop.f32.mrf.mxu0
      %v1980 = vadd.f32 %v1937, %v1979
      %v1981 = vpop.f32.mrf.mxu0
      %v1982 = vadd.f32 %v1939, %v1981
      %v1983 = vpop.f32.mrf.mxu0
      %v1984 = vadd.f32 %v1941, %v1983
      %v1985 = vpop.f32.mrf.mxu0
      %v1986 = vadd.f32 %v1943, %v1985
      %1987 = vdwg.mxu0
      %1988 = vmatprep.subr.bf16.mxu0 %v1794
      %1989 = vmatpush1.bf16.msra.mxu0 %v1793
      %1990 = vmatprep.subr.bf16.mxu0 %v1790
      %1991 = vmatpush1.bf16.msra.mxu0 %v1789
      %1992 = vmatprep.subr.bf16.mxu0 %v1786
      %1993 = vmatpush1.bf16.msra.mxu0 %v1785
      %1994 = vmatprep.subr.bf16.mxu0 %v1782
      %1995 = vmatpush1.bf16.msra.mxu0 %v1781
      %1996 = vmatprep.subr.bf16.mxu0 %v1778
      %1997 = vmatpush1.bf16.msra.mxu0 %v1777
      %1998 = vmatprep.subr.bf16.mxu0 %v1774
      %1999 = vmatpush1.bf16.msra.mxu0 %v1773
      %2000 = vmatprep.subr.bf16.mxu0 %v1770
      %2001 = vmatpush1.bf16.msra.mxu0 %v1769
      %2002 = vmatprep.subr.bf16.mxu0 %v1766
      %2003 = vmatpush1.bf16.msra.mxu0 %v1765
      %2004 = vmatprep.subr.bf16.mxu0 %v1826
      %2005 = vmatpush2.bf16.msra.mxu0 %v1825
      %2006 = vmatprep.subr.bf16.mxu0 %v1822
      %2007 = vmatpush2.bf16.msra.mxu0 %v1821
      %2008 = vmatprep.subr.bf16.mxu0 %v1818
      %2009 = vmatpush2.bf16.msra.mxu0 %v1817
      %2010 = vmatprep.subr.bf16.mxu0 %v1814
      %2011 = vmatpush2.bf16.msra.mxu0 %v1813
      %2012 = vmatprep.subr.bf16.mxu0 %v1810
      %2013 = vmatpush2.bf16.msra.mxu0 %v1809
      %2014 = vmatprep.subr.bf16.mxu0 %v1806
      %2015 = vmatpush2.bf16.msra.mxu0 %v1805
      %2016 = vmatprep.subr.bf16.mxu0 %v1802
      %2017 = vmatpush2.bf16.msra.mxu0 %v1801
      %2018 = vmatprep.subr.bf16.mxu0 %v1798
      %2019 = vmatpush2.bf16.msra.mxu0 %v1797
      %2020 = vmatprep.mubr.bf16.mxu0 %v1544
      %2021 = vmatmul.mubr.bf16.gmra.mxu0 %v1532
      %v2022 = vpop.f32.mrf.mxu0
      %v2023 = vadd.f32 0.0, %v2022
      %v2024 = vpop.f32.mrf.mxu0
      %v2025 = vadd.f32 0.0, %v2024
      %v2026 = vpop.f32.mrf.mxu0
      %v2027 = vadd.f32 0.0, %v2026
      %v2028 = vpop.f32.mrf.mxu0
      %v2029 = vadd.f32 0.0, %v2028
      %2030 = vdwg.mxu0
      %2031 = vmatprep.subr.bf16.mxu0 0
      %2032 = vmatpush1.bf16.msra.mxu0 0
      %2033 = vmatprep.subr.bf16.mxu0 0
      %2034 = vmatpush1.bf16.msra.mxu0 0
      %2035 = vmatprep.subr.bf16.mxu0 0
      %2036 = vmatpush1.bf16.msra.mxu0 0
      %2037 = vmatprep.subr.bf16.mxu0 0
      %2038 = vmatpush1.bf16.msra.mxu0 0
      %2039 = vmatprep.subr.bf16.mxu0 0
      %2040 = vmatpush1.bf16.msra.mxu0 0
      %2041 = vmatprep.subr.bf16.mxu0 0
      %2042 = vmatpush1.bf16.msra.mxu0 0
      %2043 = vmatprep.subr.bf16.mxu0 0
      %2044 = vmatpush1.bf16.msra.mxu0 0
      %2045 = vmatprep.subr.bf16.mxu0 %v1830
      %2046 = vmatpush1.bf16.msra.mxu0 %v1829
      %2047 = vmatprep.subr.bf16.mxu0 0
      %2048 = vmatpush2.bf16.msra.mxu0 0
      %2049 = vmatprep.subr.bf16.mxu0 0
      %2050 = vmatpush2.bf16.msra.mxu0 0
      %2051 = vmatprep.subr.bf16.mxu0 0
      %2052 = vmatpush2.bf16.msra.mxu0 0
      %2053 = vmatprep.subr.bf16.mxu0 0
      %2054 = vmatpush2.bf16.msra.mxu0 0
      %2055 = vmatprep.subr.bf16.mxu0 0
      %2056 = vmatpush2.bf16.msra.mxu0 0
      %2057 = vmatprep.subr.bf16.mxu0 0
      %2058 = vmatpush2.bf16.msra.mxu0 0
      %2059 = vmatprep.subr.bf16.mxu0 0
      %2060 = vmatpush2.bf16.msra.mxu0 0
      %2061 = vmatprep.subr.bf16.mxu0 0
      %2062 = vmatpush2.bf16.msra.mxu0 0
      %2063 = vmatprep.mubr.bf16.mxu0 0
      %2064 = vmatmul.mubr.bf16.gmra.mxu0 %v1900
      %v2065 = vpop.f32.mrf.mxu0
      %v2066 = vadd.f32 %v2023, %v2065
      %v2067 = vpop.f32.mrf.mxu0
      %v2068 = vadd.f32 %v2025, %v2067
      %v2069 = vpop.f32.mrf.mxu0
      %v2070 = vadd.f32 %v2027, %v2069
      %v2071 = vpop.f32.mrf.mxu0
      %v2072 = vadd.f32 %v2029, %v2071
      %2073 = vdwg.mxu0
      %v2074 = vadd.f32 %v1331, %v1980
      %v2075 = vadd.f32 %v1333, %v1982
      %v2076 = vadd.f32 %v1417, %v2066
      %v2077 = vadd.f32 %v1419, %v2068
      %v2078 = vadd.f32 %v1335, %v1984
      %v2079 = vadd.f32 %v1337, %v1986
      %v2080 = vadd.f32 %v1421, %v2070
      %v2081 = vadd.f32 %v1423, %v2072
      %v2082 = vld [vmem:[%s2] sm:$0xf]
      %v2084 = vlaneseq
      %v2085 = vshrl.u32 %v2084, 7
      %v2086 = vsub.s32 0, %v2085
      %v2087 = vrot.slane %v2082, %v2086
      %v2088 = vlaneseq
      %v2089 = vshrl.u32 %v2088, 7
      %v2090 = vsub.s32 1, %v2089
      %v2091 = vrot.slane %v2082, %v2090
      %v2092 = vlaneseq
      %v2093 = vshrl.u32 %v2092, 7
      %v2094 = vsub.s32 2, %v2093
      %v2095 = vrot.slane %v2082, %v2094
      %v2096 = vlaneseq
      %v2097 = vshrl.u32 %v2096, 7
      %v2098 = vsub.s32 3, %v2097
      %v2099 = vrot.slane %v2082, %v2098
      %v2104 = vadd.f32 %v2074, %v2087
      %v2105 = vadd.f32 %v2075, %v2091
      %v2106 = vadd.f32 %v2076, %v2095
      %v2107 = vadd.f32 %v2077, %v2099
      %v2108 = vadd.f32 %v2078, %v2087
      %v2109 = vadd.f32 %v2079, %v2091
      %v2110 = vadd.f32 %v2080, %v2095
      %v2111 = vadd.f32 %v2081, %v2099
      %v2112 = vmax.f32 %v2104, 0.0
      %v2113 = vmax.f32 %v2105, 0.0
      %v2114 = vmax.f32 %v2106, 0.0
      %v2115 = vmax.f32 %v2107, 0.0
      %v2116 = vmax.f32 %v2108, 0.0
      %v2117 = vmax.f32 %v2109, 0.0
      %v2118 = vmax.f32 %v2110, 0.0
      %v2119 = vmax.f32 %v2111, 0.0
      %v2120 = vpack.c.bf16 %v2116, %v2112
      %v2121 = vpack.c.bf16 %v2117, %v2113
      %v2122 = vpack.c.bf16 %v2118, %v2114
      %v2123 = vpack.c.bf16 %v2119, %v2115
      %v2128 = vunpack.c.l.b16 %v2120
      %v2129 = vunpack.c.l.b16 %v2121
      %v2130 = vunpack.c.l.b16 %v2122
      %v2131 = vunpack.c.l.b16 %v2123
      %v2132 = vunpack.c.h.b16 %v2120
      %v2133 = vunpack.c.h.b16 %v2121
      %v2134 = vunpack.c.h.b16 %v2122
      %v2135 = vunpack.c.h.b16 %v2123
      %v2136 = vpack.c.b16 %v2129, %v2128
      %v2137 = vpack.c.b16 %v2131, %v2130
      %v2138 = vpack.c.b16 %v2133, %v2132
      %v2139 = vpack.c.b16 %v2135, %v2134
      %2144 = vst [vmem:[%s170] sm:$0xff] %v2136
      %2145 = vst [vmem:[%s170 + $0x8] sm:$0xff] %v2137
      %2146 = vst [vmem:[%s170 + $0x10] sm:$0xff] %v2138
      %2147 = vst [vmem:[%s170 + $0x18] sm:$0xff] %v2139
      %p2148 = scmp.lt.s32.totalorder %s14, 1
      %s2149 = scalar_select %p2148, %s14, 1
      %s2150 = smul.addr %s2149, 8
      %s2151 = smul.addr %s2150, 4
      %s2152 = scalar_lea.vmem %s3, %s2151
      // Predicated region
      $region33: #{convnet4_forward.4} parent=31 // pred_check
        %p2153 = pneg %p100
      $region34: #{convnet4_forward.4} parent=31 // pred_check_branch
        %2155 = sbr.rel (%p2153) target = $region36
      $region35: #{convnet4_forward.4} parent=31 // pred_region
        _
      $region36: #{convnet4_forward.4} parent=31 // pred_fallthru
        _
    $region32: #{convnet4_forward.4} parent=5 // pred_fallthru
      _
    %p2156 = scmp.le.s32.totalorder 2, %s9
    // Predicated region
    $region37: #{convnet4_forward.4} parent=5 // pred_check
      %p2157 = pneg %p2156
    $region38: #{convnet4_forward.4} parent=5 // pred_check_branch
      %2159 = sbr.rel (%p2157) target = $region40
    $region39: #{convnet4_forward.4} parent=5 // pred_region
      %s2160 = ssub.s32 %s9, 2
      // Predicated region
      $region41: #{convnet4_forward.4} parent=39 // pred_check
        %p2161 = pneg %p106
      $region42: #{convnet4_forward.4} parent=39 // pred_check_branch
        %2163 = sbr.rel (%p2161) target = $region44
      $region43: #{convnet4_forward.4} parent=39 // pred_region
        %p2164 = scmp.lt.s32.totalorder %s15, 1
        %s2165 = scalar_select %p2164, %s15, 1
        %s2166 = smul.addr %s2165, 8
        %s2167 = smul.addr %s2166, 4
        %s2168 = scalar_lea.vmem %s3, %s2167
      $region44: #{convnet4_forward.4} parent=39 // pred_fallthru
        _
    $region40: #{convnet4_forward.4} parent=5 // pred_fallthru
      _
  $region6: #{convnet4_forward.4} parent=0 // loop_footer
    %s13 = sadd.s32 1, %s9
  $region7: #{convnet4_forward.4} parent=0 // loop_footer_branch
    %8 = sbr.rel target = $region3
  $region8: #{convnet4_forward.4} parent=0 // loop_exit
    _

// kernel: convnet4_forward.5
$region0: #{convnet4_forward.5}
  #allocation0 [shape = 'u32[]', space=smem, size = 0x4, offset = 0x4, fixed_abs, tag = 'smem constant byte address 0x4 - core index']
  #allocation1 [shape = 'u32[144,128]{1,0:T(1,128)}', space=vmem, size = 0x12000, scoped, tag = 'internal scratch']
  %s0 = inlined_call_operand.vmem [shape: bf16[2,18,576], index: 0, kind: input, shape index: {}]
  %s1 = inlined_call_operand.vmem [shape: bf16[3,576,512], index: 1, kind: input, shape index: {}]
  %s2 = inlined_call_operand.vmem [shape: f32[1,512], index: 2, kind: input, shape index: {}]
  %s3 = inlined_call_operand.vmem [shape: bf16[2,16,512], index: 3, kind: output, shape index: {}]
  %s4 = sld [smem:[#allocation0]]
  $region45: #{convnet4_forward.5} parent=0
    _
  %s6 = ssub.s32 1, %s4
  %s7 = scalar_select 0, %s6, %s4
  loop: start=0, step=1, limit=4
  $region2: #{convnet4_forward.5} parent=0 // loop_pre_header
    _
  $region3: #{convnet4_forward.5} parent=0 // loop_header
    %s9 = sphi 0, %s13
    %p10 = scmp.ge.s32.totalorder %s9, 4
    %s19 = sphi 0, %s21
    %s22 = sphi 0, %s19
    %s23 = sphi 0, %s22
    %s39 = sphi 0, %s23
    %s43 = sphi 0, %s43
    %s45 = sphi 0, %s43
    %s46 = sphi 0, %s45
    %s60 = sphi 0, %s46
    %s64 = sphi 0, %s64
    %s66 = sphi 0, %s64
    %s67 = sphi 0, %s66
    %s81 = sphi 0, %s67
    %s87 = sphi 0, %s89
    %s90 = sphi 0, %s87
    %s91 = sphi 0, %s90
    %s107 = sphi 0, %s91
  $region4: #{convnet4_forward.5} parent=0 // loop_header_branch
    %12 = sbr.rel (%p10) target = $region8
  $region5: #{convnet4_forward.5} parent=0 // loop_body
    %s14 = ssub.s32 %s9, 1
    %s15 = ssub.s32 %s9, 2
    %s16 = sadd.s32 %s9, 1
    %s17 = ssub.s32 %s9, %s16
    %p18 = scmp.eq.s32.totalorder %s17, 0
    %s20 = sadd.s32 %s19, 1
    %s21 = scalar_select %p18, %s19, %s20
    %p24 = pneg %p18
    %p25 = scmp.eq.s32.totalorder %s9, 1
    %p26 = por %p24, %p25
    %p27 = scmp.ne.s32.totalorder %s19, %s22
    %p28 = scmp.eq.s32.totalorder %s9, 0
    %p29 = por %p27, %p28
    %p30 = scmp.ne.s32.totalorder %s19, %s22
    %p31 = scmp.eq.s32.totalorder %s14, 1
    %p32 = por %p30, %p31
    %p33 = scmp.ne.s32.totalorder %s22, %s23
    %p34 = scmp.eq.s32.totalorder %s14, 0
    %p35 = por %p33, %p34
    %p36 = scmp.ne.s32.totalorder %s22, %s23
    %p37 = scmp.eq.s32.totalorder %s15, 1
    %p38 = por %p36, %p37
    %p40 = scmp.ne.s32.totalorder %s23, %s39
    %p41 = scmp.eq.s32.totalorder %s15, 0
    %p42 = por %p40, %p41
    %s44 = sadd.s32 %s43, 1
    %p47 = scmp.eq.s32.totalorder %s9, 1
    %p48 = scmp.ne.s32.totalorder %s43, %s45
    %p49 = scmp.eq.s32.totalorder %s9, 0
    %p50 = por %p48, %p49
    %p51 = scmp.ne.s32.totalorder %s43, %s45
    %p52 = scmp.eq.s32.totalorder %s14, 1
    %p53 = por %p51, %p52
    %p54 = scmp.ne.s32.totalorder %s45, %s46
    %p55 = scmp.eq.s32.totalorder %s14, 0
    %p56 = por %p54, %p55
    %p57 = scmp.ne.s32.totalorder %s45, %s46
    %p58 = scmp.eq.s32.totalorder %s15, 1
    %p59 = por %p57, %p58
    %p61 = scmp.ne.s32.totalorder %s46, %s60
    %p62 = scmp.eq.s32.totalorder %s15, 0
    %p63 = por %p61, %p62
    %s65 = sadd.s32 %s64, 1
    %p68 = scmp.eq.s32.totalorder %s9, 1
    %p69 = scmp.ne.s32.totalorder %s64, %s66
    %p70 = scmp.eq.s32.totalorder %s9, 0
    %p71 = por %p69, %p70
    %p72 = scmp.ne.s32.totalorder %s64, %s66
    %p73 = scmp.eq.s32.totalorder %s14, 1
    %p74 = por %p72, %p73
    %p75 = scmp.ne.s32.totalorder %s66, %s67
    %p76 = scmp.eq.s32.totalorder %s14, 0
    %p77 = por %p75, %p76
    %p78 = scmp.ne.s32.totalorder %s66, %s67
    %p79 = scmp.eq.s32.totalorder %s15, 1
    %p80 = por %p78, %p79
    %p82 = scmp.ne.s32.totalorder %s67, %s81
    %p83 = scmp.eq.s32.totalorder %s15, 0
    %p84 = por %p82, %p83
    %s85 = ssub.s32 %s9, %s16
    %p86 = scmp.eq.s32.totalorder %s85, 0
    %s88 = sadd.s32 %s87, 1
    %s89 = scalar_select %p86, %s87, %s88
    %p92 = pneg %p86
    %p93 = scmp.eq.s32.totalorder %s9, 1
    %p94 = por %p92, %p93
    %p95 = scmp.ne.s32.totalorder %s87, %s90
    %p96 = scmp.eq.s32.totalorder %s9, 0
    %p97 = por %p95, %p96
    %p98 = scmp.ne.s32.totalorder %s87, %s90
    %p99 = scmp.eq.s32.totalorder %s14, 1
    %p100 = por %p98, %p99
    %p101 = scmp.ne.s32.totalorder %s90, %s91
    %p102 = scmp.eq.s32.totalorder %s14, 0
    %p103 = por %p101, %p102
    %p104 = scmp.ne.s32.totalorder %s90, %s91
    %p105 = scmp.eq.s32.totalorder %s15, 1
    %p106 = por %p104, %p105
    %p108 = scmp.ne.s32.totalorder %s91, %s107
    %p109 = scmp.eq.s32.totalorder %s15, 0
    %p110 = por %p108, %p109
    %p111 = scmp.le.s32.totalorder 1, %s9
    %p112 = scmp.lt.s32.totalorder %s9, 3
    %p113 = pnand %p111, %p112
    %p114 = pneg %p113
    // Predicated region
    $region9: #{convnet4_forward.5} parent=5 // pred_check
      _
    $region10: #{convnet4_forward.5} parent=5 // pred_check_branch
      %116 = sbr.rel (%p113) target = $region12
    $region11: #{convnet4_forward.5} parent=5 // pred_region
      %s117 = ssub.s32 %s9, 1
      // Predicated region
      $region13: #{convnet4_forward.5} parent=11 // pred_check
        %p118 = pneg %p56
      $region14: #{convnet4_forward.5} parent=11 // pred_check_branch
        %120 = sbr.rel (%p118) target = $region16
      $region15: #{convnet4_forward.5} parent=11 // pred_region
        _
      $region16: #{convnet4_forward.5} parent=11 // pred_fallthru
        _
      // Predicated region
      $region17: #{convnet4_forward.5} parent=11 // pred_check
        %p121 = pneg %p77
      $region18: #{convnet4_forward.5} parent=11 // pred_check_branch
        %123 = sbr.rel (%p121) target = $region20
      $region19: #{convnet4_forward.5} parent=11 // pred_region
        _
      $region20: #{convnet4_forward.5} parent=11 // pred_fallthru
        _
    $region12: #{convnet4_forward.5} parent=5 // pred_fallthru
      _
    %p124 = scmp.lt.s32.totalorder %s9, 2
    // Predicated region
    $region21: #{convnet4_forward.5} parent=5 // pred_check
      %p125 = pneg %p124
    $region22: #{convnet4_forward.5} parent=5 // pred_check_branch
      %127 = sbr.rel (%p125) target = $region24
    $region23: #{convnet4_forward.5} parent=5 // pred_region
      // Predicated region
      $region25: #{convnet4_forward.5} parent=23 // pred_check
        %p128 = pneg %p29
      $region26: #{convnet4_forward.5} parent=23 // pred_check_branch
        %130 = sbr.rel (%p128) target = $region28
      $region27: #{convnet4_forward.5} parent=23 // pred_region
        %p131 = scmp.lt.s32.totalorder %s9, 1
        %s132 = scalar_select %p131, %s9, 1
        %s133 = smul.addr %s132, 15
        %s134 = smul.addr %s133, 4
        %s135 = scalar_lea.vmem %s0, %s134
      $region28: #{convnet4_forward.5} parent=23 // pred_fallthru
        _
    $region24: #{convnet4_forward.5} parent=5 // pred_fallthru
      _
    %p136 = scmp.le.s32.totalorder 1, %s9
    %p137 = scmp.lt.s32.totalorder %s9, 3
    %p138 = pnand %p136, %p137
    %p139 = pneg %p138
    // Predicated region
    $region29: #{convnet4_forward.5} parent=5 // pred_check
      _
    $region30: #{convnet4_forward.5} parent=5 // pred_check_branch
      %141 = sbr.rel (%p138) target = $region32
    $region31: #{convnet4_forward.5} parent=5 // pred_region
      %s142 = ssub.s32 %s9, 1
      %p143 = scmp.lt.s32.totalorder %s14, 1
      %s144 = scalar_select %p143, %s14, 1
      %s145 = smul.addr %s144, 15
      %s146 = smul.addr %s145, 4
      %s147 = scalar_lea.vmem %s0, %s146
      %p148 = pneg %p35
      %p149 = pneg %p32
      %p150 = pneg %p56
      %p151 = pneg %p53
      %p152 = pneg %p77
      %p153 = pneg %p74
      %p154 = pneg %p103
      %p155 = pneg %p100
      %p156 = scmp.lt.s32.totalorder %s14, 1
      %s157 = scalar_select %p156, %s14, 1
      %s158 = smul.addr %s157, 8
      %s159 = smul.addr %s158, 4
      %s160 = scalar_lea.vmem %s3, %s159
      %p161 = scmp.lt.s32.totalorder %s14, 1
      %s162 = scalar_select %p161, %s14, 1
      %s163 = smul.addr %s162, 15
      %s164 = smul.addr %s163, 4
      %s165 = scalar_lea.vmem %s0, %s164
      %p166 = scmp.lt.s32.totalorder %s14, 1
      %s167 = scalar_select %p166, %s14, 1
      %s168 = smul.addr %s167, 8
      %s169 = smul.addr %s168, 4
      %s170 = scalar_lea.vmem %s3, %s169
      %v172 = vld [vmem:[%s165] sm:$0xff]
      %v173 = vld [vmem:[%s165 + $0x8] sm:$0xff]
      %v174 = vld [vmem:[%s165 + $0x10] sm:$0xf]
      %v175 = vld [vmem:[%s165 + $0x14] sm:$0xff]
      %v176 = vld [vmem:[%s165 + $0x1c] sm:$0xff]
      %v177 = vld [vmem:[%s165 + $0x24] sm:$0xf]
      %v178 = vld [vmem:[%s1] sm:$0xff]
      %v179 = vld [vmem:[%s1 + $0x8] sm:$0xff]
      %v180 = vld [vmem:[%s1 + $0x10] sm:$0xff]
      %v181 = vld [vmem:[%s1 + $0x18] sm:$0xff]
      %v182 = vld [vmem:[%s1 + $0x20] sm:$0xff]
      %v183 = vld [vmem:[%s1 + $0x28] sm:$0xff]
      %v184 = vld [vmem:[%s1 + $0x30] sm:$0xff]
      %v185 = vld [vmem:[%s1 + $0x38] sm:$0xff]
      %v186 = vld [vmem:[%s1 + $0x40] sm:$0xff]
      %v187 = vld [vmem:[%s1 + $0x48] sm:$0xff]
      %v188 = vld [vmem:[%s1 + $0x50] sm:$0xff]
      %v189 = vld [vmem:[%s1 + $0x58] sm:$0xff]
      %v190 = vld [vmem:[%s1 + $0x60] sm:$0xff]
      %v191 = vld [vmem:[%s1 + $0x68] sm:$0xff]
      %v192 = vld [vmem:[%s1 + $0x70] sm:$0xff]
      %v193 = vld [vmem:[%s1 + $0x78] sm:$0xff]
      %v194 = vld [vmem:[%s1 + $0x80] sm:$0xff]
      %v195 = vld [vmem:[%s1 + $0x88] sm:$0xff]
      %v196 = vld [vmem:[%s1 + $0x90] sm:$0xff]
      %v197 = vld [vmem:[%s1 + $0x98] sm:$0xff]
      %v198 = vld [vmem:[%s1 + $0xa0] sm:$0xff]
      %v199 = vld [vmem:[%s1 + $0xa8] sm:$0xff]
      %v200 = vld [vmem:[%s1 + $0xb0] sm:$0xff]
      %v201 = vld [vmem:[%s1 + $0xb8] sm:$0xff]
      %v202 = vld [vmem:[%s1 + $0xc0] sm:$0xff]
      %v203 = vld [vmem:[%s1 + $0xc8] sm:$0xff]
      %v204 = vld [vmem:[%s1 + $0xd0] sm:$0xff]
      %v205 = vld [vmem:[%s1 + $0xd8] sm:$0xff]
      %v206 = vld [vmem:[%s1 + $0xe0] sm:$0xff]
      %v207 = vld [vmem:[%s1 + $0xe8] sm:$0xff]
      %v208 = vld [vmem:[%s1 + $0xf0] sm:$0xff]
      %v209 = vld [vmem:[%s1 + $0xf8] sm:$0xff]
      %v210 = vld [vmem:[%s1 + $0x100] sm:$0xff]
      %v211 = vld [vmem:[%s1 + $0x108] sm:$0xff]
      %v212 = vld [vmem:[%s1 + $0x110] sm:$0xff]
      %v213 = vld [vmem:[%s1 + $0x118] sm:$0xff]
      %v214 = vld [vmem:[%s1 + $0x120] sm:$0xff]
      %v215 = vld [vmem:[%s1 + $0x128] sm:$0xff]
      %v216 = vld [vmem:[%s1 + $0x130] sm:$0xff]
      %v217 = vld [vmem:[%s1 + $0x138] sm:$0xff]
      %v218 = vld [vmem:[%s1 + $0x140] sm:$0xff]
      %v219 = vld [vmem:[%s1 + $0x148] sm:$0xff]
      %v220 = vld [vmem:[%s1 + $0x150] sm:$0xff]
      %v221 = vld [vmem:[%s1 + $0x158] sm:$0xff]
      %v222 = vld [vmem:[%s1 + $0x160] sm:$0xff]
      %v223 = vld [vmem:[%s1 + $0x168] sm:$0xff]
      %v224 = vld [vmem:[%s1 + $0x170] sm:$0xff]
      %v225 = vld [vmem:[%s1 + $0x178] sm:$0xff]
      %v226 = vld [vmem:[%s1 + $0x180] sm:$0xff]
      %v227 = vld [vmem:[%s1 + $0x188] sm:$0xff]
      %v228 = vld [vmem:[%s1 + $0x190] sm:$0xff]
      %v229 = vld [vmem:[%s1 + $0x198] sm:$0xff]
      %v230 = vld [vmem:[%s1 + $0x1a0] sm:$0xff]
      %v231 = vld [vmem:[%s1 + $0x1a8] sm:$0xff]
      %v232 = vld [vmem:[%s1 + $0x1b0] sm:$0xff]
      %v233 = vld [vmem:[%s1 + $0x1b8] sm:$0xff]
      %v234 = vld [vmem:[%s1 + $0x1c0] sm:$0xff]
      %v235 = vld [vmem:[%s1 + $0x1c8] sm:$0xff]
      %v236 = vld [vmem:[%s1 + $0x1d0] sm:$0xff]
      %v237 = vld [vmem:[%s1 + $0x1d8] sm:$0xff]
      %v238 = vld [vmem:[%s1 + $0x1e0] sm:$0xff]
      %v239 = vld [vmem:[%s1 + $0x1e8] sm:$0xff]
      %v240 = vld [vmem:[%s1 + $0x1f0] sm:$0xff]
      %v241 = vld [vmem:[%s1 + $0x1f8] sm:$0xff]
      %v242 = vld [vmem:[%s1 + $0x200] sm:$0xff]
      %v243 = vld [vmem:[%s1 + $0x208] sm:$0xff]
      %v244 = vld [vmem:[%s1 + $0x210] sm:$0xff]
      %v245 = vld [vmem:[%s1 + $0x218] sm:$0xff]
      %v246 = vld [vmem:[%s1 + $0x220] sm:$0xff]
      %v247 = vld [vmem:[%s1 + $0x228] sm:$0xff]
      %v248 = vld [vmem:[%s1 + $0x230] sm:$0xff]
      %v249 = vld [vmem:[%s1 + $0x238] sm:$0xff]
      %v250 = vld [vmem:[%s1 + $0x240] sm:$0xff]
      %v251 = vld [vmem:[%s1 + $0x248] sm:$0xff]
      %v252 = vld [vmem:[%s1 + $0x250] sm:$0xff]
      %v253 = vld [vmem:[%s1 + $0x258] sm:$0xff]
      %v254 = vld [vmem:[%s1 + $0x260] sm:$0xff]
      %v255 = vld [vmem:[%s1 + $0x268] sm:$0xff]
      %v256 = vld [vmem:[%s1 + $0x270] sm:$0xff]
      %v257 = vld [vmem:[%s1 + $0x278] sm:$0xff]
      %v258 = vld [vmem:[%s1 + $0x280] sm:$0xff]
      %v259 = vld [vmem:[%s1 + $0x288] sm:$0xff]
      %v260 = vld [vmem:[%s1 + $0x290] sm:$0xff]
      %v261 = vld [vmem:[%s1 + $0x298] sm:$0xff]
      %v262 = vld [vmem:[%s1 + $0x2a0] sm:$0xff]
      %v263 = vld [vmem:[%s1 + $0x2a8] sm:$0xff]
      %v264 = vld [vmem:[%s1 + $0x2b0] sm:$0xff]
      %v265 = vld [vmem:[%s1 + $0x2b8] sm:$0xff]
      %v266 = vld [vmem:[%s1 + $0x2c0] sm:$0xff]
      %v267 = vld [vmem:[%s1 + $0x2c8] sm:$0xff]
      %v268 = vld [vmem:[%s1 + $0x2d0] sm:$0xff]
      %v269 = vld [vmem:[%s1 + $0x2d8] sm:$0xff]
      %v270 = vld [vmem:[%s1 + $0x2e0] sm:$0xff]
      %v271 = vld [vmem:[%s1 + $0x2e8] sm:$0xff]
      %v272 = vld [vmem:[%s1 + $0x2f0] sm:$0xff]
      %v273 = vld [vmem:[%s1 + $0x2f8] sm:$0xff]
      %v274 = vld [vmem:[%s1 + $0x300] sm:$0xff]
      %v275 = vld [vmem:[%s1 + $0x308] sm:$0xff]
      %v276 = vld [vmem:[%s1 + $0x310] sm:$0xff]
      %v277 = vld [vmem:[%s1 + $0x318] sm:$0xff]
      %v278 = vld [vmem:[%s1 + $0x320] sm:$0xff]
      %v279 = vld [vmem:[%s1 + $0x328] sm:$0xff]
      %v280 = vld [vmem:[%s1 + $0x330] sm:$0xff]
      %v281 = vld [vmem:[%s1 + $0x338] sm:$0xff]
      %v282 = vld [vmem:[%s1 + $0x340] sm:$0xff]
      %v283 = vld [vmem:[%s1 + $0x348] sm:$0xff]
      %v284 = vld [vmem:[%s1 + $0x350] sm:$0xff]
      %v285 = vld [vmem:[%s1 + $0x358] sm:$0xff]
      %v286 = vld [vmem:[%s1 + $0x360] sm:$0xff]
      %v287 = vld [vmem:[%s1 + $0x368] sm:$0xff]
      %v288 = vld [vmem:[%s1 + $0x370] sm:$0xff]
      %v289 = vld [vmem:[%s1 + $0x378] sm:$0xff]
      %v290 = vld [vmem:[%s1 + $0x380] sm:$0xff]
      %v291 = vld [vmem:[%s1 + $0x388] sm:$0xff]
      %v292 = vld [vmem:[%s1 + $0x390] sm:$0xff]
      %v293 = vld [vmem:[%s1 + $0x398] sm:$0xff]
      %v294 = vld [vmem:[%s1 + $0x3a0] sm:$0xff]
      %v295 = vld [vmem:[%s1 + $0x3a8] sm:$0xff]
      %v296 = vld [vmem:[%s1 + $0x3b0] sm:$0xff]
      %v297 = vld [vmem:[%s1 + $0x3b8] sm:$0xff]
      %v298 = vld [vmem:[%s1 + $0x3c0] sm:$0xff]
      %v299 = vld [vmem:[%s1 + $0x3c8] sm:$0xff]
      %v300 = vld [vmem:[%s1 + $0x3d0] sm:$0xff]
      %v301 = vld [vmem:[%s1 + $0x3d8] sm:$0xff]
      %v302 = vld [vmem:[%s1 + $0x3e0] sm:$0xff]
      %v303 = vld [vmem:[%s1 + $0x3e8] sm:$0xff]
      %v304 = vld [vmem:[%s1 + $0x3f0] sm:$0xff]
      %v305 = vld [vmem:[%s1 + $0x3f8] sm:$0xff]
      %v306 = vld [vmem:[%s1 + $0x400] sm:$0xff]
      %v307 = vld [vmem:[%s1 + $0x408] sm:$0xff]
      %v308 = vld [vmem:[%s1 + $0x410] sm:$0xff]
      %v309 = vld [vmem:[%s1 + $0x418] sm:$0xff]
      %v310 = vld [vmem:[%s1 + $0x420] sm:$0xff]
      %v311 = vld [vmem:[%s1 + $0x428] sm:$0xff]
      %v312 = vld [vmem:[%s1 + $0x430] sm:$0xff]
      %v313 = vld [vmem:[%s1 + $0x438] sm:$0xff]
      %v314 = vld [vmem:[%s1 + $0x440] sm:$0xff]
      %v315 = vld [vmem:[%s1 + $0x448] sm:$0xff]
      %v316 = vld [vmem:[%s1 + $0x450] sm:$0xff]
      %v317 = vld [vmem:[%s1 + $0x458] sm:$0xff]
      %v318 = vld [vmem:[%s1 + $0x460] sm:$0xff]
      %v319 = vld [vmem:[%s1 + $0x468] sm:$0xff]
      %v320 = vld [vmem:[%s1 + $0x470] sm:$0xff]
      %v321 = vld [vmem:[%s1 + $0x478] sm:$0xff]
      %v322 = vld [vmem:[%s165 + $0x28] sm:$0x11]
      %v323 = vld [vmem:[%s165 + $0x30] sm:$0x11]
      %v324 = vld [vmem:[%s165 + $0x38] sm:$0x1]
      %s325 = scalar_lea.vmem %s1, 1152
      %v326 = vld [vmem:[%s325] sm:$0xff]
      %v327 = vld [vmem:[%s325 + $0x8] sm:$0xff]
      %v328 = vld [vmem:[%s325 + $0x10] sm:$0xff]
      %v329 = vld [vmem:[%s325 + $0x18] sm:$0xff]
      %v330 = vld [vmem:[%s325 + $0x20] sm:$0xff]
      %v331 = vld [vmem:[%s325 + $0x28] sm:$0xff]
      %v332 = vld [vmem:[%s325 + $0x30] sm:$0xff]
      %v333 = vld [vmem:[%s325 + $0x38] sm:$0xff]
      %v334 = vld [vmem:[%s325 + $0x40] sm:$0xff]
      %v335 = vld [vmem:[%s325 + $0x48] sm:$0xff]
      %v336 = vld [vmem:[%s325 + $0x50] sm:$0xff]
      %v337 = vld [vmem:[%s325 + $0x58] sm:$0xff]
      %v338 = vld [vmem:[%s325 + $0x60] sm:$0xff]
      %v339 = vld [vmem:[%s325 + $0x68] sm:$0xff]
      %v340 = vld [vmem:[%s325 + $0x70] sm:$0xff]
      %v341 = vld [vmem:[%s325 + $0x78] sm:$0xff]
      %v342 = vld [vmem:[%s325 + $0x80] sm:$0xff]
      %v343 = vld [vmem:[%s325 + $0x88] sm:$0xff]
      %v344 = vld [vmem:[%s325 + $0x90] sm:$0xff]
      %v345 = vld [vmem:[%s325 + $0x98] sm:$0xff]
      %v346 = vld [vmem:[%s325 + $0xa0] sm:$0xff]
      %v347 = vld [vmem:[%s325 + $0xa8] sm:$0xff]
      %v348 = vld [vmem:[%s325 + $0xb0] sm:$0xff]
      %v349 = vld [vmem:[%s325 + $0xb8] sm:$0xff]
      %v350 = vld [vmem:[%s325 + $0xc0] sm:$0xff]
      %v351 = vld [vmem:[%s325 + $0xc8] sm:$0xff]
      %v352 = vld [vmem:[%s325 + $0xd0] sm:$0xff]
      %v353 = vld [vmem:[%s325 + $0xd8] sm:$0xff]
      %v354 = vld [vmem:[%s325 + $0xe0] sm:$0xff]
      %v355 = vld [vmem:[%s325 + $0xe8] sm:$0xff]
      %v356 = vld [vmem:[%s325 + $0xf0] sm:$0xff]
      %v357 = vld [vmem:[%s325 + $0xf8] sm:$0xff]
      %v358 = vld [vmem:[%s325 + $0x100] sm:$0xff]
      %v359 = vld [vmem:[%s325 + $0x108] sm:$0xff]
      %v360 = vld [vmem:[%s325 + $0x110] sm:$0xff]
      %v361 = vld [vmem:[%s325 + $0x118] sm:$0xff]
      %v362 = vld [vmem:[%s325 + $0x120] sm:$0xff]
      %v363 = vld [vmem:[%s325 + $0x128] sm:$0xff]
      %v364 = vld [vmem:[%s325 + $0x130] sm:$0xff]
      %v365 = vld [vmem:[%s325 + $0x138] sm:$0xff]
      %v366 = vld [vmem:[%s325 + $0x140] sm:$0xff]
      %v367 = vld [vmem:[%s325 + $0x148] sm:$0xff]
      %v368 = vld [vmem:[%s325 + $0x150] sm:$0xff]
      %v369 = vld [vmem:[%s325 + $0x158] sm:$0xff]
      %v370 = vld [vmem:[%s325 + $0x160] sm:$0xff]
      %v371 = vld [vmem:[%s325 + $0x168] sm:$0xff]
      %v372 = vld [vmem:[%s325 + $0x170] sm:$0xff]
      %v373 = vld [vmem:[%s325 + $0x178] sm:$0xff]
      %v374 = vld [vmem:[%s325 + $0x180] sm:$0xff]
      %v375 = vld [vmem:[%s325 + $0x188] sm:$0xff]
      %v376 = vld [vmem:[%s325 + $0x190] sm:$0xff]
      %v377 = vld [vmem:[%s325 + $0x198] sm:$0xff]
      %v378 = vld [vmem:[%s325 + $0x1a0] sm:$0xff]
      %v379 = vld [vmem:[%s325 + $0x1a8] sm:$0xff]
      %v380 = vld [vmem:[%s325 + $0x1b0] sm:$0xff]
      %v381 = vld [vmem:[%s325 + $0x1b8] sm:$0xff]
      %v382 = vld [vmem:[%s325 + $0x1c0] sm:$0xff]
      %v383 = vld [vmem:[%s325 + $0x1c8] sm:$0xff]
      %v384 = vld [vmem:[%s325 + $0x1d0] sm:$0xff]
      %v385 = vld [vmem:[%s325 + $0x1d8] sm:$0xff]
      %v386 = vld [vmem:[%s325 + $0x1e0] sm:$0xff]
      %v387 = vld [vmem:[%s325 + $0x1e8] sm:$0xff]
      %v388 = vld [vmem:[%s325 + $0x1f0] sm:$0xff]
      %v389 = vld [vmem:[%s325 + $0x1f8] sm:$0xff]
      %v390 = vld [vmem:[%s325 + $0x200] sm:$0xff]
      %v391 = vld [vmem:[%s325 + $0x208] sm:$0xff]
      %v392 = vld [vmem:[%s325 + $0x210] sm:$0xff]
      %v393 = vld [vmem:[%s325 + $0x218] sm:$0xff]
      %v394 = vld [vmem:[%s325 + $0x220] sm:$0xff]
      %v395 = vld [vmem:[%s325 + $0x228] sm:$0xff]
      %v396 = vld [vmem:[%s325 + $0x230] sm:$0xff]
      %v397 = vld [vmem:[%s325 + $0x238] sm:$0xff]
      %v398 = vld [vmem:[%s325 + $0x240] sm:$0xff]
      %v399 = vld [vmem:[%s325 + $0x248] sm:$0xff]
      %v400 = vld [vmem:[%s325 + $0x250] sm:$0xff]
      %v401 = vld [vmem:[%s325 + $0x258] sm:$0xff]
      %v402 = vld [vmem:[%s325 + $0x260] sm:$0xff]
      %v403 = vld [vmem:[%s325 + $0x268] sm:$0xff]
      %v404 = vld [vmem:[%s325 + $0x270] sm:$0xff]
      %v405 = vld [vmem:[%s325 + $0x278] sm:$0xff]
      %v406 = vld [vmem:[%s325 + $0x280] sm:$0xff]
      %v407 = vld [vmem:[%s325 + $0x288] sm:$0xff]
      %v408 = vld [vmem:[%s325 + $0x290] sm:$0xff]
      %v409 = vld [vmem:[%s325 + $0x298] sm:$0xff]
      %v410 = vld [vmem:[%s325 + $0x2a0] sm:$0xff]
      %v411 = vld [vmem:[%s325 + $0x2a8] sm:$0xff]
      %v412 = vld [vmem:[%s325 + $0x2b0] sm:$0xff]
      %v413 = vld [vmem:[%s325 + $0x2b8] sm:$0xff]
      %v414 = vld [vmem:[%s325 + $0x2c0] sm:$0xff]
      %v415 = vld [vmem:[%s325 + $0x2c8] sm:$0xff]
      %v416 = vld [vmem:[%s325 + $0x2d0] sm:$0xff]
      %v417 = vld [vmem:[%s325 + $0x2d8] sm:$0xff]
      %v418 = vld [vmem:[%s325 + $0x2e0] sm:$0xff]
      %v419 = vld [vmem:[%s325 + $0x2e8] sm:$0xff]
      %v420 = vld [vmem:[%s325 + $0x2f0] sm:$0xff]
      %v421 = vld [vmem:[%s325 + $0x2f8] sm:$0xff]
      %v422 = vld [vmem:[%s325 + $0x300] sm:$0xff]
      %v423 = vld [vmem:[%s325 + $0x308] sm:$0xff]
      %v424 = vld [vmem:[%s325 + $0x310] sm:$0xff]
      %v425 = vld [vmem:[%s325 + $0x318] sm:$0xff]
      %v426 = vld [vmem:[%s325 + $0x320] sm:$0xff]
      %v427 = vld [vmem:[%s325 + $0x328] sm:$0xff]
      %v428 = vld [vmem:[%s325 + $0x330] sm:$0xff]
      %v429 = vld [vmem:[%s325 + $0x338] sm:$0xff]
      %v430 = vld [vmem:[%s325 + $0x340] sm:$0xff]
      %v431 = vld [vmem:[%s325 + $0x348] sm:$0xff]
      %v432 = vld [vmem:[%s325 + $0x350] sm:$0xff]
      %v433 = vld [vmem:[%s325 + $0x358] sm:$0xff]
      %v434 = vld [vmem:[%s325 + $0x360] sm:$0xff]
      %v435 = vld [vmem:[%s325 + $0x368] sm:$0xff]
      %v436 = vld [vmem:[%s325 + $0x370] sm:$0xff]
      %v437 = vld [vmem:[%s325 + $0x378] sm:$0xff]
      %v438 = vld [vmem:[%s325 + $0x380] sm:$0xff]
      %v439 = vld [vmem:[%s325 + $0x388] sm:$0xff]
      %v440 = vld [vmem:[%s325 + $0x390] sm:$0xff]
      %v441 = vld [vmem:[%s325 + $0x398] sm:$0xff]
      %v442 = vld [vmem:[%s325 + $0x3a0] sm:$0xff]
      %v443 = vld [vmem:[%s325 + $0x3a8] sm:$0xff]
      %v444 = vld [vmem:[%s325 + $0x3b0] sm:$0xff]
      %v445 = vld [vmem:[%s325 + $0x3b8] sm:$0xff]
      %v446 = vld [vmem:[%s325 + $0x3c0] sm:$0xff]
      %v447 = vld [vmem:[%s325 + $0x3c8] sm:$0xff]
      %v448 = vld [vmem:[%s325 + $0x3d0] sm:$0xff]
      %v449 = vld [vmem:[%s325 + $0x3d8] sm:$0xff]
      %v450 = vld [vmem:[%s325 + $0x3e0] sm:$0xff]
      %v451 = vld [vmem:[%s325 + $0x3e8] sm:$0xff]
      %v452 = vld [vmem:[%s325 + $0x3f0] sm:$0xff]
      %v453 = vld [vmem:[%s325 + $0x3f8] sm:$0xff]
      %v454 = vld [vmem:[%s325 + $0x400] sm:$0xff]
      %v455 = vld [vmem:[%s325 + $0x408] sm:$0xff]
      %v456 = vld [vmem:[%s325 + $0x410] sm:$0xff]
      %v457 = vld [vmem:[%s325 + $0x418] sm:$0xff]
      %v458 = vld [vmem:[%s325 + $0x420] sm:$0xff]
      %v459 = vld [vmem:[%s325 + $0x428] sm:$0xff]
      %v460 = vld [vmem:[%s325 + $0x430] sm:$0xff]
      %v461 = vld [vmem:[%s325 + $0x438] sm:$0xff]
      %v462 = vld [vmem:[%s325 + $0x440] sm:$0xff]
      %v463 = vld [vmem:[%s325 + $0x448] sm:$0xff]
      %v464 = vld [vmem:[%s325 + $0x450] sm:$0xff]
      %v465 = vld [vmem:[%s325 + $0x458] sm:$0xff]
      %v466 = vld [vmem:[%s325 + $0x460] sm:$0xff]
      %v467 = vld [vmem:[%s325 + $0x468] sm:$0xff]
      %v468 = vld [vmem:[%s325 + $0x470] sm:$0xff]
      %v469 = vld [vmem:[%s325 + $0x478] sm:$0xff]
      %v479 = vunpack.c.l.b16 %v172
      %v480 = vunpack.c.h.b16 %v172
      %v481 = vunpack.c.l.b16 %v173
      %v482 = vunpack.c.h.b16 %v173
      %v483 = vunpack.c.l.b16 %v174
      %v484 = vunpack.c.l.b16 %v175
      %v485 = vunpack.c.h.b16 %v175
      %v486 = vunpack.c.l.b16 %v176
      %v487 = vunpack.c.h.b16 %v176
      %v488 = vunpack.c.l.b16 %v177
      %v489 = vunpack.c.l.b16 %v322
      %v490 = vunpack.c.h.b16 %v322
      %v491 = vunpack.c.l.b16 %v323
      %v492 = vunpack.c.h.b16 %v323
      %v493 = vunpack.c.l.b16 %v324
      %v494 = vpack.c.b16 %v484, %v479
      %v495 = vpack.c.b16 %v485, %v480
      %v496 = vpack.c.b16 %v486, %v481
      %v497 = vpack.c.b16 %v487, %v482
      %v498 = vpack.c.b16 %v488, %v483
      %v499 = vpack.c.b16 %v489, %v489
      %v500 = vpack.c.b16 %v490, %v490
      %v501 = vpack.c.b16 %v491, %v491
      %v502 = vpack.c.b16 %v492, %v492
      %v503 = vpack.c.b16 %v493, %v493
      %vm504 = vsmask.f32 7424
      %v506 = vshrl.u32 %v494, 16
      %v508 = vshll.u32 %v494, 16
      %v510 = vrot.slane %v508, 1
      %v511 = vor.u32 %v506, %v510
      %v513 = vshll.u32 %v499, 16
      %v515 = vrot.slane %v513, 1
      %v516 = vsel %vm504, %v511, %v515
      %v518 = vshrl.u32 %v495, 16
      %v520 = vshll.u32 %v495, 16
      %v522 = vrot.slane %v520, 1
      %v523 = vor.u32 %v518, %v522
      %v525 = vshll.u32 %v500, 16
      %v527 = vrot.slane %v525, 1
      %v528 = vsel %vm504, %v523, %v527
      %v530 = vshrl.u32 %v496, 16
      %v532 = vshll.u32 %v496, 16
      %v534 = vrot.slane %v532, 1
      %v535 = vor.u32 %v530, %v534
      %v537 = vshll.u32 %v501, 16
      %v539 = vrot.slane %v537, 1
      %v540 = vsel %vm504, %v535, %v539
      %v542 = vshrl.u32 %v497, 16
      %v544 = vshll.u32 %v497, 16
      %v546 = vrot.slane %v544, 1
      %v547 = vor.u32 %v542, %v546
      %v549 = vshll.u32 %v502, 16
      %v551 = vrot.slane %v549, 1
      %v552 = vsel %vm504, %v547, %v551
      %v554 = vshrl.u32 %v498, 16
      %v556 = vshll.u32 %v498, 16
      %v558 = vrot.slane %v556, 1
      %v559 = vor.u32 %v554, %v558
      %v561 = vshll.u32 %v503, 16
      %v563 = vrot.slane %v561, 1
      %v564 = vsel %vm504, %v559, %v563
      %v713 = vunpack.c.l.b16 %v326
      %v714 = vunpack.c.h.b16 %v326
      %v715 = vunpack.c.l.b16 %v327
      %v716 = vunpack.c.h.b16 %v327
      %v717 = vunpack.c.l.b16 %v328
      %v718 = vunpack.c.h.b16 %v328
      %v719 = vunpack.c.l.b16 %v329
      %v720 = vunpack.c.h.b16 %v329
      %v721 = vunpack.c.l.b16 %v330
      %v722 = vunpack.c.h.b16 %v330
      %v723 = vunpack.c.l.b16 %v331
      %v724 = vunpack.c.h.b16 %v331
      %v725 = vunpack.c.l.b16 %v332
      %v726 = vunpack.c.h.b16 %v332
      %v727 = vunpack.c.l.b16 %v333
      %v728 = vunpack.c.h.b16 %v333
      %v729 = vunpack.c.l.b16 %v334
      %v730 = vunpack.c.h.b16 %v334
      %v731 = vunpack.c.l.b16 %v335
      %v732 = vunpack.c.h.b16 %v335
      %v733 = vunpack.c.l.b16 %v336
      %v734 = vunpack.c.h.b16 %v336
      %v735 = vunpack.c.l.b16 %v337
      %v736 = vunpack.c.h.b16 %v337
      %v737 = vunpack.c.l.b16 %v338
      %v738 = vunpack.c.h.b16 %v338
      %v739 = vunpack.c.l.b16 %v339
      %v740 = vunpack.c.h.b16 %v339
      %v741 = vunpack.c.l.b16 %v340
      %v742 = vunpack.c.h.b16 %v340
      %v743 = vunpack.c.l.b16 %v341
      %v744 = vunpack.c.h.b16 %v341
      %v745 = vunpack.c.l.b16 %v342
      %v746 = vunpack.c.h.b16 %v342
      %v747 = vunpack.c.l.b16 %v343
      %v748 = vunpack.c.h.b16 %v343
      %v749 = vunpack.c.l.b16 %v344
      %v750 = vunpack.c.h.b16 %v344
      %v751 = vunpack.c.l.b16 %v345
      %v752 = vunpack.c.h.b16 %v345
      %v753 = vunpack.c.l.b16 %v346
      %v754 = vunpack.c.h.b16 %v346
      %v755 = vunpack.c.l.b16 %v347
      %v756 = vunpack.c.h.b16 %v347
      %v757 = vunpack.c.l.b16 %v348
      %v758 = vunpack.c.h.b16 %v348
      %v759 = vunpack.c.l.b16 %v349
      %v760 = vunpack.c.h.b16 %v349
      %v761 = vunpack.c.l.b16 %v350
      %v762 = vunpack.c.h.b16 %v350
      %v763 = vunpack.c.l.b16 %v351
      %v764 = vunpack.c.h.b16 %v351
      %v765 = vunpack.c.l.b16 %v352
      %v766 = vunpack.c.h.b16 %v352
      %v767 = vunpack.c.l.b16 %v353
      %v768 = vunpack.c.h.b16 %v353
      %v769 = vunpack.c.l.b16 %v354
      %v770 = vunpack.c.h.b16 %v354
      %v771 = vunpack.c.l.b16 %v355
      %v772 = vunpack.c.h.b16 %v355
      %v773 = vunpack.c.l.b16 %v356
      %v774 = vunpack.c.h.b16 %v356
      %v775 = vunpack.c.l.b16 %v357
      %v776 = vunpack.c.h.b16 %v357
      %v777 = vunpack.c.l.b16 %v358
      %v778 = vunpack.c.h.b16 %v358
      %v779 = vunpack.c.l.b16 %v359
      %v780 = vunpack.c.h.b16 %v359
      %v781 = vunpack.c.l.b16 %v360
      %v782 = vunpack.c.h.b16 %v360
      %v783 = vunpack.c.l.b16 %v361
      %v784 = vunpack.c.h.b16 %v361
      %v785 = vunpack.c.l.b16 %v362
      %v786 = vunpack.c.h.b16 %v362
      %v787 = vunpack.c.l.b16 %v363
      %v788 = vunpack.c.h.b16 %v363
      %v789 = vunpack.c.l.b16 %v364
      %v790 = vunpack.c.h.b16 %v364
      %v791 = vunpack.c.l.b16 %v365
      %v792 = vunpack.c.h.b16 %v365
      %v793 = vunpack.c.l.b16 %v366
      %v794 = vunpack.c.h.b16 %v366
      %v795 = vunpack.c.l.b16 %v367
      %v796 = vunpack.c.h.b16 %v367
      %v797 = vunpack.c.l.b16 %v368
      %v798 = vunpack.c.h.b16 %v368
      %v799 = vunpack.c.l.b16 %v369
      %v800 = vunpack.c.h.b16 %v369
      %v801 = vunpack.c.l.b16 %v370
      %v802 = vunpack.c.h.b16 %v370
      %v803 = vunpack.c.l.b16 %v371
      %v804 = vunpack.c.h.b16 %v371
      %v805 = vunpack.c.l.b16 %v372
      %v806 = vunpack.c.h.b16 %v372
      %v807 = vunpack.c.l.b16 %v373
      %v808 = vunpack.c.h.b16 %v373
      %v809 = vunpack.c.l.b16 %v374
      %v810 = vunpack.c.h.b16 %v374
      %v811 = vunpack.c.l.b16 %v375
      %v812 = vunpack.c.h.b16 %v375
      %v813 = vunpack.c.l.b16 %v376
      %v814 = vunpack.c.h.b16 %v376
      %v815 = vunpack.c.l.b16 %v377
      %v816 = vunpack.c.h.b16 %v377
      %v817 = vunpack.c.l.b16 %v378
      %v818 = vunpack.c.h.b16 %v378
      %v819 = vunpack.c.l.b16 %v379
      %v820 = vunpack.c.h.b16 %v379
      %v821 = vunpack.c.l.b16 %v380
      %v822 = vunpack.c.h.b16 %v380
      %v823 = vunpack.c.l.b16 %v381
      %v824 = vunpack.c.h.b16 %v381
      %v825 = vunpack.c.l.b16 %v382
      %v826 = vunpack.c.h.b16 %v382
      %v827 = vunpack.c.l.b16 %v383
      %v828 = vunpack.c.h.b16 %v383
      %v829 = vunpack.c.l.b16 %v384
      %v830 = vunpack.c.h.b16 %v384
      %v831 = vunpack.c.l.b16 %v385
      %v832 = vunpack.c.h.b16 %v385
      %v833 = vunpack.c.l.b16 %v386
      %v834 = vunpack.c.h.b16 %v386
      %v835 = vunpack.c.l.b16 %v387
      %v836 = vunpack.c.h.b16 %v387
      %v837 = vunpack.c.l.b16 %v388
      %v838 = vunpack.c.h.b16 %v388
      %v839 = vunpack.c.l.b16 %v389
      %v840 = vunpack.c.h.b16 %v389
      %v841 = vunpack.c.l.b16 %v390
      %v842 = vunpack.c.h.b16 %v390
      %v843 = vunpack.c.l.b16 %v391
      %v844 = vunpack.c.h.b16 %v391
      %v845 = vunpack.c.l.b16 %v392
      %v846 = vunpack.c.h.b16 %v392
      %v847 = vunpack.c.l.b16 %v393
      %v848 = vunpack.c.h.b16 %v393
      %v849 = vunpack.c.l.b16 %v394
      %v850 = vunpack.c.h.b16 %v394
      %v851 = vunpack.c.l.b16 %v395
      %v852 = vunpack.c.h.b16 %v395
      %v853 = vunpack.c.l.b16 %v396
      %v854 = vunpack.c.h.b16 %v396
      %v855 = vunpack.c.l.b16 %v397
      %v856 = vunpack.c.h.b16 %v397
      %v857 = vunpack.c.l.b16 %v398
      %v858 = vunpack.c.h.b16 %v398
      %v859 = vunpack.c.l.b16 %v399
      %v860 = vunpack.c.h.b16 %v399
      %v861 = vunpack.c.l.b16 %v400
      %v862 = vunpack.c.h.b16 %v400
      %v863 = vunpack.c.l.b16 %v401
      %v864 = vunpack.c.h.b16 %v401
      %v865 = vunpack.c.l.b16 %v402
      %v866 = vunpack.c.h.b16 %v402
      %v867 = vunpack.c.l.b16 %v403
      %v868 = vunpack.c.h.b16 %v403
      %v869 = vunpack.c.l.b16 %v404
      %v870 = vunpack.c.h.b16 %v404
      %v871 = vunpack.c.l.b16 %v405
      %v872 = vunpack.c.h.b16 %v405
      %v873 = vunpack.c.l.b16 %v406
      %v874 = vunpack.c.h.b16 %v406
      %v875 = vunpack.c.l.b16 %v407
      %v876 = vunpack.c.h.b16 %v407
      %v877 = vunpack.c.l.b16 %v408
      %v878 = vunpack.c.h.b16 %v408
      %v879 = vunpack.c.l.b16 %v409
      %v880 = vunpack.c.h.b16 %v409
      %v881 = vunpack.c.l.b16 %v410
      %v882 = vunpack.c.h.b16 %v410
      %v883 = vunpack.c.l.b16 %v411
      %v884 = vunpack.c.h.b16 %v411
      %v885 = vunpack.c.l.b16 %v412
      %v886 = vunpack.c.h.b16 %v412
      %v887 = vunpack.c.l.b16 %v413
      %v888 = vunpack.c.h.b16 %v413
      %v889 = vunpack.c.l.b16 %v414
      %v890 = vunpack.c.h.b16 %v414
      %v891 = vunpack.c.l.b16 %v415
      %v892 = vunpack.c.h.b16 %v415
      %v893 = vunpack.c.l.b16 %v416
      %v894 = vunpack.c.h.b16 %v416
      %v895 = vunpack.c.l.b16 %v417
      %v896 = vunpack.c.h.b16 %v417
      %v897 = vunpack.c.l.b16 %v418
      %v898 = vunpack.c.h.b16 %v418
      %v899 = vunpack.c.l.b16 %v419
      %v900 = vunpack.c.h.b16 %v419
      %v901 = vunpack.c.l.b16 %v420
      %v902 = vunpack.c.h.b16 %v420
      %v903 = vunpack.c.l.b16 %v421
      %v904 = vunpack.c.h.b16 %v421
      %v905 = vunpack.c.l.b16 %v422
      %v906 = vunpack.c.h.b16 %v422
      %v907 = vunpack.c.l.b16 %v423
      %v908 = vunpack.c.h.b16 %v423
      %v909 = vunpack.c.l.b16 %v424
      %v910 = vunpack.c.h.b16 %v424
      %v911 = vunpack.c.l.b16 %v425
      %v912 = vunpack.c.h.b16 %v425
      %v913 = vunpack.c.l.b16 %v426
      %v914 = vunpack.c.h.b16 %v426
      %v915 = vunpack.c.l.b16 %v427
      %v916 = vunpack.c.h.b16 %v427
      %v917 = vunpack.c.l.b16 %v428
      %v918 = vunpack.c.h.b16 %v428
      %v919 = vunpack.c.l.b16 %v429
      %v920 = vunpack.c.h.b16 %v429
      %v921 = vunpack.c.l.b16 %v430
      %v922 = vunpack.c.h.b16 %v430
      %v923 = vunpack.c.l.b16 %v431
      %v924 = vunpack.c.h.b16 %v431
      %v925 = vunpack.c.l.b16 %v432
      %v926 = vunpack.c.h.b16 %v432
      %v927 = vunpack.c.l.b16 %v433
      %v928 = vunpack.c.h.b16 %v433
      %v929 = vunpack.c.l.b16 %v434
      %v930 = vunpack.c.h.b16 %v434
      %v931 = vunpack.c.l.b16 %v435
      %v932 = vunpack.c.h.b16 %v435
      %v933 = vunpack.c.l.b16 %v436
      %v934 = vunpack.c.h.b16 %v436
      %v935 = vunpack.c.l.b16 %v437
      %v936 = vunpack.c.h.b16 %v437
      %v937 = vunpack.c.l.b16 %v438
      %v938 = vunpack.c.h.b16 %v438
      %v939 = vunpack.c.l.b16 %v439
      %v940 = vunpack.c.h.b16 %v439
      %v941 = vunpack.c.l.b16 %v440
      %v942 = vunpack.c.h.b16 %v440
      %v943 = vunpack.c.l.b16 %v441
      %v944 = vunpack.c.h.b16 %v441
      %v945 = vunpack.c.l.b16 %v442
      %v946 = vunpack.c.h.b16 %v442
      %v947 = vunpack.c.l.b16 %v443
      %v948 = vunpack.c.h.b16 %v443
      %v949 = vunpack.c.l.b16 %v444
      %v950 = vunpack.c.h.b16 %v444
      %v951 = vunpack.c.l.b16 %v445
      %v952 = vunpack.c.h.b16 %v445
      %v953 = vunpack.c.l.b16 %v446
      %v954 = vunpack.c.h.b16 %v446
      %v955 = vunpack.c.l.b16 %v447
      %v956 = vunpack.c.h.b16 %v447
      %v957 = vunpack.c.l.b16 %v448
      %v958 = vunpack.c.h.b16 %v448
      %v959 = vunpack.c.l.b16 %v449
      %v960 = vunpack.c.h.b16 %v449
      %v961 = vunpack.c.l.b16 %v450
      %v962 = vunpack.c.h.b16 %v450
      %v963 = vunpack.c.l.b16 %v451
      %v964 = vunpack.c.h.b16 %v451
      %v965 = vunpack.c.l.b16 %v452
      %v966 = vunpack.c.h.b16 %v452
      %v967 = vunpack.c.l.b16 %v453
      %v968 = vunpack.c.h.b16 %v453
      %v969 = vunpack.c.l.b16 %v454
      %v970 = vunpack.c.h.b16 %v454
      %v971 = vunpack.c.l.b16 %v455
      %v972 = vunpack.c.h.b16 %v455
      %v973 = vunpack.c.l.b16 %v456
      %v974 = vunpack.c.h.b16 %v456
      %v975 = vunpack.c.l.b16 %v457
      %v976 = vunpack.c.h.b16 %v457
      %v977 = vunpack.c.l.b16 %v458
      %v978 = vunpack.c.h.b16 %v458
      %v979 = vunpack.c.l.b16 %v459
      %v980 = vunpack.c.h.b16 %v459
      %v981 = vunpack.c.l.b16 %v460
      %v982 = vunpack.c.h.b16 %v460
      %v983 = vunpack.c.l.b16 %v461
      %v984 = vunpack.c.h.b16 %v461
      %v985 = vunpack.c.l.b16 %v462
      %v986 = vunpack.c.h.b16 %v462
      %v987 = vunpack.c.l.b16 %v463
      %v988 = vunpack.c.h.b16 %v463
      %v989 = vunpack.c.l.b16 %v464
      %v990 = vunpack.c.h.b16 %v464
      %v991 = vunpack.c.l.b16 %v465
      %v992 = vunpack.c.h.b16 %v465
      %v993 = vunpack.c.l.b16 %v466
      %v994 = vunpack.c.h.b16 %v466
      %v995 = vunpack.c.l.b16 %v467
      %v996 = vunpack.c.h.b16 %v467
      %v997 = vunpack.c.l.b16 %v468
      %v998 = vunpack.c.h.b16 %v468
      %v999 = vunpack.c.l.b16 %v469
      %v1000 = vunpack.c.h.b16 %v469
      %v1001 = vpack.c.b16 %v717, %v713
      %v1002 = vpack.c.b16 %v718, %v714
      %v1003 = vpack.c.b16 %v719, %v715
      %v1004 = vpack.c.b16 %v720, %v716
      %v1005 = vpack.c.b16 %v725, %v721
      %v1006 = vpack.c.b16 %v726, %v722
      %v1007 = vpack.c.b16 %v727, %v723
      %v1008 = vpack.c.b16 %v728, %v724
      %v1009 = vpack.c.b16 %v733, %v729
      %v1010 = vpack.c.b16 %v734, %v730
      %v1011 = vpack.c.b16 %v735, %v731
      %v1012 = vpack.c.b16 %v736, %v732
      %v1013 = vpack.c.b16 %v741, %v737
      %v1014 = vpack.c.b16 %v742, %v738
      %v1015 = vpack.c.b16 %v743, %v739
      %v1016 = vpack.c.b16 %v744, %v740
      %v1017 = vpack.c.b16 %v749, %v745
      %v1018 = vpack.c.b16 %v750, %v746
      %v1019 = vpack.c.b16 %v751, %v747
      %v1020 = vpack.c.b16 %v752, %v748
      %v1021 = vpack.c.b16 %v757, %v753
      %v1022 = vpack.c.b16 %v758, %v754
      %v1023 = vpack.c.b16 %v759, %v755
      %v1024 = vpack.c.b16 %v760, %v756
      %v1025 = vpack.c.b16 %v765, %v761
      %v1026 = vpack.c.b16 %v766, %v762
      %v1027 = vpack.c.b16 %v767, %v763
      %v1028 = vpack.c.b16 %v768, %v764
      %v1029 = vpack.c.b16 %v773, %v769
      %v1030 = vpack.c.b16 %v774, %v770
      %v1031 = vpack.c.b16 %v775, %v771
      %v1032 = vpack.c.b16 %v776, %v772
      %v1033 = vpack.c.b16 %v781, %v777
      %v1034 = vpack.c.b16 %v782, %v778
      %v1035 = vpack.c.b16 %v783, %v779
      %v1036 = vpack.c.b16 %v784, %v780
      %v1037 = vpack.c.b16 %v789, %v785
      %v1038 = vpack.c.b16 %v790, %v786
      %v1039 = vpack.c.b16 %v791, %v787
      %v1040 = vpack.c.b16 %v792, %v788
      %v1041 = vpack.c.b16 %v797, %v793
      %v1042 = vpack.c.b16 %v798, %v794
      %v1043 = vpack.c.b16 %v799, %v795
      %v1044 = vpack.c.b16 %v800, %v796
      %v1045 = vpack.c.b16 %v805, %v801
      %v1046 = vpack.c.b16 %v806, %v802
      %v1047 = vpack.c.b16 %v807, %v803
      %v1048 = vpack.c.b16 %v808, %v804
      %v1049 = vpack.c.b16 %v813, %v809
      %v1050 = vpack.c.b16 %v814, %v810
      %v1051 = vpack.c.b16 %v815, %v811
      %v1052 = vpack.c.b16 %v816, %v812
      %v1053 = vpack.c.b16 %v821, %v817
      %v1054 = vpack.c.b16 %v822, %v818
      %v1055 = vpack.c.b16 %v823, %v819
      %v1056 = vpack.c.b16 %v824, %v820
      %v1057 = vpack.c.b16 %v829, %v825
      %v1058 = vpack.c.b16 %v830, %v826
      %v1059 = vpack.c.b16 %v831, %v827
      %v1060 = vpack.c.b16 %v832, %v828
      %v1061 = vpack.c.b16 %v837, %v833
      %v1062 = vpack.c.b16 %v838, %v834
      %v1063 = vpack.c.b16 %v839, %v835
      %v1064 = vpack.c.b16 %v840, %v836
      %v1065 = vpack.c.b16 %v845, %v841
      %v1066 = vpack.c.b16 %v846, %v842
      %v1067 = vpack.c.b16 %v847, %v843
      %v1068 = vpack.c.b16 %v848, %v844
      %v1069 = vpack.c.b16 %v853, %v849
      %v1070 = vpack.c.b16 %v854, %v850
      %v1071 = vpack.c.b16 %v855, %v851
      %v1072 = vpack.c.b16 %v856, %v852
      %v1073 = vpack.c.b16 %v861, %v857
      %v1074 = vpack.c.b16 %v862, %v858
      %v1075 = vpack.c.b16 %v863, %v859
      %v1076 = vpack.c.b16 %v864, %v860
      %v1077 = vpack.c.b16 %v869, %v865
      %v1078 = vpack.c.b16 %v870, %v866
      %v1079 = vpack.c.b16 %v871, %v867
      %v1080 = vpack.c.b16 %v872, %v868
      %v1081 = vpack.c.b16 %v877, %v873
      %v1082 = vpack.c.b16 %v878, %v874
      %v1083 = vpack.c.b16 %v879, %v875
      %v1084 = vpack.c.b16 %v880, %v876
      %v1085 = vpack.c.b16 %v885, %v881
      %v1086 = vpack.c.b16 %v886, %v882
      %v1087 = vpack.c.b16 %v887, %v883
      %v1088 = vpack.c.b16 %v888, %v884
      %v1089 = vpack.c.b16 %v893, %v889
      %v1090 = vpack.c.b16 %v894, %v890
      %v1091 = vpack.c.b16 %v895, %v891
      %v1092 = vpack.c.b16 %v896, %v892
      %v1093 = vpack.c.b16 %v901, %v897
      %v1094 = vpack.c.b16 %v902, %v898
      %v1095 = vpack.c.b16 %v903, %v899
      %v1096 = vpack.c.b16 %v904, %v900
      %v1097 = vpack.c.b16 %v909, %v905
      %v1098 = vpack.c.b16 %v910, %v906
      %v1099 = vpack.c.b16 %v911, %v907
      %v1100 = vpack.c.b16 %v912, %v908
      %v1101 = vpack.c.b16 %v917, %v913
      %v1102 = vpack.c.b16 %v918, %v914
      %v1103 = vpack.c.b16 %v919, %v915
      %v1104 = vpack.c.b16 %v920, %v916
      %v1105 = vpack.c.b16 %v925, %v921
      %v1106 = vpack.c.b16 %v926, %v922
      %v1107 = vpack.c.b16 %v927, %v923
      %v1108 = vpack.c.b16 %v928, %v924
      %v1109 = vpack.c.b16 %v933, %v929
      %v1110 = vpack.c.b16 %v934, %v930
      %v1111 = vpack.c.b16 %v935, %v931
      %v1112 = vpack.c.b16 %v936, %v932
      %v1113 = vpack.c.b16 %v941, %v937
      %v1114 = vpack.c.b16 %v942, %v938
      %v1115 = vpack.c.b16 %v943, %v939
      %v1116 = vpack.c.b16 %v944, %v940
      %v1117 = vpack.c.b16 %v949, %v945
      %v1118 = vpack.c.b16 %v950, %v946
      %v1119 = vpack.c.b16 %v951, %v947
      %v1120 = vpack.c.b16 %v952, %v948
      %v1121 = vpack.c.b16 %v957, %v953
      %v1122 = vpack.c.b16 %v958, %v954
      %v1123 = vpack.c.b16 %v959, %v955
      %v1124 = vpack.c.b16 %v960, %v956
      %v1125 = vpack.c.b16 %v965, %v961
      %v1126 = vpack.c.b16 %v966, %v962
      %v1127 = vpack.c.b16 %v967, %v963
      %v1128 = vpack.c.b16 %v968, %v964
      %v1129 = vpack.c.b16 %v973, %v969
      %v1130 = vpack.c.b16 %v974, %v970
      %v1131 = vpack.c.b16 %v975, %v971
      %v1132 = vpack.c.b16 %v976, %v972
      %v1133 = vpack.c.b16 %v981, %v977
      %v1134 = vpack.c.b16 %v982, %v978
      %v1135 = vpack.c.b16 %v983, %v979
      %v1136 = vpack.c.b16 %v984, %v980
      %v1137 = vpack.c.b16 %v989, %v985
      %v1138 = vpack.c.b16 %v990, %v986
      %v1139 = vpack.c.b16 %v991, %v987
      %v1140 = vpack.c.b16 %v992, %v988
      %v1141 = vpack.c.b16 %v997, %v993
      %v1142 = vpack.c.b16 %v998, %v994
      %v1143 = vpack.c.b16 %v999, %v995
      %v1144 = vpack.c.b16 %v1000, %v996
      %vm1289 = vcmask 523264
      %v1291 = vsel %vm1289, %v564, 0
      %1293 = vmatprep.subr.bf16.mxu0 %v1030
      %1294 = vmatpush1.bf16.msra.mxu0 %v1029
      %1295 = vmatprep.subr.bf16.mxu0 %v1026
      %1296 = vmatpush1.bf16.msra.mxu0 %v1025
      %1297 = vmatprep.subr.bf16.mxu0 %v1022
      %1298 = vmatpush1.bf16.msra.mxu0 %v1021
      %1299 = vmatprep.subr.bf16.mxu0 %v1018
      %1300 = vmatpush1.bf16.msra.mxu0 %v1017
      %1301 = vmatprep.subr.bf16.mxu0 %v1014
      %1302 = vmatpush1.bf16.msra.mxu0 %v1013
      %1303 = vmatprep.subr.bf16.mxu0 %v1010
      %1304 = vmatpush1.bf16.msra.mxu0 %v1009
      %1305 = vmatprep.subr.bf16.mxu0 %v1006
      %1306 = vmatpush1.bf16.msra.mxu0 %v1005
      %1307 = vmatprep.subr.bf16.mxu0 %v1002
      %1308 = vmatpush1.bf16.msra.mxu0 %v1001
      %1309 = vmatprep.subr.bf16.mxu0 %v1062
      %1310 = vmatpush2.bf16.msra.mxu0 %v1061
      %1311 = vmatprep.subr.bf16.mxu0 %v1058
      %1312 = vmatpush2.bf16.msra.mxu0 %v1057
      %1313 = vmatprep.subr.bf16.mxu0 %v1054
      %1314 = vmatpush2.bf16.msra.mxu0 %v1053
      %1315 = vmatprep.subr.bf16.mxu0 %v1050
      %1316 = vmatpush2.bf16.msra.mxu0 %v1049
      %1317 = vmatprep.subr.bf16.mxu0 %v1046
      %1318 = vmatpush2.bf16.msra.mxu0 %v1045
      %1319 = vmatprep.subr.bf16.mxu0 %v1042
      %1320 = vmatpush2.bf16.msra.mxu0 %v1041
      %1321 = vmatprep.subr.bf16.mxu0 %v1038
      %1322 = vmatpush2.bf16.msra.mxu0 %v1037
      %1323 = vmatprep.subr.bf16.mxu0 %v1034
      %1324 = vmatpush2.bf16.msra.mxu0 %v1033
      %1325 = vmatprep.mubr.bf16.mxu0 %v528
      %1326 = vmatmul.mubr.bf16.gmra.mxu0 %v516
      %v1327 = vpop.f32.mrf.mxu0
      %v1328 = vadd.f32 0.0, %v1327
      %v1329 = vpop.f32.mrf.mxu0
      %v1330 = vadd.f32 0.0, %v1329
      %v1331 = vpop.f32.mrf.mxu0
      %v1332 = vadd.f32 0.0, %v1331
      %v1333 = vpop.f32.mrf.mxu0
      %v1334 = vadd.f32 0.0, %v1333
      %1335 = vdwg.mxu0
      %1336 = vmatprep.subr.bf16.mxu0 %v1094
      %1337 = vmatpush1.bf16.msra.mxu0 %v1093
      %1338 = vmatprep.subr.bf16.mxu0 %v1090
      %1339 = vmatpush1.bf16.msra.mxu0 %v1089
      %1340 = vmatprep.subr.bf16.mxu0 %v1086
      %1341 = vmatpush1.bf16.msra.mxu0 %v1085
      %1342 = vmatprep.subr.bf16.mxu0 %v1082
      %1343 = vmatpush1.bf16.msra.mxu0 %v1081
      %1344 = vmatprep.subr.bf16.mxu0 %v1078
      %1345 = vmatpush1.bf16.msra.mxu0 %v1077
      %1346 = vmatprep.subr.bf16.mxu0 %v1074
      %1347 = vmatpush1.bf16.msra.mxu0 %v1073
      %1348 = vmatprep.subr.bf16.mxu0 %v1070
      %1349 = vmatpush1.bf16.msra.mxu0 %v1069
      %1350 = vmatprep.subr.bf16.mxu0 %v1066
      %1351 = vmatpush1.bf16.msra.mxu0 %v1065
      %1352 = vmatprep.subr.bf16.mxu0 %v1126
      %1353 = vmatpush2.bf16.msra.mxu0 %v1125
      %1354 = vmatprep.subr.bf16.mxu0 %v1122
      %1355 = vmatpush2.bf16.msra.mxu0 %v1121
      %1356 = vmatprep.subr.bf16.mxu0 %v1118
      %1357 = vmatpush2.bf16.msra.mxu0 %v1117
      %1358 = vmatprep.subr.bf16.mxu0 %v1114
      %1359 = vmatpush2.bf16.msra.mxu0 %v1113
      %1360 = vmatprep.subr.bf16.mxu0 %v1110
      %1361 = vmatpush2.bf16.msra.mxu0 %v1109
      %1362 = vmatprep.subr.bf16.mxu0 %v1106
      %1363 = vmatpush2.bf16.msra.mxu0 %v1105
      %1364 = vmatprep.subr.bf16.mxu0 %v1102
      %1365 = vmatpush2.bf16.msra.mxu0 %v1101
      %1366 = vmatprep.subr.bf16.mxu0 %v1098
      %1367 = vmatpush2.bf16.msra.mxu0 %v1097
      %1368 = vmatprep.mubr.bf16.mxu0 %v552
      %1369 = vmatmul.mubr.bf16.gmra.mxu0 %v540
      %v1370 = vpop.f32.mrf.mxu0
      %v1371 = vadd.f32 %v1328, %v1370
      %v1372 = vpop.f32.mrf.mxu0
      %v1373 = vadd.f32 %v1330, %v1372
      %v1374 = vpop.f32.mrf.mxu0
      %v1375 = vadd.f32 %v1332, %v1374
      %v1376 = vpop.f32.mrf.mxu0
      %v1377 = vadd.f32 %v1334, %v1376
      %1378 = vdwg.mxu0
      %1379 = vmatprep.subr.bf16.mxu0 0
      %1380 = vmatpush1.bf16.msra.mxu0 0
      %1381 = vmatprep.subr.bf16.mxu0 0
      %1382 = vmatpush1.bf16.msra.mxu0 0
      %1383 = vmatprep.subr.bf16.mxu0 0
      %1384 = vmatpush1.bf16.msra.mxu0 0
      %1385 = vmatprep.subr.bf16.mxu0 0
      %1386 = vmatpush1.bf16.msra.mxu0 0
      %1387 = vmatprep.subr.bf16.mxu0 %v1142
      %1388 = vmatpush1.bf16.msra.mxu0 %v1141
      %1389 = vmatprep.subr.bf16.mxu0 %v1138
      %1390 = vmatpush1.bf16.msra.mxu0 %v1137
      %1391 = vmatprep.subr.bf16.mxu0 %v1134
      %1392 = vmatpush1.bf16.msra.mxu0 %v1133
      %1393 = vmatprep.subr.bf16.mxu0 %v1130
      %1394 = vmatpush1.bf16.msra.mxu0 %v1129
      %1395 = vmatprep.subr.bf16.mxu0 0
      %1396 = vmatpush2.bf16.msra.mxu0 0
      %1397 = vmatprep.subr.bf16.mxu0 0
      %1398 = vmatpush2.bf16.msra.mxu0 0
      %1399 = vmatprep.subr.bf16.mxu0 0
      %1400 = vmatpush2.bf16.msra.mxu0 0
      %1401 = vmatprep.subr.bf16.mxu0 0
      %1402 = vmatpush2.bf16.msra.mxu0 0
      %1403 = vmatprep.subr.bf16.mxu0 0
      %1404 = vmatpush2.bf16.msra.mxu0 0
      %1405 = vmatprep.subr.bf16.mxu0 0
      %1406 = vmatpush2.bf16.msra.mxu0 0
      %1407 = vmatprep.subr.bf16.mxu0 0
      %1408 = vmatpush2.bf16.msra.mxu0 0
      %1409 = vmatprep.subr.bf16.mxu0 0
      %1410 = vmatpush2.bf16.msra.mxu0 0
      %1411 = vmatprep.mubr.bf16.mxu0 0
      %1412 = vmatmul.mubr.bf16.gmra.mxu0 %v1291
      %v1413 = vpop.f32.mrf.mxu0
      %v1414 = vadd.f32 %v1371, %v1413
      %v1415 = vpop.f32.mrf.mxu0
      %v1416 = vadd.f32 %v1373, %v1415
      %v1417 = vpop.f32.mrf.mxu0
      %v1418 = vadd.f32 %v1375, %v1417
      %v1419 = vpop.f32.mrf.mxu0
      %v1420 = vadd.f32 %v1377, %v1419
      %1421 = vdwg.mxu0
      %1422 = vmatprep.subr.bf16.mxu0 %v1032
      %1423 = vmatpush1.bf16.msra.mxu0 %v1031
      %1424 = vmatprep.subr.bf16.mxu0 %v1028
      %1425 = vmatpush1.bf16.msra.mxu0 %v1027
      %1426 = vmatprep.subr.bf16.mxu0 %v1024
      %1427 = vmatpush1.bf16.msra.mxu0 %v1023
      %1428 = vmatprep.subr.bf16.mxu0 %v1020
      %1429 = vmatpush1.bf16.msra.mxu0 %v1019
      %1430 = vmatprep.subr.bf16.mxu0 %v1016
      %1431 = vmatpush1.bf16.msra.mxu0 %v1015
      %1432 = vmatprep.subr.bf16.mxu0 %v1012
      %1433 = vmatpush1.bf16.msra.mxu0 %v1011
      %1434 = vmatprep.subr.bf16.mxu0 %v1008
      %1435 = vmatpush1.bf16.msra.mxu0 %v1007
      %1436 = vmatprep.subr.bf16.mxu0 %v1004
      %1437 = vmatpush1.bf16.msra.mxu0 %v1003
      %1438 = vmatprep.subr.bf16.mxu0 %v1064
      %1439 = vmatpush2.bf16.msra.mxu0 %v1063
      %1440 = vmatprep.subr.bf16.mxu0 %v1060
      %1441 = vmatpush2.bf16.msra.mxu0 %v1059
      %1442 = vmatprep.subr.bf16.mxu0 %v1056
      %1443 = vmatpush2.bf16.msra.mxu0 %v1055
      %1444 = vmatprep.subr.bf16.mxu0 %v1052
      %1445 = vmatpush2.bf16.msra.mxu0 %v1051
      %1446 = vmatprep.subr.bf16.mxu0 %v1048
      %1447 = vmatpush2.bf16.msra.mxu0 %v1047
      %1448 = vmatprep.subr.bf16.mxu0 %v1044
      %1449 = vmatpush2.bf16.msra.mxu0 %v1043
      %1450 = vmatprep.subr.bf16.mxu0 %v1040
      %1451 = vmatpush2.bf16.msra.mxu0 %v1039
      %1452 = vmatprep.subr.bf16.mxu0 %v1036
      %1453 = vmatpush2.bf16.msra.mxu0 %v1035
      %1454 = vmatprep.mubr.bf16.mxu0 %v528
      %1455 = vmatmul.mubr.bf16.gmra.mxu0 %v516
      %v1456 = vpop.f32.mrf.mxu0
      %v1457 = vadd.f32 0.0, %v1456
      %v1458 = vpop.f32.mrf.mxu0
      %v1459 = vadd.f32 0.0, %v1458
      %v1460 = vpop.f32.mrf.mxu0
      %v1461 = vadd.f32 0.0, %v1460
      %v1462 = vpop.f32.mrf.mxu0
      %v1463 = vadd.f32 0.0, %v1462
      %1464 = vdwg.mxu0
      %1465 = vmatprep.subr.bf16.mxu0 %v1096
      %1466 = vmatpush1.bf16.msra.mxu0 %v1095
      %1467 = vmatprep.subr.bf16.mxu0 %v1092
      %1468 = vmatpush1.bf16.msra.mxu0 %v1091
      %1469 = vmatprep.subr.bf16.mxu0 %v1088
      %1470 = vmatpush1.bf16.msra.mxu0 %v1087
      %1471 = vmatprep.subr.bf16.mxu0 %v1084
      %1472 = vmatpush1.bf16.msra.mxu0 %v1083
      %1473 = vmatprep.subr.bf16.mxu0 %v1080
      %1474 = vmatpush1.bf16.msra.mxu0 %v1079
      %1475 = vmatprep.subr.bf16.mxu0 %v1076
      %1476 = vmatpush1.bf16.msra.mxu0 %v1075
      %1477 = vmatprep.subr.bf16.mxu0 %v1072
      %1478 = vmatpush1.bf16.msra.mxu0 %v1071
      %1479 = vmatprep.subr.bf16.mxu0 %v1068
      %1480 = vmatpush1.bf16.msra.mxu0 %v1067
      %1481 = vmatprep.subr.bf16.mxu0 %v1128
      %1482 = vmatpush2.bf16.msra.mxu0 %v1127
      %1483 = vmatprep.subr.bf16.mxu0 %v1124
      %1484 = vmatpush2.bf16.msra.mxu0 %v1123
      %1485 = vmatprep.subr.bf16.mxu0 %v1120
      %1486 = vmatpush2.bf16.msra.mxu0 %v1119
      %1487 = vmatprep.subr.bf16.mxu0 %v1116
      %1488 = vmatpush2.bf16.msra.mxu0 %v1115
      %1489 = vmatprep.subr.bf16.mxu0 %v1112
      %1490 = vmatpush2.bf16.msra.mxu0 %v1111
      %1491 = vmatprep.subr.bf16.mxu0 %v1108
      %1492 = vmatpush2.bf16.msra.mxu0 %v1107
      %1493 = vmatprep.subr.bf16.mxu0 %v1104
      %1494 = vmatpush2.bf16.msra.mxu0 %v1103
      %1495 = vmatprep.subr.bf16.mxu0 %v1100
      %1496 = vmatpush2.bf16.msra.mxu0 %v1099
      %1497 = vmatprep.mubr.bf16.mxu0 %v552
      %1498 = vmatmul.mubr.bf16.gmra.mxu0 %v540
      %v1499 = vpop.f32.mrf.mxu0
      %v1500 = vadd.f32 %v1457, %v1499
      %v1501 = vpop.f32.mrf.mxu0
      %v1502 = vadd.f32 %v1459, %v1501
      %v1503 = vpop.f32.mrf.mxu0
      %v1504 = vadd.f32 %v1461, %v1503
      %v1505 = vpop.f32.mrf.mxu0
      %v1506 = vadd.f32 %v1463, %v1505
      %1507 = vdwg.mxu0
      %1508 = vmatprep.subr.bf16.mxu0 0
      %1509 = vmatpush1.bf16.msra.mxu0 0
      %1510 = vmatprep.subr.bf16.mxu0 0
      %1511 = vmatpush1.bf16.msra.mxu0 0
      %1512 = vmatprep.subr.bf16.mxu0 0
      %1513 = vmatpush1.bf16.msra.mxu0 0
      %1514 = vmatprep.subr.bf16.mxu0 0
      %1515 = vmatpush1.bf16.msra.mxu0 0
      %1516 = vmatprep.subr.bf16.mxu0 %v1144
      %1517 = vmatpush1.bf16.msra.mxu0 %v1143
      %1518 = vmatprep.subr.bf16.mxu0 %v1140
      %1519 = vmatpush1.bf16.msra.mxu0 %v1139
      %1520 = vmatprep.subr.bf16.mxu0 %v1136
      %1521 = vmatpush1.bf16.msra.mxu0 %v1135
      %1522 = vmatprep.subr.bf16.mxu0 %v1132
      %1523 = vmatpush1.bf16.msra.mxu0 %v1131
      %1524 = vmatprep.subr.bf16.mxu0 0
      %1525 = vmatpush2.bf16.msra.mxu0 0
      %1526 = vmatprep.subr.bf16.mxu0 0
      %1527 = vmatpush2.bf16.msra.mxu0 0
      %1528 = vmatprep.subr.bf16.mxu0 0
      %1529 = vmatpush2.bf16.msra.mxu0 0
      %1530 = vmatprep.subr.bf16.mxu0 0
      %1531 = vmatpush2.bf16.msra.mxu0 0
      %1532 = vmatprep.subr.bf16.mxu0 0
      %1533 = vmatpush2.bf16.msra.mxu0 0
      %1534 = vmatprep.subr.bf16.mxu0 0
      %1535 = vmatpush2.bf16.msra.mxu0 0
      %1536 = vmatprep.subr.bf16.mxu0 0
      %1537 = vmatpush2.bf16.msra.mxu0 0
      %1538 = vmatprep.subr.bf16.mxu0 0
      %1539 = vmatpush2.bf16.msra.mxu0 0
      %1540 = vmatprep.mubr.bf16.mxu0 0
      %1541 = vmatmul.mubr.bf16.gmra.mxu0 %v1291
      %v1542 = vpop.f32.mrf.mxu0
      %v1543 = vadd.f32 %v1500, %v1542
      %v1544 = vpop.f32.mrf.mxu0
      %v1545 = vadd.f32 %v1502, %v1544
      %v1546 = vpop.f32.mrf.mxu0
      %v1547 = vadd.f32 %v1504, %v1546
      %v1548 = vpop.f32.mrf.mxu0
      %v1549 = vadd.f32 %v1506, %v1548
      %1550 = vdwg.mxu0
      %v1699 = vunpack.c.l.b16 %v178
      %v1700 = vunpack.c.h.b16 %v178
      %v1701 = vunpack.c.l.b16 %v179
      %v1702 = vunpack.c.h.b16 %v179
      %v1703 = vunpack.c.l.b16 %v180
      %v1704 = vunpack.c.h.b16 %v180
      %v1705 = vunpack.c.l.b16 %v181
      %v1706 = vunpack.c.h.b16 %v181
      %v1707 = vunpack.c.l.b16 %v182
      %v1708 = vunpack.c.h.b16 %v182
      %v1709 = vunpack.c.l.b16 %v183
      %v1710 = vunpack.c.h.b16 %v183
      %v1711 = vunpack.c.l.b16 %v184
      %v1712 = vunpack.c.h.b16 %v184
      %v1713 = vunpack.c.l.b16 %v185
      %v1714 = vunpack.c.h.b16 %v185
      %v1715 = vunpack.c.l.b16 %v186
      %v1716 = vunpack.c.h.b16 %v186
      %v1717 = vunpack.c.l.b16 %v187
      %v1718 = vunpack.c.h.b16 %v187
      %v1719 = vunpack.c.l.b16 %v188
      %v1720 = vunpack.c.h.b16 %v188
      %v1721 = vunpack.c.l.b16 %v189
      %v1722 = vunpack.c.h.b16 %v189
      %v1723 = vunpack.c.l.b16 %v190
      %v1724 = vunpack.c.h.b16 %v190
      %v1725 = vunpack.c.l.b16 %v191
      %v1726 = vunpack.c.h.b16 %v191
      %v1727 = vunpack.c.l.b16 %v192
      %v1728 = vunpack.c.h.b16 %v192
      %v1729 = vunpack.c.l.b16 %v193
      %v1730 = vunpack.c.h.b16 %v193
      %v1731 = vunpack.c.l.b16 %v194
      %v1732 = vunpack.c.h.b16 %v194
      %v1733 = vunpack.c.l.b16 %v195
      %v1734 = vunpack.c.h.b16 %v195
      %v1735 = vunpack.c.l.b16 %v196
      %v1736 = vunpack.c.h.b16 %v196
      %v1737 = vunpack.c.l.b16 %v197
      %v1738 = vunpack.c.h.b16 %v197
      %v1739 = vunpack.c.l.b16 %v198
      %v1740 = vunpack.c.h.b16 %v198
      %v1741 = vunpack.c.l.b16 %v199
      %v1742 = vunpack.c.h.b16 %v199
      %v1743 = vunpack.c.l.b16 %v200
      %v1744 = vunpack.c.h.b16 %v200
      %v1745 = vunpack.c.l.b16 %v201
      %v1746 = vunpack.c.h.b16 %v201
      %v1747 = vunpack.c.l.b16 %v202
      %v1748 = vunpack.c.h.b16 %v202
      %v1749 = vunpack.c.l.b16 %v203
      %v1750 = vunpack.c.h.b16 %v203
      %v1751 = vunpack.c.l.b16 %v204
      %v1752 = vunpack.c.h.b16 %v204
      %v1753 = vunpack.c.l.b16 %v205
      %v1754 = vunpack.c.h.b16 %v205
      %v1755 = vunpack.c.l.b16 %v206
      %v1756 = vunpack.c.h.b16 %v206
      %v1757 = vunpack.c.l.b16 %v207
      %v1758 = vunpack.c.h.b16 %v207
      %v1759 = vunpack.c.l.b16 %v208
      %v1760 = vunpack.c.h.b16 %v208
      %v1761 = vunpack.c.l.b16 %v209
      %v1762 = vunpack.c.h.b16 %v209
      %v1763 = vunpack.c.l.b16 %v210
      %v1764 = vunpack.c.h.b16 %v210
      %v1765 = vunpack.c.l.b16 %v211
      %v1766 = vunpack.c.h.b16 %v211
      %v1767 = vunpack.c.l.b16 %v212
      %v1768 = vunpack.c.h.b16 %v212
      %v1769 = vunpack.c.l.b16 %v213
      %v1770 = vunpack.c.h.b16 %v213
      %v1771 = vunpack.c.l.b16 %v214
      %v1772 = vunpack.c.h.b16 %v214
      %v1773 = vunpack.c.l.b16 %v215
      %v1774 = vunpack.c.h.b16 %v215
      %v1775 = vunpack.c.l.b16 %v216
      %v1776 = vunpack.c.h.b16 %v216
      %v1777 = vunpack.c.l.b16 %v217
      %v1778 = vunpack.c.h.b16 %v217
      %v1779 = vunpack.c.l.b16 %v218
      %v1780 = vunpack.c.h.b16 %v218
      %v1781 = vunpack.c.l.b16 %v219
      %v1782 = vunpack.c.h.b16 %v219
      %v1783 = vunpack.c.l.b16 %v220
      %v1784 = vunpack.c.h.b16 %v220
      %v1785 = vunpack.c.l.b16 %v221
      %v1786 = vunpack.c.h.b16 %v221
      %v1787 = vunpack.c.l.b16 %v222
      %v1788 = vunpack.c.h.b16 %v222
      %v1789 = vunpack.c.l.b16 %v223
      %v1790 = vunpack.c.h.b16 %v223
      %v1791 = vunpack.c.l.b16 %v224
      %v1792 = vunpack.c.h.b16 %v224
      %v1793 = vunpack.c.l.b16 %v225
      %v1794 = vunpack.c.h.b16 %v225
      %v1795 = vunpack.c.l.b16 %v226
      %v1796 = vunpack.c.h.b16 %v226
      %v1797 = vunpack.c.l.b16 %v227
      %v1798 = vunpack.c.h.b16 %v227
      %v1799 = vunpack.c.l.b16 %v228
      %v1800 = vunpack.c.h.b16 %v228
      %v1801 = vunpack.c.l.b16 %v229
      %v1802 = vunpack.c.h.b16 %v229
      %v1803 = vunpack.c.l.b16 %v230
      %v1804 = vunpack.c.h.b16 %v230
      %v1805 = vunpack.c.l.b16 %v231
      %v1806 = vunpack.c.h.b16 %v231
      %v1807 = vunpack.c.l.b16 %v232
      %v1808 = vunpack.c.h.b16 %v232
      %v1809 = vunpack.c.l.b16 %v233
      %v1810 = vunpack.c.h.b16 %v233
      %v1811 = vunpack.c.l.b16 %v234
      %v1812 = vunpack.c.h.b16 %v234
      %v1813 = vunpack.c.l.b16 %v235
      %v1814 = vunpack.c.h.b16 %v235
      %v1815 = vunpack.c.l.b16 %v236
      %v1816 = vunpack.c.h.b16 %v236
      %v1817 = vunpack.c.l.b16 %v237
      %v1818 = vunpack.c.h.b16 %v237
      %v1819 = vunpack.c.l.b16 %v238
      %v1820 = vunpack.c.h.b16 %v238
      %v1821 = vunpack.c.l.b16 %v239
      %v1822 = vunpack.c.h.b16 %v239
      %v1823 = vunpack.c.l.b16 %v240
      %v1824 = vunpack.c.h.b16 %v240
      %v1825 = vunpack.c.l.b16 %v241
      %v1826 = vunpack.c.h.b16 %v241
      %v1827 = vunpack.c.l.b16 %v242
      %v1828 = vunpack.c.h.b16 %v242
      %v1829 = vunpack.c.l.b16 %v243
      %v1830 = vunpack.c.h.b16 %v243
      %v1831 = vunpack.c.l.b16 %v244
      %v1832 = vunpack.c.h.b16 %v244
      %v1833 = vunpack.c.l.b16 %v245
      %v1834 = vunpack.c.h.b16 %v245
      %v1835 = vunpack.c.l.b16 %v246
      %v1836 = vunpack.c.h.b16 %v246
      %v1837 = vunpack.c.l.b16 %v247
      %v1838 = vunpack.c.h.b16 %v247
      %v1839 = vunpack.c.l.b16 %v248
      %v1840 = vunpack.c.h.b16 %v248
      %v1841 = vunpack.c.l.b16 %v249
      %v1842 = vunpack.c.h.b16 %v249
      %v1843 = vunpack.c.l.b16 %v250
      %v1844 = vunpack.c.h.b16 %v250
      %v1845 = vunpack.c.l.b16 %v251
      %v1846 = vunpack.c.h.b16 %v251
      %v1847 = vunpack.c.l.b16 %v252
      %v1848 = vunpack.c.h.b16 %v252
      %v1849 = vunpack.c.l.b16 %v253
      %v1850 = vunpack.c.h.b16 %v253
      %v1851 = vunpack.c.l.b16 %v254
      %v1852 = vunpack.c.h.b16 %v254
      %v1853 = vunpack.c.l.b16 %v255
      %v1854 = vunpack.c.h.b16 %v255
      %v1855 = vunpack.c.l.b16 %v256
      %v1856 = vunpack.c.h.b16 %v256
      %v1857 = vunpack.c.l.b16 %v257
      %v1858 = vunpack.c.h.b16 %v257
      %v1859 = vunpack.c.l.b16 %v258
      %v1860 = vunpack.c.h.b16 %v258
      %v1861 = vunpack.c.l.b16 %v259
      %v1862 = vunpack.c.h.b16 %v259
      %v1863 = vunpack.c.l.b16 %v260
      %v1864 = vunpack.c.h.b16 %v260
      %v1865 = vunpack.c.l.b16 %v261
      %v1866 = vunpack.c.h.b16 %v261
      %v1867 = vunpack.c.l.b16 %v262
      %v1868 = vunpack.c.h.b16 %v262
      %v1869 = vunpack.c.l.b16 %v263
      %v1870 = vunpack.c.h.b16 %v263
      %v1871 = vunpack.c.l.b16 %v264
      %v1872 = vunpack.c.h.b16 %v264
      %v1873 = vunpack.c.l.b16 %v265
      %v1874 = vunpack.c.h.b16 %v265
      %v1875 = vunpack.c.l.b16 %v266
      %v1876 = vunpack.c.h.b16 %v266
      %v1877 = vunpack.c.l.b16 %v267
      %v1878 = vunpack.c.h.b16 %v267
      %v1879 = vunpack.c.l.b16 %v268
      %v1880 = vunpack.c.h.b16 %v268
      %v1881 = vunpack.c.l.b16 %v269
      %v1882 = vunpack.c.h.b16 %v269
      %v1883 = vunpack.c.l.b16 %v270
      %v1884 = vunpack.c.h.b16 %v270
      %v1885 = vunpack.c.l.b16 %v271
      %v1886 = vunpack.c.h.b16 %v271
      %v1887 = vunpack.c.l.b16 %v272
      %v1888 = vunpack.c.h.b16 %v272
      %v1889 = vunpack.c.l.b16 %v273
      %v1890 = vunpack.c.h.b16 %v273
      %v1891 = vunpack.c.l.b16 %v274
      %v1892 = vunpack.c.h.b16 %v274
      %v1893 = vunpack.c.l.b16 %v275
      %v1894 = vunpack.c.h.b16 %v275
      %v1895 = vunpack.c.l.b16 %v276
      %v1896 = vunpack.c.h.b16 %v276
      %v1897 = vunpack.c.l.b16 %v277
      %v1898 = vunpack.c.h.b16 %v277
      %v1899 = vunpack.c.l.b16 %v278
      %v1900 = vunpack.c.h.b16 %v278
      %v1901 = vunpack.c.l.b16 %v279
      %v1902 = vunpack.c.h.b16 %v279
      %v1903 = vunpack.c.l.b16 %v280
      %v1904 = vunpack.c.h.b16 %v280
      %v1905 = vunpack.c.l.b16 %v281
      %v1906 = vunpack.c.h.b16 %v281
      %v1907 = vunpack.c.l.b16 %v282
      %v1908 = vunpack.c.h.b16 %v282
      %v1909 = vunpack.c.l.b16 %v283
      %v1910 = vunpack.c.h.b16 %v283
      %v1911 = vunpack.c.l.b16 %v284
      %v1912 = vunpack.c.h.b16 %v284
      %v1913 = vunpack.c.l.b16 %v285
      %v1914 = vunpack.c.h.b16 %v285
      %v1915 = vunpack.c.l.b16 %v286
      %v1916 = vunpack.c.h.b16 %v286
      %v1917 = vunpack.c.l.b16 %v287
      %v1918 = vunpack.c.h.b16 %v287
      %v1919 = vunpack.c.l.b16 %v288
      %v1920 = vunpack.c.h.b16 %v288
      %v1921 = vunpack.c.l.b16 %v289
      %v1922 = vunpack.c.h.b16 %v289
      %v1923 = vunpack.c.l.b16 %v290
      %v1924 = vunpack.c.h.b16 %v290
      %v1925 = vunpack.c.l.b16 %v291
      %v1926 = vunpack.c.h.b16 %v291
      %v1927 = vunpack.c.l.b16 %v292
      %v1928 = vunpack.c.h.b16 %v292
      %v1929 = vunpack.c.l.b16 %v293
      %v1930 = vunpack.c.h.b16 %v293
      %v1931 = vunpack.c.l.b16 %v294
      %v1932 = vunpack.c.h.b16 %v294
      %v1933 = vunpack.c.l.b16 %v295
      %v1934 = vunpack.c.h.b16 %v295
      %v1935 = vunpack.c.l.b16 %v296
      %v1936 = vunpack.c.h.b16 %v296
      %v1937 = vunpack.c.l.b16 %v297
      %v1938 = vunpack.c.h.b16 %v297
      %v1939 = vunpack.c.l.b16 %v298
      %v1940 = vunpack.c.h.b16 %v298
      %v1941 = vunpack.c.l.b16 %v299
      %v1942 = vunpack.c.h.b16 %v299
      %v1943 = vunpack.c.l.b16 %v300
      %v1944 = vunpack.c.h.b16 %v300
      %v1945 = vunpack.c.l.b16 %v301
      %v1946 = vunpack.c.h.b16 %v301
      %v1947 = vunpack.c.l.b16 %v302
      %v1948 = vunpack.c.h.b16 %v302
      %v1949 = vunpack.c.l.b16 %v303
      %v1950 = vunpack.c.h.b16 %v303
      %v1951 = vunpack.c.l.b16 %v304
      %v1952 = vunpack.c.h.b16 %v304
      %v1953 = vunpack.c.l.b16 %v305
      %v1954 = vunpack.c.h.b16 %v305
      %v1955 = vunpack.c.l.b16 %v306
      %v1956 = vunpack.c.h.b16 %v306
      %v1957 = vunpack.c.l.b16 %v307
      %v1958 = vunpack.c.h.b16 %v307
      %v1959 = vunpack.c.l.b16 %v308
      %v1960 = vunpack.c.h.b16 %v308
      %v1961 = vunpack.c.l.b16 %v309
      %v1962 = vunpack.c.h.b16 %v309
      %v1963 = vunpack.c.l.b16 %v310
      %v1964 = vunpack.c.h.b16 %v310
      %v1965 = vunpack.c.l.b16 %v311
      %v1966 = vunpack.c.h.b16 %v311
      %v1967 = vunpack.c.l.b16 %v312
      %v1968 = vunpack.c.h.b16 %v312
      %v1969 = vunpack.c.l.b16 %v313
      %v1970 = vunpack.c.h.b16 %v313
      %v1971 = vunpack.c.l.b16 %v314
      %v1972 = vunpack.c.h.b16 %v314
      %v1973 = vunpack.c.l.b16 %v315
      %v1974 = vunpack.c.h.b16 %v315
      %v1975 = vunpack.c.l.b16 %v316
      %v1976 = vunpack.c.h.b16 %v316
      %v1977 = vunpack.c.l.b16 %v317
      %v1978 = vunpack.c.h.b16 %v317
      %v1979 = vunpack.c.l.b16 %v318
      %v1980 = vunpack.c.h.b16 %v318
      %v1981 = vunpack.c.l.b16 %v319
      %v1982 = vunpack.c.h.b16 %v319
      %v1983 = vunpack.c.l.b16 %v320
      %v1984 = vunpack.c.h.b16 %v320
      %v1985 = vunpack.c.l.b16 %v321
      %v1986 = vunpack.c.h.b16 %v321
      %v1987 = vpack.c.b16 %v1703, %v1699
      %v1988 = vpack.c.b16 %v1704, %v1700
      %v1989 = vpack.c.b16 %v1705, %v1701
      %v1990 = vpack.c.b16 %v1706, %v1702
      %v1991 = vpack.c.b16 %v1711, %v1707
      %v1992 = vpack.c.b16 %v1712, %v1708
      %v1993 = vpack.c.b16 %v1713, %v1709
      %v1994 = vpack.c.b16 %v1714, %v1710
      %v1995 = vpack.c.b16 %v1719, %v1715
      %v1996 = vpack.c.b16 %v1720, %v1716
      %v1997 = vpack.c.b16 %v1721, %v1717
      %v1998 = vpack.c.b16 %v1722, %v1718
      %v1999 = vpack.c.b16 %v1727, %v1723
      %v2000 = vpack.c.b16 %v1728, %v1724
      %v2001 = vpack.c.b16 %v1729, %v1725
      %v2002 = vpack.c.b16 %v1730, %v1726
      %v2003 = vpack.c.b16 %v1735, %v1731
      %v2004 = vpack.c.b16 %v1736, %v1732
      %v2005 = vpack.c.b16 %v1737, %v1733
      %v2006 = vpack.c.b16 %v1738, %v1734
      %v2007 = vpack.c.b16 %v1743, %v1739
      %v2008 = vpack.c.b16 %v1744, %v1740
      %v2009 = vpack.c.b16 %v1745, %v1741
      %v2010 = vpack.c.b16 %v1746, %v1742
      %v2011 = vpack.c.b16 %v1751, %v1747
      %v2012 = vpack.c.b16 %v1752, %v1748
      %v2013 = vpack.c.b16 %v1753, %v1749
      %v2014 = vpack.c.b16 %v1754, %v1750
      %v2015 = vpack.c.b16 %v1759, %v1755
      %v2016 = vpack.c.b16 %v1760, %v1756
      %v2017 = vpack.c.b16 %v1761, %v1757
      %v2018 = vpack.c.b16 %v1762, %v1758
      %v2019 = vpack.c.b16 %v1767, %v1763
      %v2020 = vpack.c.b16 %v1768, %v1764
      %v2021 = vpack.c.b16 %v1769, %v1765
      %v2022 = vpack.c.b16 %v1770, %v1766
      %v2023 = vpack.c.b16 %v1775, %v1771
      %v2024 = vpack.c.b16 %v1776, %v1772
      %v2025 = vpack.c.b16 %v1777, %v1773
      %v2026 = vpack.c.b16 %v1778, %v1774
      %v2027 = vpack.c.b16 %v1783, %v1779
      %v2028 = vpack.c.b16 %v1784, %v1780
      %v2029 = vpack.c.b16 %v1785, %v1781
      %v2030 = vpack.c.b16 %v1786, %v1782
      %v2031 = vpack.c.b16 %v1791, %v1787
      %v2032 = vpack.c.b16 %v1792, %v1788
      %v2033 = vpack.c.b16 %v1793, %v1789
      %v2034 = vpack.c.b16 %v1794, %v1790
      %v2035 = vpack.c.b16 %v1799, %v1795
      %v2036 = vpack.c.b16 %v1800, %v1796
      %v2037 = vpack.c.b16 %v1801, %v1797
      %v2038 = vpack.c.b16 %v1802, %v1798
      %v2039 = vpack.c.b16 %v1807, %v1803
      %v2040 = vpack.c.b16 %v1808, %v1804
      %v2041 = vpack.c.b16 %v1809, %v1805
      %v2042 = vpack.c.b16 %v1810, %v1806
      %v2043 = vpack.c.b16 %v1815, %v1811
      %v2044 = vpack.c.b16 %v1816, %v1812
      %v2045 = vpack.c.b16 %v1817, %v1813
      %v2046 = vpack.c.b16 %v1818, %v1814
      %v2047 = vpack.c.b16 %v1823, %v1819
      %v2048 = vpack.c.b16 %v1824, %v1820
      %v2049 = vpack.c.b16 %v1825, %v1821
      %v2050 = vpack.c.b16 %v1826, %v1822
      %v2051 = vpack.c.b16 %v1831, %v1827
      %v2052 = vpack.c.b16 %v1832, %v1828
      %v2053 = vpack.c.b16 %v1833, %v1829
      %v2054 = vpack.c.b16 %v1834, %v1830
      %v2055 = vpack.c.b16 %v1839, %v1835
      %v2056 = vpack.c.b16 %v1840, %v1836
      %v2057 = vpack.c.b16 %v1841, %v1837
      %v2058 = vpack.c.b16 %v1842, %v1838
      %v2059 = vpack.c.b16 %v1847, %v1843
      %v2060 = vpack.c.b16 %v1848, %v1844
      %v2061 = vpack.c.b16 %v1849, %v1845
      %v2062 = vpack.c.b16 %v1850, %v1846
      %v2063 = vpack.c.b16 %v1855, %v1851
      %v2064 = vpack.c.b16 %v1856, %v1852
      %v2065 = vpack.c.b16 %v1857, %v1853
      %v2066 = vpack.c.b16 %v1858, %v1854
      %v2067 = vpack.c.b16 %v1863, %v1859
      %v2068 = vpack.c.b16 %v1864, %v1860
      %v2069 = vpack.c.b16 %v1865, %v1861
      %v2070 = vpack.c.b16 %v1866, %v1862
      %v2071 = vpack.c.b16 %v1871, %v1867
      %v2072 = vpack.c.b16 %v1872, %v1868
      %v2073 = vpack.c.b16 %v1873, %v1869
      %v2074 = vpack.c.b16 %v1874, %v1870
      %v2075 = vpack.c.b16 %v1879, %v1875
      %v2076 = vpack.c.b16 %v1880, %v1876
      %v2077 = vpack.c.b16 %v1881, %v1877
      %v2078 = vpack.c.b16 %v1882, %v1878
      %v2079 = vpack.c.b16 %v1887, %v1883
      %v2080 = vpack.c.b16 %v1888, %v1884
      %v2081 = vpack.c.b16 %v1889, %v1885
      %v2082 = vpack.c.b16 %v1890, %v1886
      %v2083 = vpack.c.b16 %v1895, %v1891
      %v2084 = vpack.c.b16 %v1896, %v1892
      %v2085 = vpack.c.b16 %v1897, %v1893
      %v2086 = vpack.c.b16 %v1898, %v1894
      %v2087 = vpack.c.b16 %v1903, %v1899
      %v2088 = vpack.c.b16 %v1904, %v1900
      %v2089 = vpack.c.b16 %v1905, %v1901
      %v2090 = vpack.c.b16 %v1906, %v1902
      %v2091 = vpack.c.b16 %v1911, %v1907
      %v2092 = vpack.c.b16 %v1912, %v1908
      %v2093 = vpack.c.b16 %v1913, %v1909
      %v2094 = vpack.c.b16 %v1914, %v1910
      %v2095 = vpack.c.b16 %v1919, %v1915
      %v2096 = vpack.c.b16 %v1920, %v1916
      %v2097 = vpack.c.b16 %v1921, %v1917
      %v2098 = vpack.c.b16 %v1922, %v1918
      %v2099 = vpack.c.b16 %v1927, %v1923
      %v2100 = vpack.c.b16 %v1928, %v1924
      %v2101 = vpack.c.b16 %v1929, %v1925
      %v2102 = vpack.c.b16 %v1930, %v1926
      %v2103 = vpack.c.b16 %v1935, %v1931
      %v2104 = vpack.c.b16 %v1936, %v1932
      %v2105 = vpack.c.b16 %v1937, %v1933
      %v2106 = vpack.c.b16 %v1938, %v1934
      %v2107 = vpack.c.b16 %v1943, %v1939
      %v2108 = vpack.c.b16 %v1944, %v1940
      %v2109 = vpack.c.b16 %v1945, %v1941
      %v2110 = vpack.c.b16 %v1946, %v1942
      %v2111 = vpack.c.b16 %v1951, %v1947
      %v2112 = vpack.c.b16 %v1952, %v1948
      %v2113 = vpack.c.b16 %v1953, %v1949
      %v2114 = vpack.c.b16 %v1954, %v1950
      %v2115 = vpack.c.b16 %v1959, %v1955
      %v2116 = vpack.c.b16 %v1960, %v1956
      %v2117 = vpack.c.b16 %v1961, %v1957
      %v2118 = vpack.c.b16 %v1962, %v1958
      %v2119 = vpack.c.b16 %v1967, %v1963
      %v2120 = vpack.c.b16 %v1968, %v1964
      %v2121 = vpack.c.b16 %v1969, %v1965
      %v2122 = vpack.c.b16 %v1970, %v1966
      %v2123 = vpack.c.b16 %v1975, %v1971
      %v2124 = vpack.c.b16 %v1976, %v1972
      %v2125 = vpack.c.b16 %v1977, %v1973
      %v2126 = vpack.c.b16 %v1978, %v1974
      %v2127 = vpack.c.b16 %v1983, %v1979
      %v2128 = vpack.c.b16 %v1984, %v1980
      %v2129 = vpack.c.b16 %v1985, %v1981
      %v2130 = vpack.c.b16 %v1986, %v1982
      %v2275 = vsel %vm1289, %v498, 0
      %2277 = vmatprep.subr.bf16.mxu0 %v2016
      %2278 = vmatpush1.bf16.msra.mxu0 %v2015
      %2279 = vmatprep.subr.bf16.mxu0 %v2012
      %2280 = vmatpush1.bf16.msra.mxu0 %v2011
      %2281 = vmatprep.subr.bf16.mxu0 %v2008
      %2282 = vmatpush1.bf16.msra.mxu0 %v2007
      %2283 = vmatprep.subr.bf16.mxu0 %v2004
      %2284 = vmatpush1.bf16.msra.mxu0 %v2003
      %2285 = vmatprep.subr.bf16.mxu0 %v2000
      %2286 = vmatpush1.bf16.msra.mxu0 %v1999
      %2287 = vmatprep.subr.bf16.mxu0 %v1996
      %2288 = vmatpush1.bf16.msra.mxu0 %v1995
      %2289 = vmatprep.subr.bf16.mxu0 %v1992
      %2290 = vmatpush1.bf16.msra.mxu0 %v1991
      %2291 = vmatprep.subr.bf16.mxu0 %v1988
      %2292 = vmatpush1.bf16.msra.mxu0 %v1987
      %2293 = vmatprep.subr.bf16.mxu0 %v2048
      %2294 = vmatpush2.bf16.msra.mxu0 %v2047
      %2295 = vmatprep.subr.bf16.mxu0 %v2044
      %2296 = vmatpush2.bf16.msra.mxu0 %v2043
      %2297 = vmatprep.subr.bf16.mxu0 %v2040
      %2298 = vmatpush2.bf16.msra.mxu0 %v2039
      %2299 = vmatprep.subr.bf16.mxu0 %v2036
      %2300 = vmatpush2.bf16.msra.mxu0 %v2035
      %2301 = vmatprep.subr.bf16.mxu0 %v2032
      %2302 = vmatpush2.bf16.msra.mxu0 %v2031
      %2303 = vmatprep.subr.bf16.mxu0 %v2028
      %2304 = vmatpush2.bf16.msra.mxu0 %v2027
      %2305 = vmatprep.subr.bf16.mxu0 %v2024
      %2306 = vmatpush2.bf16.msra.mxu0 %v2023
      %2307 = vmatprep.subr.bf16.mxu0 %v2020
      %2308 = vmatpush2.bf16.msra.mxu0 %v2019
      %2309 = vmatprep.mubr.bf16.mxu0 %v495
      %2310 = vmatmul.mubr.bf16.gmra.mxu0 %v494
      %v2311 = vpop.f32.mrf.mxu0
      %v2312 = vadd.f32 %v1414, %v2311
      %v2313 = vpop.f32.mrf.mxu0
      %v2314 = vadd.f32 %v1416, %v2313
      %v2315 = vpop.f32.mrf.mxu0
      %v2316 = vadd.f32 %v1418, %v2315
      %v2317 = vpop.f32.mrf.mxu0
      %v2318 = vadd.f32 %v1420, %v2317
      %2319 = vdwg.mxu0
      %2320 = vmatprep.subr.bf16.mxu0 %v2080
      %2321 = vmatpush1.bf16.msra.mxu0 %v2079
      %2322 = vmatprep.subr.bf16.mxu0 %v2076
      %2323 = vmatpush1.bf16.msra.mxu0 %v2075
      %2324 = vmatprep.subr.bf16.mxu0 %v2072
      %2325 = vmatpush1.bf16.msra.mxu0 %v2071
      %2326 = vmatprep.subr.bf16.mxu0 %v2068
      %2327 = vmatpush1.bf16.msra.mxu0 %v2067
      %2328 = vmatprep.subr.bf16.mxu0 %v2064
      %2329 = vmatpush1.bf16.msra.mxu0 %v2063
      %2330 = vmatprep.subr.bf16.mxu0 %v2060
      %2331 = vmatpush1.bf16.msra.mxu0 %v2059
      %2332 = vmatprep.subr.bf16.mxu0 %v2056
      %2333 = vmatpush1.bf16.msra.mxu0 %v2055
      %2334 = vmatprep.subr.bf16.mxu0 %v2052
      %2335 = vmatpush1.bf16.msra.mxu0 %v2051
      %2336 = vmatprep.subr.bf16.mxu0 %v2112
      %2337 = vmatpush2.bf16.msra.mxu0 %v2111
      %2338 = vmatprep.subr.bf16.mxu0 %v2108
      %2339 = vmatpush2.bf16.msra.mxu0 %v2107
      %2340 = vmatprep.subr.bf16.mxu0 %v2104
      %2341 = vmatpush2.bf16.msra.mxu0 %v2103
      %2342 = vmatprep.subr.bf16.mxu0 %v2100
      %2343 = vmatpush2.bf16.msra.mxu0 %v2099
      %2344 = vmatprep.subr.bf16.mxu0 %v2096
      %2345 = vmatpush2.bf16.msra.mxu0 %v2095
      %2346 = vmatprep.subr.bf16.mxu0 %v2092
      %2347 = vmatpush2.bf16.msra.mxu0 %v2091
      %2348 = vmatprep.subr.bf16.mxu0 %v2088
      %2349 = vmatpush2.bf16.msra.mxu0 %v2087
      %2350 = vmatprep.subr.bf16.mxu0 %v2084
      %2351 = vmatpush2.bf16.msra.mxu0 %v2083
      %2352 = vmatprep.mubr.bf16.mxu0 %v497
      %2353 = vmatmul.mubr.bf16.gmra.mxu0 %v496
      %v2354 = vpop.f32.mrf.mxu0
      %v2355 = vadd.f32 %v2312, %v2354
      %v2356 = vpop.f32.mrf.mxu0
      %v2357 = vadd.f32 %v2314, %v2356
      %v2358 = vpop.f32.mrf.mxu0
      %v2359 = vadd.f32 %v2316, %v2358
      %v2360 = vpop.f32.mrf.mxu0
      %v2361 = vadd.f32 %v2318, %v2360
      %2362 = vdwg.mxu0
      %2363 = vmatprep.subr.bf16.mxu0 0
      %2364 = vmatpush1.bf16.msra.mxu0 0
      %2365 = vmatprep.subr.bf16.mxu0 0
      %2366 = vmatpush1.bf16.msra.mxu0 0
      %2367 = vmatprep.subr.bf16.mxu0 0
      %2368 = vmatpush1.bf16.msra.mxu0 0
      %2369 = vmatprep.subr.bf16.mxu0 0
      %2370 = vmatpush1.bf16.msra.mxu0 0
      %2371 = vmatprep.subr.bf16.mxu0 %v2128
      %2372 = vmatpush1.bf16.msra.mxu0 %v2127
      %2373 = vmatprep.subr.bf16.mxu0 %v2124
      %2374 = vmatpush1.bf16.msra.mxu0 %v2123
      %2375 = vmatprep.subr.bf16.mxu0 %v2120
      %2376 = vmatpush1.bf16.msra.mxu0 %v2119
      %2377 = vmatprep.subr.bf16.mxu0 %v2116
      %2378 = vmatpush1.bf16.msra.mxu0 %v2115
      %2379 = vmatprep.subr.bf16.mxu0 0
      %2380 = vmatpush2.bf16.msra.mxu0 0
      %2381 = vmatprep.subr.bf16.mxu0 0
      %2382 = vmatpush2.bf16.msra.mxu0 0
      %2383 = vmatprep.subr.bf16.mxu0 0
      %2384 = vmatpush2.bf16.msra.mxu0 0
      %2385 = vmatprep.subr.bf16.mxu0 0
      %2386 = vmatpush2.bf16.msra.mxu0 0
      %2387 = vmatprep.subr.bf16.mxu0 0
      %2388 = vmatpush2.bf16.msra.mxu0 0
      %2389 = vmatprep.subr.bf16.mxu0 0
      %2390 = vmatpush2.bf16.msra.mxu0 0
      %2391 = vmatprep.subr.bf16.mxu0 0
      %2392 = vmatpush2.bf16.msra.mxu0 0
      %2393 = vmatprep.subr.bf16.mxu0 0
      %2394 = vmatpush2.bf16.msra.mxu0 0
      %2395 = vmatprep.mubr.bf16.mxu0 0
      %2396 = vmatmul.mubr.bf16.gmra.mxu0 %v2275
      %v2397 = vpop.f32.mrf.mxu0
      %v2398 = vadd.f32 %v2355, %v2397
      %v2399 = vpop.f32.mrf.mxu0
      %v2400 = vadd.f32 %v2357, %v2399
      %v2401 = vpop.f32.mrf.mxu0
      %v2402 = vadd.f32 %v2359, %v2401
      %v2403 = vpop.f32.mrf.mxu0
      %v2404 = vadd.f32 %v2361, %v2403
      %2405 = vdwg.mxu0
      %2406 = vmatprep.subr.bf16.mxu0 %v2018
      %2407 = vmatpush1.bf16.msra.mxu0 %v2017
      %2408 = vmatprep.subr.bf16.mxu0 %v2014
      %2409 = vmatpush1.bf16.msra.mxu0 %v2013
      %2410 = vmatprep.subr.bf16.mxu0 %v2010
      %2411 = vmatpush1.bf16.msra.mxu0 %v2009
      %2412 = vmatprep.subr.bf16.mxu0 %v2006
      %2413 = vmatpush1.bf16.msra.mxu0 %v2005
      %2414 = vmatprep.subr.bf16.mxu0 %v2002
      %2415 = vmatpush1.bf16.msra.mxu0 %v2001
      %2416 = vmatprep.subr.bf16.mxu0 %v1998
      %2417 = vmatpush1.bf16.msra.mxu0 %v1997
      %2418 = vmatprep.subr.bf16.mxu0 %v1994
      %2419 = vmatpush1.bf16.msra.mxu0 %v1993
      %2420 = vmatprep.subr.bf16.mxu0 %v1990
      %2421 = vmatpush1.bf16.msra.mxu0 %v1989
      %2422 = vmatprep.subr.bf16.mxu0 %v2050
      %2423 = vmatpush2.bf16.msra.mxu0 %v2049
      %2424 = vmatprep.subr.bf16.mxu0 %v2046
      %2425 = vmatpush2.bf16.msra.mxu0 %v2045
      %2426 = vmatprep.subr.bf16.mxu0 %v2042
      %2427 = vmatpush2.bf16.msra.mxu0 %v2041
      %2428 = vmatprep.subr.bf16.mxu0 %v2038
      %2429 = vmatpush2.bf16.msra.mxu0 %v2037
      %2430 = vmatprep.subr.bf16.mxu0 %v2034
      %2431 = vmatpush2.bf16.msra.mxu0 %v2033
      %2432 = vmatprep.subr.bf16.mxu0 %v2030
      %2433 = vmatpush2.bf16.msra.mxu0 %v2029
      %2434 = vmatprep.subr.bf16.mxu0 %v2026
      %2435 = vmatpush2.bf16.msra.mxu0 %v2025
      %2436 = vmatprep.subr.bf16.mxu0 %v2022
      %2437 = vmatpush2.bf16.msra.mxu0 %v2021
      %2438 = vmatprep.mubr.bf16.mxu0 %v495
      %2439 = vmatmul.mubr.bf16.gmra.mxu0 %v494
      %v2440 = vpop.f32.mrf.mxu0
      %v2441 = vadd.f32 %v1543, %v2440
      %v2442 = vpop.f32.mrf.mxu0
      %v2443 = vadd.f32 %v1545, %v2442
      %v2444 = vpop.f32.mrf.mxu0
      %v2445 = vadd.f32 %v1547, %v2444
      %v2446 = vpop.f32.mrf.mxu0
      %v2447 = vadd.f32 %v1549, %v2446
      %2448 = vdwg.mxu0
      %2449 = vmatprep.subr.bf16.mxu0 %v2082
      %2450 = vmatpush1.bf16.msra.mxu0 %v2081
      %2451 = vmatprep.subr.bf16.mxu0 %v2078
      %2452 = vmatpush1.bf16.msra.mxu0 %v2077
      %2453 = vmatprep.subr.bf16.mxu0 %v2074
      %2454 = vmatpush1.bf16.msra.mxu0 %v2073
      %2455 = vmatprep.subr.bf16.mxu0 %v2070
      %2456 = vmatpush1.bf16.msra.mxu0 %v2069
      %2457 = vmatprep.subr.bf16.mxu0 %v2066
      %2458 = vmatpush1.bf16.msra.mxu0 %v2065
      %2459 = vmatprep.subr.bf16.mxu0 %v2062
      %2460 = vmatpush1.bf16.msra.mxu0 %v2061
      %2461 = vmatprep.subr.bf16.mxu0 %v2058
      %2462 = vmatpush1.bf16.msra.mxu0 %v2057
      %2463 = vmatprep.subr.bf16.mxu0 %v2054
      %2464 = vmatpush1.bf16.msra.mxu0 %v2053
      %2465 = vmatprep.subr.bf16.mxu0 %v2114
      %2466 = vmatpush2.bf16.msra.mxu0 %v2113
      %2467 = vmatprep.subr.bf16.mxu0 %v2110
      %2468 = vmatpush2.bf16.msra.mxu0 %v2109
      %2469 = vmatprep.subr.bf16.mxu0 %v2106
      %2470 = vmatpush2.bf16.msra.mxu0 %v2105
      %2471 = vmatprep.subr.bf16.mxu0 %v2102
      %2472 = vmatpush2.bf16.msra.mxu0 %v2101
      %2473 = vmatprep.subr.bf16.mxu0 %v2098
      %2474 = vmatpush2.bf16.msra.mxu0 %v2097
      %2475 = vmatprep.subr.bf16.mxu0 %v2094
      %2476 = vmatpush2.bf16.msra.mxu0 %v2093
      %2477 = vmatprep.subr.bf16.mxu0 %v2090
      %2478 = vmatpush2.bf16.msra.mxu0 %v2089
      %2479 = vmatprep.subr.bf16.mxu0 %v2086
      %2480 = vmatpush2.bf16.msra.mxu0 %v2085
      %2481 = vmatprep.mubr.bf16.mxu0 %v497
      %2482 = vmatmul.mubr.bf16.gmra.mxu0 %v496
      %v2483 = vpop.f32.mrf.mxu0
      %v2484 = vadd.f32 %v2441, %v2483
      %v2485 = vpop.f32.mrf.mxu0
      %v2486 = vadd.f32 %v2443, %v2485
      %v2487 = vpop.f32.mrf.mxu0
      %v2488 = vadd.f32 %v2445, %v2487
      %v2489 = vpop.f32.mrf.mxu0
      %v2490 = vadd.f32 %v2447, %v2489
      %2491 = vdwg.mxu0
      %2492 = vmatprep.subr.bf16.mxu0 0
      %2493 = vmatpush1.bf16.msra.mxu0 0
      %2494 = vmatprep.subr.bf16.mxu0 0
      %2495 = vmatpush1.bf16.msra.mxu0 0
      %2496 = vmatprep.subr.bf16.mxu0 0
      %2497 = vmatpush1.bf16.msra.mxu0 0
      %2498 = vmatprep.subr.bf16.mxu0 0
      %2499 = vmatpush1.bf16.msra.mxu0 0
      %2500 = vmatprep.subr.bf16.mxu0 %v2130
      %2501 = vmatpush1.bf16.msra.mxu0 %v2129
      %2502 = vmatprep.subr.bf16.mxu0 %v2126
      %2503 = vmatpush1.bf16.msra.mxu0 %v2125
      %2504 = vmatprep.subr.bf16.mxu0 %v2122
      %2505 = vmatpush1.bf16.msra.mxu0 %v2121
      %2506 = vmatprep.subr.bf16.mxu0 %v2118
      %2507 = vmatpush1.bf16.msra.mxu0 %v2117
      %2508 = vmatprep.subr.bf16.mxu0 0
      %2509 = vmatpush2.bf16.msra.mxu0 0
      %2510 = vmatprep.subr.bf16.mxu0 0
      %2511 = vmatpush2.bf16.msra.mxu0 0
      %2512 = vmatprep.subr.bf16.mxu0 0
      %2513 = vmatpush2.bf16.msra.mxu0 0
      %2514 = vmatprep.subr.bf16.mxu0 0
      %2515 = vmatpush2.bf16.msra.mxu0 0
      %2516 = vmatprep.subr.bf16.mxu0 0
      %2517 = vmatpush2.bf16.msra.mxu0 0
      %2518 = vmatprep.subr.bf16.mxu0 0
      %2519 = vmatpush2.bf16.msra.mxu0 0
      %2520 = vmatprep.subr.bf16.mxu0 0
      %2521 = vmatpush2.bf16.msra.mxu0 0
      %2522 = vmatprep.subr.bf16.mxu0 0
      %2523 = vmatpush2.bf16.msra.mxu0 0
      %2524 = vmatprep.mubr.bf16.mxu0 0
      %2525 = vmatmul.mubr.bf16.gmra.mxu0 %v2275
      %v2526 = vpop.f32.mrf.mxu0
      %v2527 = vadd.f32 %v2484, %v2526
      %v2528 = vpop.f32.mrf.mxu0
      %v2529 = vadd.f32 %v2486, %v2528
      %v2530 = vpop.f32.mrf.mxu0
      %v2531 = vadd.f32 %v2488, %v2530
      %v2532 = vpop.f32.mrf.mxu0
      %v2533 = vadd.f32 %v2490, %v2532
      %2534 = vdwg.mxu0
      %v2535 = vld [vmem:[%s165] sm:$0xee]
      %v2536 = vld [vmem:[%s165 + $0x8] sm:$0xee]
      %v2537 = vld [vmem:[%s165 + $0x10] sm:$0xe]
      %s2538 = scalar_lea.vmem %s1, 2304
      %v2539 = vld [vmem:[%s2538] sm:$0xff]
      %v2540 = vld [vmem:[%s2538 + $0x8] sm:$0xff]
      %v2541 = vld [vmem:[%s2538 + $0x10] sm:$0xff]
      %v2542 = vld [vmem:[%s2538 + $0x18] sm:$0xff]
      %v2543 = vld [vmem:[%s2538 + $0x20] sm:$0xff]
      %v2544 = vld [vmem:[%s2538 + $0x28] sm:$0xff]
      %v2545 = vld [vmem:[%s2538 + $0x30] sm:$0xff]
      %v2546 = vld [vmem:[%s2538 + $0x38] sm:$0xff]
      %v2547 = vld [vmem:[%s2538 + $0x40] sm:$0xff]
      %v2548 = vld [vmem:[%s2538 + $0x48] sm:$0xff]
      %v2549 = vld [vmem:[%s2538 + $0x50] sm:$0xff]
      %v2550 = vld [vmem:[%s2538 + $0x58] sm:$0xff]
      %v2551 = vld [vmem:[%s2538 + $0x60] sm:$0xff]
      %v2552 = vld [vmem:[%s2538 + $0x68] sm:$0xff]
      %v2553 = vld [vmem:[%s2538 + $0x70] sm:$0xff]
      %v2554 = vld [vmem:[%s2538 + $0x78] sm:$0xff]
      %v2555 = vld [vmem:[%s2538 + $0x80] sm:$0xff]
      %v2556 = vld [vmem:[%s2538 + $0x88] sm:$0xff]
      %v2557 = vld [vmem:[%s2538 + $0x90] sm:$0xff]
      %v2558 = vld [vmem:[%s2538 + $0x98] sm:$0xff]
      %v2559 = vld [vmem:[%s2538 + $0xa0] sm:$0xff]
      %v2560 = vld [vmem:[%s2538 + $0xa8] sm:$0xff]
      %v2561 = vld [vmem:[%s2538 + $0xb0] sm:$0xff]
      %v2562 = vld [vmem:[%s2538 + $0xb8] sm:$0xff]
      %v2563 = vld [vmem:[%s2538 + $0xc0] sm:$0xff]
      %v2564 = vld [vmem:[%s2538 + $0xc8] sm:$0xff]
      %v2565 = vld [vmem:[%s2538 + $0xd0] sm:$0xff]
      %v2566 = vld [vmem:[%s2538 + $0xd8] sm:$0xff]
      %v2567 = vld [vmem:[%s2538 + $0xe0] sm:$0xff]
      %v2568 = vld [vmem:[%s2538 + $0xe8] sm:$0xff]
      %v2569 = vld [vmem:[%s2538 + $0xf0] sm:$0xff]
      %v2570 = vld [vmem:[%s2538 + $0xf8] sm:$0xff]
      %v2571 = vld [vmem:[%s2538 + $0x100] sm:$0xff]
      %v2572 = vld [vmem:[%s2538 + $0x108] sm:$0xff]
      %v2573 = vld [vmem:[%s2538 + $0x110] sm:$0xff]
      %v2574 = vld [vmem:[%s2538 + $0x118] sm:$0xff]
      %v2575 = vld [vmem:[%s2538 + $0x120] sm:$0xff]
      %v2576 = vld [vmem:[%s2538 + $0x128] sm:$0xff]
      %v2577 = vld [vmem:[%s2538 + $0x130] sm:$0xff]
      %v2578 = vld [vmem:[%s2538 + $0x138] sm:$0xff]
      %v2579 = vld [vmem:[%s2538 + $0x140] sm:$0xff]
      %v2580 = vld [vmem:[%s2538 + $0x148] sm:$0xff]
      %v2581 = vld [vmem:[%s2538 + $0x150] sm:$0xff]
      %v2582 = vld [vmem:[%s2538 + $0x158] sm:$0xff]
      %v2583 = vld [vmem:[%s2538 + $0x160] sm:$0xff]
      %v2584 = vld [vmem:[%s2538 + $0x168] sm:$0xff]
      %v2585 = vld [vmem:[%s2538 + $0x170] sm:$0xff]
      %v2586 = vld [vmem:[%s2538 + $0x178] sm:$0xff]
      %v2587 = vld [vmem:[%s2538 + $0x180] sm:$0xff]
      %v2588 = vld [vmem:[%s2538 + $0x188] sm:$0xff]
      %v2589 = vld [vmem:[%s2538 + $0x190] sm:$0xff]
      %v2590 = vld [vmem:[%s2538 + $0x198] sm:$0xff]
      %v2591 = vld [vmem:[%s2538 + $0x1a0] sm:$0xff]
      %v2592 = vld [vmem:[%s2538 + $0x1a8] sm:$0xff]
      %v2593 = vld [vmem:[%s2538 + $0x1b0] sm:$0xff]
      %v2594 = vld [vmem:[%s2538 + $0x1b8] sm:$0xff]
      %v2595 = vld [vmem:[%s2538 + $0x1c0] sm:$0xff]
      %v2596 = vld [vmem:[%s2538 + $0x1c8] sm:$0xff]
      %v2597 = vld [vmem:[%s2538 + $0x1d0] sm:$0xff]
      %v2598 = vld [vmem:[%s2538 + $0x1d8] sm:$0xff]
      %v2599 = vld [vmem:[%s2538 + $0x1e0] sm:$0xff]
      %v2600 = vld [vmem:[%s2538 + $0x1e8] sm:$0xff]
      %v2601 = vld [vmem:[%s2538 + $0x1f0] sm:$0xff]
      %v2602 = vld [vmem:[%s2538 + $0x1f8] sm:$0xff]
      %v2603 = vld [vmem:[%s2538 + $0x200] sm:$0xff]
      %v2604 = vld [vmem:[%s2538 + $0x208] sm:$0xff]
      %v2605 = vld [vmem:[%s2538 + $0x210] sm:$0xff]
      %v2606 = vld [vmem:[%s2538 + $0x218] sm:$0xff]
      %v2607 = vld [vmem:[%s2538 + $0x220] sm:$0xff]
      %v2608 = vld [vmem:[%s2538 + $0x228] sm:$0xff]
      %v2609 = vld [vmem:[%s2538 + $0x230] sm:$0xff]
      %v2610 = vld [vmem:[%s2538 + $0x238] sm:$0xff]
      %v2611 = vld [vmem:[%s2538 + $0x240] sm:$0xff]
      %v2612 = vld [vmem:[%s2538 + $0x248] sm:$0xff]
      %v2613 = vld [vmem:[%s2538 + $0x250] sm:$0xff]
      %v2614 = vld [vmem:[%s2538 + $0x258] sm:$0xff]
      %v2615 = vld [vmem:[%s2538 + $0x260] sm:$0xff]
      %v2616 = vld [vmem:[%s2538 + $0x268] sm:$0xff]
      %v2617 = vld [vmem:[%s2538 + $0x270] sm:$0xff]
      %v2618 = vld [vmem:[%s2538 + $0x278] sm:$0xff]
      %v2619 = vld [vmem:[%s2538 + $0x280] sm:$0xff]
      %v2620 = vld [vmem:[%s2538 + $0x288] sm:$0xff]
      %v2621 = vld [vmem:[%s2538 + $0x290] sm:$0xff]
      %v2622 = vld [vmem:[%s2538 + $0x298] sm:$0xff]
      %v2623 = vld [vmem:[%s2538 + $0x2a0] sm:$0xff]
      %v2624 = vld [vmem:[%s2538 + $0x2a8] sm:$0xff]
      %v2625 = vld [vmem:[%s2538 + $0x2b0] sm:$0xff]
      %v2626 = vld [vmem:[%s2538 + $0x2b8] sm:$0xff]
      %v2627 = vld [vmem:[%s2538 + $0x2c0] sm:$0xff]
      %v2628 = vld [vmem:[%s2538 + $0x2c8] sm:$0xff]
      %v2629 = vld [vmem:[%s2538 + $0x2d0] sm:$0xff]
      %v2630 = vld [vmem:[%s2538 + $0x2d8] sm:$0xff]
      %v2631 = vld [vmem:[%s2538 + $0x2e0] sm:$0xff]
      %v2632 = vld [vmem:[%s2538 + $0x2e8] sm:$0xff]
      %v2633 = vld [vmem:[%s2538 + $0x2f0] sm:$0xff]
      %v2634 = vld [vmem:[%s2538 + $0x2f8] sm:$0xff]
      %v2635 = vld [vmem:[%s2538 + $0x300] sm:$0xff]
      %v2636 = vld [vmem:[%s2538 + $0x308] sm:$0xff]
      %v2637 = vld [vmem:[%s2538 + $0x310] sm:$0xff]
      %v2638 = vld [vmem:[%s2538 + $0x318] sm:$0xff]
      %v2639 = vld [vmem:[%s2538 + $0x320] sm:$0xff]
      %v2640 = vld [vmem:[%s2538 + $0x328] sm:$0xff]
      %v2641 = vld [vmem:[%s2538 + $0x330] sm:$0xff]
      %v2642 = vld [vmem:[%s2538 + $0x338] sm:$0xff]
      %v2643 = vld [vmem:[%s2538 + $0x340] sm:$0xff]
      %v2644 = vld [vmem:[%s2538 + $0x348] sm:$0xff]
      %v2645 = vld [vmem:[%s2538 + $0x350] sm:$0xff]
      %v2646 = vld [vmem:[%s2538 + $0x358] sm:$0xff]
      %v2647 = vld [vmem:[%s2538 + $0x360] sm:$0xff]
      %v2648 = vld [vmem:[%s2538 + $0x368] sm:$0xff]
      %v2649 = vld [vmem:[%s2538 + $0x370] sm:$0xff]
      %v2650 = vld [vmem:[%s2538 + $0x378] sm:$0xff]
      %v2651 = vld [vmem:[%s2538 + $0x380] sm:$0xff]
      %v2652 = vld [vmem:[%s2538 + $0x388] sm:$0xff]
      %v2653 = vld [vmem:[%s2538 + $0x390] sm:$0xff]
      %v2654 = vld [vmem:[%s2538 + $0x398] sm:$0xff]
      %v2655 = vld [vmem:[%s2538 + $0x3a0] sm:$0xff]
      %v2656 = vld [vmem:[%s2538 + $0x3a8] sm:$0xff]
      %v2657 = vld [vmem:[%s2538 + $0x3b0] sm:$0xff]
      %v2658 = vld [vmem:[%s2538 + $0x3b8] sm:$0xff]
      %v2659 = vld [vmem:[%s2538 + $0x3c0] sm:$0xff]
      %v2660 = vld [vmem:[%s2538 + $0x3c8] sm:$0xff]
      %v2661 = vld [vmem:[%s2538 + $0x3d0] sm:$0xff]
      %v2662 = vld [vmem:[%s2538 + $0x3d8] sm:$0xff]
      %v2663 = vld [vmem:[%s2538 + $0x3e0] sm:$0xff]
      %v2664 = vld [vmem:[%s2538 + $0x3e8] sm:$0xff]
      %v2665 = vld [vmem:[%s2538 + $0x3f0] sm:$0xff]
      %v2666 = vld [vmem:[%s2538 + $0x3f8] sm:$0xff]
      %v2667 = vld [vmem:[%s2538 + $0x400] sm:$0xff]
      %v2668 = vld [vmem:[%s2538 + $0x408] sm:$0xff]
      %v2669 = vld [vmem:[%s2538 + $0x410] sm:$0xff]
      %v2670 = vld [vmem:[%s2538 + $0x418] sm:$0xff]
      %v2671 = vld [vmem:[%s2538 + $0x420] sm:$0xff]
      %v2672 = vld [vmem:[%s2538 + $0x428] sm:$0xff]
      %v2673 = vld [vmem:[%s2538 + $0x430] sm:$0xff]
      %v2674 = vld [vmem:[%s2538 + $0x438] sm:$0xff]
      %v2675 = vld [vmem:[%s2538 + $0x440] sm:$0xff]
      %v2676 = vld [vmem:[%s2538 + $0x448] sm:$0xff]
      %v2677 = vld [vmem:[%s2538 + $0x450] sm:$0xff]
      %v2678 = vld [vmem:[%s2538 + $0x458] sm:$0xff]
      %v2679 = vld [vmem:[%s2538 + $0x460] sm:$0xff]
      %v2680 = vld [vmem:[%s2538 + $0x468] sm:$0xff]
      %v2681 = vld [vmem:[%s2538 + $0x470] sm:$0xff]
      %v2682 = vld [vmem:[%s2538 + $0x478] sm:$0xff]
      %v2686 = vunpack.c.l.b16 %v2535
      %v2687 = vunpack.c.h.b16 %v2535
      %v2688 = vunpack.c.l.b16 %v2536
      %v2689 = vunpack.c.h.b16 %v2536
      %v2690 = vunpack.c.l.b16 %v2537
      %v2691 = vpack.c.b16 %v484, %v2686
      %v2692 = vpack.c.b16 %v485, %v2687
      %v2693 = vpack.c.b16 %v486, %v2688
      %v2694 = vpack.c.b16 %v487, %v2689
      %v2695 = vpack.c.b16 %v488, %v2690
      %vm2696 = vcmask 1046528
      %v2697 = vrot.slane %v2691, 1
      %v2698 = vrot.slane %v499, 1
      %v2699 = vsel %vm2696, %v2697, %v2698
      %v2700 = vrot.slane %v2692, 1
      %v2701 = vrot.slane %v500, 1
      %v2702 = vsel %vm2696, %v2700, %v2701
      %v2703 = vrot.slane %v2693, 1
      %v2704 = vrot.slane %v501, 1
      %v2705 = vsel %vm2696, %v2703, %v2704
      %v2706 = vrot.slane %v2694, 1
      %v2707 = vrot.slane %v502, 1
      %v2708 = vsel %vm2696, %v2706, %v2707
      %v2709 = vrot.slane %v2695, 1
      %v2710 = vrot.slane %v503, 1
      %v2711 = vsel %vm2696, %v2709, %v2710
      %v2860 = vunpack.c.l.b16 %v2539
      %v2861 = vunpack.c.h.b16 %v2539
      %v2862 = vunpack.c.l.b16 %v2540
      %v2863 = vunpack.c.h.b16 %v2540
      %v2864 = vunpack.c.l.b16 %v2541
      %v2865 = vunpack.c.h.b16 %v2541
      %v2866 = vunpack.c.l.b16 %v2542
      %v2867 = vunpack.c.h.b16 %v2542
      %v2868 = vunpack.c.l.b16 %v2543
      %v2869 = vunpack.c.h.b16 %v2543
      %v2870 = vunpack.c.l.b16 %v2544
      %v2871 = vunpack.c.h.b16 %v2544
      %v2872 = vunpack.c.l.b16 %v2545
      %v2873 = vunpack.c.h.b16 %v2545
      %v2874 = vunpack.c.l.b16 %v2546
      %v2875 = vunpack.c.h.b16 %v2546
      %v2876 = vunpack.c.l.b16 %v2547
      %v2877 = vunpack.c.h.b16 %v2547
      %v2878 = vunpack.c.l.b16 %v2548
      %v2879 = vunpack.c.h.b16 %v2548
      %v2880 = vunpack.c.l.b16 %v2549
      %v2881 = vunpack.c.h.b16 %v2549
      %v2882 = vunpack.c.l.b16 %v2550
      %v2883 = vunpack.c.h.b16 %v2550
      %v2884 = vunpack.c.l.b16 %v2551
      %v2885 = vunpack.c.h.b16 %v2551
      %v2886 = vunpack.c.l.b16 %v2552
      %v2887 = vunpack.c.h.b16 %v2552
      %v2888 = vunpack.c.l.b16 %v2553
      %v2889 = vunpack.c.h.b16 %v2553
      %v2890 = vunpack.c.l.b16 %v2554
      %v2891 = vunpack.c.h.b16 %v2554
      %v2892 = vunpack.c.l.b16 %v2555
      %v2893 = vunpack.c.h.b16 %v2555
      %v2894 = vunpack.c.l.b16 %v2556
      %v2895 = vunpack.c.h.b16 %v2556
      %v2896 = vunpack.c.l.b16 %v2557
      %v2897 = vunpack.c.h.b16 %v2557
      %v2898 = vunpack.c.l.b16 %v2558
      %v2899 = vunpack.c.h.b16 %v2558
      %v2900 = vunpack.c.l.b16 %v2559
      %v2901 = vunpack.c.h.b16 %v2559
      %v2902 = vunpack.c.l.b16 %v2560
      %v2903 = vunpack.c.h.b16 %v2560
      %v2904 = vunpack.c.l.b16 %v2561
      %v2905 = vunpack.c.h.b16 %v2561
      %v2906 = vunpack.c.l.b16 %v2562
      %v2907 = vunpack.c.h.b16 %v2562
      %v2908 = vunpack.c.l.b16 %v2563
      %v2909 = vunpack.c.h.b16 %v2563
      %v2910 = vunpack.c.l.b16 %v2564
      %v2911 = vunpack.c.h.b16 %v2564
      %v2912 = vunpack.c.l.b16 %v2565
      %v2913 = vunpack.c.h.b16 %v2565
      %v2914 = vunpack.c.l.b16 %v2566
      %v2915 = vunpack.c.h.b16 %v2566
      %v2916 = vunpack.c.l.b16 %v2567
      %v2917 = vunpack.c.h.b16 %v2567
      %v2918 = vunpack.c.l.b16 %v2568
      %v2919 = vunpack.c.h.b16 %v2568
      %v2920 = vunpack.c.l.b16 %v2569
      %v2921 = vunpack.c.h.b16 %v2569
      %v2922 = vunpack.c.l.b16 %v2570
      %v2923 = vunpack.c.h.b16 %v2570
      %v2924 = vunpack.c.l.b16 %v2571
      %v2925 = vunpack.c.h.b16 %v2571
      %v2926 = vunpack.c.l.b16 %v2572
      %v2927 = vunpack.c.h.b16 %v2572
      %v2928 = vunpack.c.l.b16 %v2573
      %v2929 = vunpack.c.h.b16 %v2573
      %v2930 = vunpack.c.l.b16 %v2574
      %v2931 = vunpack.c.h.b16 %v2574
      %v2932 = vunpack.c.l.b16 %v2575
      %v2933 = vunpack.c.h.b16 %v2575
      %v2934 = vunpack.c.l.b16 %v2576
      %v2935 = vunpack.c.h.b16 %v2576
      %v2936 = vunpack.c.l.b16 %v2577
      %v2937 = vunpack.c.h.b16 %v2577
      %v2938 = vunpack.c.l.b16 %v2578
      %v2939 = vunpack.c.h.b16 %v2578
      %v2940 = vunpack.c.l.b16 %v2579
      %v2941 = vunpack.c.h.b16 %v2579
      %v2942 = vunpack.c.l.b16 %v2580
      %v2943 = vunpack.c.h.b16 %v2580
      %v2944 = vunpack.c.l.b16 %v2581
      %v2945 = vunpack.c.h.b16 %v2581
      %v2946 = vunpack.c.l.b16 %v2582
      %v2947 = vunpack.c.h.b16 %v2582
      %v2948 = vunpack.c.l.b16 %v2583
      %v2949 = vunpack.c.h.b16 %v2583
      %v2950 = vunpack.c.l.b16 %v2584
      %v2951 = vunpack.c.h.b16 %v2584
      %v2952 = vunpack.c.l.b16 %v2585
      %v2953 = vunpack.c.h.b16 %v2585
      %v2954 = vunpack.c.l.b16 %v2586
      %v2955 = vunpack.c.h.b16 %v2586
      %v2956 = vunpack.c.l.b16 %v2587
      %v2957 = vunpack.c.h.b16 %v2587
      %v2958 = vunpack.c.l.b16 %v2588
      %v2959 = vunpack.c.h.b16 %v2588
      %v2960 = vunpack.c.l.b16 %v2589
      %v2961 = vunpack.c.h.b16 %v2589
      %v2962 = vunpack.c.l.b16 %v2590
      %v2963 = vunpack.c.h.b16 %v2590
      %v2964 = vunpack.c.l.b16 %v2591
      %v2965 = vunpack.c.h.b16 %v2591
      %v2966 = vunpack.c.l.b16 %v2592
      %v2967 = vunpack.c.h.b16 %v2592
      %v2968 = vunpack.c.l.b16 %v2593
      %v2969 = vunpack.c.h.b16 %v2593
      %v2970 = vunpack.c.l.b16 %v2594
      %v2971 = vunpack.c.h.b16 %v2594
      %v2972 = vunpack.c.l.b16 %v2595
      %v2973 = vunpack.c.h.b16 %v2595
      %v2974 = vunpack.c.l.b16 %v2596
      %v2975 = vunpack.c.h.b16 %v2596
      %v2976 = vunpack.c.l.b16 %v2597
      %v2977 = vunpack.c.h.b16 %v2597
      %v2978 = vunpack.c.l.b16 %v2598
      %v2979 = vunpack.c.h.b16 %v2598
      %v2980 = vunpack.c.l.b16 %v2599
      %v2981 = vunpack.c.h.b16 %v2599
      %v2982 = vunpack.c.l.b16 %v2600
      %v2983 = vunpack.c.h.b16 %v2600
      %v2984 = vunpack.c.l.b16 %v2601
      %v2985 = vunpack.c.h.b16 %v2601
      %v2986 = vunpack.c.l.b16 %v2602
      %v2987 = vunpack.c.h.b16 %v2602
      %v2988 = vunpack.c.l.b16 %v2603
      %v2989 = vunpack.c.h.b16 %v2603
      %v2990 = vunpack.c.l.b16 %v2604
      %v2991 = vunpack.c.h.b16 %v2604
      %v2992 = vunpack.c.l.b16 %v2605
      %v2993 = vunpack.c.h.b16 %v2605
      %v2994 = vunpack.c.l.b16 %v2606
      %v2995 = vunpack.c.h.b16 %v2606
      %v2996 = vunpack.c.l.b16 %v2607
      %v2997 = vunpack.c.h.b16 %v2607
      %v2998 = vunpack.c.l.b16 %v2608
      %v2999 = vunpack.c.h.b16 %v2608
      %v3000 = vunpack.c.l.b16 %v2609
      %v3001 = vunpack.c.h.b16 %v2609
      %v3002 = vunpack.c.l.b16 %v2610
      %v3003 = vunpack.c.h.b16 %v2610
      %v3004 = vunpack.c.l.b16 %v2611
      %v3005 = vunpack.c.h.b16 %v2611
      %v3006 = vunpack.c.l.b16 %v2612
      %v3007 = vunpack.c.h.b16 %v2612
      %v3008 = vunpack.c.l.b16 %v2613
      %v3009 = vunpack.c.h.b16 %v2613
      %v3010 = vunpack.c.l.b16 %v2614
      %v3011 = vunpack.c.h.b16 %v2614
      %v3012 = vunpack.c.l.b16 %v2615
      %v3013 = vunpack.c.h.b16 %v2615
      %v3014 = vunpack.c.l.b16 %v2616
      %v3015 = vunpack.c.h.b16 %v2616
      %v3016 = vunpack.c.l.b16 %v2617
      %v3017 = vunpack.c.h.b16 %v2617
      %v3018 = vunpack.c.l.b16 %v2618
      %v3019 = vunpack.c.h.b16 %v2618
      %v3020 = vunpack.c.l.b16 %v2619
      %v3021 = vunpack.c.h.b16 %v2619
      %v3022 = vunpack.c.l.b16 %v2620
      %v3023 = vunpack.c.h.b16 %v2620
      %v3024 = vunpack.c.l.b16 %v2621
      %v3025 = vunpack.c.h.b16 %v2621
      %v3026 = vunpack.c.l.b16 %v2622
      %v3027 = vunpack.c.h.b16 %v2622
      %v3028 = vunpack.c.l.b16 %v2623
      %v3029 = vunpack.c.h.b16 %v2623
      %v3030 = vunpack.c.l.b16 %v2624
      %v3031 = vunpack.c.h.b16 %v2624
      %v3032 = vunpack.c.l.b16 %v2625
      %v3033 = vunpack.c.h.b16 %v2625
      %v3034 = vunpack.c.l.b16 %v2626
      %v3035 = vunpack.c.h.b16 %v2626
      %v3036 = vunpack.c.l.b16 %v2627
      %v3037 = vunpack.c.h.b16 %v2627
      %v3038 = vunpack.c.l.b16 %v2628
      %v3039 = vunpack.c.h.b16 %v2628
      %v3040 = vunpack.c.l.b16 %v2629
      %v3041 = vunpack.c.h.b16 %v2629
      %v3042 = vunpack.c.l.b16 %v2630
      %v3043 = vunpack.c.h.b16 %v2630
      %v3044 = vunpack.c.l.b16 %v2631
      %v3045 = vunpack.c.h.b16 %v2631
      %v3046 = vunpack.c.l.b16 %v2632
      %v3047 = vunpack.c.h.b16 %v2632
      %v3048 = vunpack.c.l.b16 %v2633
      %v3049 = vunpack.c.h.b16 %v2633
      %v3050 = vunpack.c.l.b16 %v2634
      %v3051 = vunpack.c.h.b16 %v2634
      %v3052 = vunpack.c.l.b16 %v2635
      %v3053 = vunpack.c.h.b16 %v2635
      %v3054 = vunpack.c.l.b16 %v2636
      %v3055 = vunpack.c.h.b16 %v2636
      %v3056 = vunpack.c.l.b16 %v2637
      %v3057 = vunpack.c.h.b16 %v2637
      %v3058 = vunpack.c.l.b16 %v2638
      %v3059 = vunpack.c.h.b16 %v2638
      %v3060 = vunpack.c.l.b16 %v2639
      %v3061 = vunpack.c.h.b16 %v2639
      %v3062 = vunpack.c.l.b16 %v2640
      %v3063 = vunpack.c.h.b16 %v2640
      %v3064 = vunpack.c.l.b16 %v2641
      %v3065 = vunpack.c.h.b16 %v2641
      %v3066 = vunpack.c.l.b16 %v2642
      %v3067 = vunpack.c.h.b16 %v2642
      %v3068 = vunpack.c.l.b16 %v2643
      %v3069 = vunpack.c.h.b16 %v2643
      %v3070 = vunpack.c.l.b16 %v2644
      %v3071 = vunpack.c.h.b16 %v2644
      %v3072 = vunpack.c.l.b16 %v2645
      %v3073 = vunpack.c.h.b16 %v2645
      %v3074 = vunpack.c.l.b16 %v2646
      %v3075 = vunpack.c.h.b16 %v2646
      %v3076 = vunpack.c.l.b16 %v2647
      %v3077 = vunpack.c.h.b16 %v2647
      %v3078 = vunpack.c.l.b16 %v2648
      %v3079 = vunpack.c.h.b16 %v2648
      %v3080 = vunpack.c.l.b16 %v2649
      %v3081 = vunpack.c.h.b16 %v2649
      %v3082 = vunpack.c.l.b16 %v2650
      %v3083 = vunpack.c.h.b16 %v2650
      %v3084 = vunpack.c.l.b16 %v2651
      %v3085 = vunpack.c.h.b16 %v2651
      %v3086 = vunpack.c.l.b16 %v2652
      %v3087 = vunpack.c.h.b16 %v2652
      %v3088 = vunpack.c.l.b16 %v2653
      %v3089 = vunpack.c.h.b16 %v2653
      %v3090 = vunpack.c.l.b16 %v2654
      %v3091 = vunpack.c.h.b16 %v2654
      %v3092 = vunpack.c.l.b16 %v2655
      %v3093 = vunpack.c.h.b16 %v2655
      %v3094 = vunpack.c.l.b16 %v2656
      %v3095 = vunpack.c.h.b16 %v2656
      %v3096 = vunpack.c.l.b16 %v2657
      %v3097 = vunpack.c.h.b16 %v2657
      %v3098 = vunpack.c.l.b16 %v2658
      %v3099 = vunpack.c.h.b16 %v2658
      %v3100 = vunpack.c.l.b16 %v2659
      %v3101 = vunpack.c.h.b16 %v2659
      %v3102 = vunpack.c.l.b16 %v2660
      %v3103 = vunpack.c.h.b16 %v2660
      %v3104 = vunpack.c.l.b16 %v2661
      %v3105 = vunpack.c.h.b16 %v2661
      %v3106 = vunpack.c.l.b16 %v2662
      %v3107 = vunpack.c.h.b16 %v2662
      %v3108 = vunpack.c.l.b16 %v2663
      %v3109 = vunpack.c.h.b16 %v2663
      %v3110 = vunpack.c.l.b16 %v2664
      %v3111 = vunpack.c.h.b16 %v2664
      %v3112 = vunpack.c.l.b16 %v2665
      %v3113 = vunpack.c.h.b16 %v2665
      %v3114 = vunpack.c.l.b16 %v2666
      %v3115 = vunpack.c.h.b16 %v2666
      %v3116 = vunpack.c.l.b16 %v2667
      %v3117 = vunpack.c.h.b16 %v2667
      %v3118 = vunpack.c.l.b16 %v2668
      %v3119 = vunpack.c.h.b16 %v2668
      %v3120 = vunpack.c.l.b16 %v2669
      %v3121 = vunpack.c.h.b16 %v2669
      %v3122 = vunpack.c.l.b16 %v2670
      %v3123 = vunpack.c.h.b16 %v2670
      %v3124 = vunpack.c.l.b16 %v2671
      %v3125 = vunpack.c.h.b16 %v2671
      %v3126 = vunpack.c.l.b16 %v2672
      %v3127 = vunpack.c.h.b16 %v2672
      %v3128 = vunpack.c.l.b16 %v2673
      %v3129 = vunpack.c.h.b16 %v2673
      %v3130 = vunpack.c.l.b16 %v2674
      %v3131 = vunpack.c.h.b16 %v2674
      %v3132 = vunpack.c.l.b16 %v2675
      %v3133 = vunpack.c.h.b16 %v2675
      %v3134 = vunpack.c.l.b16 %v2676
      %v3135 = vunpack.c.h.b16 %v2676
      %v3136 = vunpack.c.l.b16 %v2677
      %v3137 = vunpack.c.h.b16 %v2677
      %v3138 = vunpack.c.l.b16 %v2678
      %v3139 = vunpack.c.h.b16 %v2678
      %v3140 = vunpack.c.l.b16 %v2679
      %v3141 = vunpack.c.h.b16 %v2679
      %v3142 = vunpack.c.l.b16 %v2680
      %v3143 = vunpack.c.h.b16 %v2680
      %v3144 = vunpack.c.l.b16 %v2681
      %v3145 = vunpack.c.h.b16 %v2681
      %v3146 = vunpack.c.l.b16 %v2682
      %v3147 = vunpack.c.h.b16 %v2682
      %v3148 = vpack.c.b16 %v2864, %v2860
      %v3149 = vpack.c.b16 %v2865, %v2861
      %v3150 = vpack.c.b16 %v2866, %v2862
      %v3151 = vpack.c.b16 %v2867, %v2863
      %v3152 = vpack.c.b16 %v2872, %v2868
      %v3153 = vpack.c.b16 %v2873, %v2869
      %v3154 = vpack.c.b16 %v2874, %v2870
      %v3155 = vpack.c.b16 %v2875, %v2871
      %v3156 = vpack.c.b16 %v2880, %v2876
      %v3157 = vpack.c.b16 %v2881, %v2877
      %v3158 = vpack.c.b16 %v2882, %v2878
      %v3159 = vpack.c.b16 %v2883, %v2879
      %v3160 = vpack.c.b16 %v2888, %v2884
      %v3161 = vpack.c.b16 %v2889, %v2885
      %v3162 = vpack.c.b16 %v2890, %v2886
      %v3163 = vpack.c.b16 %v2891, %v2887
      %v3164 = vpack.c.b16 %v2896, %v2892
      %v3165 = vpack.c.b16 %v2897, %v2893
      %v3166 = vpack.c.b16 %v2898, %v2894
      %v3167 = vpack.c.b16 %v2899, %v2895
      %v3168 = vpack.c.b16 %v2904, %v2900
      %v3169 = vpack.c.b16 %v2905, %v2901
      %v3170 = vpack.c.b16 %v2906, %v2902
      %v3171 = vpack.c.b16 %v2907, %v2903
      %v3172 = vpack.c.b16 %v2912, %v2908
      %v3173 = vpack.c.b16 %v2913, %v2909
      %v3174 = vpack.c.b16 %v2914, %v2910
      %v3175 = vpack.c.b16 %v2915, %v2911
      %v3176 = vpack.c.b16 %v2920, %v2916
      %v3177 = vpack.c.b16 %v2921, %v2917
      %v3178 = vpack.c.b16 %v2922, %v2918
      %v3179 = vpack.c.b16 %v2923, %v2919
      %v3180 = vpack.c.b16 %v2928, %v2924
      %v3181 = vpack.c.b16 %v2929, %v2925
      %v3182 = vpack.c.b16 %v2930, %v2926
      %v3183 = vpack.c.b16 %v2931, %v2927
      %v3184 = vpack.c.b16 %v2936, %v2932
      %v3185 = vpack.c.b16 %v2937, %v2933
      %v3186 = vpack.c.b16 %v2938, %v2934
      %v3187 = vpack.c.b16 %v2939, %v2935
      %v3188 = vpack.c.b16 %v2944, %v2940
      %v3189 = vpack.c.b16 %v2945, %v2941
      %v3190 = vpack.c.b16 %v2946, %v2942
      %v3191 = vpack.c.b16 %v2947, %v2943
      %v3192 = vpack.c.b16 %v2952, %v2948
      %v3193 = vpack.c.b16 %v2953, %v2949
      %v3194 = vpack.c.b16 %v2954, %v2950
      %v3195 = vpack.c.b16 %v2955, %v2951
      %v3196 = vpack.c.b16 %v2960, %v2956
      %v3197 = vpack.c.b16 %v2961, %v2957
      %v3198 = vpack.c.b16 %v2962, %v2958
      %v3199 = vpack.c.b16 %v2963, %v2959
      %v3200 = vpack.c.b16 %v2968, %v2964
      %v3201 = vpack.c.b16 %v2969, %v2965
      %v3202 = vpack.c.b16 %v2970, %v2966
      %v3203 = vpack.c.b16 %v2971, %v2967
      %v3204 = vpack.c.b16 %v2976, %v2972
      %v3205 = vpack.c.b16 %v2977, %v2973
      %v3206 = vpack.c.b16 %v2978, %v2974
      %v3207 = vpack.c.b16 %v2979, %v2975
      %v3208 = vpack.c.b16 %v2984, %v2980
      %v3209 = vpack.c.b16 %v2985, %v2981
      %v3210 = vpack.c.b16 %v2986, %v2982
      %v3211 = vpack.c.b16 %v2987, %v2983
      %v3212 = vpack.c.b16 %v2992, %v2988
      %v3213 = vpack.c.b16 %v2993, %v2989
      %v3214 = vpack.c.b16 %v2994, %v2990
      %v3215 = vpack.c.b16 %v2995, %v2991
      %v3216 = vpack.c.b16 %v3000, %v2996
      %v3217 = vpack.c.b16 %v3001, %v2997
      %v3218 = vpack.c.b16 %v3002, %v2998
      %v3219 = vpack.c.b16 %v3003, %v2999
      %v3220 = vpack.c.b16 %v3008, %v3004
      %v3221 = vpack.c.b16 %v3009, %v3005
      %v3222 = vpack.c.b16 %v3010, %v3006
      %v3223 = vpack.c.b16 %v3011, %v3007
      %v3224 = vpack.c.b16 %v3016, %v3012
      %v3225 = vpack.c.b16 %v3017, %v3013
      %v3226 = vpack.c.b16 %v3018, %v3014
      %v3227 = vpack.c.b16 %v3019, %v3015
      %v3228 = vpack.c.b16 %v3024, %v3020
      %v3229 = vpack.c.b16 %v3025, %v3021
      %v3230 = vpack.c.b16 %v3026, %v3022
      %v3231 = vpack.c.b16 %v3027, %v3023
      %v3232 = vpack.c.b16 %v3032, %v3028
      %v3233 = vpack.c.b16 %v3033, %v3029
      %v3234 = vpack.c.b16 %v3034, %v3030
      %v3235 = vpack.c.b16 %v3035, %v3031
      %v3236 = vpack.c.b16 %v3040, %v3036
      %v3237 = vpack.c.b16 %v3041, %v3037
      %v3238 = vpack.c.b16 %v3042, %v3038
      %v3239 = vpack.c.b16 %v3043, %v3039
      %v3240 = vpack.c.b16 %v3048, %v3044
      %v3241 = vpack.c.b16 %v3049, %v3045
      %v3242 = vpack.c.b16 %v3050, %v3046
      %v3243 = vpack.c.b16 %v3051, %v3047
      %v3244 = vpack.c.b16 %v3056, %v3052
      %v3245 = vpack.c.b16 %v3057, %v3053
      %v3246 = vpack.c.b16 %v3058, %v3054
      %v3247 = vpack.c.b16 %v3059, %v3055
      %v3248 = vpack.c.b16 %v3064, %v3060
      %v3249 = vpack.c.b16 %v3065, %v3061
      %v3250 = vpack.c.b16 %v3066, %v3062
      %v3251 = vpack.c.b16 %v3067, %v3063
      %v3252 = vpack.c.b16 %v3072, %v3068
      %v3253 = vpack.c.b16 %v3073, %v3069
      %v3254 = vpack.c.b16 %v3074, %v3070
      %v3255 = vpack.c.b16 %v3075, %v3071
      %v3256 = vpack.c.b16 %v3080, %v3076
      %v3257 = vpack.c.b16 %v3081, %v3077
      %v3258 = vpack.c.b16 %v3082, %v3078
      %v3259 = vpack.c.b16 %v3083, %v3079
      %v3260 = vpack.c.b16 %v3088, %v3084
      %v3261 = vpack.c.b16 %v3089, %v3085
      %v3262 = vpack.c.b16 %v3090, %v3086
      %v3263 = vpack.c.b16 %v3091, %v3087
      %v3264 = vpack.c.b16 %v3096, %v3092
      %v3265 = vpack.c.b16 %v3097, %v3093
      %v3266 = vpack.c.b16 %v3098, %v3094
      %v3267 = vpack.c.b16 %v3099, %v3095
      %v3268 = vpack.c.b16 %v3104, %v3100
      %v3269 = vpack.c.b16 %v3105, %v3101
      %v3270 = vpack.c.b16 %v3106, %v3102
      %v3271 = vpack.c.b16 %v3107, %v3103
      %v3272 = vpack.c.b16 %v3112, %v3108
      %v3273 = vpack.c.b16 %v3113, %v3109
      %v3274 = vpack.c.b16 %v3114, %v3110
      %v3275 = vpack.c.b16 %v3115, %v3111
      %v3276 = vpack.c.b16 %v3120, %v3116
      %v3277 = vpack.c.b16 %v3121, %v3117
      %v3278 = vpack.c.b16 %v3122, %v3118
      %v3279 = vpack.c.b16 %v3123, %v3119
      %v3280 = vpack.c.b16 %v3128, %v3124
      %v3281 = vpack.c.b16 %v3129, %v3125
      %v3282 = vpack.c.b16 %v3130, %v3126
      %v3283 = vpack.c.b16 %v3131, %v3127
      %v3284 = vpack.c.b16 %v3136, %v3132
      %v3285 = vpack.c.b16 %v3137, %v3133
      %v3286 = vpack.c.b16 %v3138, %v3134
      %v3287 = vpack.c.b16 %v3139, %v3135
      %v3288 = vpack.c.b16 %v3144, %v3140
      %v3289 = vpack.c.b16 %v3145, %v3141
      %v3290 = vpack.c.b16 %v3146, %v3142
      %v3291 = vpack.c.b16 %v3147, %v3143
      %v3437 = vsel %vm1289, %v2711, 0
      %3439 = vmatprep.subr.bf16.mxu0 %v3177
      %3440 = vmatpush1.bf16.msra.mxu0 %v3176
      %3441 = vmatprep.subr.bf16.mxu0 %v3173
      %3442 = vmatpush1.bf16.msra.mxu0 %v3172
      %3443 = vmatprep.subr.bf16.mxu0 %v3169
      %3444 = vmatpush1.bf16.msra.mxu0 %v3168
      %3445 = vmatprep.subr.bf16.mxu0 %v3165
      %3446 = vmatpush1.bf16.msra.mxu0 %v3164
      %3447 = vmatprep.subr.bf16.mxu0 %v3161
      %3448 = vmatpush1.bf16.msra.mxu0 %v3160
      %3449 = vmatprep.subr.bf16.mxu0 %v3157
      %3450 = vmatpush1.bf16.msra.mxu0 %v3156
      %3451 = vmatprep.subr.bf16.mxu0 %v3153
      %3452 = vmatpush1.bf16.msra.mxu0 %v3152
      %3453 = vmatprep.subr.bf16.mxu0 %v3149
      %3454 = vmatpush1.bf16.msra.mxu0 %v3148
      %3455 = vmatprep.subr.bf16.mxu0 %v3209
      %3456 = vmatpush2.bf16.msra.mxu0 %v3208
      %3457 = vmatprep.subr.bf16.mxu0 %v3205
      %3458 = vmatpush2.bf16.msra.mxu0 %v3204
      %3459 = vmatprep.subr.bf16.mxu0 %v3201
      %3460 = vmatpush2.bf16.msra.mxu0 %v3200
      %3461 = vmatprep.subr.bf16.mxu0 %v3197
      %3462 = vmatpush2.bf16.msra.mxu0 %v3196
      %3463 = vmatprep.subr.bf16.mxu0 %v3193
      %3464 = vmatpush2.bf16.msra.mxu0 %v3192
      %3465 = vmatprep.subr.bf16.mxu0 %v3189
      %3466 = vmatpush2.bf16.msra.mxu0 %v3188
      %3467 = vmatprep.subr.bf16.mxu0 %v3185
      %3468 = vmatpush2.bf16.msra.mxu0 %v3184
      %3469 = vmatprep.subr.bf16.mxu0 %v3181
      %3470 = vmatpush2.bf16.msra.mxu0 %v3180
      %3471 = vmatprep.mubr.bf16.mxu0 %v2702
      %3472 = vmatmul.mubr.bf16.gmra.mxu0 %v2699
      %v3473 = vpop.f32.mrf.mxu0
      %v3474 = vadd.f32 0.0, %v3473
      %v3475 = vpop.f32.mrf.mxu0
      %v3476 = vadd.f32 0.0, %v3475
      %v3477 = vpop.f32.mrf.mxu0
      %v3478 = vadd.f32 0.0, %v3477
      %v3479 = vpop.f32.mrf.mxu0
      %v3480 = vadd.f32 0.0, %v3479
      %3481 = vdwg.mxu0
      %3482 = vmatprep.subr.bf16.mxu0 %v3241
      %3483 = vmatpush1.bf16.msra.mxu0 %v3240
      %3484 = vmatprep.subr.bf16.mxu0 %v3237
      %3485 = vmatpush1.bf16.msra.mxu0 %v3236
      %3486 = vmatprep.subr.bf16.mxu0 %v3233
      %3487 = vmatpush1.bf16.msra.mxu0 %v3232
      %3488 = vmatprep.subr.bf16.mxu0 %v3229
      %3489 = vmatpush1.bf16.msra.mxu0 %v3228
      %3490 = vmatprep.subr.bf16.mxu0 %v3225
      %3491 = vmatpush1.bf16.msra.mxu0 %v3224
      %3492 = vmatprep.subr.bf16.mxu0 %v3221
      %3493 = vmatpush1.bf16.msra.mxu0 %v3220
      %3494 = vmatprep.subr.bf16.mxu0 %v3217
      %3495 = vmatpush1.bf16.msra.mxu0 %v3216
      %3496 = vmatprep.subr.bf16.mxu0 %v3213
      %3497 = vmatpush1.bf16.msra.mxu0 %v3212
      %3498 = vmatprep.subr.bf16.mxu0 %v3273
      %3499 = vmatpush2.bf16.msra.mxu0 %v3272
      %3500 = vmatprep.subr.bf16.mxu0 %v3269
      %3501 = vmatpush2.bf16.msra.mxu0 %v3268
      %3502 = vmatprep.subr.bf16.mxu0 %v3265
      %3503 = vmatpush2.bf16.msra.mxu0 %v3264
      %3504 = vmatprep.subr.bf16.mxu0 %v3261
      %3505 = vmatpush2.bf16.msra.mxu0 %v3260
      %3506 = vmatprep.subr.bf16.mxu0 %v3257
      %3507 = vmatpush2.bf16.msra.mxu0 %v3256
      %3508 = vmatprep.subr.bf16.mxu0 %v3253
      %3509 = vmatpush2.bf16.msra.mxu0 %v3252
      %3510 = vmatprep.subr.bf16.mxu0 %v3249
      %3511 = vmatpush2.bf16.msra.mxu0 %v3248
      %3512 = vmatprep.subr.bf16.mxu0 %v3245
      %3513 = vmatpush2.bf16.msra.mxu0 %v3244
      %3514 = vmatprep.mubr.bf16.mxu0 %v2708
      %3515 = vmatmul.mubr.bf16.gmra.mxu0 %v2705
      %v3516 = vpop.f32.mrf.mxu0
      %v3517 = vadd.f32 %v3474, %v3516
      %v3518 = vpop.f32.mrf.mxu0
      %v3519 = vadd.f32 %v3476, %v3518
      %v3520 = vpop.f32.mrf.mxu0
      %v3521 = vadd.f32 %v3478, %v3520
      %v3522 = vpop.f32.mrf.mxu0
      %v3523 = vadd.f32 %v3480, %v3522
      %3524 = vdwg.mxu0
      %3525 = vmatprep.subr.bf16.mxu0 0
      %3526 = vmatpush1.bf16.msra.mxu0 0
      %3527 = vmatprep.subr.bf16.mxu0 0
      %3528 = vmatpush1.bf16.msra.mxu0 0
      %3529 = vmatprep.subr.bf16.mxu0 0
      %3530 = vmatpush1.bf16.msra.mxu0 0
      %3531 = vmatprep.subr.bf16.mxu0 0
      %3532 = vmatpush1.bf16.msra.mxu0 0
      %3533 = vmatprep.subr.bf16.mxu0 %v3289
      %3534 = vmatpush1.bf16.msra.mxu0 %v3288
      %3535 = vmatprep.subr.bf16.mxu0 %v3285
      %3536 = vmatpush1.bf16.msra.mxu0 %v3284
      %3537 = vmatprep.subr.bf16.mxu0 %v3281
      %3538 = vmatpush1.bf16.msra.mxu0 %v3280
      %3539 = vmatprep.subr.bf16.mxu0 %v3277
      %3540 = vmatpush1.bf16.msra.mxu0 %v3276
      %3541 = vmatprep.subr.bf16.mxu0 0
      %3542 = vmatpush2.bf16.msra.mxu0 0
      %3543 = vmatprep.subr.bf16.mxu0 0
      %3544 = vmatpush2.bf16.msra.mxu0 0
      %3545 = vmatprep.subr.bf16.mxu0 0
      %3546 = vmatpush2.bf16.msra.mxu0 0
      %3547 = vmatprep.subr.bf16.mxu0 0
      %3548 = vmatpush2.bf16.msra.mxu0 0
      %3549 = vmatprep.subr.bf16.mxu0 0
      %3550 = vmatpush2.bf16.msra.mxu0 0
      %3551 = vmatprep.subr.bf16.mxu0 0
      %3552 = vmatpush2.bf16.msra.mxu0 0
      %3553 = vmatprep.subr.bf16.mxu0 0
      %3554 = vmatpush2.bf16.msra.mxu0 0
      %3555 = vmatprep.subr.bf16.mxu0 0
      %3556 = vmatpush2.bf16.msra.mxu0 0
      %3557 = vmatprep.mubr.bf16.mxu0 0
      %3558 = vmatmul.mubr.bf16.gmra.mxu0 %v3437
      %v3559 = vpop.f32.mrf.mxu0
      %v3560 = vadd.f32 %v3517, %v3559
      %v3561 = vpop.f32.mrf.mxu0
      %v3562 = vadd.f32 %v3519, %v3561
      %v3563 = vpop.f32.mrf.mxu0
      %v3564 = vadd.f32 %v3521, %v3563
      %v3565 = vpop.f32.mrf.mxu0
      %v3566 = vadd.f32 %v3523, %v3565
      %3567 = vdwg.mxu0
      %3568 = vmatprep.subr.bf16.mxu0 %v3179
      %3569 = vmatpush1.bf16.msra.mxu0 %v3178
      %3570 = vmatprep.subr.bf16.mxu0 %v3175
      %3571 = vmatpush1.bf16.msra.mxu0 %v3174
      %3572 = vmatprep.subr.bf16.mxu0 %v3171
      %3573 = vmatpush1.bf16.msra.mxu0 %v3170
      %3574 = vmatprep.subr.bf16.mxu0 %v3167
      %3575 = vmatpush1.bf16.msra.mxu0 %v3166
      %3576 = vmatprep.subr.bf16.mxu0 %v3163
      %3577 = vmatpush1.bf16.msra.mxu0 %v3162
      %3578 = vmatprep.subr.bf16.mxu0 %v3159
      %3579 = vmatpush1.bf16.msra.mxu0 %v3158
      %3580 = vmatprep.subr.bf16.mxu0 %v3155
      %3581 = vmatpush1.bf16.msra.mxu0 %v3154
      %3582 = vmatprep.subr.bf16.mxu0 %v3151
      %3583 = vmatpush1.bf16.msra.mxu0 %v3150
      %3584 = vmatprep.subr.bf16.mxu0 %v3211
      %3585 = vmatpush2.bf16.msra.mxu0 %v3210
      %3586 = vmatprep.subr.bf16.mxu0 %v3207
      %3587 = vmatpush2.bf16.msra.mxu0 %v3206
      %3588 = vmatprep.subr.bf16.mxu0 %v3203
      %3589 = vmatpush2.bf16.msra.mxu0 %v3202
      %3590 = vmatprep.subr.bf16.mxu0 %v3199
      %3591 = vmatpush2.bf16.msra.mxu0 %v3198
      %3592 = vmatprep.subr.bf16.mxu0 %v3195
      %3593 = vmatpush2.bf16.msra.mxu0 %v3194
      %3594 = vmatprep.subr.bf16.mxu0 %v3191
      %3595 = vmatpush2.bf16.msra.mxu0 %v3190
      %3596 = vmatprep.subr.bf16.mxu0 %v3187
      %3597 = vmatpush2.bf16.msra.mxu0 %v3186
      %3598 = vmatprep.subr.bf16.mxu0 %v3183
      %3599 = vmatpush2.bf16.msra.mxu0 %v3182
      %3600 = vmatprep.mubr.bf16.mxu0 %v2702
      %3601 = vmatmul.mubr.bf16.gmra.mxu0 %v2699
      %v3602 = vpop.f32.mrf.mxu0
      %v3603 = vadd.f32 0.0, %v3602
      %v3604 = vpop.f32.mrf.mxu0
      %v3605 = vadd.f32 0.0, %v3604
      %v3606 = vpop.f32.mrf.mxu0
      %v3607 = vadd.f32 0.0, %v3606
      %v3608 = vpop.f32.mrf.mxu0
      %v3609 = vadd.f32 0.0, %v3608
      %3610 = vdwg.mxu0
      %3611 = vmatprep.subr.bf16.mxu0 %v3243
      %3612 = vmatpush1.bf16.msra.mxu0 %v3242
      %3613 = vmatprep.subr.bf16.mxu0 %v3239
      %3614 = vmatpush1.bf16.msra.mxu0 %v3238
      %3615 = vmatprep.subr.bf16.mxu0 %v3235
      %3616 = vmatpush1.bf16.msra.mxu0 %v3234
      %3617 = vmatprep.subr.bf16.mxu0 %v3231
      %3618 = vmatpush1.bf16.msra.mxu0 %v3230
      %3619 = vmatprep.subr.bf16.mxu0 %v3227
      %3620 = vmatpush1.bf16.msra.mxu0 %v3226
      %3621 = vmatprep.subr.bf16.mxu0 %v3223
      %3622 = vmatpush1.bf16.msra.mxu0 %v3222
      %3623 = vmatprep.subr.bf16.mxu0 %v3219
      %3624 = vmatpush1.bf16.msra.mxu0 %v3218
      %3625 = vmatprep.subr.bf16.mxu0 %v3215
      %3626 = vmatpush1.bf16.msra.mxu0 %v3214
      %3627 = vmatprep.subr.bf16.mxu0 %v3275
      %3628 = vmatpush2.bf16.msra.mxu0 %v3274
      %3629 = vmatprep.subr.bf16.mxu0 %v3271
      %3630 = vmatpush2.bf16.msra.mxu0 %v3270
      %3631 = vmatprep.subr.bf16.mxu0 %v3267
      %3632 = vmatpush2.bf16.msra.mxu0 %v3266
      %3633 = vmatprep.subr.bf16.mxu0 %v3263
      %3634 = vmatpush2.bf16.msra.mxu0 %v3262
      %3635 = vmatprep.subr.bf16.mxu0 %v3259
      %3636 = vmatpush2.bf16.msra.mxu0 %v3258
      %3637 = vmatprep.subr.bf16.mxu0 %v3255
      %3638 = vmatpush2.bf16.msra.mxu0 %v3254
      %3639 = vmatprep.subr.bf16.mxu0 %v3251
      %3640 = vmatpush2.bf16.msra.mxu0 %v3250
      %3641 = vmatprep.subr.bf16.mxu0 %v3247
      %3642 = vmatpush2.bf16.msra.mxu0 %v3246
      %3643 = vmatprep.mubr.bf16.mxu0 %v2708
      %3644 = vmatmul.mubr.bf16.gmra.mxu0 %v2705
      %v3645 = vpop.f32.mrf.mxu0
      %v3646 = vadd.f32 %v3603, %v3645
      %v3647 = vpop.f32.mrf.mxu0
      %v3648 = vadd.f32 %v3605, %v3647
      %v3649 = vpop.f32.mrf.mxu0
      %v3650 = vadd.f32 %v3607, %v3649
      %v3651 = vpop.f32.mrf.mxu0
      %v3652 = vadd.f32 %v3609, %v3651
      %3653 = vdwg.mxu0
      %3654 = vmatprep.subr.bf16.mxu0 0
      %3655 = vmatpush1.bf16.msra.mxu0 0
      %3656 = vmatprep.subr.bf16.mxu0 0
      %3657 = vmatpush1.bf16.msra.mxu0 0
      %3658 = vmatprep.subr.bf16.mxu0 0
      %3659 = vmatpush1.bf16.msra.mxu0 0
      %3660 = vmatprep.subr.bf16.mxu0 0
      %3661 = vmatpush1.bf16.msra.mxu0 0
      %3662 = vmatprep.subr.bf16.mxu0 %v3291
      %3663 = vmatpush1.bf16.msra.mxu0 %v3290
      %3664 = vmatprep.subr.bf16.mxu0 %v3287
      %3665 = vmatpush1.bf16.msra.mxu0 %v3286
      %3666 = vmatprep.subr.bf16.mxu0 %v3283
      %3667 = vmatpush1.bf16.msra.mxu0 %v3282
      %3668 = vmatprep.subr.bf16.mxu0 %v3279
      %3669 = vmatpush1.bf16.msra.mxu0 %v3278
      %3670 = vmatprep.subr.bf16.mxu0 0
      %3671 = vmatpush2.bf16.msra.mxu0 0
      %3672 = vmatprep.subr.bf16.mxu0 0
      %3673 = vmatpush2.bf16.msra.mxu0 0
      %3674 = vmatprep.subr.bf16.mxu0 0
      %3675 = vmatpush2.bf16.msra.mxu0 0
      %3676 = vmatprep.subr.bf16.mxu0 0
      %3677 = vmatpush2.bf16.msra.mxu0 0
      %3678 = vmatprep.subr.bf16.mxu0 0
      %3679 = vmatpush2.bf16.msra.mxu0 0
      %3680 = vmatprep.subr.bf16.mxu0 0
      %3681 = vmatpush2.bf16.msra.mxu0 0
      %3682 = vmatprep.subr.bf16.mxu0 0
      %3683 = vmatpush2.bf16.msra.mxu0 0
      %3684 = vmatprep.subr.bf16.mxu0 0
      %3685 = vmatpush2.bf16.msra.mxu0 0
      %3686 = vmatprep.mubr.bf16.mxu0 0
      %3687 = vmatmul.mubr.bf16.gmra.mxu0 %v3437
      %v3688 = vpop.f32.mrf.mxu0
      %v3689 = vadd.f32 %v3646, %v3688
      %v3690 = vpop.f32.mrf.mxu0
      %v3691 = vadd.f32 %v3648, %v3690
      %v3692 = vpop.f32.mrf.mxu0
      %v3693 = vadd.f32 %v3650, %v3692
      %v3694 = vpop.f32.mrf.mxu0
      %v3695 = vadd.f32 %v3652, %v3694
      %3696 = vdwg.mxu0
      %v3697 = vadd.f32 %v2398, %v3560
      %v3698 = vadd.f32 %v2400, %v3562
      %v3699 = vadd.f32 %v2527, %v3689
      %v3700 = vadd.f32 %v2529, %v3691
      %v3701 = vadd.f32 %v2402, %v3564
      %v3702 = vadd.f32 %v2404, %v3566
      %v3703 = vadd.f32 %v2531, %v3693
      %v3704 = vadd.f32 %v2533, %v3695
      %v3705 = vld [vmem:[%s2] sm:$0xf]
      %v3707 = vlaneseq
      %v3708 = vshrl.u32 %v3707, 7
      %v3709 = vsub.s32 0, %v3708
      %v3710 = vrot.slane %v3705, %v3709
      %v3711 = vlaneseq
      %v3712 = vshrl.u32 %v3711, 7
      %v3713 = vsub.s32 1, %v3712
      %v3714 = vrot.slane %v3705, %v3713
      %v3715 = vlaneseq
      %v3716 = vshrl.u32 %v3715, 7
      %v3717 = vsub.s32 2, %v3716
      %v3718 = vrot.slane %v3705, %v3717
      %v3719 = vlaneseq
      %v3720 = vshrl.u32 %v3719, 7
      %v3721 = vsub.s32 3, %v3720
      %v3722 = vrot.slane %v3705, %v3721
      %v3727 = vadd.f32 %v3697, %v3710
      %v3728 = vadd.f32 %v3698, %v3714
      %v3729 = vadd.f32 %v3699, %v3718
      %v3730 = vadd.f32 %v3700, %v3722
      %v3731 = vadd.f32 %v3701, %v3710
      %v3732 = vadd.f32 %v3702, %v3714
      %v3733 = vadd.f32 %v3703, %v3718
      %v3734 = vadd.f32 %v3704, %v3722
      %v3735 = vmax.f32 %v3727, 0.0
      %v3736 = vmax.f32 %v3728, 0.0
      %v3737 = vmax.f32 %v3729, 0.0
      %v3738 = vmax.f32 %v3730, 0.0
      %v3739 = vmax.f32 %v3731, 0.0
      %v3740 = vmax.f32 %v3732, 0.0
      %v3741 = vmax.f32 %v3733, 0.0
      %v3742 = vmax.f32 %v3734, 0.0
      %v3743 = vpack.c.bf16 %v3739, %v3735
      %v3744 = vpack.c.bf16 %v3740, %v3736
      %v3745 = vpack.c.bf16 %v3741, %v3737
      %v3746 = vpack.c.bf16 %v3742, %v3738
      %v3751 = vunpack.c.l.b16 %v3743
      %v3752 = vunpack.c.l.b16 %v3744
      %v3753 = vunpack.c.l.b16 %v3745
      %v3754 = vunpack.c.l.b16 %v3746
      %v3755 = vunpack.c.h.b16 %v3743
      %v3756 = vunpack.c.h.b16 %v3744
      %v3757 = vunpack.c.h.b16 %v3745
      %v3758 = vunpack.c.h.b16 %v3746
      %v3759 = vpack.c.b16 %v3752, %v3751
      %v3760 = vpack.c.b16 %v3754, %v3753
      %v3761 = vpack.c.b16 %v3756, %v3755
      %v3762 = vpack.c.b16 %v3758, %v3757
      %3767 = vst [vmem:[%s170] sm:$0xff] %v3759
      %3768 = vst [vmem:[%s170 + $0x8] sm:$0xff] %v3760
      %3769 = vst [vmem:[%s170 + $0x10] sm:$0xff] %v3761
      %3770 = vst [vmem:[%s170 + $0x18] sm:$0xff] %v3762
      %p3771 = scmp.lt.s32.totalorder %s14, 1
      %s3772 = scalar_select %p3771, %s14, 1
      %s3773 = smul.addr %s3772, 8
      %s3774 = smul.addr %s3773, 4
      %s3775 = scalar_lea.vmem %s3, %s3774
      // Predicated region
      $region33: #{convnet4_forward.5} parent=31 // pred_check
        %p3776 = pneg %p100
      $region34: #{convnet4_forward.5} parent=31 // pred_check_branch
        %3778 = sbr.rel (%p3776) target = $region36
      $region35: #{convnet4_forward.5} parent=31 // pred_region
        _
      $region36: #{convnet4_forward.5} parent=31 // pred_fallthru
        _
    $region32: #{convnet4_forward.5} parent=5 // pred_fallthru
      _
    %p3779 = scmp.le.s32.totalorder 2, %s9
    // Predicated region
    $region37: #{convnet4_forward.5} parent=5 // pred_check
      %p3780 = pneg %p3779
    $region38: #{convnet4_forward.5} parent=5 // pred_check_branch
      %3782 = sbr.rel (%p3780) target = $region40
    $region39: #{convnet4_forward.5} parent=5 // pred_region
      %s3783 = ssub.s32 %s9, 2
      // Predicated region
      $region41: #{convnet4_forward.5} parent=39 // pred_check
        %p3784 = pneg %p106
      $region42: #{convnet4_forward.5} parent=39 // pred_check_branch
        %3786 = sbr.rel (%p3784) target = $region44
      $region43: #{convnet4_forward.5} parent=39 // pred_region
        %p3787 = scmp.lt.s32.totalorder %s15, 1
        %s3788 = scalar_select %p3787, %s15, 1
        %s3789 = smul.addr %s3788, 8
        %s3790 = smul.addr %s3789, 4
        %s3791 = scalar_lea.vmem %s3, %s3790
      $region44: #{convnet4_forward.5} parent=39 // pred_fallthru
        _
    $region40: #{convnet4_forward.5} parent=5 // pred_fallthru
      _
  $region6: #{convnet4_forward.5} parent=0 // loop_footer
    %s13 = sadd.s32 1, %s9
  $region7: #{convnet4_forward.5} parent=0 // loop_footer_branch
    %8 = sbr.rel target = $region3
  $region8: #{convnet4_forward.5} parent=0 // loop_exit
    _

// kernel: convnet4_forward.6
$region0: #{convnet4_forward.6}
  #allocation0 [shape = 'u32[]', space=smem, size = 0x4, offset = 0x4, fixed_abs, tag = 'smem constant byte address 0x4 - core index']
  #allocation1 [shape = 'u32[144,128]{1,0:T(1,128)}', space=vmem, size = 0x12000, scoped, tag = 'internal scratch']
  %s0 = inlined_call_operand.vmem [shape: bf16[2,18,576], index: 0, kind: input, shape index: {}]
  %s1 = inlined_call_operand.vmem [shape: bf16[3,576,512], index: 1, kind: input, shape index: {}]
  %s2 = inlined_call_operand.vmem [shape: f32[1,512], index: 2, kind: input, shape index: {}]
  %s3 = inlined_call_operand.vmem [shape: bf16[2,8,512], index: 3, kind: output, shape index: {}]
  %s4 = sld [smem:[#allocation0]]
  $region45: #{convnet4_forward.6} parent=0
    _
  %s6 = ssub.s32 1, %s4
  %s7 = scalar_select 0, %s6, %s4
  loop: start=0, step=1, limit=4
  $region2: #{convnet4_forward.6} parent=0 // loop_pre_header
    _
  $region3: #{convnet4_forward.6} parent=0 // loop_header
    %s9 = sphi 0, %s13
    %p10 = scmp.ge.s32.totalorder %s9, 4
    %s19 = sphi 0, %s21
    %s22 = sphi 0, %s19
    %s23 = sphi 0, %s22
    %s39 = sphi 0, %s23
    %s43 = sphi 0, %s43
    %s45 = sphi 0, %s43
    %s46 = sphi 0, %s45
    %s60 = sphi 0, %s46
    %s64 = sphi 0, %s64
    %s66 = sphi 0, %s64
    %s67 = sphi 0, %s66
    %s81 = sphi 0, %s67
    %s87 = sphi 0, %s89
    %s90 = sphi 0, %s87
    %s91 = sphi 0, %s90
    %s107 = sphi 0, %s91
  $region4: #{convnet4_forward.6} parent=0 // loop_header_branch
    %12 = sbr.rel (%p10) target = $region8
  $region5: #{convnet4_forward.6} parent=0 // loop_body
    %s14 = ssub.s32 %s9, 1
    %s15 = ssub.s32 %s9, 2
    %s16 = sadd.s32 %s9, 1
    %s17 = ssub.s32 %s9, %s16
    %p18 = scmp.eq.s32.totalorder %s17, 0
    %s20 = sadd.s32 %s19, 1
    %s21 = scalar_select %p18, %s19, %s20
    %p24 = pneg %p18
    %p25 = scmp.eq.s32.totalorder %s9, 1
    %p26 = por %p24, %p25
    %p27 = scmp.ne.s32.totalorder %s19, %s22
    %p28 = scmp.eq.s32.totalorder %s9, 0
    %p29 = por %p27, %p28
    %p30 = scmp.ne.s32.totalorder %s19, %s22
    %p31 = scmp.eq.s32.totalorder %s14, 1
    %p32 = por %p30, %p31
    %p33 = scmp.ne.s32.totalorder %s22, %s23
    %p34 = scmp.eq.s32.totalorder %s14, 0
    %p35 = por %p33, %p34
    %p36 = scmp.ne.s32.totalorder %s22, %s23
    %p37 = scmp.eq.s32.totalorder %s15, 1
    %p38 = por %p36, %p37
    %p40 = scmp.ne.s32.totalorder %s23, %s39
    %p41 = scmp.eq.s32.totalorder %s15, 0
    %p42 = por %p40, %p41
    %s44 = sadd.s32 %s43, 1
    %p47 = scmp.eq.s32.totalorder %s9, 1
    %p48 = scmp.ne.s32.totalorder %s43, %s45
    %p49 = scmp.eq.s32.totalorder %s9, 0
    %p50 = por %p48, %p49
    %p51 = scmp.ne.s32.totalorder %s43, %s45
    %p52 = scmp.eq.s32.totalorder %s14, 1
    %p53 = por %p51, %p52
    %p54 = scmp.ne.s32.totalorder %s45, %s46
    %p55 = scmp.eq.s32.totalorder %s14, 0
    %p56 = por %p54, %p55
    %p57 = scmp.ne.s32.totalorder %s45, %s46
    %p58 = scmp.eq.s32.totalorder %s15, 1
    %p59 = por %p57, %p58
    %p61 = scmp.ne.s32.totalorder %s46, %s60
    %p62 = scmp.eq.s32.totalorder %s15, 0
    %p63 = por %p61, %p62
    %s65 = sadd.s32 %s64, 1
    %p68 = scmp.eq.s32.totalorder %s9, 1
    %p69 = scmp.ne.s32.totalorder %s64, %s66
    %p70 = scmp.eq.s32.totalorder %s9, 0
    %p71 = por %p69, %p70
    %p72 = scmp.ne.s32.totalorder %s64, %s66
    %p73 = scmp.eq.s32.totalorder %s14, 1
    %p74 = por %p72, %p73
    %p75 = scmp.ne.s32.totalorder %s66, %s67
    %p76 = scmp.eq.s32.totalorder %s14, 0
    %p77 = por %p75, %p76
    %p78 = scmp.ne.s32.totalorder %s66, %s67
    %p79 = scmp.eq.s32.totalorder %s15, 1
    %p80 = por %p78, %p79
    %p82 = scmp.ne.s32.totalorder %s67, %s81
    %p83 = scmp.eq.s32.totalorder %s15, 0
    %p84 = por %p82, %p83
    %s85 = ssub.s32 %s9, %s16
    %p86 = scmp.eq.s32.totalorder %s85, 0
    %s88 = sadd.s32 %s87, 1
    %s89 = scalar_select %p86, %s87, %s88
    %p92 = pneg %p86
    %p93 = scmp.eq.s32.totalorder %s9, 1
    %p94 = por %p92, %p93
    %p95 = scmp.ne.s32.totalorder %s87, %s90
    %p96 = scmp.eq.s32.totalorder %s9, 0
    %p97 = por %p95, %p96
    %p98 = scmp.ne.s32.totalorder %s87, %s90
    %p99 = scmp.eq.s32.totalorder %s14, 1
    %p100 = por %p98, %p99
    %p101 = scmp.ne.s32.totalorder %s90, %s91
    %p102 = scmp.eq.s32.totalorder %s14, 0
    %p103 = por %p101, %p102
    %p104 = scmp.ne.s32.totalorder %s90, %s91
    %p105 = scmp.eq.s32.totalorder %s15, 1
    %p106 = por %p104, %p105
    %p108 = scmp.ne.s32.totalorder %s91, %s107
    %p109 = scmp.eq.s32.totalorder %s15, 0
    %p110 = por %p108, %p109
    %p111 = scmp.le.s32.totalorder 1, %s9
    %p112 = scmp.lt.s32.totalorder %s9, 3
    %p113 = pnand %p111, %p112
    %p114 = pneg %p113
    // Predicated region
    $region9: #{convnet4_forward.6} parent=5 // pred_check
      _
    $region10: #{convnet4_forward.6} parent=5 // pred_check_branch
      %116 = sbr.rel (%p113) target = $region12
    $region11: #{convnet4_forward.6} parent=5 // pred_region
      %s117 = ssub.s32 %s9, 1
      // Predicated region
      $region13: #{convnet4_forward.6} parent=11 // pred_check
        %p118 = pneg %p56
      $region14: #{convnet4_forward.6} parent=11 // pred_check_branch
        %120 = sbr.rel (%p118) target = $region16
      $region15: #{convnet4_forward.6} parent=11 // pred_region
        _
      $region16: #{convnet4_forward.6} parent=11 // pred_fallthru
        _
      // Predicated region
      $region17: #{convnet4_forward.6} parent=11 // pred_check
        %p121 = pneg %p77
      $region18: #{convnet4_forward.6} parent=11 // pred_check_branch
        %123 = sbr.rel (%p121) target = $region20
      $region19: #{convnet4_forward.6} parent=11 // pred_region
        _
      $region20: #{convnet4_forward.6} parent=11 // pred_fallthru
        _
    $region12: #{convnet4_forward.6} parent=5 // pred_fallthru
      _
    %p124 = scmp.lt.s32.totalorder %s9, 2
    // Predicated region
    $region21: #{convnet4_forward.6} parent=5 // pred_check
      %p125 = pneg %p124
    $region22: #{convnet4_forward.6} parent=5 // pred_check_branch
      %127 = sbr.rel (%p125) target = $region24
    $region23: #{convnet4_forward.6} parent=5 // pred_region
      // Predicated region
      $region25: #{convnet4_forward.6} parent=23 // pred_check
        %p128 = pneg %p29
      $region26: #{convnet4_forward.6} parent=23 // pred_check_branch
        %130 = sbr.rel (%p128) target = $region28
      $region27: #{convnet4_forward.6} parent=23 // pred_region
        %p131 = scmp.lt.s32.totalorder %s9, 1
        %s132 = scalar_select %p131, %s9, 1
        %s133 = smul.addr %s132, 15
        %s134 = smul.addr %s133, 4
        %s135 = scalar_lea.vmem %s0, %s134
      $region28: #{convnet4_forward.6} parent=23 // pred_fallthru
        _
    $region24: #{convnet4_forward.6} parent=5 // pred_fallthru
      _
    %p136 = scmp.le.s32.totalorder 1, %s9
    %p137 = scmp.lt.s32.totalorder %s9, 3
    %p138 = pnand %p136, %p137
    %p139 = pneg %p138
    // Predicated region
    $region29: #{convnet4_forward.6} parent=5 // pred_check
      _
    $region30: #{convnet4_forward.6} parent=5 // pred_check_branch
      %141 = sbr.rel (%p138) target = $region32
    $region31: #{convnet4_forward.6} parent=5 // pred_region
      %s142 = ssub.s32 %s9, 1
      %p143 = scmp.lt.s32.totalorder %s14, 1
      %s144 = scalar_select %p143, %s14, 1
      %s145 = smul.addr %s144, 15
      %s146 = smul.addr %s145, 4
      %s147 = scalar_lea.vmem %s0, %s146
      %p148 = pneg %p35
      %p149 = pneg %p32
      %p150 = pneg %p56
      %p151 = pneg %p53
      %p152 = pneg %p77
      %p153 = pneg %p74
      %p154 = pneg %p103
      %p155 = pneg %p100
      %p156 = scmp.lt.s32.totalorder %s14, 1
      %s157 = scalar_select %p156, %s14, 1
      %s158 = smul.addr %s157, 4
      %s159 = smul.addr %s158, 4
      %s160 = scalar_lea.vmem %s3, %s159
      %p161 = scmp.lt.s32.totalorder %s14, 1
      %s162 = scalar_select %p161, %s14, 1
      %s163 = smul.addr %s162, 15
      %s164 = smul.addr %s163, 4
      %s165 = scalar_lea.vmem %s0, %s164
      %p166 = scmp.lt.s32.totalorder %s14, 1
      %s167 = scalar_select %p166, %s14, 1
      %s168 = smul.addr %s167, 4
      %s169 = smul.addr %s168, 4
      %s170 = scalar_lea.vmem %s3, %s169
      %v172 = vld [vmem:[%s165] sm:$0xff]
      %v173 = vld [vmem:[%s165 + $0x8] sm:$0xff]
      %v174 = vld [vmem:[%s165 + $0x10] sm:$0xf]
      %v175 = vld [vmem:[%s1] sm:$0xff]
      %v176 = vld [vmem:[%s1 + $0x8] sm:$0xff]
      %v177 = vld [vmem:[%s1 + $0x10] sm:$0xff]
      %v178 = vld [vmem:[%s1 + $0x18] sm:$0xff]
      %v179 = vld [vmem:[%s1 + $0x20] sm:$0xff]
      %v180 = vld [vmem:[%s1 + $0x28] sm:$0xff]
      %v181 = vld [vmem:[%s1 + $0x30] sm:$0xff]
      %v182 = vld [vmem:[%s1 + $0x38] sm:$0xff]
      %v183 = vld [vmem:[%s1 + $0x40] sm:$0xff]
      %v184 = vld [vmem:[%s1 + $0x48] sm:$0xff]
      %v185 = vld [vmem:[%s1 + $0x50] sm:$0xff]
      %v186 = vld [vmem:[%s1 + $0x58] sm:$0xff]
      %v187 = vld [vmem:[%s1 + $0x60] sm:$0xff]
      %v188 = vld [vmem:[%s1 + $0x68] sm:$0xff]
      %v189 = vld [vmem:[%s1 + $0x70] sm:$0xff]
      %v190 = vld [vmem:[%s1 + $0x78] sm:$0xff]
      %v191 = vld [vmem:[%s1 + $0x80] sm:$0xff]
      %v192 = vld [vmem:[%s1 + $0x88] sm:$0xff]
      %v193 = vld [vmem:[%s1 + $0x90] sm:$0xff]
      %v194 = vld [vmem:[%s1 + $0x98] sm:$0xff]
      %v195 = vld [vmem:[%s1 + $0xa0] sm:$0xff]
      %v196 = vld [vmem:[%s1 + $0xa8] sm:$0xff]
      %v197 = vld [vmem:[%s1 + $0xb0] sm:$0xff]
      %v198 = vld [vmem:[%s1 + $0xb8] sm:$0xff]
      %v199 = vld [vmem:[%s1 + $0xc0] sm:$0xff]
      %v200 = vld [vmem:[%s1 + $0xc8] sm:$0xff]
      %v201 = vld [vmem:[%s1 + $0xd0] sm:$0xff]
      %v202 = vld [vmem:[%s1 + $0xd8] sm:$0xff]
      %v203 = vld [vmem:[%s1 + $0xe0] sm:$0xff]
      %v204 = vld [vmem:[%s1 + $0xe8] sm:$0xff]
      %v205 = vld [vmem:[%s1 + $0xf0] sm:$0xff]
      %v206 = vld [vmem:[%s1 + $0xf8] sm:$0xff]
      %v207 = vld [vmem:[%s1 + $0x100] sm:$0xff]
      %v208 = vld [vmem:[%s1 + $0x108] sm:$0xff]
      %v209 = vld [vmem:[%s1 + $0x110] sm:$0xff]
      %v210 = vld [vmem:[%s1 + $0x118] sm:$0xff]
      %v211 = vld [vmem:[%s1 + $0x120] sm:$0xff]
      %v212 = vld [vmem:[%s1 + $0x128] sm:$0xff]
      %v213 = vld [vmem:[%s1 + $0x130] sm:$0xff]
      %v214 = vld [vmem:[%s1 + $0x138] sm:$0xff]
      %v215 = vld [vmem:[%s1 + $0x140] sm:$0xff]
      %v216 = vld [vmem:[%s1 + $0x148] sm:$0xff]
      %v217 = vld [vmem:[%s1 + $0x150] sm:$0xff]
      %v218 = vld [vmem:[%s1 + $0x158] sm:$0xff]
      %v219 = vld [vmem:[%s1 + $0x160] sm:$0xff]
      %v220 = vld [vmem:[%s1 + $0x168] sm:$0xff]
      %v221 = vld [vmem:[%s1 + $0x170] sm:$0xff]
      %v222 = vld [vmem:[%s1 + $0x178] sm:$0xff]
      %v223 = vld [vmem:[%s1 + $0x180] sm:$0xff]
      %v224 = vld [vmem:[%s1 + $0x188] sm:$0xff]
      %v225 = vld [vmem:[%s1 + $0x190] sm:$0xff]
      %v226 = vld [vmem:[%s1 + $0x198] sm:$0xff]
      %v227 = vld [vmem:[%s1 + $0x1a0] sm:$0xff]
      %v228 = vld [vmem:[%s1 + $0x1a8] sm:$0xff]
      %v229 = vld [vmem:[%s1 + $0x1b0] sm:$0xff]
      %v230 = vld [vmem:[%s1 + $0x1b8] sm:$0xff]
      %v231 = vld [vmem:[%s1 + $0x1c0] sm:$0xff]
      %v232 = vld [vmem:[%s1 + $0x1c8] sm:$0xff]
      %v233 = vld [vmem:[%s1 + $0x1d0] sm:$0xff]
      %v234 = vld [vmem:[%s1 + $0x1d8] sm:$0xff]
      %v235 = vld [vmem:[%s1 + $0x1e0] sm:$0xff]
      %v236 = vld [vmem:[%s1 + $0x1e8] sm:$0xff]
      %v237 = vld [vmem:[%s1 + $0x1f0] sm:$0xff]
      %v238 = vld [vmem:[%s1 + $0x1f8] sm:$0xff]
      %v239 = vld [vmem:[%s1 + $0x200] sm:$0xff]
      %v240 = vld [vmem:[%s1 + $0x208] sm:$0xff]
      %v241 = vld [vmem:[%s1 + $0x210] sm:$0xff]
      %v242 = vld [vmem:[%s1 + $0x218] sm:$0xff]
      %v243 = vld [vmem:[%s1 + $0x220] sm:$0xff]
      %v244 = vld [vmem:[%s1 + $0x228] sm:$0xff]
      %v245 = vld [vmem:[%s1 + $0x230] sm:$0xff]
      %v246 = vld [vmem:[%s1 + $0x238] sm:$0xff]
      %v247 = vld [vmem:[%s1 + $0x240] sm:$0xff]
      %v248 = vld [vmem:[%s1 + $0x248] sm:$0xff]
      %v249 = vld [vmem:[%s1 + $0x250] sm:$0xff]
      %v250 = vld [vmem:[%s1 + $0x258] sm:$0xff]
      %v251 = vld [vmem:[%s1 + $0x260] sm:$0xff]
      %v252 = vld [vmem:[%s1 + $0x268] sm:$0xff]
      %v253 = vld [vmem:[%s1 + $0x270] sm:$0xff]
      %v254 = vld [vmem:[%s1 + $0x278] sm:$0xff]
      %v255 = vld [vmem:[%s1 + $0x280] sm:$0xff]
      %v256 = vld [vmem:[%s1 + $0x288] sm:$0xff]
      %v257 = vld [vmem:[%s1 + $0x290] sm:$0xff]
      %v258 = vld [vmem:[%s1 + $0x298] sm:$0xff]
      %v259 = vld [vmem:[%s1 + $0x2a0] sm:$0xff]
      %v260 = vld [vmem:[%s1 + $0x2a8] sm:$0xff]
      %v261 = vld [vmem:[%s1 + $0x2b0] sm:$0xff]
      %v262 = vld [vmem:[%s1 + $0x2b8] sm:$0xff]
      %v263 = vld [vmem:[%s1 + $0x2c0] sm:$0xff]
      %v264 = vld [vmem:[%s1 + $0x2c8] sm:$0xff]
      %v265 = vld [vmem:[%s1 + $0x2d0] sm:$0xff]
      %v266 = vld [vmem:[%s1 + $0x2d8] sm:$0xff]
      %v267 = vld [vmem:[%s1 + $0x2e0] sm:$0xff]
      %v268 = vld [vmem:[%s1 + $0x2e8] sm:$0xff]
      %v269 = vld [vmem:[%s1 + $0x2f0] sm:$0xff]
      %v270 = vld [vmem:[%s1 + $0x2f8] sm:$0xff]
      %v271 = vld [vmem:[%s1 + $0x300] sm:$0xff]
      %v272 = vld [vmem:[%s1 + $0x308] sm:$0xff]
      %v273 = vld [vmem:[%s1 + $0x310] sm:$0xff]
      %v274 = vld [vmem:[%s1 + $0x318] sm:$0xff]
      %v275 = vld [vmem:[%s1 + $0x320] sm:$0xff]
      %v276 = vld [vmem:[%s1 + $0x328] sm:$0xff]
      %v277 = vld [vmem:[%s1 + $0x330] sm:$0xff]
      %v278 = vld [vmem:[%s1 + $0x338] sm:$0xff]
      %v279 = vld [vmem:[%s1 + $0x340] sm:$0xff]
      %v280 = vld [vmem:[%s1 + $0x348] sm:$0xff]
      %v281 = vld [vmem:[%s1 + $0x350] sm:$0xff]
      %v282 = vld [vmem:[%s1 + $0x358] sm:$0xff]
      %v283 = vld [vmem:[%s1 + $0x360] sm:$0xff]
      %v284 = vld [vmem:[%s1 + $0x368] sm:$0xff]
      %v285 = vld [vmem:[%s1 + $0x370] sm:$0xff]
      %v286 = vld [vmem:[%s1 + $0x378] sm:$0xff]
      %v287 = vld [vmem:[%s1 + $0x380] sm:$0xff]
      %v288 = vld [vmem:[%s1 + $0x388] sm:$0xff]
      %v289 = vld [vmem:[%s1 + $0x390] sm:$0xff]
      %v290 = vld [vmem:[%s1 + $0x398] sm:$0xff]
      %v291 = vld [vmem:[%s1 + $0x3a0] sm:$0xff]
      %v292 = vld [vmem:[%s1 + $0x3a8] sm:$0xff]
      %v293 = vld [vmem:[%s1 + $0x3b0] sm:$0xff]
      %v294 = vld [vmem:[%s1 + $0x3b8] sm:$0xff]
      %v295 = vld [vmem:[%s1 + $0x3c0] sm:$0xff]
      %v296 = vld [vmem:[%s1 + $0x3c8] sm:$0xff]
      %v297 = vld [vmem:[%s1 + $0x3d0] sm:$0xff]
      %v298 = vld [vmem:[%s1 + $0x3d8] sm:$0xff]
      %v299 = vld [vmem:[%s1 + $0x3e0] sm:$0xff]
      %v300 = vld [vmem:[%s1 + $0x3e8] sm:$0xff]
      %v301 = vld [vmem:[%s1 + $0x3f0] sm:$0xff]
      %v302 = vld [vmem:[%s1 + $0x3f8] sm:$0xff]
      %v303 = vld [vmem:[%s1 + $0x400] sm:$0xff]
      %v304 = vld [vmem:[%s1 + $0x408] sm:$0xff]
      %v305 = vld [vmem:[%s1 + $0x410] sm:$0xff]
      %v306 = vld [vmem:[%s1 + $0x418] sm:$0xff]
      %v307 = vld [vmem:[%s1 + $0x420] sm:$0xff]
      %v308 = vld [vmem:[%s1 + $0x428] sm:$0xff]
      %v309 = vld [vmem:[%s1 + $0x430] sm:$0xff]
      %v310 = vld [vmem:[%s1 + $0x438] sm:$0xff]
      %v311 = vld [vmem:[%s1 + $0x440] sm:$0xff]
      %v312 = vld [vmem:[%s1 + $0x448] sm:$0xff]
      %v313 = vld [vmem:[%s1 + $0x450] sm:$0xff]
      %v314 = vld [vmem:[%s1 + $0x458] sm:$0xff]
      %v315 = vld [vmem:[%s1 + $0x460] sm:$0xff]
      %v316 = vld [vmem:[%s1 + $0x468] sm:$0xff]
      %v317 = vld [vmem:[%s1 + $0x470] sm:$0xff]
      %v318 = vld [vmem:[%s1 + $0x478] sm:$0xff]
      %v319 = vld [vmem:[%s165 + $0x14] sm:$0xff]
      %v320 = vld [vmem:[%s165 + $0x1c] sm:$0xff]
      %v321 = vld [vmem:[%s165 + $0x24] sm:$0xf]
      %v322 = vld [vmem:[%s165 + $0x28] sm:$0x11]
      %v323 = vld [vmem:[%s165 + $0x30] sm:$0x11]
      %v324 = vld [vmem:[%s165 + $0x38] sm:$0x1]
      %s325 = scalar_lea.vmem %s1, 1152
      %v326 = vld [vmem:[%s325] sm:$0xff]
      %v327 = vld [vmem:[%s325 + $0x8] sm:$0xff]
      %v328 = vld [vmem:[%s325 + $0x10] sm:$0xff]
      %v329 = vld [vmem:[%s325 + $0x18] sm:$0xff]
      %v330 = vld [vmem:[%s325 + $0x20] sm:$0xff]
      %v331 = vld [vmem:[%s325 + $0x28] sm:$0xff]
      %v332 = vld [vmem:[%s325 + $0x30] sm:$0xff]
      %v333 = vld [vmem:[%s325 + $0x38] sm:$0xff]
      %v334 = vld [vmem:[%s325 + $0x40] sm:$0xff]
      %v335 = vld [vmem:[%s325 + $0x48] sm:$0xff]
      %v336 = vld [vmem:[%s325 + $0x50] sm:$0xff]
      %v337 = vld [vmem:[%s325 + $0x58] sm:$0xff]
      %v338 = vld [vmem:[%s325 + $0x60] sm:$0xff]
      %v339 = vld [vmem:[%s325 + $0x68] sm:$0xff]
      %v340 = vld [vmem:[%s325 + $0x70] sm:$0xff]
      %v341 = vld [vmem:[%s325 + $0x78] sm:$0xff]
      %v342 = vld [vmem:[%s325 + $0x80] sm:$0xff]
      %v343 = vld [vmem:[%s325 + $0x88] sm:$0xff]
      %v344 = vld [vmem:[%s325 + $0x90] sm:$0xff]
      %v345 = vld [vmem:[%s325 + $0x98] sm:$0xff]
      %v346 = vld [vmem:[%s325 + $0xa0] sm:$0xff]
      %v347 = vld [vmem:[%s325 + $0xa8] sm:$0xff]
      %v348 = vld [vmem:[%s325 + $0xb0] sm:$0xff]
      %v349 = vld [vmem:[%s325 + $0xb8] sm:$0xff]
      %v350 = vld [vmem:[%s325 + $0xc0] sm:$0xff]
      %v351 = vld [vmem:[%s325 + $0xc8] sm:$0xff]
      %v352 = vld [vmem:[%s325 + $0xd0] sm:$0xff]
      %v353 = vld [vmem:[%s325 + $0xd8] sm:$0xff]
      %v354 = vld [vmem:[%s325 + $0xe0] sm:$0xff]
      %v355 = vld [vmem:[%s325 + $0xe8] sm:$0xff]
      %v356 = vld [vmem:[%s325 + $0xf0] sm:$0xff]
      %v357 = vld [vmem:[%s325 + $0xf8] sm:$0xff]
      %v358 = vld [vmem:[%s325 + $0x100] sm:$0xff]
      %v359 = vld [vmem:[%s325 + $0x108] sm:$0xff]
      %v360 = vld [vmem:[%s325 + $0x110] sm:$0xff]
      %v361 = vld [vmem:[%s325 + $0x118] sm:$0xff]
      %v362 = vld [vmem:[%s325 + $0x120] sm:$0xff]
      %v363 = vld [vmem:[%s325 + $0x128] sm:$0xff]
      %v364 = vld [vmem:[%s325 + $0x130] sm:$0xff]
      %v365 = vld [vmem:[%s325 + $0x138] sm:$0xff]
      %v366 = vld [vmem:[%s325 + $0x140] sm:$0xff]
      %v367 = vld [vmem:[%s325 + $0x148] sm:$0xff]
      %v368 = vld [vmem:[%s325 + $0x150] sm:$0xff]
      %v369 = vld [vmem:[%s325 + $0x158] sm:$0xff]
      %v370 = vld [vmem:[%s325 + $0x160] sm:$0xff]
      %v371 = vld [vmem:[%s325 + $0x168] sm:$0xff]
      %v372 = vld [vmem:[%s325 + $0x170] sm:$0xff]
      %v373 = vld [vmem:[%s325 + $0x178] sm:$0xff]
      %v374 = vld [vmem:[%s325 + $0x180] sm:$0xff]
      %v375 = vld [vmem:[%s325 + $0x188] sm:$0xff]
      %v376 = vld [vmem:[%s325 + $0x190] sm:$0xff]
      %v377 = vld [vmem:[%s325 + $0x198] sm:$0xff]
      %v378 = vld [vmem:[%s325 + $0x1a0] sm:$0xff]
      %v379 = vld [vmem:[%s325 + $0x1a8] sm:$0xff]
      %v380 = vld [vmem:[%s325 + $0x1b0] sm:$0xff]
      %v381 = vld [vmem:[%s325 + $0x1b8] sm:$0xff]
      %v382 = vld [vmem:[%s325 + $0x1c0] sm:$0xff]
      %v383 = vld [vmem:[%s325 + $0x1c8] sm:$0xff]
      %v384 = vld [vmem:[%s325 + $0x1d0] sm:$0xff]
      %v385 = vld [vmem:[%s325 + $0x1d8] sm:$0xff]
      %v386 = vld [vmem:[%s325 + $0x1e0] sm:$0xff]
      %v387 = vld [vmem:[%s325 + $0x1e8] sm:$0xff]
      %v388 = vld [vmem:[%s325 + $0x1f0] sm:$0xff]
      %v389 = vld [vmem:[%s325 + $0x1f8] sm:$0xff]
      %v390 = vld [vmem:[%s325 + $0x200] sm:$0xff]
      %v391 = vld [vmem:[%s325 + $0x208] sm:$0xff]
      %v392 = vld [vmem:[%s325 + $0x210] sm:$0xff]
      %v393 = vld [vmem:[%s325 + $0x218] sm:$0xff]
      %v394 = vld [vmem:[%s325 + $0x220] sm:$0xff]
      %v395 = vld [vmem:[%s325 + $0x228] sm:$0xff]
      %v396 = vld [vmem:[%s325 + $0x230] sm:$0xff]
      %v397 = vld [vmem:[%s325 + $0x238] sm:$0xff]
      %v398 = vld [vmem:[%s325 + $0x240] sm:$0xff]
      %v399 = vld [vmem:[%s325 + $0x248] sm:$0xff]
      %v400 = vld [vmem:[%s325 + $0x250] sm:$0xff]
      %v401 = vld [vmem:[%s325 + $0x258] sm:$0xff]
      %v402 = vld [vmem:[%s325 + $0x260] sm:$0xff]
      %v403 = vld [vmem:[%s325 + $0x268] sm:$0xff]
      %v404 = vld [vmem:[%s325 + $0x270] sm:$0xff]
      %v405 = vld [vmem:[%s325 + $0x278] sm:$0xff]
      %v406 = vld [vmem:[%s325 + $0x280] sm:$0xff]
      %v407 = vld [vmem:[%s325 + $0x288] sm:$0xff]
      %v408 = vld [vmem:[%s325 + $0x290] sm:$0xff]
      %v409 = vld [vmem:[%s325 + $0x298] sm:$0xff]
      %v410 = vld [vmem:[%s325 + $0x2a0] sm:$0xff]
      %v411 = vld [vmem:[%s325 + $0x2a8] sm:$0xff]
      %v412 = vld [vmem:[%s325 + $0x2b0] sm:$0xff]
      %v413 = vld [vmem:[%s325 + $0x2b8] sm:$0xff]
      %v414 = vld [vmem:[%s325 + $0x2c0] sm:$0xff]
      %v415 = vld [vmem:[%s325 + $0x2c8] sm:$0xff]
      %v416 = vld [vmem:[%s325 + $0x2d0] sm:$0xff]
      %v417 = vld [vmem:[%s325 + $0x2d8] sm:$0xff]
      %v418 = vld [vmem:[%s325 + $0x2e0] sm:$0xff]
      %v419 = vld [vmem:[%s325 + $0x2e8] sm:$0xff]
      %v420 = vld [vmem:[%s325 + $0x2f0] sm:$0xff]
      %v421 = vld [vmem:[%s325 + $0x2f8] sm:$0xff]
      %v422 = vld [vmem:[%s325 + $0x300] sm:$0xff]
      %v423 = vld [vmem:[%s325 + $0x308] sm:$0xff]
      %v424 = vld [vmem:[%s325 + $0x310] sm:$0xff]
      %v425 = vld [vmem:[%s325 + $0x318] sm:$0xff]
      %v426 = vld [vmem:[%s325 + $0x320] sm:$0xff]
      %v427 = vld [vmem:[%s325 + $0x328] sm:$0xff]
      %v428 = vld [vmem:[%s325 + $0x330] sm:$0xff]
      %v429 = vld [vmem:[%s325 + $0x338] sm:$0xff]
      %v430 = vld [vmem:[%s325 + $0x340] sm:$0xff]
      %v431 = vld [vmem:[%s325 + $0x348] sm:$0xff]
      %v432 = vld [vmem:[%s325 + $0x350] sm:$0xff]
      %v433 = vld [vmem:[%s325 + $0x358] sm:$0xff]
      %v434 = vld [vmem:[%s325 + $0x360] sm:$0xff]
      %v435 = vld [vmem:[%s325 + $0x368] sm:$0xff]
      %v436 = vld [vmem:[%s325 + $0x370] sm:$0xff]
      %v437 = vld [vmem:[%s325 + $0x378] sm:$0xff]
      %v438 = vld [vmem:[%s325 + $0x380] sm:$0xff]
      %v439 = vld [vmem:[%s325 + $0x388] sm:$0xff]
      %v440 = vld [vmem:[%s325 + $0x390] sm:$0xff]
      %v441 = vld [vmem:[%s325 + $0x398] sm:$0xff]
      %v442 = vld [vmem:[%s325 + $0x3a0] sm:$0xff]
      %v443 = vld [vmem:[%s325 + $0x3a8] sm:$0xff]
      %v444 = vld [vmem:[%s325 + $0x3b0] sm:$0xff]
      %v445 = vld [vmem:[%s325 + $0x3b8] sm:$0xff]
      %v446 = vld [vmem:[%s325 + $0x3c0] sm:$0xff]
      %v447 = vld [vmem:[%s325 + $0x3c8] sm:$0xff]
      %v448 = vld [vmem:[%s325 + $0x3d0] sm:$0xff]
      %v449 = vld [vmem:[%s325 + $0x3d8] sm:$0xff]
      %v450 = vld [vmem:[%s325 + $0x3e0] sm:$0xff]
      %v451 = vld [vmem:[%s325 + $0x3e8] sm:$0xff]
      %v452 = vld [vmem:[%s325 + $0x3f0] sm:$0xff]
      %v453 = vld [vmem:[%s325 + $0x3f8] sm:$0xff]
      %v454 = vld [vmem:[%s325 + $0x400] sm:$0xff]
      %v455 = vld [vmem:[%s325 + $0x408] sm:$0xff]
      %v456 = vld [vmem:[%s325 + $0x410] sm:$0xff]
      %v457 = vld [vmem:[%s325 + $0x418] sm:$0xff]
      %v458 = vld [vmem:[%s325 + $0x420] sm:$0xff]
      %v459 = vld [vmem:[%s325 + $0x428] sm:$0xff]
      %v460 = vld [vmem:[%s325 + $0x430] sm:$0xff]
      %v461 = vld [vmem:[%s325 + $0x438] sm:$0xff]
      %v462 = vld [vmem:[%s325 + $0x440] sm:$0xff]
      %v463 = vld [vmem:[%s325 + $0x448] sm:$0xff]
      %v464 = vld [vmem:[%s325 + $0x450] sm:$0xff]
      %v465 = vld [vmem:[%s325 + $0x458] sm:$0xff]
      %v466 = vld [vmem:[%s325 + $0x460] sm:$0xff]
      %v467 = vld [vmem:[%s325 + $0x468] sm:$0xff]
      %v468 = vld [vmem:[%s325 + $0x470] sm:$0xff]
      %v469 = vld [vmem:[%s325 + $0x478] sm:$0xff]
      %v476 = vunpack.c.l.b16 %v319
      %v477 = vunpack.c.h.b16 %v319
      %v478 = vunpack.c.l.b16 %v320
      %v479 = vunpack.c.h.b16 %v320
      %v480 = vunpack.c.l.b16 %v321
      %v481 = vunpack.c.l.b16 %v322
      %v482 = vunpack.c.h.b16 %v322
      %v483 = vunpack.c.l.b16 %v323
      %v484 = vunpack.c.h.b16 %v323
      %v485 = vunpack.c.l.b16 %v324
      %v486 = vpack.c.b16 %v481, %v476
      %v487 = vpack.c.b16 %v482, %v477
      %v488 = vpack.c.b16 %v483, %v478
      %v489 = vpack.c.b16 %v484, %v479
      %v490 = vpack.c.b16 %v485, %v480
      %v492 = vshrl.u32 %v486, 16
      %v494 = vshll.u32 %v486, 16
      %v496 = vrot.slane %v494, 1
      %v497 = vor.u32 %v492, %v496
      %v499 = vshrl.u32 %v487, 16
      %v501 = vshll.u32 %v487, 16
      %v503 = vrot.slane %v501, 1
      %v504 = vor.u32 %v499, %v503
      %v506 = vshrl.u32 %v488, 16
      %v508 = vshll.u32 %v488, 16
      %v510 = vrot.slane %v508, 1
      %v511 = vor.u32 %v506, %v510
      %v513 = vshrl.u32 %v489, 16
      %v515 = vshll.u32 %v489, 16
      %v517 = vrot.slane %v515, 1
      %v518 = vor.u32 %v513, %v517
      %v520 = vshrl.u32 %v490, 16
      %v522 = vshll.u32 %v490, 16
      %v524 = vrot.slane %v522, 1
      %v525 = vor.u32 %v520, %v524
      %v674 = vunpack.c.l.b16 %v326
      %v675 = vunpack.c.h.b16 %v326
      %v676 = vunpack.c.l.b16 %v327
      %v677 = vunpack.c.h.b16 %v327
      %v678 = vunpack.c.l.b16 %v328
      %v679 = vunpack.c.h.b16 %v328
      %v680 = vunpack.c.l.b16 %v329
      %v681 = vunpack.c.h.b16 %v329
      %v682 = vunpack.c.l.b16 %v330
      %v683 = vunpack.c.h.b16 %v330
      %v684 = vunpack.c.l.b16 %v331
      %v685 = vunpack.c.h.b16 %v331
      %v686 = vunpack.c.l.b16 %v332
      %v687 = vunpack.c.h.b16 %v332
      %v688 = vunpack.c.l.b16 %v333
      %v689 = vunpack.c.h.b16 %v333
      %v690 = vunpack.c.l.b16 %v334
      %v691 = vunpack.c.h.b16 %v334
      %v692 = vunpack.c.l.b16 %v335
      %v693 = vunpack.c.h.b16 %v335
      %v694 = vunpack.c.l.b16 %v336
      %v695 = vunpack.c.h.b16 %v336
      %v696 = vunpack.c.l.b16 %v337
      %v697 = vunpack.c.h.b16 %v337
      %v698 = vunpack.c.l.b16 %v338
      %v699 = vunpack.c.h.b16 %v338
      %v700 = vunpack.c.l.b16 %v339
      %v701 = vunpack.c.h.b16 %v339
      %v702 = vunpack.c.l.b16 %v340
      %v703 = vunpack.c.h.b16 %v340
      %v704 = vunpack.c.l.b16 %v341
      %v705 = vunpack.c.h.b16 %v341
      %v706 = vunpack.c.l.b16 %v342
      %v707 = vunpack.c.h.b16 %v342
      %v708 = vunpack.c.l.b16 %v343
      %v709 = vunpack.c.h.b16 %v343
      %v710 = vunpack.c.l.b16 %v344
      %v711 = vunpack.c.h.b16 %v344
      %v712 = vunpack.c.l.b16 %v345
      %v713 = vunpack.c.h.b16 %v345
      %v714 = vunpack.c.l.b16 %v346
      %v715 = vunpack.c.h.b16 %v346
      %v716 = vunpack.c.l.b16 %v347
      %v717 = vunpack.c.h.b16 %v347
      %v718 = vunpack.c.l.b16 %v348
      %v719 = vunpack.c.h.b16 %v348
      %v720 = vunpack.c.l.b16 %v349
      %v721 = vunpack.c.h.b16 %v349
      %v722 = vunpack.c.l.b16 %v350
      %v723 = vunpack.c.h.b16 %v350
      %v724 = vunpack.c.l.b16 %v351
      %v725 = vunpack.c.h.b16 %v351
      %v726 = vunpack.c.l.b16 %v352
      %v727 = vunpack.c.h.b16 %v352
      %v728 = vunpack.c.l.b16 %v353
      %v729 = vunpack.c.h.b16 %v353
      %v730 = vunpack.c.l.b16 %v354
      %v731 = vunpack.c.h.b16 %v354
      %v732 = vunpack.c.l.b16 %v355
      %v733 = vunpack.c.h.b16 %v355
      %v734 = vunpack.c.l.b16 %v356
      %v735 = vunpack.c.h.b16 %v356
      %v736 = vunpack.c.l.b16 %v357
      %v737 = vunpack.c.h.b16 %v357
      %v738 = vunpack.c.l.b16 %v358
      %v739 = vunpack.c.h.b16 %v358
      %v740 = vunpack.c.l.b16 %v359
      %v741 = vunpack.c.h.b16 %v359
      %v742 = vunpack.c.l.b16 %v360
      %v743 = vunpack.c.h.b16 %v360
      %v744 = vunpack.c.l.b16 %v361
      %v745 = vunpack.c.h.b16 %v361
      %v746 = vunpack.c.l.b16 %v362
      %v747 = vunpack.c.h.b16 %v362
      %v748 = vunpack.c.l.b16 %v363
      %v749 = vunpack.c.h.b16 %v363
      %v750 = vunpack.c.l.b16 %v364
      %v751 = vunpack.c.h.b16 %v364
      %v752 = vunpack.c.l.b16 %v365
      %v753 = vunpack.c.h.b16 %v365
      %v754 = vunpack.c.l.b16 %v366
      %v755 = vunpack.c.h.b16 %v366
      %v756 = vunpack.c.l.b16 %v367
      %v757 = vunpack.c.h.b16 %v367
      %v758 = vunpack.c.l.b16 %v368
      %v759 = vunpack.c.h.b16 %v368
      %v760 = vunpack.c.l.b16 %v369
      %v761 = vunpack.c.h.b16 %v369
      %v762 = vunpack.c.l.b16 %v370
      %v763 = vunpack.c.h.b16 %v370
      %v764 = vunpack.c.l.b16 %v371
      %v765 = vunpack.c.h.b16 %v371
      %v766 = vunpack.c.l.b16 %v372
      %v767 = vunpack.c.h.b16 %v372
      %v768 = vunpack.c.l.b16 %v373
      %v769 = vunpack.c.h.b16 %v373
      %v770 = vunpack.c.l.b16 %v374
      %v771 = vunpack.c.h.b16 %v374
      %v772 = vunpack.c.l.b16 %v375
      %v773 = vunpack.c.h.b16 %v375
      %v774 = vunpack.c.l.b16 %v376
      %v775 = vunpack.c.h.b16 %v376
      %v776 = vunpack.c.l.b16 %v377
      %v777 = vunpack.c.h.b16 %v377
      %v778 = vunpack.c.l.b16 %v378
      %v779 = vunpack.c.h.b16 %v378
      %v780 = vunpack.c.l.b16 %v379
      %v781 = vunpack.c.h.b16 %v379
      %v782 = vunpack.c.l.b16 %v380
      %v783 = vunpack.c.h.b16 %v380
      %v784 = vunpack.c.l.b16 %v381
      %v785 = vunpack.c.h.b16 %v381
      %v786 = vunpack.c.l.b16 %v382
      %v787 = vunpack.c.h.b16 %v382
      %v788 = vunpack.c.l.b16 %v383
      %v789 = vunpack.c.h.b16 %v383
      %v790 = vunpack.c.l.b16 %v384
      %v791 = vunpack.c.h.b16 %v384
      %v792 = vunpack.c.l.b16 %v385
      %v793 = vunpack.c.h.b16 %v385
      %v794 = vunpack.c.l.b16 %v386
      %v795 = vunpack.c.h.b16 %v386
      %v796 = vunpack.c.l.b16 %v387
      %v797 = vunpack.c.h.b16 %v387
      %v798 = vunpack.c.l.b16 %v388
      %v799 = vunpack.c.h.b16 %v388
      %v800 = vunpack.c.l.b16 %v389
      %v801 = vunpack.c.h.b16 %v389
      %v802 = vunpack.c.l.b16 %v390
      %v803 = vunpack.c.h.b16 %v390
      %v804 = vunpack.c.l.b16 %v391
      %v805 = vunpack.c.h.b16 %v391
      %v806 = vunpack.c.l.b16 %v392
      %v807 = vunpack.c.h.b16 %v392
      %v808 = vunpack.c.l.b16 %v393
      %v809 = vunpack.c.h.b16 %v393
      %v810 = vunpack.c.l.b16 %v394
      %v811 = vunpack.c.h.b16 %v394
      %v812 = vunpack.c.l.b16 %v395
      %v813 = vunpack.c.h.b16 %v395
      %v814 = vunpack.c.l.b16 %v396
      %v815 = vunpack.c.h.b16 %v396
      %v816 = vunpack.c.l.b16 %v397
      %v817 = vunpack.c.h.b16 %v397
      %v818 = vunpack.c.l.b16 %v398
      %v819 = vunpack.c.h.b16 %v398
      %v820 = vunpack.c.l.b16 %v399
      %v821 = vunpack.c.h.b16 %v399
      %v822 = vunpack.c.l.b16 %v400
      %v823 = vunpack.c.h.b16 %v400
      %v824 = vunpack.c.l.b16 %v401
      %v825 = vunpack.c.h.b16 %v401
      %v826 = vunpack.c.l.b16 %v402
      %v827 = vunpack.c.h.b16 %v402
      %v828 = vunpack.c.l.b16 %v403
      %v829 = vunpack.c.h.b16 %v403
      %v830 = vunpack.c.l.b16 %v404
      %v831 = vunpack.c.h.b16 %v404
      %v832 = vunpack.c.l.b16 %v405
      %v833 = vunpack.c.h.b16 %v405
      %v834 = vunpack.c.l.b16 %v406
      %v835 = vunpack.c.h.b16 %v406
      %v836 = vunpack.c.l.b16 %v407
      %v837 = vunpack.c.h.b16 %v407
      %v838 = vunpack.c.l.b16 %v408
      %v839 = vunpack.c.h.b16 %v408
      %v840 = vunpack.c.l.b16 %v409
      %v841 = vunpack.c.h.b16 %v409
      %v842 = vunpack.c.l.b16 %v410
      %v843 = vunpack.c.h.b16 %v410
      %v844 = vunpack.c.l.b16 %v411
      %v845 = vunpack.c.h.b16 %v411
      %v846 = vunpack.c.l.b16 %v412
      %v847 = vunpack.c.h.b16 %v412
      %v848 = vunpack.c.l.b16 %v413
      %v849 = vunpack.c.h.b16 %v413
      %v850 = vunpack.c.l.b16 %v414
      %v851 = vunpack.c.h.b16 %v414
      %v852 = vunpack.c.l.b16 %v415
      %v853 = vunpack.c.h.b16 %v415
      %v854 = vunpack.c.l.b16 %v416
      %v855 = vunpack.c.h.b16 %v416
      %v856 = vunpack.c.l.b16 %v417
      %v857 = vunpack.c.h.b16 %v417
      %v858 = vunpack.c.l.b16 %v418
      %v859 = vunpack.c.h.b16 %v418
      %v860 = vunpack.c.l.b16 %v419
      %v861 = vunpack.c.h.b16 %v419
      %v862 = vunpack.c.l.b16 %v420
      %v863 = vunpack.c.h.b16 %v420
      %v864 = vunpack.c.l.b16 %v421
      %v865 = vunpack.c.h.b16 %v421
      %v866 = vunpack.c.l.b16 %v422
      %v867 = vunpack.c.h.b16 %v422
      %v868 = vunpack.c.l.b16 %v423
      %v869 = vunpack.c.h.b16 %v423
      %v870 = vunpack.c.l.b16 %v424
      %v871 = vunpack.c.h.b16 %v424
      %v872 = vunpack.c.l.b16 %v425
      %v873 = vunpack.c.h.b16 %v425
      %v874 = vunpack.c.l.b16 %v426
      %v875 = vunpack.c.h.b16 %v426
      %v876 = vunpack.c.l.b16 %v427
      %v877 = vunpack.c.h.b16 %v427
      %v878 = vunpack.c.l.b16 %v428
      %v879 = vunpack.c.h.b16 %v428
      %v880 = vunpack.c.l.b16 %v429
      %v881 = vunpack.c.h.b16 %v429
      %v882 = vunpack.c.l.b16 %v430
      %v883 = vunpack.c.h.b16 %v430
      %v884 = vunpack.c.l.b16 %v431
      %v885 = vunpack.c.h.b16 %v431
      %v886 = vunpack.c.l.b16 %v432
      %v887 = vunpack.c.h.b16 %v432
      %v888 = vunpack.c.l.b16 %v433
      %v889 = vunpack.c.h.b16 %v433
      %v890 = vunpack.c.l.b16 %v434
      %v891 = vunpack.c.h.b16 %v434
      %v892 = vunpack.c.l.b16 %v435
      %v893 = vunpack.c.h.b16 %v435
      %v894 = vunpack.c.l.b16 %v436
      %v895 = vunpack.c.h.b16 %v436
      %v896 = vunpack.c.l.b16 %v437
      %v897 = vunpack.c.h.b16 %v437
      %v898 = vunpack.c.l.b16 %v438
      %v899 = vunpack.c.h.b16 %v438
      %v900 = vunpack.c.l.b16 %v439
      %v901 = vunpack.c.h.b16 %v439
      %v902 = vunpack.c.l.b16 %v440
      %v903 = vunpack.c.h.b16 %v440
      %v904 = vunpack.c.l.b16 %v441
      %v905 = vunpack.c.h.b16 %v441
      %v906 = vunpack.c.l.b16 %v442
      %v907 = vunpack.c.h.b16 %v442
      %v908 = vunpack.c.l.b16 %v443
      %v909 = vunpack.c.h.b16 %v443
      %v910 = vunpack.c.l.b16 %v444
      %v911 = vunpack.c.h.b16 %v444
      %v912 = vunpack.c.l.b16 %v445
      %v913 = vunpack.c.h.b16 %v445
      %v914 = vunpack.c.l.b16 %v446
      %v915 = vunpack.c.h.b16 %v446
      %v916 = vunpack.c.l.b16 %v447
      %v917 = vunpack.c.h.b16 %v447
      %v918 = vunpack.c.l.b16 %v448
      %v919 = vunpack.c.h.b16 %v448
      %v920 = vunpack.c.l.b16 %v449
      %v921 = vunpack.c.h.b16 %v449
      %v922 = vunpack.c.l.b16 %v450
      %v923 = vunpack.c.h.b16 %v450
      %v924 = vunpack.c.l.b16 %v451
      %v925 = vunpack.c.h.b16 %v451
      %v926 = vunpack.c.l.b16 %v452
      %v927 = vunpack.c.h.b16 %v452
      %v928 = vunpack.c.l.b16 %v453
      %v929 = vunpack.c.h.b16 %v453
      %v930 = vunpack.c.l.b16 %v454
      %v931 = vunpack.c.h.b16 %v454
      %v932 = vunpack.c.l.b16 %v455
      %v933 = vunpack.c.h.b16 %v455
      %v934 = vunpack.c.l.b16 %v456
      %v935 = vunpack.c.h.b16 %v456
      %v936 = vunpack.c.l.b16 %v457
      %v937 = vunpack.c.h.b16 %v457
      %v938 = vunpack.c.l.b16 %v458
      %v939 = vunpack.c.h.b16 %v458
      %v940 = vunpack.c.l.b16 %v459
      %v941 = vunpack.c.h.b16 %v459
      %v942 = vunpack.c.l.b16 %v460
      %v943 = vunpack.c.h.b16 %v460
      %v944 = vunpack.c.l.b16 %v461
      %v945 = vunpack.c.h.b16 %v461
      %v946 = vunpack.c.l.b16 %v462
      %v947 = vunpack.c.h.b16 %v462
      %v948 = vunpack.c.l.b16 %v463
      %v949 = vunpack.c.h.b16 %v463
      %v950 = vunpack.c.l.b16 %v464
      %v951 = vunpack.c.h.b16 %v464
      %v952 = vunpack.c.l.b16 %v465
      %v953 = vunpack.c.h.b16 %v465
      %v954 = vunpack.c.l.b16 %v466
      %v955 = vunpack.c.h.b16 %v466
      %v956 = vunpack.c.l.b16 %v467
      %v957 = vunpack.c.h.b16 %v467
      %v958 = vunpack.c.l.b16 %v468
      %v959 = vunpack.c.h.b16 %v468
      %v960 = vunpack.c.l.b16 %v469
      %v961 = vunpack.c.h.b16 %v469
      %v962 = vpack.c.b16 %v678, %v674
      %v963 = vpack.c.b16 %v679, %v675
      %v964 = vpack.c.b16 %v680, %v676
      %v965 = vpack.c.b16 %v681, %v677
      %v966 = vpack.c.b16 %v686, %v682
      %v967 = vpack.c.b16 %v687, %v683
      %v968 = vpack.c.b16 %v688, %v684
      %v969 = vpack.c.b16 %v689, %v685
      %v970 = vpack.c.b16 %v694, %v690
      %v971 = vpack.c.b16 %v695, %v691
      %v972 = vpack.c.b16 %v696, %v692
      %v973 = vpack.c.b16 %v697, %v693
      %v974 = vpack.c.b16 %v702, %v698
      %v975 = vpack.c.b16 %v703, %v699
      %v976 = vpack.c.b16 %v704, %v700
      %v977 = vpack.c.b16 %v705, %v701
      %v978 = vpack.c.b16 %v710, %v706
      %v979 = vpack.c.b16 %v711, %v707
      %v980 = vpack.c.b16 %v712, %v708
      %v981 = vpack.c.b16 %v713, %v709
      %v982 = vpack.c.b16 %v718, %v714
      %v983 = vpack.c.b16 %v719, %v715
      %v984 = vpack.c.b16 %v720, %v716
      %v985 = vpack.c.b16 %v721, %v717
      %v986 = vpack.c.b16 %v726, %v722
      %v987 = vpack.c.b16 %v727, %v723
      %v988 = vpack.c.b16 %v728, %v724
      %v989 = vpack.c.b16 %v729, %v725
      %v990 = vpack.c.b16 %v734, %v730
      %v991 = vpack.c.b16 %v735, %v731
      %v992 = vpack.c.b16 %v736, %v732
      %v993 = vpack.c.b16 %v737, %v733
      %v994 = vpack.c.b16 %v742, %v738
      %v995 = vpack.c.b16 %v743, %v739
      %v996 = vpack.c.b16 %v744, %v740
      %v997 = vpack.c.b16 %v745, %v741
      %v998 = vpack.c.b16 %v750, %v746
      %v999 = vpack.c.b16 %v751, %v747
      %v1000 = vpack.c.b16 %v752, %v748
      %v1001 = vpack.c.b16 %v753, %v749
      %v1002 = vpack.c.b16 %v758, %v754
      %v1003 = vpack.c.b16 %v759, %v755
      %v1004 = vpack.c.b16 %v760, %v756
      %v1005 = vpack.c.b16 %v761, %v757
      %v1006 = vpack.c.b16 %v766, %v762
      %v1007 = vpack.c.b16 %v767, %v763
      %v1008 = vpack.c.b16 %v768, %v764
      %v1009 = vpack.c.b16 %v769, %v765
      %v1010 = vpack.c.b16 %v774, %v770
      %v1011 = vpack.c.b16 %v775, %v771
      %v1012 = vpack.c.b16 %v776, %v772
      %v1013 = vpack.c.b16 %v777, %v773
      %v1014 = vpack.c.b16 %v782, %v778
      %v1015 = vpack.c.b16 %v783, %v779
      %v1016 = vpack.c.b16 %v784, %v780
      %v1017 = vpack.c.b16 %v785, %v781
      %v1018 = vpack.c.b16 %v790, %v786
      %v1019 = vpack.c.b16 %v791, %v787
      %v1020 = vpack.c.b16 %v792, %v788
      %v1021 = vpack.c.b16 %v793, %v789
      %v1022 = vpack.c.b16 %v798, %v794
      %v1023 = vpack.c.b16 %v799, %v795
      %v1024 = vpack.c.b16 %v800, %v796
      %v1025 = vpack.c.b16 %v801, %v797
      %v1026 = vpack.c.b16 %v806, %v802
      %v1027 = vpack.c.b16 %v807, %v803
      %v1028 = vpack.c.b16 %v808, %v804
      %v1029 = vpack.c.b16 %v809, %v805
      %v1030 = vpack.c.b16 %v814, %v810
      %v1031 = vpack.c.b16 %v815, %v811
      %v1032 = vpack.c.b16 %v816, %v812
      %v1033 = vpack.c.b16 %v817, %v813
      %v1034 = vpack.c.b16 %v822, %v818
      %v1035 = vpack.c.b16 %v823, %v819
      %v1036 = vpack.c.b16 %v824, %v820
      %v1037 = vpack.c.b16 %v825, %v821
      %v1038 = vpack.c.b16 %v830, %v826
      %v1039 = vpack.c.b16 %v831, %v827
      %v1040 = vpack.c.b16 %v832, %v828
      %v1041 = vpack.c.b16 %v833, %v829
      %v1042 = vpack.c.b16 %v838, %v834
      %v1043 = vpack.c.b16 %v839, %v835
      %v1044 = vpack.c.b16 %v840, %v836
      %v1045 = vpack.c.b16 %v841, %v837
      %v1046 = vpack.c.b16 %v846, %v842
      %v1047 = vpack.c.b16 %v847, %v843
      %v1048 = vpack.c.b16 %v848, %v844
      %v1049 = vpack.c.b16 %v849, %v845
      %v1050 = vpack.c.b16 %v854, %v850
      %v1051 = vpack.c.b16 %v855, %v851
      %v1052 = vpack.c.b16 %v856, %v852
      %v1053 = vpack.c.b16 %v857, %v853
      %v1054 = vpack.c.b16 %v862, %v858
      %v1055 = vpack.c.b16 %v863, %v859
      %v1056 = vpack.c.b16 %v864, %v860
      %v1057 = vpack.c.b16 %v865, %v861
      %v1058 = vpack.c.b16 %v870, %v866
      %v1059 = vpack.c.b16 %v871, %v867
      %v1060 = vpack.c.b16 %v872, %v868
      %v1061 = vpack.c.b16 %v873, %v869
      %v1062 = vpack.c.b16 %v878, %v874
      %v1063 = vpack.c.b16 %v879, %v875
      %v1064 = vpack.c.b16 %v880, %v876
      %v1065 = vpack.c.b16 %v881, %v877
      %v1066 = vpack.c.b16 %v886, %v882
      %v1067 = vpack.c.b16 %v887, %v883
      %v1068 = vpack.c.b16 %v888, %v884
      %v1069 = vpack.c.b16 %v889, %v885
      %v1070 = vpack.c.b16 %v894, %v890
      %v1071 = vpack.c.b16 %v895, %v891
      %v1072 = vpack.c.b16 %v896, %v892
      %v1073 = vpack.c.b16 %v897, %v893
      %v1074 = vpack.c.b16 %v902, %v898
      %v1075 = vpack.c.b16 %v903, %v899
      %v1076 = vpack.c.b16 %v904, %v900
      %v1077 = vpack.c.b16 %v905, %v901
      %v1078 = vpack.c.b16 %v910, %v906
      %v1079 = vpack.c.b16 %v911, %v907
      %v1080 = vpack.c.b16 %v912, %v908
      %v1081 = vpack.c.b16 %v913, %v909
      %v1082 = vpack.c.b16 %v918, %v914
      %v1083 = vpack.c.b16 %v919, %v915
      %v1084 = vpack.c.b16 %v920, %v916
      %v1085 = vpack.c.b16 %v921, %v917
      %v1086 = vpack.c.b16 %v926, %v922
      %v1087 = vpack.c.b16 %v927, %v923
      %v1088 = vpack.c.b16 %v928, %v924
      %v1089 = vpack.c.b16 %v929, %v925
      %v1090 = vpack.c.b16 %v934, %v930
      %v1091 = vpack.c.b16 %v935, %v931
      %v1092 = vpack.c.b16 %v936, %v932
      %v1093 = vpack.c.b16 %v937, %v933
      %v1094 = vpack.c.b16 %v942, %v938
      %v1095 = vpack.c.b16 %v943, %v939
      %v1096 = vpack.c.b16 %v944, %v940
      %v1097 = vpack.c.b16 %v945, %v941
      %v1098 = vpack.c.b16 %v950, %v946
      %v1099 = vpack.c.b16 %v951, %v947
      %v1100 = vpack.c.b16 %v952, %v948
      %v1101 = vpack.c.b16 %v953, %v949
      %v1102 = vpack.c.b16 %v958, %v954
      %v1103 = vpack.c.b16 %v959, %v955
      %v1104 = vpack.c.b16 %v960, %v956
      %v1105 = vpack.c.b16 %v961, %v957
      %vm1250 = vcmask 523264
      %v1252 = vsel %vm1250, %v525, 0
      %1254 = vmatprep.subr.bf16.mxu0 %v991
      %1255 = vmatpush1.bf16.msra.mxu0 %v990
      %1256 = vmatprep.subr.bf16.mxu0 %v987
      %1257 = vmatpush1.bf16.msra.mxu0 %v986
      %1258 = vmatprep.subr.bf16.mxu0 %v983
      %1259 = vmatpush1.bf16.msra.mxu0 %v982
      %1260 = vmatprep.subr.bf16.mxu0 %v979
      %1261 = vmatpush1.bf16.msra.mxu0 %v978
      %1262 = vmatprep.subr.bf16.mxu0 %v975
      %1263 = vmatpush1.bf16.msra.mxu0 %v974
      %1264 = vmatprep.subr.bf16.mxu0 %v971
      %1265 = vmatpush1.bf16.msra.mxu0 %v970
      %1266 = vmatprep.subr.bf16.mxu0 %v967
      %1267 = vmatpush1.bf16.msra.mxu0 %v966
      %1268 = vmatprep.subr.bf16.mxu0 %v963
      %1269 = vmatpush1.bf16.msra.mxu0 %v962
      %1270 = vmatprep.subr.bf16.mxu0 %v1023
      %1271 = vmatpush2.bf16.msra.mxu0 %v1022
      %1272 = vmatprep.subr.bf16.mxu0 %v1019
      %1273 = vmatpush2.bf16.msra.mxu0 %v1018
      %1274 = vmatprep.subr.bf16.mxu0 %v1015
      %1275 = vmatpush2.bf16.msra.mxu0 %v1014
      %1276 = vmatprep.subr.bf16.mxu0 %v1011
      %1277 = vmatpush2.bf16.msra.mxu0 %v1010
      %1278 = vmatprep.subr.bf16.mxu0 %v1007
      %1279 = vmatpush2.bf16.msra.mxu0 %v1006
      %1280 = vmatprep.subr.bf16.mxu0 %v1003
      %1281 = vmatpush2.bf16.msra.mxu0 %v1002
      %1282 = vmatprep.subr.bf16.mxu0 %v999
      %1283 = vmatpush2.bf16.msra.mxu0 %v998
      %1284 = vmatprep.subr.bf16.mxu0 %v995
      %1285 = vmatpush2.bf16.msra.mxu0 %v994
      %1286 = vmatprep.mubr.bf16.mxu0 %v504
      %1287 = vmatmul.mubr.bf16.gmra.mxu0 %v497
      %v1288 = vpop.f32.mrf.mxu0
      %v1289 = vadd.f32 0.0, %v1288
      %v1290 = vpop.f32.mrf.mxu0
      %v1291 = vadd.f32 0.0, %v1290
      %v1292 = vpop.f32.mrf.mxu0
      %v1293 = vpop.f32.mrf.mxu0
      %1294 = vdwg.mxu0
      %1295 = vmatprep.subr.bf16.mxu0 %v1055
      %1296 = vmatpush1.bf16.msra.mxu0 %v1054
      %1297 = vmatprep.subr.bf16.mxu0 %v1051
      %1298 = vmatpush1.bf16.msra.mxu0 %v1050
      %1299 = vmatprep.subr.bf16.mxu0 %v1047
      %1300 = vmatpush1.bf16.msra.mxu0 %v1046
      %1301 = vmatprep.subr.bf16.mxu0 %v1043
      %1302 = vmatpush1.bf16.msra.mxu0 %v1042
      %1303 = vmatprep.subr.bf16.mxu0 %v1039
      %1304 = vmatpush1.bf16.msra.mxu0 %v1038
      %1305 = vmatprep.subr.bf16.mxu0 %v1035
      %1306 = vmatpush1.bf16.msra.mxu0 %v1034
      %1307 = vmatprep.subr.bf16.mxu0 %v1031
      %1308 = vmatpush1.bf16.msra.mxu0 %v1030
      %1309 = vmatprep.subr.bf16.mxu0 %v1027
      %1310 = vmatpush1.bf16.msra.mxu0 %v1026
      %1311 = vmatprep.subr.bf16.mxu0 %v1087
      %1312 = vmatpush2.bf16.msra.mxu0 %v1086
      %1313 = vmatprep.subr.bf16.mxu0 %v1083
      %1314 = vmatpush2.bf16.msra.mxu0 %v1082
      %1315 = vmatprep.subr.bf16.mxu0 %v1079
      %1316 = vmatpush2.bf16.msra.mxu0 %v1078
      %1317 = vmatprep.subr.bf16.mxu0 %v1075
      %1318 = vmatpush2.bf16.msra.mxu0 %v1074
      %1319 = vmatprep.subr.bf16.mxu0 %v1071
      %1320 = vmatpush2.bf16.msra.mxu0 %v1070
      %1321 = vmatprep.subr.bf16.mxu0 %v1067
      %1322 = vmatpush2.bf16.msra.mxu0 %v1066
      %1323 = vmatprep.subr.bf16.mxu0 %v1063
      %1324 = vmatpush2.bf16.msra.mxu0 %v1062
      %1325 = vmatprep.subr.bf16.mxu0 %v1059
      %1326 = vmatpush2.bf16.msra.mxu0 %v1058
      %1327 = vmatprep.mubr.bf16.mxu0 %v518
      %1328 = vmatmul.mubr.bf16.gmra.mxu0 %v511
      %v1329 = vpop.f32.mrf.mxu0
      %v1330 = vadd.f32 %v1289, %v1329
      %v1331 = vpop.f32.mrf.mxu0
      %v1332 = vadd.f32 %v1291, %v1331
      %v1333 = vpop.f32.mrf.mxu0
      %v1334 = vpop.f32.mrf.mxu0
      %1335 = vdwg.mxu0
      %1336 = vmatprep.subr.bf16.mxu0 0
      %1337 = vmatpush1.bf16.msra.mxu0 0
      %1338 = vmatprep.subr.bf16.mxu0 0
      %1339 = vmatpush1.bf16.msra.mxu0 0
      %1340 = vmatprep.subr.bf16.mxu0 0
      %1341 = vmatpush1.bf16.msra.mxu0 0
      %1342 = vmatprep.subr.bf16.mxu0 0
      %1343 = vmatpush1.bf16.msra.mxu0 0
      %1344 = vmatprep.subr.bf16.mxu0 %v1103
      %1345 = vmatpush1.bf16.msra.mxu0 %v1102
      %1346 = vmatprep.subr.bf16.mxu0 %v1099
      %1347 = vmatpush1.bf16.msra.mxu0 %v1098
      %1348 = vmatprep.subr.bf16.mxu0 %v1095
      %1349 = vmatpush1.bf16.msra.mxu0 %v1094
      %1350 = vmatprep.subr.bf16.mxu0 %v1091
      %1351 = vmatpush1.bf16.msra.mxu0 %v1090
      %1352 = vmatprep.subr.bf16.mxu0 0
      %1353 = vmatpush2.bf16.msra.mxu0 0
      %1354 = vmatprep.subr.bf16.mxu0 0
      %1355 = vmatpush2.bf16.msra.mxu0 0
      %1356 = vmatprep.subr.bf16.mxu0 0
      %1357 = vmatpush2.bf16.msra.mxu0 0
      %1358 = vmatprep.subr.bf16.mxu0 0
      %1359 = vmatpush2.bf16.msra.mxu0 0
      %1360 = vmatprep.subr.bf16.mxu0 0
      %1361 = vmatpush2.bf16.msra.mxu0 0
      %1362 = vmatprep.subr.bf16.mxu0 0
      %1363 = vmatpush2.bf16.msra.mxu0 0
      %1364 = vmatprep.subr.bf16.mxu0 0
      %1365 = vmatpush2.bf16.msra.mxu0 0
      %1366 = vmatprep.subr.bf16.mxu0 0
      %1367 = vmatpush2.bf16.msra.mxu0 0
      %1368 = vmatprep.mubr.bf16.mxu0 0
      %1369 = vmatmul.mubr.bf16.gmra.mxu0 %v1252
      %v1370 = vpop.f32.mrf.mxu0
      %v1371 = vadd.f32 %v1330, %v1370
      %v1372 = vpop.f32.mrf.mxu0
      %v1373 = vadd.f32 %v1332, %v1372
      %v1374 = vpop.f32.mrf.mxu0
      %v1375 = vpop.f32.mrf.mxu0
      %1376 = vdwg.mxu0
      %1377 = vmatprep.subr.bf16.mxu0 %v993
      %1378 = vmatpush1.bf16.msra.mxu0 %v992
      %1379 = vmatprep.subr.bf16.mxu0 %v989
      %1380 = vmatpush1.bf16.msra.mxu0 %v988
      %1381 = vmatprep.subr.bf16.mxu0 %v985
      %1382 = vmatpush1.bf16.msra.mxu0 %v984
      %1383 = vmatprep.subr.bf16.mxu0 %v981
      %1384 = vmatpush1.bf16.msra.mxu0 %v980
      %1385 = vmatprep.subr.bf16.mxu0 %v977
      %1386 = vmatpush1.bf16.msra.mxu0 %v976
      %1387 = vmatprep.subr.bf16.mxu0 %v973
      %1388 = vmatpush1.bf16.msra.mxu0 %v972
      %1389 = vmatprep.subr.bf16.mxu0 %v969
      %1390 = vmatpush1.bf16.msra.mxu0 %v968
      %1391 = vmatprep.subr.bf16.mxu0 %v965
      %1392 = vmatpush1.bf16.msra.mxu0 %v964
      %1393 = vmatprep.subr.bf16.mxu0 %v1025
      %1394 = vmatpush2.bf16.msra.mxu0 %v1024
      %1395 = vmatprep.subr.bf16.mxu0 %v1021
      %1396 = vmatpush2.bf16.msra.mxu0 %v1020
      %1397 = vmatprep.subr.bf16.mxu0 %v1017
      %1398 = vmatpush2.bf16.msra.mxu0 %v1016
      %1399 = vmatprep.subr.bf16.mxu0 %v1013
      %1400 = vmatpush2.bf16.msra.mxu0 %v1012
      %1401 = vmatprep.subr.bf16.mxu0 %v1009
      %1402 = vmatpush2.bf16.msra.mxu0 %v1008
      %1403 = vmatprep.subr.bf16.mxu0 %v1005
      %1404 = vmatpush2.bf16.msra.mxu0 %v1004
      %1405 = vmatprep.subr.bf16.mxu0 %v1001
      %1406 = vmatpush2.bf16.msra.mxu0 %v1000
      %1407 = vmatprep.subr.bf16.mxu0 %v997
      %1408 = vmatpush2.bf16.msra.mxu0 %v996
      %1409 = vmatprep.mubr.bf16.mxu0 %v504
      %1410 = vmatmul.mubr.bf16.gmra.mxu0 %v497
      %v1411 = vpop.f32.mrf.mxu0
      %v1412 = vadd.f32 0.0, %v1411
      %v1413 = vpop.f32.mrf.mxu0
      %v1414 = vadd.f32 0.0, %v1413
      %v1415 = vpop.f32.mrf.mxu0
      %v1416 = vpop.f32.mrf.mxu0
      %1417 = vdwg.mxu0
      %1418 = vmatprep.subr.bf16.mxu0 %v1057
      %1419 = vmatpush1.bf16.msra.mxu0 %v1056
      %1420 = vmatprep.subr.bf16.mxu0 %v1053
      %1421 = vmatpush1.bf16.msra.mxu0 %v1052
      %1422 = vmatprep.subr.bf16.mxu0 %v1049
      %1423 = vmatpush1.bf16.msra.mxu0 %v1048
      %1424 = vmatprep.subr.bf16.mxu0 %v1045
      %1425 = vmatpush1.bf16.msra.mxu0 %v1044
      %1426 = vmatprep.subr.bf16.mxu0 %v1041
      %1427 = vmatpush1.bf16.msra.mxu0 %v1040
      %1428 = vmatprep.subr.bf16.mxu0 %v1037
      %1429 = vmatpush1.bf16.msra.mxu0 %v1036
      %1430 = vmatprep.subr.bf16.mxu0 %v1033
      %1431 = vmatpush1.bf16.msra.mxu0 %v1032
      %1432 = vmatprep.subr.bf16.mxu0 %v1029
      %1433 = vmatpush1.bf16.msra.mxu0 %v1028
      %1434 = vmatprep.subr.bf16.mxu0 %v1089
      %1435 = vmatpush2.bf16.msra.mxu0 %v1088
      %1436 = vmatprep.subr.bf16.mxu0 %v1085
      %1437 = vmatpush2.bf16.msra.mxu0 %v1084
      %1438 = vmatprep.subr.bf16.mxu0 %v1081
      %1439 = vmatpush2.bf16.msra.mxu0 %v1080
      %1440 = vmatprep.subr.bf16.mxu0 %v1077
      %1441 = vmatpush2.bf16.msra.mxu0 %v1076
      %1442 = vmatprep.subr.bf16.mxu0 %v1073
      %1443 = vmatpush2.bf16.msra.mxu0 %v1072
      %1444 = vmatprep.subr.bf16.mxu0 %v1069
      %1445 = vmatpush2.bf16.msra.mxu0 %v1068
      %1446 = vmatprep.subr.bf16.mxu0 %v1065
      %1447 = vmatpush2.bf16.msra.mxu0 %v1064
      %1448 = vmatprep.subr.bf16.mxu0 %v1061
      %1449 = vmatpush2.bf16.msra.mxu0 %v1060
      %1450 = vmatprep.mubr.bf16.mxu0 %v518
      %1451 = vmatmul.mubr.bf16.gmra.mxu0 %v511
      %v1452 = vpop.f32.mrf.mxu0
      %v1453 = vadd.f32 %v1412, %v1452
      %v1454 = vpop.f32.mrf.mxu0
      %v1455 = vadd.f32 %v1414, %v1454
      %v1456 = vpop.f32.mrf.mxu0
      %v1457 = vpop.f32.mrf.mxu0
      %1458 = vdwg.mxu0
      %1459 = vmatprep.subr.bf16.mxu0 0
      %1460 = vmatpush1.bf16.msra.mxu0 0
      %1461 = vmatprep.subr.bf16.mxu0 0
      %1462 = vmatpush1.bf16.msra.mxu0 0
      %1463 = vmatprep.subr.bf16.mxu0 0
      %1464 = vmatpush1.bf16.msra.mxu0 0
      %1465 = vmatprep.subr.bf16.mxu0 0
      %1466 = vmatpush1.bf16.msra.mxu0 0
      %1467 = vmatprep.subr.bf16.mxu0 %v1105
      %1468 = vmatpush1.bf16.msra.mxu0 %v1104
      %1469 = vmatprep.subr.bf16.mxu0 %v1101
      %1470 = vmatpush1.bf16.msra.mxu0 %v1100
      %1471 = vmatprep.subr.bf16.mxu0 %v1097
      %1472 = vmatpush1.bf16.msra.mxu0 %v1096
      %1473 = vmatprep.subr.bf16.mxu0 %v1093
      %1474 = vmatpush1.bf16.msra.mxu0 %v1092
      %1475 = vmatprep.subr.bf16.mxu0 0
      %1476 = vmatpush2.bf16.msra.mxu0 0
      %1477 = vmatprep.subr.bf16.mxu0 0
      %1478 = vmatpush2.bf16.msra.mxu0 0
      %1479 = vmatprep.subr.bf16.mxu0 0
      %1480 = vmatpush2.bf16.msra.mxu0 0
      %1481 = vmatprep.subr.bf16.mxu0 0
      %1482 = vmatpush2.bf16.msra.mxu0 0
      %1483 = vmatprep.subr.bf16.mxu0 0
      %1484 = vmatpush2.bf16.msra.mxu0 0
      %1485 = vmatprep.subr.bf16.mxu0 0
      %1486 = vmatpush2.bf16.msra.mxu0 0
      %1487 = vmatprep.subr.bf16.mxu0 0
      %1488 = vmatpush2.bf16.msra.mxu0 0
      %1489 = vmatprep.subr.bf16.mxu0 0
      %1490 = vmatpush2.bf16.msra.mxu0 0
      %1491 = vmatprep.mubr.bf16.mxu0 0
      %1492 = vmatmul.mubr.bf16.gmra.mxu0 %v1252
      %v1493 = vpop.f32.mrf.mxu0
      %v1494 = vadd.f32 %v1453, %v1493
      %v1495 = vpop.f32.mrf.mxu0
      %v1496 = vadd.f32 %v1455, %v1495
      %v1497 = vpop.f32.mrf.mxu0
      %v1498 = vpop.f32.mrf.mxu0
      %1499 = vdwg.mxu0
      %v1503 = vunpack.c.l.b16 %v172
      %v1504 = vunpack.c.h.b16 %v172
      %v1505 = vunpack.c.l.b16 %v173
      %v1506 = vunpack.c.h.b16 %v173
      %v1507 = vunpack.c.l.b16 %v174
      %v1508 = vpack.c.b16 %v1503, %v1503
      %v1509 = vpack.c.b16 %v1504, %v1504
      %v1510 = vpack.c.b16 %v1505, %v1505
      %v1511 = vpack.c.b16 %v1506, %v1506
      %v1512 = vpack.c.b16 %v1507, %v1507
      %v1661 = vunpack.c.l.b16 %v175
      %v1662 = vunpack.c.h.b16 %v175
      %v1663 = vunpack.c.l.b16 %v176
      %v1664 = vunpack.c.h.b16 %v176
      %v1665 = vunpack.c.l.b16 %v177
      %v1666 = vunpack.c.h.b16 %v177
      %v1667 = vunpack.c.l.b16 %v178
      %v1668 = vunpack.c.h.b16 %v178
      %v1669 = vunpack.c.l.b16 %v179
      %v1670 = vunpack.c.h.b16 %v179
      %v1671 = vunpack.c.l.b16 %v180
      %v1672 = vunpack.c.h.b16 %v180
      %v1673 = vunpack.c.l.b16 %v181
      %v1674 = vunpack.c.h.b16 %v181
      %v1675 = vunpack.c.l.b16 %v182
      %v1676 = vunpack.c.h.b16 %v182
      %v1677 = vunpack.c.l.b16 %v183
      %v1678 = vunpack.c.h.b16 %v183
      %v1679 = vunpack.c.l.b16 %v184
      %v1680 = vunpack.c.h.b16 %v184
      %v1681 = vunpack.c.l.b16 %v185
      %v1682 = vunpack.c.h.b16 %v185
      %v1683 = vunpack.c.l.b16 %v186
      %v1684 = vunpack.c.h.b16 %v186
      %v1685 = vunpack.c.l.b16 %v187
      %v1686 = vunpack.c.h.b16 %v187
      %v1687 = vunpack.c.l.b16 %v188
      %v1688 = vunpack.c.h.b16 %v188
      %v1689 = vunpack.c.l.b16 %v189
      %v1690 = vunpack.c.h.b16 %v189
      %v1691 = vunpack.c.l.b16 %v190
      %v1692 = vunpack.c.h.b16 %v190
      %v1693 = vunpack.c.l.b16 %v191
      %v1694 = vunpack.c.h.b16 %v191
      %v1695 = vunpack.c.l.b16 %v192
      %v1696 = vunpack.c.h.b16 %v192
      %v1697 = vunpack.c.l.b16 %v193
      %v1698 = vunpack.c.h.b16 %v193
      %v1699 = vunpack.c.l.b16 %v194
      %v1700 = vunpack.c.h.b16 %v194
      %v1701 = vunpack.c.l.b16 %v195
      %v1702 = vunpack.c.h.b16 %v195
      %v1703 = vunpack.c.l.b16 %v196
      %v1704 = vunpack.c.h.b16 %v196
      %v1705 = vunpack.c.l.b16 %v197
      %v1706 = vunpack.c.h.b16 %v197
      %v1707 = vunpack.c.l.b16 %v198
      %v1708 = vunpack.c.h.b16 %v198
      %v1709 = vunpack.c.l.b16 %v199
      %v1710 = vunpack.c.h.b16 %v199
      %v1711 = vunpack.c.l.b16 %v200
      %v1712 = vunpack.c.h.b16 %v200
      %v1713 = vunpack.c.l.b16 %v201
      %v1714 = vunpack.c.h.b16 %v201
      %v1715 = vunpack.c.l.b16 %v202
      %v1716 = vunpack.c.h.b16 %v202
      %v1717 = vunpack.c.l.b16 %v203
      %v1718 = vunpack.c.h.b16 %v203
      %v1719 = vunpack.c.l.b16 %v204
      %v1720 = vunpack.c.h.b16 %v204
      %v1721 = vunpack.c.l.b16 %v205
      %v1722 = vunpack.c.h.b16 %v205
      %v1723 = vunpack.c.l.b16 %v206
      %v1724 = vunpack.c.h.b16 %v206
      %v1725 = vunpack.c.l.b16 %v207
      %v1726 = vunpack.c.h.b16 %v207
      %v1727 = vunpack.c.l.b16 %v208
      %v1728 = vunpack.c.h.b16 %v208
      %v1729 = vunpack.c.l.b16 %v209
      %v1730 = vunpack.c.h.b16 %v209
      %v1731 = vunpack.c.l.b16 %v210
      %v1732 = vunpack.c.h.b16 %v210
      %v1733 = vunpack.c.l.b16 %v211
      %v1734 = vunpack.c.h.b16 %v211
      %v1735 = vunpack.c.l.b16 %v212
      %v1736 = vunpack.c.h.b16 %v212
      %v1737 = vunpack.c.l.b16 %v213
      %v1738 = vunpack.c.h.b16 %v213
      %v1739 = vunpack.c.l.b16 %v214
      %v1740 = vunpack.c.h.b16 %v214
      %v1741 = vunpack.c.l.b16 %v215
      %v1742 = vunpack.c.h.b16 %v215
      %v1743 = vunpack.c.l.b16 %v216
      %v1744 = vunpack.c.h.b16 %v216
      %v1745 = vunpack.c.l.b16 %v217
      %v1746 = vunpack.c.h.b16 %v217
      %v1747 = vunpack.c.l.b16 %v218
      %v1748 = vunpack.c.h.b16 %v218
      %v1749 = vunpack.c.l.b16 %v219
      %v1750 = vunpack.c.h.b16 %v219
      %v1751 = vunpack.c.l.b16 %v220
      %v1752 = vunpack.c.h.b16 %v220
      %v1753 = vunpack.c.l.b16 %v221
      %v1754 = vunpack.c.h.b16 %v221
      %v1755 = vunpack.c.l.b16 %v222
      %v1756 = vunpack.c.h.b16 %v222
      %v1757 = vunpack.c.l.b16 %v223
      %v1758 = vunpack.c.h.b16 %v223
      %v1759 = vunpack.c.l.b16 %v224
      %v1760 = vunpack.c.h.b16 %v224
      %v1761 = vunpack.c.l.b16 %v225
      %v1762 = vunpack.c.h.b16 %v225
      %v1763 = vunpack.c.l.b16 %v226
      %v1764 = vunpack.c.h.b16 %v226
      %v1765 = vunpack.c.l.b16 %v227
      %v1766 = vunpack.c.h.b16 %v227
      %v1767 = vunpack.c.l.b16 %v228
      %v1768 = vunpack.c.h.b16 %v228
      %v1769 = vunpack.c.l.b16 %v229
      %v1770 = vunpack.c.h.b16 %v229
      %v1771 = vunpack.c.l.b16 %v230
      %v1772 = vunpack.c.h.b16 %v230
      %v1773 = vunpack.c.l.b16 %v231
      %v1774 = vunpack.c.h.b16 %v231
      %v1775 = vunpack.c.l.b16 %v232
      %v1776 = vunpack.c.h.b16 %v232
      %v1777 = vunpack.c.l.b16 %v233
      %v1778 = vunpack.c.h.b16 %v233
      %v1779 = vunpack.c.l.b16 %v234
      %v1780 = vunpack.c.h.b16 %v234
      %v1781 = vunpack.c.l.b16 %v235
      %v1782 = vunpack.c.h.b16 %v235
      %v1783 = vunpack.c.l.b16 %v236
      %v1784 = vunpack.c.h.b16 %v236
      %v1785 = vunpack.c.l.b16 %v237
      %v1786 = vunpack.c.h.b16 %v237
      %v1787 = vunpack.c.l.b16 %v238
      %v1788 = vunpack.c.h.b16 %v238
      %v1789 = vunpack.c.l.b16 %v239
      %v1790 = vunpack.c.h.b16 %v239
      %v1791 = vunpack.c.l.b16 %v240
      %v1792 = vunpack.c.h.b16 %v240
      %v1793 = vunpack.c.l.b16 %v241
      %v1794 = vunpack.c.h.b16 %v241
      %v1795 = vunpack.c.l.b16 %v242
      %v1796 = vunpack.c.h.b16 %v242
      %v1797 = vunpack.c.l.b16 %v243
      %v1798 = vunpack.c.h.b16 %v243
      %v1799 = vunpack.c.l.b16 %v244
      %v1800 = vunpack.c.h.b16 %v244
      %v1801 = vunpack.c.l.b16 %v245
      %v1802 = vunpack.c.h.b16 %v245
      %v1803 = vunpack.c.l.b16 %v246
      %v1804 = vunpack.c.h.b16 %v246
      %v1805 = vunpack.c.l.b16 %v247
      %v1806 = vunpack.c.h.b16 %v247
      %v1807 = vunpack.c.l.b16 %v248
      %v1808 = vunpack.c.h.b16 %v248
      %v1809 = vunpack.c.l.b16 %v249
      %v1810 = vunpack.c.h.b16 %v249
      %v1811 = vunpack.c.l.b16 %v250
      %v1812 = vunpack.c.h.b16 %v250
      %v1813 = vunpack.c.l.b16 %v251
      %v1814 = vunpack.c.h.b16 %v251
      %v1815 = vunpack.c.l.b16 %v252
      %v1816 = vunpack.c.h.b16 %v252
      %v1817 = vunpack.c.l.b16 %v253
      %v1818 = vunpack.c.h.b16 %v253
      %v1819 = vunpack.c.l.b16 %v254
      %v1820 = vunpack.c.h.b16 %v254
      %v1821 = vunpack.c.l.b16 %v255
      %v1822 = vunpack.c.h.b16 %v255
      %v1823 = vunpack.c.l.b16 %v256
      %v1824 = vunpack.c.h.b16 %v256
      %v1825 = vunpack.c.l.b16 %v257
      %v1826 = vunpack.c.h.b16 %v257
      %v1827 = vunpack.c.l.b16 %v258
      %v1828 = vunpack.c.h.b16 %v258
      %v1829 = vunpack.c.l.b16 %v259
      %v1830 = vunpack.c.h.b16 %v259
      %v1831 = vunpack.c.l.b16 %v260
      %v1832 = vunpack.c.h.b16 %v260
      %v1833 = vunpack.c.l.b16 %v261
      %v1834 = vunpack.c.h.b16 %v261
      %v1835 = vunpack.c.l.b16 %v262
      %v1836 = vunpack.c.h.b16 %v262
      %v1837 = vunpack.c.l.b16 %v263
      %v1838 = vunpack.c.h.b16 %v263
      %v1839 = vunpack.c.l.b16 %v264
      %v1840 = vunpack.c.h.b16 %v264
      %v1841 = vunpack.c.l.b16 %v265
      %v1842 = vunpack.c.h.b16 %v265
      %v1843 = vunpack.c.l.b16 %v266
      %v1844 = vunpack.c.h.b16 %v266
      %v1845 = vunpack.c.l.b16 %v267
      %v1846 = vunpack.c.h.b16 %v267
      %v1847 = vunpack.c.l.b16 %v268
      %v1848 = vunpack.c.h.b16 %v268
      %v1849 = vunpack.c.l.b16 %v269
      %v1850 = vunpack.c.h.b16 %v269
      %v1851 = vunpack.c.l.b16 %v270
      %v1852 = vunpack.c.h.b16 %v270
      %v1853 = vunpack.c.l.b16 %v271
      %v1854 = vunpack.c.h.b16 %v271
      %v1855 = vunpack.c.l.b16 %v272
      %v1856 = vunpack.c.h.b16 %v272
      %v1857 = vunpack.c.l.b16 %v273
      %v1858 = vunpack.c.h.b16 %v273
      %v1859 = vunpack.c.l.b16 %v274
      %v1860 = vunpack.c.h.b16 %v274
      %v1861 = vunpack.c.l.b16 %v275
      %v1862 = vunpack.c.h.b16 %v275
      %v1863 = vunpack.c.l.b16 %v276
      %v1864 = vunpack.c.h.b16 %v276
      %v1865 = vunpack.c.l.b16 %v277
      %v1866 = vunpack.c.h.b16 %v277
      %v1867 = vunpack.c.l.b16 %v278
      %v1868 = vunpack.c.h.b16 %v278
      %v1869 = vunpack.c.l.b16 %v279
      %v1870 = vunpack.c.h.b16 %v279
      %v1871 = vunpack.c.l.b16 %v280
      %v1872 = vunpack.c.h.b16 %v280
      %v1873 = vunpack.c.l.b16 %v281
      %v1874 = vunpack.c.h.b16 %v281
      %v1875 = vunpack.c.l.b16 %v282
      %v1876 = vunpack.c.h.b16 %v282
      %v1877 = vunpack.c.l.b16 %v283
      %v1878 = vunpack.c.h.b16 %v283
      %v1879 = vunpack.c.l.b16 %v284
      %v1880 = vunpack.c.h.b16 %v284
      %v1881 = vunpack.c.l.b16 %v285
      %v1882 = vunpack.c.h.b16 %v285
      %v1883 = vunpack.c.l.b16 %v286
      %v1884 = vunpack.c.h.b16 %v286
      %v1885 = vunpack.c.l.b16 %v287
      %v1886 = vunpack.c.h.b16 %v287
      %v1887 = vunpack.c.l.b16 %v288
      %v1888 = vunpack.c.h.b16 %v288
      %v1889 = vunpack.c.l.b16 %v289
      %v1890 = vunpack.c.h.b16 %v289
      %v1891 = vunpack.c.l.b16 %v290
      %v1892 = vunpack.c.h.b16 %v290
      %v1893 = vunpack.c.l.b16 %v291
      %v1894 = vunpack.c.h.b16 %v291
      %v1895 = vunpack.c.l.b16 %v292
      %v1896 = vunpack.c.h.b16 %v292
      %v1897 = vunpack.c.l.b16 %v293
      %v1898 = vunpack.c.h.b16 %v293
      %v1899 = vunpack.c.l.b16 %v294
      %v1900 = vunpack.c.h.b16 %v294
      %v1901 = vunpack.c.l.b16 %v295
      %v1902 = vunpack.c.h.b16 %v295
      %v1903 = vunpack.c.l.b16 %v296
      %v1904 = vunpack.c.h.b16 %v296
      %v1905 = vunpack.c.l.b16 %v297
      %v1906 = vunpack.c.h.b16 %v297
      %v1907 = vunpack.c.l.b16 %v298
      %v1908 = vunpack.c.h.b16 %v298
      %v1909 = vunpack.c.l.b16 %v299
      %v1910 = vunpack.c.h.b16 %v299
      %v1911 = vunpack.c.l.b16 %v300
      %v1912 = vunpack.c.h.b16 %v300
      %v1913 = vunpack.c.l.b16 %v301
      %v1914 = vunpack.c.h.b16 %v301
      %v1915 = vunpack.c.l.b16 %v302
      %v1916 = vunpack.c.h.b16 %v302
      %v1917 = vunpack.c.l.b16 %v303
      %v1918 = vunpack.c.h.b16 %v303
      %v1919 = vunpack.c.l.b16 %v304
      %v1920 = vunpack.c.h.b16 %v304
      %v1921 = vunpack.c.l.b16 %v305
      %v1922 = vunpack.c.h.b16 %v305
      %v1923 = vunpack.c.l.b16 %v306
      %v1924 = vunpack.c.h.b16 %v306
      %v1925 = vunpack.c.l.b16 %v307
      %v1926 = vunpack.c.h.b16 %v307
      %v1927 = vunpack.c.l.b16 %v308
      %v1928 = vunpack.c.h.b16 %v308
      %v1929 = vunpack.c.l.b16 %v309
      %v1930 = vunpack.c.h.b16 %v309
      %v1931 = vunpack.c.l.b16 %v310
      %v1932 = vunpack.c.h.b16 %v310
      %v1933 = vunpack.c.l.b16 %v311
      %v1934 = vunpack.c.h.b16 %v311
      %v1935 = vunpack.c.l.b16 %v312
      %v1936 = vunpack.c.h.b16 %v312
      %v1937 = vunpack.c.l.b16 %v313
      %v1938 = vunpack.c.h.b16 %v313
      %v1939 = vunpack.c.l.b16 %v314
      %v1940 = vunpack.c.h.b16 %v314
      %v1941 = vunpack.c.l.b16 %v315
      %v1942 = vunpack.c.h.b16 %v315
      %v1943 = vunpack.c.l.b16 %v316
      %v1944 = vunpack.c.h.b16 %v316
      %v1945 = vunpack.c.l.b16 %v317
      %v1946 = vunpack.c.h.b16 %v317
      %v1947 = vunpack.c.l.b16 %v318
      %v1948 = vunpack.c.h.b16 %v318
      %v1949 = vpack.c.b16 %v1665, %v1661
      %v1950 = vpack.c.b16 %v1666, %v1662
      %v1951 = vpack.c.b16 %v1667, %v1663
      %v1952 = vpack.c.b16 %v1668, %v1664
      %v1953 = vpack.c.b16 %v1673, %v1669
      %v1954 = vpack.c.b16 %v1674, %v1670
      %v1955 = vpack.c.b16 %v1675, %v1671
      %v1956 = vpack.c.b16 %v1676, %v1672
      %v1957 = vpack.c.b16 %v1681, %v1677
      %v1958 = vpack.c.b16 %v1682, %v1678
      %v1959 = vpack.c.b16 %v1683, %v1679
      %v1960 = vpack.c.b16 %v1684, %v1680
      %v1961 = vpack.c.b16 %v1689, %v1685
      %v1962 = vpack.c.b16 %v1690, %v1686
      %v1963 = vpack.c.b16 %v1691, %v1687
      %v1964 = vpack.c.b16 %v1692, %v1688
      %v1965 = vpack.c.b16 %v1697, %v1693
      %v1966 = vpack.c.b16 %v1698, %v1694
      %v1967 = vpack.c.b16 %v1699, %v1695
      %v1968 = vpack.c.b16 %v1700, %v1696
      %v1969 = vpack.c.b16 %v1705, %v1701
      %v1970 = vpack.c.b16 %v1706, %v1702
      %v1971 = vpack.c.b16 %v1707, %v1703
      %v1972 = vpack.c.b16 %v1708, %v1704
      %v1973 = vpack.c.b16 %v1713, %v1709
      %v1974 = vpack.c.b16 %v1714, %v1710
      %v1975 = vpack.c.b16 %v1715, %v1711
      %v1976 = vpack.c.b16 %v1716, %v1712
      %v1977 = vpack.c.b16 %v1721, %v1717
      %v1978 = vpack.c.b16 %v1722, %v1718
      %v1979 = vpack.c.b16 %v1723, %v1719
      %v1980 = vpack.c.b16 %v1724, %v1720
      %v1981 = vpack.c.b16 %v1729, %v1725
      %v1982 = vpack.c.b16 %v1730, %v1726
      %v1983 = vpack.c.b16 %v1731, %v1727
      %v1984 = vpack.c.b16 %v1732, %v1728
      %v1985 = vpack.c.b16 %v1737, %v1733
      %v1986 = vpack.c.b16 %v1738, %v1734
      %v1987 = vpack.c.b16 %v1739, %v1735
      %v1988 = vpack.c.b16 %v1740, %v1736
      %v1989 = vpack.c.b16 %v1745, %v1741
      %v1990 = vpack.c.b16 %v1746, %v1742
      %v1991 = vpack.c.b16 %v1747, %v1743
      %v1992 = vpack.c.b16 %v1748, %v1744
      %v1993 = vpack.c.b16 %v1753, %v1749
      %v1994 = vpack.c.b16 %v1754, %v1750
      %v1995 = vpack.c.b16 %v1755, %v1751
      %v1996 = vpack.c.b16 %v1756, %v1752
      %v1997 = vpack.c.b16 %v1761, %v1757
      %v1998 = vpack.c.b16 %v1762, %v1758
      %v1999 = vpack.c.b16 %v1763, %v1759
      %v2000 = vpack.c.b16 %v1764, %v1760
      %v2001 = vpack.c.b16 %v1769, %v1765
      %v2002 = vpack.c.b16 %v1770, %v1766
      %v2003 = vpack.c.b16 %v1771, %v1767
      %v2004 = vpack.c.b16 %v1772, %v1768
      %v2005 = vpack.c.b16 %v1777, %v1773
      %v2006 = vpack.c.b16 %v1778, %v1774
      %v2007 = vpack.c.b16 %v1779, %v1775
      %v2008 = vpack.c.b16 %v1780, %v1776
      %v2009 = vpack.c.b16 %v1785, %v1781
      %v2010 = vpack.c.b16 %v1786, %v1782
      %v2011 = vpack.c.b16 %v1787, %v1783
      %v2012 = vpack.c.b16 %v1788, %v1784
      %v2013 = vpack.c.b16 %v1793, %v1789
      %v2014 = vpack.c.b16 %v1794, %v1790
      %v2015 = vpack.c.b16 %v1795, %v1791
      %v2016 = vpack.c.b16 %v1796, %v1792
      %v2017 = vpack.c.b16 %v1801, %v1797
      %v2018 = vpack.c.b16 %v1802, %v1798
      %v2019 = vpack.c.b16 %v1803, %v1799
      %v2020 = vpack.c.b16 %v1804, %v1800
      %v2021 = vpack.c.b16 %v1809, %v1805
      %v2022 = vpack.c.b16 %v1810, %v1806
      %v2023 = vpack.c.b16 %v1811, %v1807
      %v2024 = vpack.c.b16 %v1812, %v1808
      %v2025 = vpack.c.b16 %v1817, %v1813
      %v2026 = vpack.c.b16 %v1818, %v1814
      %v2027 = vpack.c.b16 %v1819, %v1815
      %v2028 = vpack.c.b16 %v1820, %v1816
      %v2029 = vpack.c.b16 %v1825, %v1821
      %v2030 = vpack.c.b16 %v1826, %v1822
      %v2031 = vpack.c.b16 %v1827, %v1823
      %v2032 = vpack.c.b16 %v1828, %v1824
      %v2033 = vpack.c.b16 %v1833, %v1829
      %v2034 = vpack.c.b16 %v1834, %v1830
      %v2035 = vpack.c.b16 %v1835, %v1831
      %v2036 = vpack.c.b16 %v1836, %v1832
      %v2037 = vpack.c.b16 %v1841, %v1837
      %v2038 = vpack.c.b16 %v1842, %v1838
      %v2039 = vpack.c.b16 %v1843, %v1839
      %v2040 = vpack.c.b16 %v1844, %v1840
      %v2041 = vpack.c.b16 %v1849, %v1845
      %v2042 = vpack.c.b16 %v1850, %v1846
      %v2043 = vpack.c.b16 %v1851, %v1847
      %v2044 = vpack.c.b16 %v1852, %v1848
      %v2045 = vpack.c.b16 %v1857, %v1853
      %v2046 = vpack.c.b16 %v1858, %v1854
      %v2047 = vpack.c.b16 %v1859, %v1855
      %v2048 = vpack.c.b16 %v1860, %v1856
      %v2049 = vpack.c.b16 %v1865, %v1861
      %v2050 = vpack.c.b16 %v1866, %v1862
      %v2051 = vpack.c.b16 %v1867, %v1863
      %v2052 = vpack.c.b16 %v1868, %v1864
      %v2053 = vpack.c.b16 %v1873, %v1869
      %v2054 = vpack.c.b16 %v1874, %v1870
      %v2055 = vpack.c.b16 %v1875, %v1871
      %v2056 = vpack.c.b16 %v1876, %v1872
      %v2057 = vpack.c.b16 %v1881, %v1877
      %v2058 = vpack.c.b16 %v1882, %v1878
      %v2059 = vpack.c.b16 %v1883, %v1879
      %v2060 = vpack.c.b16 %v1884, %v1880
      %v2061 = vpack.c.b16 %v1889, %v1885
      %v2062 = vpack.c.b16 %v1890, %v1886
      %v2063 = vpack.c.b16 %v1891, %v1887
      %v2064 = vpack.c.b16 %v1892, %v1888
      %v2065 = vpack.c.b16 %v1897, %v1893
      %v2066 = vpack.c.b16 %v1898, %v1894
      %v2067 = vpack.c.b16 %v1899, %v1895
      %v2068 = vpack.c.b16 %v1900, %v1896
      %v2069 = vpack.c.b16 %v1905, %v1901
      %v2070 = vpack.c.b16 %v1906, %v1902
      %v2071 = vpack.c.b16 %v1907, %v1903
      %v2072 = vpack.c.b16 %v1908, %v1904
      %v2073 = vpack.c.b16 %v1913, %v1909
      %v2074 = vpack.c.b16 %v1914, %v1910
      %v2075 = vpack.c.b16 %v1915, %v1911
      %v2076 = vpack.c.b16 %v1916, %v1912
      %v2077 = vpack.c.b16 %v1921, %v1917
      %v2078 = vpack.c.b16 %v1922, %v1918
      %v2079 = vpack.c.b16 %v1923, %v1919
      %v2080 = vpack.c.b16 %v1924, %v1920
      %v2081 = vpack.c.b16 %v1929, %v1925
      %v2082 = vpack.c.b16 %v1930, %v1926
      %v2083 = vpack.c.b16 %v1931, %v1927
      %v2084 = vpack.c.b16 %v1932, %v1928
      %v2085 = vpack.c.b16 %v1937, %v1933
      %v2086 = vpack.c.b16 %v1938, %v1934
      %v2087 = vpack.c.b16 %v1939, %v1935
      %v2088 = vpack.c.b16 %v1940, %v1936
      %v2089 = vpack.c.b16 %v1945, %v1941
      %v2090 = vpack.c.b16 %v1946, %v1942
      %v2091 = vpack.c.b16 %v1947, %v1943
      %v2092 = vpack.c.b16 %v1948, %v1944
      %v2238 = vsel %vm1250, %v1512, 0
      %2240 = vmatprep.subr.bf16.mxu0 %v1978
      %2241 = vmatpush1.bf16.msra.mxu0 %v1977
      %2242 = vmatprep.subr.bf16.mxu0 %v1974
      %2243 = vmatpush1.bf16.msra.mxu0 %v1973
      %2244 = vmatprep.subr.bf16.mxu0 %v1970
      %2245 = vmatpush1.bf16.msra.mxu0 %v1969
      %2246 = vmatprep.subr.bf16.mxu0 %v1966
      %2247 = vmatpush1.bf16.msra.mxu0 %v1965
      %2248 = vmatprep.subr.bf16.mxu0 %v1962
      %2249 = vmatpush1.bf16.msra.mxu0 %v1961
      %2250 = vmatprep.subr.bf16.mxu0 %v1958
      %2251 = vmatpush1.bf16.msra.mxu0 %v1957
      %2252 = vmatprep.subr.bf16.mxu0 %v1954
      %2253 = vmatpush1.bf16.msra.mxu0 %v1953
      %2254 = vmatprep.subr.bf16.mxu0 %v1950
      %2255 = vmatpush1.bf16.msra.mxu0 %v1949
      %2256 = vmatprep.subr.bf16.mxu0 %v2010
      %2257 = vmatpush2.bf16.msra.mxu0 %v2009
      %2258 = vmatprep.subr.bf16.mxu0 %v2006
      %2259 = vmatpush2.bf16.msra.mxu0 %v2005
      %2260 = vmatprep.subr.bf16.mxu0 %v2002
      %2261 = vmatpush2.bf16.msra.mxu0 %v2001
      %2262 = vmatprep.subr.bf16.mxu0 %v1998
      %2263 = vmatpush2.bf16.msra.mxu0 %v1997
      %2264 = vmatprep.subr.bf16.mxu0 %v1994
      %2265 = vmatpush2.bf16.msra.mxu0 %v1993
      %2266 = vmatprep.subr.bf16.mxu0 %v1990
      %2267 = vmatpush2.bf16.msra.mxu0 %v1989
      %2268 = vmatprep.subr.bf16.mxu0 %v1986
      %2269 = vmatpush2.bf16.msra.mxu0 %v1985
      %2270 = vmatprep.subr.bf16.mxu0 %v1982
      %2271 = vmatpush2.bf16.msra.mxu0 %v1981
      %2272 = vmatprep.mubr.bf16.mxu0 %v1509
      %2273 = vmatmul.mubr.bf16.gmra.mxu0 %v1508
      %v2274 = vpop.f32.mrf.mxu0
      %v2275 = vadd.f32 %v1371, %v2274
      %v2276 = vpop.f32.mrf.mxu0
      %v2277 = vadd.f32 %v1373, %v2276
      %v2278 = vpop.f32.mrf.mxu0
      %v2279 = vpop.f32.mrf.mxu0
      %2280 = vdwg.mxu0
      %2281 = vmatprep.subr.bf16.mxu0 %v2042
      %2282 = vmatpush1.bf16.msra.mxu0 %v2041
      %2283 = vmatprep.subr.bf16.mxu0 %v2038
      %2284 = vmatpush1.bf16.msra.mxu0 %v2037
      %2285 = vmatprep.subr.bf16.mxu0 %v2034
      %2286 = vmatpush1.bf16.msra.mxu0 %v2033
      %2287 = vmatprep.subr.bf16.mxu0 %v2030
      %2288 = vmatpush1.bf16.msra.mxu0 %v2029
      %2289 = vmatprep.subr.bf16.mxu0 %v2026
      %2290 = vmatpush1.bf16.msra.mxu0 %v2025
      %2291 = vmatprep.subr.bf16.mxu0 %v2022
      %2292 = vmatpush1.bf16.msra.mxu0 %v2021
      %2293 = vmatprep.subr.bf16.mxu0 %v2018
      %2294 = vmatpush1.bf16.msra.mxu0 %v2017
      %2295 = vmatprep.subr.bf16.mxu0 %v2014
      %2296 = vmatpush1.bf16.msra.mxu0 %v2013
      %2297 = vmatprep.subr.bf16.mxu0 %v2074
      %2298 = vmatpush2.bf16.msra.mxu0 %v2073
      %2299 = vmatprep.subr.bf16.mxu0 %v2070
      %2300 = vmatpush2.bf16.msra.mxu0 %v2069
      %2301 = vmatprep.subr.bf16.mxu0 %v2066
      %2302 = vmatpush2.bf16.msra.mxu0 %v2065
      %2303 = vmatprep.subr.bf16.mxu0 %v2062
      %2304 = vmatpush2.bf16.msra.mxu0 %v2061
      %2305 = vmatprep.subr.bf16.mxu0 %v2058
      %2306 = vmatpush2.bf16.msra.mxu0 %v2057
      %2307 = vmatprep.subr.bf16.mxu0 %v2054
      %2308 = vmatpush2.bf16.msra.mxu0 %v2053
      %2309 = vmatprep.subr.bf16.mxu0 %v2050
      %2310 = vmatpush2.bf16.msra.mxu0 %v2049
      %2311 = vmatprep.subr.bf16.mxu0 %v2046
      %2312 = vmatpush2.bf16.msra.mxu0 %v2045
      %2313 = vmatprep.mubr.bf16.mxu0 %v1511
      %2314 = vmatmul.mubr.bf16.gmra.mxu0 %v1510
      %v2315 = vpop.f32.mrf.mxu0
      %v2316 = vadd.f32 %v2275, %v2315
      %v2317 = vpop.f32.mrf.mxu0
      %v2318 = vadd.f32 %v2277, %v2317
      %v2319 = vpop.f32.mrf.mxu0
      %v2320 = vpop.f32.mrf.mxu0
      %2321 = vdwg.mxu0
      %2322 = vmatprep.subr.bf16.mxu0 0
      %2323 = vmatpush1.bf16.msra.mxu0 0
      %2324 = vmatprep.subr.bf16.mxu0 0
      %2325 = vmatpush1.bf16.msra.mxu0 0
      %2326 = vmatprep.subr.bf16.mxu0 0
      %2327 = vmatpush1.bf16.msra.mxu0 0
      %2328 = vmatprep.subr.bf16.mxu0 0
      %2329 = vmatpush1.bf16.msra.mxu0 0
      %2330 = vmatprep.subr.bf16.mxu0 %v2090
      %2331 = vmatpush1.bf16.msra.mxu0 %v2089
      %2332 = vmatprep.subr.bf16.mxu0 %v2086
      %2333 = vmatpush1.bf16.msra.mxu0 %v2085
      %2334 = vmatprep.subr.bf16.mxu0 %v2082
      %2335 = vmatpush1.bf16.msra.mxu0 %v2081
      %2336 = vmatprep.subr.bf16.mxu0 %v2078
      %2337 = vmatpush1.bf16.msra.mxu0 %v2077
      %2338 = vmatprep.subr.bf16.mxu0 0
      %2339 = vmatpush2.bf16.msra.mxu0 0
      %2340 = vmatprep.subr.bf16.mxu0 0
      %2341 = vmatpush2.bf16.msra.mxu0 0
      %2342 = vmatprep.subr.bf16.mxu0 0
      %2343 = vmatpush2.bf16.msra.mxu0 0
      %2344 = vmatprep.subr.bf16.mxu0 0
      %2345 = vmatpush2.bf16.msra.mxu0 0
      %2346 = vmatprep.subr.bf16.mxu0 0
      %2347 = vmatpush2.bf16.msra.mxu0 0
      %2348 = vmatprep.subr.bf16.mxu0 0
      %2349 = vmatpush2.bf16.msra.mxu0 0
      %2350 = vmatprep.subr.bf16.mxu0 0
      %2351 = vmatpush2.bf16.msra.mxu0 0
      %2352 = vmatprep.subr.bf16.mxu0 0
      %2353 = vmatpush2.bf16.msra.mxu0 0
      %2354 = vmatprep.mubr.bf16.mxu0 0
      %2355 = vmatmul.mubr.bf16.gmra.mxu0 %v2238
      %v2356 = vpop.f32.mrf.mxu0
      %v2357 = vadd.f32 %v2316, %v2356
      %v2358 = vpop.f32.mrf.mxu0
      %v2359 = vadd.f32 %v2318, %v2358
      %v2360 = vpop.f32.mrf.mxu0
      %v2361 = vpop.f32.mrf.mxu0
      %2362 = vdwg.mxu0
      %2363 = vmatprep.subr.bf16.mxu0 %v1980
      %2364 = vmatpush1.bf16.msra.mxu0 %v1979
      %2365 = vmatprep.subr.bf16.mxu0 %v1976
      %2366 = vmatpush1.bf16.msra.mxu0 %v1975
      %2367 = vmatprep.subr.bf16.mxu0 %v1972
      %2368 = vmatpush1.bf16.msra.mxu0 %v1971
      %2369 = vmatprep.subr.bf16.mxu0 %v1968
      %2370 = vmatpush1.bf16.msra.mxu0 %v1967
      %2371 = vmatprep.subr.bf16.mxu0 %v1964
      %2372 = vmatpush1.bf16.msra.mxu0 %v1963
      %2373 = vmatprep.subr.bf16.mxu0 %v1960
      %2374 = vmatpush1.bf16.msra.mxu0 %v1959
      %2375 = vmatprep.subr.bf16.mxu0 %v1956
      %2376 = vmatpush1.bf16.msra.mxu0 %v1955
      %2377 = vmatprep.subr.bf16.mxu0 %v1952
      %2378 = vmatpush1.bf16.msra.mxu0 %v1951
      %2379 = vmatprep.subr.bf16.mxu0 %v2012
      %2380 = vmatpush2.bf16.msra.mxu0 %v2011
      %2381 = vmatprep.subr.bf16.mxu0 %v2008
      %2382 = vmatpush2.bf16.msra.mxu0 %v2007
      %2383 = vmatprep.subr.bf16.mxu0 %v2004
      %2384 = vmatpush2.bf16.msra.mxu0 %v2003
      %2385 = vmatprep.subr.bf16.mxu0 %v2000
      %2386 = vmatpush2.bf16.msra.mxu0 %v1999
      %2387 = vmatprep.subr.bf16.mxu0 %v1996
      %2388 = vmatpush2.bf16.msra.mxu0 %v1995
      %2389 = vmatprep.subr.bf16.mxu0 %v1992
      %2390 = vmatpush2.bf16.msra.mxu0 %v1991
      %2391 = vmatprep.subr.bf16.mxu0 %v1988
      %2392 = vmatpush2.bf16.msra.mxu0 %v1987
      %2393 = vmatprep.subr.bf16.mxu0 %v1984
      %2394 = vmatpush2.bf16.msra.mxu0 %v1983
      %2395 = vmatprep.mubr.bf16.mxu0 %v1509
      %2396 = vmatmul.mubr.bf16.gmra.mxu0 %v1508
      %v2397 = vpop.f32.mrf.mxu0
      %v2398 = vadd.f32 %v1494, %v2397
      %v2399 = vpop.f32.mrf.mxu0
      %v2400 = vadd.f32 %v1496, %v2399
      %v2401 = vpop.f32.mrf.mxu0
      %v2402 = vpop.f32.mrf.mxu0
      %2403 = vdwg.mxu0
      %2404 = vmatprep.subr.bf16.mxu0 %v2044
      %2405 = vmatpush1.bf16.msra.mxu0 %v2043
      %2406 = vmatprep.subr.bf16.mxu0 %v2040
      %2407 = vmatpush1.bf16.msra.mxu0 %v2039
      %2408 = vmatprep.subr.bf16.mxu0 %v2036
      %2409 = vmatpush1.bf16.msra.mxu0 %v2035
      %2410 = vmatprep.subr.bf16.mxu0 %v2032
      %2411 = vmatpush1.bf16.msra.mxu0 %v2031
      %2412 = vmatprep.subr.bf16.mxu0 %v2028
      %2413 = vmatpush1.bf16.msra.mxu0 %v2027
      %2414 = vmatprep.subr.bf16.mxu0 %v2024
      %2415 = vmatpush1.bf16.msra.mxu0 %v2023
      %2416 = vmatprep.subr.bf16.mxu0 %v2020
      %2417 = vmatpush1.bf16.msra.mxu0 %v2019
      %2418 = vmatprep.subr.bf16.mxu0 %v2016
      %2419 = vmatpush1.bf16.msra.mxu0 %v2015
      %2420 = vmatprep.subr.bf16.mxu0 %v2076
      %2421 = vmatpush2.bf16.msra.mxu0 %v2075
      %2422 = vmatprep.subr.bf16.mxu0 %v2072
      %2423 = vmatpush2.bf16.msra.mxu0 %v2071
      %2424 = vmatprep.subr.bf16.mxu0 %v2068
      %2425 = vmatpush2.bf16.msra.mxu0 %v2067
      %2426 = vmatprep.subr.bf16.mxu0 %v2064
      %2427 = vmatpush2.bf16.msra.mxu0 %v2063
      %2428 = vmatprep.subr.bf16.mxu0 %v2060
      %2429 = vmatpush2.bf16.msra.mxu0 %v2059
      %2430 = vmatprep.subr.bf16.mxu0 %v2056
      %2431 = vmatpush2.bf16.msra.mxu0 %v2055
      %2432 = vmatprep.subr.bf16.mxu0 %v2052
      %2433 = vmatpush2.bf16.msra.mxu0 %v2051
      %2434 = vmatprep.subr.bf16.mxu0 %v2048
      %2435 = vmatpush2.bf16.msra.mxu0 %v2047
      %2436 = vmatprep.mubr.bf16.mxu0 %v1511
      %2437 = vmatmul.mubr.bf16.gmra.mxu0 %v1510
      %v2438 = vpop.f32.mrf.mxu0
      %v2439 = vadd.f32 %v2398, %v2438
      %v2440 = vpop.f32.mrf.mxu0
      %v2441 = vadd.f32 %v2400, %v2440
      %v2442 = vpop.f32.mrf.mxu0
      %v2443 = vpop.f32.mrf.mxu0
      %2444 = vdwg.mxu0
      %2445 = vmatprep.subr.bf16.mxu0 0
      %2446 = vmatpush1.bf16.msra.mxu0 0
      %2447 = vmatprep.subr.bf16.mxu0 0
      %2448 = vmatpush1.bf16.msra.mxu0 0
      %2449 = vmatprep.subr.bf16.mxu0 0
      %2450 = vmatpush1.bf16.msra.mxu0 0
      %2451 = vmatprep.subr.bf16.mxu0 0
      %2452 = vmatpush1.bf16.msra.mxu0 0
      %2453 = vmatprep.subr.bf16.mxu0 %v2092
      %2454 = vmatpush1.bf16.msra.mxu0 %v2091
      %2455 = vmatprep.subr.bf16.mxu0 %v2088
      %2456 = vmatpush1.bf16.msra.mxu0 %v2087
      %2457 = vmatprep.subr.bf16.mxu0 %v2084
      %2458 = vmatpush1.bf16.msra.mxu0 %v2083
      %2459 = vmatprep.subr.bf16.mxu0 %v2080
      %2460 = vmatpush1.bf16.msra.mxu0 %v2079
      %2461 = vmatprep.subr.bf16.mxu0 0
      %2462 = vmatpush2.bf16.msra.mxu0 0
      %2463 = vmatprep.subr.bf16.mxu0 0
      %2464 = vmatpush2.bf16.msra.mxu0 0
      %2465 = vmatprep.subr.bf16.mxu0 0
      %2466 = vmatpush2.bf16.msra.mxu0 0
      %2467 = vmatprep.subr.bf16.mxu0 0
      %2468 = vmatpush2.bf16.msra.mxu0 0
      %2469 = vmatprep.subr.bf16.mxu0 0
      %2470 = vmatpush2.bf16.msra.mxu0 0
      %2471 = vmatprep.subr.bf16.mxu0 0
      %2472 = vmatpush2.bf16.msra.mxu0 0
      %2473 = vmatprep.subr.bf16.mxu0 0
      %2474 = vmatpush2.bf16.msra.mxu0 0
      %2475 = vmatprep.subr.bf16.mxu0 0
      %2476 = vmatpush2.bf16.msra.mxu0 0
      %2477 = vmatprep.mubr.bf16.mxu0 0
      %2478 = vmatmul.mubr.bf16.gmra.mxu0 %v2238
      %v2479 = vpop.f32.mrf.mxu0
      %v2480 = vadd.f32 %v2439, %v2479
      %v2481 = vpop.f32.mrf.mxu0
      %v2482 = vadd.f32 %v2441, %v2481
      %v2483 = vpop.f32.mrf.mxu0
      %v2484 = vpop.f32.mrf.mxu0
      %2485 = vdwg.mxu0
      %v2486 = vld [vmem:[%s165] sm:$0xff]
      %v2487 = vld [vmem:[%s165 + $0x8] sm:$0xff]
      %v2488 = vld [vmem:[%s165 + $0x10] sm:$0xf]
      %v2489 = vld [vmem:[%s165 + $0x14] sm:$0x11]
      %v2490 = vld [vmem:[%s165 + $0x1c] sm:$0x11]
      %v2491 = vld [vmem:[%s165 + $0x24] sm:$0x1]
      %s2492 = scalar_lea.vmem %s1, 2304
      %v2493 = vld [vmem:[%s2492] sm:$0xff]
      %v2494 = vld [vmem:[%s2492 + $0x8] sm:$0xff]
      %v2495 = vld [vmem:[%s2492 + $0x10] sm:$0xff]
      %v2496 = vld [vmem:[%s2492 + $0x18] sm:$0xff]
      %v2497 = vld [vmem:[%s2492 + $0x20] sm:$0xff]
      %v2498 = vld [vmem:[%s2492 + $0x28] sm:$0xff]
      %v2499 = vld [vmem:[%s2492 + $0x30] sm:$0xff]
      %v2500 = vld [vmem:[%s2492 + $0x38] sm:$0xff]
      %v2501 = vld [vmem:[%s2492 + $0x40] sm:$0xff]
      %v2502 = vld [vmem:[%s2492 + $0x48] sm:$0xff]
      %v2503 = vld [vmem:[%s2492 + $0x50] sm:$0xff]
      %v2504 = vld [vmem:[%s2492 + $0x58] sm:$0xff]
      %v2505 = vld [vmem:[%s2492 + $0x60] sm:$0xff]
      %v2506 = vld [vmem:[%s2492 + $0x68] sm:$0xff]
      %v2507 = vld [vmem:[%s2492 + $0x70] sm:$0xff]
      %v2508 = vld [vmem:[%s2492 + $0x78] sm:$0xff]
      %v2509 = vld [vmem:[%s2492 + $0x80] sm:$0xff]
      %v2510 = vld [vmem:[%s2492 + $0x88] sm:$0xff]
      %v2511 = vld [vmem:[%s2492 + $0x90] sm:$0xff]
      %v2512 = vld [vmem:[%s2492 + $0x98] sm:$0xff]
      %v2513 = vld [vmem:[%s2492 + $0xa0] sm:$0xff]
      %v2514 = vld [vmem:[%s2492 + $0xa8] sm:$0xff]
      %v2515 = vld [vmem:[%s2492 + $0xb0] sm:$0xff]
      %v2516 = vld [vmem:[%s2492 + $0xb8] sm:$0xff]
      %v2517 = vld [vmem:[%s2492 + $0xc0] sm:$0xff]
      %v2518 = vld [vmem:[%s2492 + $0xc8] sm:$0xff]
      %v2519 = vld [vmem:[%s2492 + $0xd0] sm:$0xff]
      %v2520 = vld [vmem:[%s2492 + $0xd8] sm:$0xff]
      %v2521 = vld [vmem:[%s2492 + $0xe0] sm:$0xff]
      %v2522 = vld [vmem:[%s2492 + $0xe8] sm:$0xff]
      %v2523 = vld [vmem:[%s2492 + $0xf0] sm:$0xff]
      %v2524 = vld [vmem:[%s2492 + $0xf8] sm:$0xff]
      %v2525 = vld [vmem:[%s2492 + $0x100] sm:$0xff]
      %v2526 = vld [vmem:[%s2492 + $0x108] sm:$0xff]
      %v2527 = vld [vmem:[%s2492 + $0x110] sm:$0xff]
      %v2528 = vld [vmem:[%s2492 + $0x118] sm:$0xff]
      %v2529 = vld [vmem:[%s2492 + $0x120] sm:$0xff]
      %v2530 = vld [vmem:[%s2492 + $0x128] sm:$0xff]
      %v2531 = vld [vmem:[%s2492 + $0x130] sm:$0xff]
      %v2532 = vld [vmem:[%s2492 + $0x138] sm:$0xff]
      %v2533 = vld [vmem:[%s2492 + $0x140] sm:$0xff]
      %v2534 = vld [vmem:[%s2492 + $0x148] sm:$0xff]
      %v2535 = vld [vmem:[%s2492 + $0x150] sm:$0xff]
      %v2536 = vld [vmem:[%s2492 + $0x158] sm:$0xff]
      %v2537 = vld [vmem:[%s2492 + $0x160] sm:$0xff]
      %v2538 = vld [vmem:[%s2492 + $0x168] sm:$0xff]
      %v2539 = vld [vmem:[%s2492 + $0x170] sm:$0xff]
      %v2540 = vld [vmem:[%s2492 + $0x178] sm:$0xff]
      %v2541 = vld [vmem:[%s2492 + $0x180] sm:$0xff]
      %v2542 = vld [vmem:[%s2492 + $0x188] sm:$0xff]
      %v2543 = vld [vmem:[%s2492 + $0x190] sm:$0xff]
      %v2544 = vld [vmem:[%s2492 + $0x198] sm:$0xff]
      %v2545 = vld [vmem:[%s2492 + $0x1a0] sm:$0xff]
      %v2546 = vld [vmem:[%s2492 + $0x1a8] sm:$0xff]
      %v2547 = vld [vmem:[%s2492 + $0x1b0] sm:$0xff]
      %v2548 = vld [vmem:[%s2492 + $0x1b8] sm:$0xff]
      %v2549 = vld [vmem:[%s2492 + $0x1c0] sm:$0xff]
      %v2550 = vld [vmem:[%s2492 + $0x1c8] sm:$0xff]
      %v2551 = vld [vmem:[%s2492 + $0x1d0] sm:$0xff]
      %v2552 = vld [vmem:[%s2492 + $0x1d8] sm:$0xff]
      %v2553 = vld [vmem:[%s2492 + $0x1e0] sm:$0xff]
      %v2554 = vld [vmem:[%s2492 + $0x1e8] sm:$0xff]
      %v2555 = vld [vmem:[%s2492 + $0x1f0] sm:$0xff]
      %v2556 = vld [vmem:[%s2492 + $0x1f8] sm:$0xff]
      %v2557 = vld [vmem:[%s2492 + $0x200] sm:$0xff]
      %v2558 = vld [vmem:[%s2492 + $0x208] sm:$0xff]
      %v2559 = vld [vmem:[%s2492 + $0x210] sm:$0xff]
      %v2560 = vld [vmem:[%s2492 + $0x218] sm:$0xff]
      %v2561 = vld [vmem:[%s2492 + $0x220] sm:$0xff]
      %v2562 = vld [vmem:[%s2492 + $0x228] sm:$0xff]
      %v2563 = vld [vmem:[%s2492 + $0x230] sm:$0xff]
      %v2564 = vld [vmem:[%s2492 + $0x238] sm:$0xff]
      %v2565 = vld [vmem:[%s2492 + $0x240] sm:$0xff]
      %v2566 = vld [vmem:[%s2492 + $0x248] sm:$0xff]
      %v2567 = vld [vmem:[%s2492 + $0x250] sm:$0xff]
      %v2568 = vld [vmem:[%s2492 + $0x258] sm:$0xff]
      %v2569 = vld [vmem:[%s2492 + $0x260] sm:$0xff]
      %v2570 = vld [vmem:[%s2492 + $0x268] sm:$0xff]
      %v2571 = vld [vmem:[%s2492 + $0x270] sm:$0xff]
      %v2572 = vld [vmem:[%s2492 + $0x278] sm:$0xff]
      %v2573 = vld [vmem:[%s2492 + $0x280] sm:$0xff]
      %v2574 = vld [vmem:[%s2492 + $0x288] sm:$0xff]
      %v2575 = vld [vmem:[%s2492 + $0x290] sm:$0xff]
      %v2576 = vld [vmem:[%s2492 + $0x298] sm:$0xff]
      %v2577 = vld [vmem:[%s2492 + $0x2a0] sm:$0xff]
      %v2578 = vld [vmem:[%s2492 + $0x2a8] sm:$0xff]
      %v2579 = vld [vmem:[%s2492 + $0x2b0] sm:$0xff]
      %v2580 = vld [vmem:[%s2492 + $0x2b8] sm:$0xff]
      %v2581 = vld [vmem:[%s2492 + $0x2c0] sm:$0xff]
      %v2582 = vld [vmem:[%s2492 + $0x2c8] sm:$0xff]
      %v2583 = vld [vmem:[%s2492 + $0x2d0] sm:$0xff]
      %v2584 = vld [vmem:[%s2492 + $0x2d8] sm:$0xff]
      %v2585 = vld [vmem:[%s2492 + $0x2e0] sm:$0xff]
      %v2586 = vld [vmem:[%s2492 + $0x2e8] sm:$0xff]
      %v2587 = vld [vmem:[%s2492 + $0x2f0] sm:$0xff]
      %v2588 = vld [vmem:[%s2492 + $0x2f8] sm:$0xff]
      %v2589 = vld [vmem:[%s2492 + $0x300] sm:$0xff]
      %v2590 = vld [vmem:[%s2492 + $0x308] sm:$0xff]
      %v2591 = vld [vmem:[%s2492 + $0x310] sm:$0xff]
      %v2592 = vld [vmem:[%s2492 + $0x318] sm:$0xff]
      %v2593 = vld [vmem:[%s2492 + $0x320] sm:$0xff]
      %v2594 = vld [vmem:[%s2492 + $0x328] sm:$0xff]
      %v2595 = vld [vmem:[%s2492 + $0x330] sm:$0xff]
      %v2596 = vld [vmem:[%s2492 + $0x338] sm:$0xff]
      %v2597 = vld [vmem:[%s2492 + $0x340] sm:$0xff]
      %v2598 = vld [vmem:[%s2492 + $0x348] sm:$0xff]
      %v2599 = vld [vmem:[%s2492 + $0x350] sm:$0xff]
      %v2600 = vld [vmem:[%s2492 + $0x358] sm:$0xff]
      %v2601 = vld [vmem:[%s2492 + $0x360] sm:$0xff]
      %v2602 = vld [vmem:[%s2492 + $0x368] sm:$0xff]
      %v2603 = vld [vmem:[%s2492 + $0x370] sm:$0xff]
      %v2604 = vld [vmem:[%s2492 + $0x378] sm:$0xff]
      %v2605 = vld [vmem:[%s2492 + $0x380] sm:$0xff]
      %v2606 = vld [vmem:[%s2492 + $0x388] sm:$0xff]
      %v2607 = vld [vmem:[%s2492 + $0x390] sm:$0xff]
      %v2608 = vld [vmem:[%s2492 + $0x398] sm:$0xff]
      %v2609 = vld [vmem:[%s2492 + $0x3a0] sm:$0xff]
      %v2610 = vld [vmem:[%s2492 + $0x3a8] sm:$0xff]
      %v2611 = vld [vmem:[%s2492 + $0x3b0] sm:$0xff]
      %v2612 = vld [vmem:[%s2492 + $0x3b8] sm:$0xff]
      %v2613 = vld [vmem:[%s2492 + $0x3c0] sm:$0xff]
      %v2614 = vld [vmem:[%s2492 + $0x3c8] sm:$0xff]
      %v2615 = vld [vmem:[%s2492 + $0x3d0] sm:$0xff]
      %v2616 = vld [vmem:[%s2492 + $0x3d8] sm:$0xff]
      %v2617 = vld [vmem:[%s2492 + $0x3e0] sm:$0xff]
      %v2618 = vld [vmem:[%s2492 + $0x3e8] sm:$0xff]
      %v2619 = vld [vmem:[%s2492 + $0x3f0] sm:$0xff]
      %v2620 = vld [vmem:[%s2492 + $0x3f8] sm:$0xff]
      %v2621 = vld [vmem:[%s2492 + $0x400] sm:$0xff]
      %v2622 = vld [vmem:[%s2492 + $0x408] sm:$0xff]
      %v2623 = vld [vmem:[%s2492 + $0x410] sm:$0xff]
      %v2624 = vld [vmem:[%s2492 + $0x418] sm:$0xff]
      %v2625 = vld [vmem:[%s2492 + $0x420] sm:$0xff]
      %v2626 = vld [vmem:[%s2492 + $0x428] sm:$0xff]
      %v2627 = vld [vmem:[%s2492 + $0x430] sm:$0xff]
      %v2628 = vld [vmem:[%s2492 + $0x438] sm:$0xff]
      %v2629 = vld [vmem:[%s2492 + $0x440] sm:$0xff]
      %v2630 = vld [vmem:[%s2492 + $0x448] sm:$0xff]
      %v2631 = vld [vmem:[%s2492 + $0x450] sm:$0xff]
      %v2632 = vld [vmem:[%s2492 + $0x458] sm:$0xff]
      %v2633 = vld [vmem:[%s2492 + $0x460] sm:$0xff]
      %v2634 = vld [vmem:[%s2492 + $0x468] sm:$0xff]
      %v2635 = vld [vmem:[%s2492 + $0x470] sm:$0xff]
      %v2636 = vld [vmem:[%s2492 + $0x478] sm:$0xff]
      %v2643 = vunpack.c.l.b16 %v2486
      %v2644 = vunpack.c.h.b16 %v2486
      %v2645 = vunpack.c.l.b16 %v2487
      %v2646 = vunpack.c.h.b16 %v2487
      %v2647 = vunpack.c.l.b16 %v2488
      %v2648 = vunpack.c.l.b16 %v2489
      %v2649 = vunpack.c.h.b16 %v2489
      %v2650 = vunpack.c.l.b16 %v2490
      %v2651 = vunpack.c.h.b16 %v2490
      %v2652 = vunpack.c.l.b16 %v2491
      %v2653 = vpack.c.b16 %v2648, %v2643
      %v2654 = vpack.c.b16 %v2649, %v2644
      %v2655 = vpack.c.b16 %v2650, %v2645
      %v2656 = vpack.c.b16 %v2651, %v2646
      %v2657 = vpack.c.b16 %v2652, %v2647
      %v2659 = vshrl.u32 %v2653, 16
      %v2661 = vshll.u32 %v2653, 16
      %v2663 = vrot.slane %v2661, 1
      %v2664 = vor.u32 %v2659, %v2663
      %v2666 = vshrl.u32 %v2654, 16
      %v2668 = vshll.u32 %v2654, 16
      %v2670 = vrot.slane %v2668, 1
      %v2671 = vor.u32 %v2666, %v2670
      %v2673 = vshrl.u32 %v2655, 16
      %v2675 = vshll.u32 %v2655, 16
      %v2677 = vrot.slane %v2675, 1
      %v2678 = vor.u32 %v2673, %v2677
      %v2680 = vshrl.u32 %v2656, 16
      %v2682 = vshll.u32 %v2656, 16
      %v2684 = vrot.slane %v2682, 1
      %v2685 = vor.u32 %v2680, %v2684
      %v2687 = vshrl.u32 %v2657, 16
      %v2689 = vshll.u32 %v2657, 16
      %v2691 = vrot.slane %v2689, 1
      %v2692 = vor.u32 %v2687, %v2691
      %v2841 = vunpack.c.l.b16 %v2493
      %v2842 = vunpack.c.h.b16 %v2493
      %v2843 = vunpack.c.l.b16 %v2494
      %v2844 = vunpack.c.h.b16 %v2494
      %v2845 = vunpack.c.l.b16 %v2495
      %v2846 = vunpack.c.h.b16 %v2495
      %v2847 = vunpack.c.l.b16 %v2496
      %v2848 = vunpack.c.h.b16 %v2496
      %v2849 = vunpack.c.l.b16 %v2497
      %v2850 = vunpack.c.h.b16 %v2497
      %v2851 = vunpack.c.l.b16 %v2498
      %v2852 = vunpack.c.h.b16 %v2498
      %v2853 = vunpack.c.l.b16 %v2499
      %v2854 = vunpack.c.h.b16 %v2499
      %v2855 = vunpack.c.l.b16 %v2500
      %v2856 = vunpack.c.h.b16 %v2500
      %v2857 = vunpack.c.l.b16 %v2501
      %v2858 = vunpack.c.h.b16 %v2501
      %v2859 = vunpack.c.l.b16 %v2502
      %v2860 = vunpack.c.h.b16 %v2502
      %v2861 = vunpack.c.l.b16 %v2503
      %v2862 = vunpack.c.h.b16 %v2503
      %v2863 = vunpack.c.l.b16 %v2504
      %v2864 = vunpack.c.h.b16 %v2504
      %v2865 = vunpack.c.l.b16 %v2505
      %v2866 = vunpack.c.h.b16 %v2505
      %v2867 = vunpack.c.l.b16 %v2506
      %v2868 = vunpack.c.h.b16 %v2506
      %v2869 = vunpack.c.l.b16 %v2507
      %v2870 = vunpack.c.h.b16 %v2507
      %v2871 = vunpack.c.l.b16 %v2508
      %v2872 = vunpack.c.h.b16 %v2508
      %v2873 = vunpack.c.l.b16 %v2509
      %v2874 = vunpack.c.h.b16 %v2509
      %v2875 = vunpack.c.l.b16 %v2510
      %v2876 = vunpack.c.h.b16 %v2510
      %v2877 = vunpack.c.l.b16 %v2511
      %v2878 = vunpack.c.h.b16 %v2511
      %v2879 = vunpack.c.l.b16 %v2512
      %v2880 = vunpack.c.h.b16 %v2512
      %v2881 = vunpack.c.l.b16 %v2513
      %v2882 = vunpack.c.h.b16 %v2513
      %v2883 = vunpack.c.l.b16 %v2514
      %v2884 = vunpack.c.h.b16 %v2514
      %v2885 = vunpack.c.l.b16 %v2515
      %v2886 = vunpack.c.h.b16 %v2515
      %v2887 = vunpack.c.l.b16 %v2516
      %v2888 = vunpack.c.h.b16 %v2516
      %v2889 = vunpack.c.l.b16 %v2517
      %v2890 = vunpack.c.h.b16 %v2517
      %v2891 = vunpack.c.l.b16 %v2518
      %v2892 = vunpack.c.h.b16 %v2518
      %v2893 = vunpack.c.l.b16 %v2519
      %v2894 = vunpack.c.h.b16 %v2519
      %v2895 = vunpack.c.l.b16 %v2520
      %v2896 = vunpack.c.h.b16 %v2520
      %v2897 = vunpack.c.l.b16 %v2521
      %v2898 = vunpack.c.h.b16 %v2521
      %v2899 = vunpack.c.l.b16 %v2522
      %v2900 = vunpack.c.h.b16 %v2522
      %v2901 = vunpack.c.l.b16 %v2523
      %v2902 = vunpack.c.h.b16 %v2523
      %v2903 = vunpack.c.l.b16 %v2524
      %v2904 = vunpack.c.h.b16 %v2524
      %v2905 = vunpack.c.l.b16 %v2525
      %v2906 = vunpack.c.h.b16 %v2525
      %v2907 = vunpack.c.l.b16 %v2526
      %v2908 = vunpack.c.h.b16 %v2526
      %v2909 = vunpack.c.l.b16 %v2527
      %v2910 = vunpack.c.h.b16 %v2527
      %v2911 = vunpack.c.l.b16 %v2528
      %v2912 = vunpack.c.h.b16 %v2528
      %v2913 = vunpack.c.l.b16 %v2529
      %v2914 = vunpack.c.h.b16 %v2529
      %v2915 = vunpack.c.l.b16 %v2530
      %v2916 = vunpack.c.h.b16 %v2530
      %v2917 = vunpack.c.l.b16 %v2531
      %v2918 = vunpack.c.h.b16 %v2531
      %v2919 = vunpack.c.l.b16 %v2532
      %v2920 = vunpack.c.h.b16 %v2532
      %v2921 = vunpack.c.l.b16 %v2533
      %v2922 = vunpack.c.h.b16 %v2533
      %v2923 = vunpack.c.l.b16 %v2534
      %v2924 = vunpack.c.h.b16 %v2534
      %v2925 = vunpack.c.l.b16 %v2535
      %v2926 = vunpack.c.h.b16 %v2535
      %v2927 = vunpack.c.l.b16 %v2536
      %v2928 = vunpack.c.h.b16 %v2536
      %v2929 = vunpack.c.l.b16 %v2537
      %v2930 = vunpack.c.h.b16 %v2537
      %v2931 = vunpack.c.l.b16 %v2538
      %v2932 = vunpack.c.h.b16 %v2538
      %v2933 = vunpack.c.l.b16 %v2539
      %v2934 = vunpack.c.h.b16 %v2539
      %v2935 = vunpack.c.l.b16 %v2540
      %v2936 = vunpack.c.h.b16 %v2540
      %v2937 = vunpack.c.l.b16 %v2541
      %v2938 = vunpack.c.h.b16 %v2541
      %v2939 = vunpack.c.l.b16 %v2542
      %v2940 = vunpack.c.h.b16 %v2542
      %v2941 = vunpack.c.l.b16 %v2543
      %v2942 = vunpack.c.h.b16 %v2543
      %v2943 = vunpack.c.l.b16 %v2544
      %v2944 = vunpack.c.h.b16 %v2544
      %v2945 = vunpack.c.l.b16 %v2545
      %v2946 = vunpack.c.h.b16 %v2545
      %v2947 = vunpack.c.l.b16 %v2546
      %v2948 = vunpack.c.h.b16 %v2546
      %v2949 = vunpack.c.l.b16 %v2547
      %v2950 = vunpack.c.h.b16 %v2547
      %v2951 = vunpack.c.l.b16 %v2548
      %v2952 = vunpack.c.h.b16 %v2548
      %v2953 = vunpack.c.l.b16 %v2549
      %v2954 = vunpack.c.h.b16 %v2549
      %v2955 = vunpack.c.l.b16 %v2550
      %v2956 = vunpack.c.h.b16 %v2550
      %v2957 = vunpack.c.l.b16 %v2551
      %v2958 = vunpack.c.h.b16 %v2551
      %v2959 = vunpack.c.l.b16 %v2552
      %v2960 = vunpack.c.h.b16 %v2552
      %v2961 = vunpack.c.l.b16 %v2553
      %v2962 = vunpack.c.h.b16 %v2553
      %v2963 = vunpack.c.l.b16 %v2554
      %v2964 = vunpack.c.h.b16 %v2554
      %v2965 = vunpack.c.l.b16 %v2555
      %v2966 = vunpack.c.h.b16 %v2555
      %v2967 = vunpack.c.l.b16 %v2556
      %v2968 = vunpack.c.h.b16 %v2556
      %v2969 = vunpack.c.l.b16 %v2557
      %v2970 = vunpack.c.h.b16 %v2557
      %v2971 = vunpack.c.l.b16 %v2558
      %v2972 = vunpack.c.h.b16 %v2558
      %v2973 = vunpack.c.l.b16 %v2559
      %v2974 = vunpack.c.h.b16 %v2559
      %v2975 = vunpack.c.l.b16 %v2560
      %v2976 = vunpack.c.h.b16 %v2560
      %v2977 = vunpack.c.l.b16 %v2561
      %v2978 = vunpack.c.h.b16 %v2561
      %v2979 = vunpack.c.l.b16 %v2562
      %v2980 = vunpack.c.h.b16 %v2562
      %v2981 = vunpack.c.l.b16 %v2563
      %v2982 = vunpack.c.h.b16 %v2563
      %v2983 = vunpack.c.l.b16 %v2564
      %v2984 = vunpack.c.h.b16 %v2564
      %v2985 = vunpack.c.l.b16 %v2565
      %v2986 = vunpack.c.h.b16 %v2565
      %v2987 = vunpack.c.l.b16 %v2566
      %v2988 = vunpack.c.h.b16 %v2566
      %v2989 = vunpack.c.l.b16 %v2567
      %v2990 = vunpack.c.h.b16 %v2567
      %v2991 = vunpack.c.l.b16 %v2568
      %v2992 = vunpack.c.h.b16 %v2568
      %v2993 = vunpack.c.l.b16 %v2569
      %v2994 = vunpack.c.h.b16 %v2569
      %v2995 = vunpack.c.l.b16 %v2570
      %v2996 = vunpack.c.h.b16 %v2570
      %v2997 = vunpack.c.l.b16 %v2571
      %v2998 = vunpack.c.h.b16 %v2571
      %v2999 = vunpack.c.l.b16 %v2572
      %v3000 = vunpack.c.h.b16 %v2572
      %v3001 = vunpack.c.l.b16 %v2573
      %v3002 = vunpack.c.h.b16 %v2573
      %v3003 = vunpack.c.l.b16 %v2574
      %v3004 = vunpack.c.h.b16 %v2574
      %v3005 = vunpack.c.l.b16 %v2575
      %v3006 = vunpack.c.h.b16 %v2575
      %v3007 = vunpack.c.l.b16 %v2576
      %v3008 = vunpack.c.h.b16 %v2576
      %v3009 = vunpack.c.l.b16 %v2577
      %v3010 = vunpack.c.h.b16 %v2577
      %v3011 = vunpack.c.l.b16 %v2578
      %v3012 = vunpack.c.h.b16 %v2578
      %v3013 = vunpack.c.l.b16 %v2579
      %v3014 = vunpack.c.h.b16 %v2579
      %v3015 = vunpack.c.l.b16 %v2580
      %v3016 = vunpack.c.h.b16 %v2580
      %v3017 = vunpack.c.l.b16 %v2581
      %v3018 = vunpack.c.h.b16 %v2581
      %v3019 = vunpack.c.l.b16 %v2582
      %v3020 = vunpack.c.h.b16 %v2582
      %v3021 = vunpack.c.l.b16 %v2583
      %v3022 = vunpack.c.h.b16 %v2583
      %v3023 = vunpack.c.l.b16 %v2584
      %v3024 = vunpack.c.h.b16 %v2584
      %v3025 = vunpack.c.l.b16 %v2585
      %v3026 = vunpack.c.h.b16 %v2585
      %v3027 = vunpack.c.l.b16 %v2586
      %v3028 = vunpack.c.h.b16 %v2586
      %v3029 = vunpack.c.l.b16 %v2587
      %v3030 = vunpack.c.h.b16 %v2587
      %v3031 = vunpack.c.l.b16 %v2588
      %v3032 = vunpack.c.h.b16 %v2588
      %v3033 = vunpack.c.l.b16 %v2589
      %v3034 = vunpack.c.h.b16 %v2589
      %v3035 = vunpack.c.l.b16 %v2590
      %v3036 = vunpack.c.h.b16 %v2590
      %v3037 = vunpack.c.l.b16 %v2591
      %v3038 = vunpack.c.h.b16 %v2591
      %v3039 = vunpack.c.l.b16 %v2592
      %v3040 = vunpack.c.h.b16 %v2592
      %v3041 = vunpack.c.l.b16 %v2593
      %v3042 = vunpack.c.h.b16 %v2593
      %v3043 = vunpack.c.l.b16 %v2594
      %v3044 = vunpack.c.h.b16 %v2594
      %v3045 = vunpack.c.l.b16 %v2595
      %v3046 = vunpack.c.h.b16 %v2595
      %v3047 = vunpack.c.l.b16 %v2596
      %v3048 = vunpack.c.h.b16 %v2596
      %v3049 = vunpack.c.l.b16 %v2597
      %v3050 = vunpack.c.h.b16 %v2597
      %v3051 = vunpack.c.l.b16 %v2598
      %v3052 = vunpack.c.h.b16 %v2598
      %v3053 = vunpack.c.l.b16 %v2599
      %v3054 = vunpack.c.h.b16 %v2599
      %v3055 = vunpack.c.l.b16 %v2600
      %v3056 = vunpack.c.h.b16 %v2600
      %v3057 = vunpack.c.l.b16 %v2601
      %v3058 = vunpack.c.h.b16 %v2601
      %v3059 = vunpack.c.l.b16 %v2602
      %v3060 = vunpack.c.h.b16 %v2602
      %v3061 = vunpack.c.l.b16 %v2603
      %v3062 = vunpack.c.h.b16 %v2603
      %v3063 = vunpack.c.l.b16 %v2604
      %v3064 = vunpack.c.h.b16 %v2604
      %v3065 = vunpack.c.l.b16 %v2605
      %v3066 = vunpack.c.h.b16 %v2605
      %v3067 = vunpack.c.l.b16 %v2606
      %v3068 = vunpack.c.h.b16 %v2606
      %v3069 = vunpack.c.l.b16 %v2607
      %v3070 = vunpack.c.h.b16 %v2607
      %v3071 = vunpack.c.l.b16 %v2608
      %v3072 = vunpack.c.h.b16 %v2608
      %v3073 = vunpack.c.l.b16 %v2609
      %v3074 = vunpack.c.h.b16 %v2609
      %v3075 = vunpack.c.l.b16 %v2610
      %v3076 = vunpack.c.h.b16 %v2610
      %v3077 = vunpack.c.l.b16 %v2611
      %v3078 = vunpack.c.h.b16 %v2611
      %v3079 = vunpack.c.l.b16 %v2612
      %v3080 = vunpack.c.h.b16 %v2612
      %v3081 = vunpack.c.l.b16 %v2613
      %v3082 = vunpack.c.h.b16 %v2613
      %v3083 = vunpack.c.l.b16 %v2614
      %v3084 = vunpack.c.h.b16 %v2614
      %v3085 = vunpack.c.l.b16 %v2615
      %v3086 = vunpack.c.h.b16 %v2615
      %v3087 = vunpack.c.l.b16 %v2616
      %v3088 = vunpack.c.h.b16 %v2616
      %v3089 = vunpack.c.l.b16 %v2617
      %v3090 = vunpack.c.h.b16 %v2617
      %v3091 = vunpack.c.l.b16 %v2618
      %v3092 = vunpack.c.h.b16 %v2618
      %v3093 = vunpack.c.l.b16 %v2619
      %v3094 = vunpack.c.h.b16 %v2619
      %v3095 = vunpack.c.l.b16 %v2620
      %v3096 = vunpack.c.h.b16 %v2620
      %v3097 = vunpack.c.l.b16 %v2621
      %v3098 = vunpack.c.h.b16 %v2621
      %v3099 = vunpack.c.l.b16 %v2622
      %v3100 = vunpack.c.h.b16 %v2622
      %v3101 = vunpack.c.l.b16 %v2623
      %v3102 = vunpack.c.h.b16 %v2623
      %v3103 = vunpack.c.l.b16 %v2624
      %v3104 = vunpack.c.h.b16 %v2624
      %v3105 = vunpack.c.l.b16 %v2625
      %v3106 = vunpack.c.h.b16 %v2625
      %v3107 = vunpack.c.l.b16 %v2626
      %v3108 = vunpack.c.h.b16 %v2626
      %v3109 = vunpack.c.l.b16 %v2627
      %v3110 = vunpack.c.h.b16 %v2627
      %v3111 = vunpack.c.l.b16 %v2628
      %v3112 = vunpack.c.h.b16 %v2628
      %v3113 = vunpack.c.l.b16 %v2629
      %v3114 = vunpack.c.h.b16 %v2629
      %v3115 = vunpack.c.l.b16 %v2630
      %v3116 = vunpack.c.h.b16 %v2630
      %v3117 = vunpack.c.l.b16 %v2631
      %v3118 = vunpack.c.h.b16 %v2631
      %v3119 = vunpack.c.l.b16 %v2632
      %v3120 = vunpack.c.h.b16 %v2632
      %v3121 = vunpack.c.l.b16 %v2633
      %v3122 = vunpack.c.h.b16 %v2633
      %v3123 = vunpack.c.l.b16 %v2634
      %v3124 = vunpack.c.h.b16 %v2634
      %v3125 = vunpack.c.l.b16 %v2635
      %v3126 = vunpack.c.h.b16 %v2635
      %v3127 = vunpack.c.l.b16 %v2636
      %v3128 = vunpack.c.h.b16 %v2636
      %v3129 = vpack.c.b16 %v2845, %v2841
      %v3130 = vpack.c.b16 %v2846, %v2842
      %v3131 = vpack.c.b16 %v2847, %v2843
      %v3132 = vpack.c.b16 %v2848, %v2844
      %v3133 = vpack.c.b16 %v2853, %v2849
      %v3134 = vpack.c.b16 %v2854, %v2850
      %v3135 = vpack.c.b16 %v2855, %v2851
      %v3136 = vpack.c.b16 %v2856, %v2852
      %v3137 = vpack.c.b16 %v2861, %v2857
      %v3138 = vpack.c.b16 %v2862, %v2858
      %v3139 = vpack.c.b16 %v2863, %v2859
      %v3140 = vpack.c.b16 %v2864, %v2860
      %v3141 = vpack.c.b16 %v2869, %v2865
      %v3142 = vpack.c.b16 %v2870, %v2866
      %v3143 = vpack.c.b16 %v2871, %v2867
      %v3144 = vpack.c.b16 %v2872, %v2868
      %v3145 = vpack.c.b16 %v2877, %v2873
      %v3146 = vpack.c.b16 %v2878, %v2874
      %v3147 = vpack.c.b16 %v2879, %v2875
      %v3148 = vpack.c.b16 %v2880, %v2876
      %v3149 = vpack.c.b16 %v2885, %v2881
      %v3150 = vpack.c.b16 %v2886, %v2882
      %v3151 = vpack.c.b16 %v2887, %v2883
      %v3152 = vpack.c.b16 %v2888, %v2884
      %v3153 = vpack.c.b16 %v2893, %v2889
      %v3154 = vpack.c.b16 %v2894, %v2890
      %v3155 = vpack.c.b16 %v2895, %v2891
      %v3156 = vpack.c.b16 %v2896, %v2892
      %v3157 = vpack.c.b16 %v2901, %v2897
      %v3158 = vpack.c.b16 %v2902, %v2898
      %v3159 = vpack.c.b16 %v2903, %v2899
      %v3160 = vpack.c.b16 %v2904, %v2900
      %v3161 = vpack.c.b16 %v2909, %v2905
      %v3162 = vpack.c.b16 %v2910, %v2906
      %v3163 = vpack.c.b16 %v2911, %v2907
      %v3164 = vpack.c.b16 %v2912, %v2908
      %v3165 = vpack.c.b16 %v2917, %v2913
      %v3166 = vpack.c.b16 %v2918, %v2914
      %v3167 = vpack.c.b16 %v2919, %v2915
      %v3168 = vpack.c.b16 %v2920, %v2916
      %v3169 = vpack.c.b16 %v2925, %v2921
      %v3170 = vpack.c.b16 %v2926, %v2922
      %v3171 = vpack.c.b16 %v2927, %v2923
      %v3172 = vpack.c.b16 %v2928, %v2924
      %v3173 = vpack.c.b16 %v2933, %v2929
      %v3174 = vpack.c.b16 %v2934, %v2930
      %v3175 = vpack.c.b16 %v2935, %v2931
      %v3176 = vpack.c.b16 %v2936, %v2932
      %v3177 = vpack.c.b16 %v2941, %v2937
      %v3178 = vpack.c.b16 %v2942, %v2938
      %v3179 = vpack.c.b16 %v2943, %v2939
      %v3180 = vpack.c.b16 %v2944, %v2940
      %v3181 = vpack.c.b16 %v2949, %v2945
      %v3182 = vpack.c.b16 %v2950, %v2946
      %v3183 = vpack.c.b16 %v2951, %v2947
      %v3184 = vpack.c.b16 %v2952, %v2948
      %v3185 = vpack.c.b16 %v2957, %v2953
      %v3186 = vpack.c.b16 %v2958, %v2954
      %v3187 = vpack.c.b16 %v2959, %v2955
      %v3188 = vpack.c.b16 %v2960, %v2956
      %v3189 = vpack.c.b16 %v2965, %v2961
      %v3190 = vpack.c.b16 %v2966, %v2962
      %v3191 = vpack.c.b16 %v2967, %v2963
      %v3192 = vpack.c.b16 %v2968, %v2964
      %v3193 = vpack.c.b16 %v2973, %v2969
      %v3194 = vpack.c.b16 %v2974, %v2970
      %v3195 = vpack.c.b16 %v2975, %v2971
      %v3196 = vpack.c.b16 %v2976, %v2972
      %v3197 = vpack.c.b16 %v2981, %v2977
      %v3198 = vpack.c.b16 %v2982, %v2978
      %v3199 = vpack.c.b16 %v2983, %v2979
      %v3200 = vpack.c.b16 %v2984, %v2980
      %v3201 = vpack.c.b16 %v2989, %v2985
      %v3202 = vpack.c.b16 %v2990, %v2986
      %v3203 = vpack.c.b16 %v2991, %v2987
      %v3204 = vpack.c.b16 %v2992, %v2988
      %v3205 = vpack.c.b16 %v2997, %v2993
      %v3206 = vpack.c.b16 %v2998, %v2994
      %v3207 = vpack.c.b16 %v2999, %v2995
      %v3208 = vpack.c.b16 %v3000, %v2996
      %v3209 = vpack.c.b16 %v3005, %v3001
      %v3210 = vpack.c.b16 %v3006, %v3002
      %v3211 = vpack.c.b16 %v3007, %v3003
      %v3212 = vpack.c.b16 %v3008, %v3004
      %v3213 = vpack.c.b16 %v3013, %v3009
      %v3214 = vpack.c.b16 %v3014, %v3010
      %v3215 = vpack.c.b16 %v3015, %v3011
      %v3216 = vpack.c.b16 %v3016, %v3012
      %v3217 = vpack.c.b16 %v3021, %v3017
      %v3218 = vpack.c.b16 %v3022, %v3018
      %v3219 = vpack.c.b16 %v3023, %v3019
      %v3220 = vpack.c.b16 %v3024, %v3020
      %v3221 = vpack.c.b16 %v3029, %v3025
      %v3222 = vpack.c.b16 %v3030, %v3026
      %v3223 = vpack.c.b16 %v3031, %v3027
      %v3224 = vpack.c.b16 %v3032, %v3028
      %v3225 = vpack.c.b16 %v3037, %v3033
      %v3226 = vpack.c.b16 %v3038, %v3034
      %v3227 = vpack.c.b16 %v3039, %v3035
      %v3228 = vpack.c.b16 %v3040, %v3036
      %v3229 = vpack.c.b16 %v3045, %v3041
      %v3230 = vpack.c.b16 %v3046, %v3042
      %v3231 = vpack.c.b16 %v3047, %v3043
      %v3232 = vpack.c.b16 %v3048, %v3044
      %v3233 = vpack.c.b16 %v3053, %v3049
      %v3234 = vpack.c.b16 %v3054, %v3050
      %v3235 = vpack.c.b16 %v3055, %v3051
      %v3236 = vpack.c.b16 %v3056, %v3052
      %v3237 = vpack.c.b16 %v3061, %v3057
      %v3238 = vpack.c.b16 %v3062, %v3058
      %v3239 = vpack.c.b16 %v3063, %v3059
      %v3240 = vpack.c.b16 %v3064, %v3060
      %v3241 = vpack.c.b16 %v3069, %v3065
      %v3242 = vpack.c.b16 %v3070, %v3066
      %v3243 = vpack.c.b16 %v3071, %v3067
      %v3244 = vpack.c.b16 %v3072, %v3068
      %v3245 = vpack.c.b16 %v3077, %v3073
      %v3246 = vpack.c.b16 %v3078, %v3074
      %v3247 = vpack.c.b16 %v3079, %v3075
      %v3248 = vpack.c.b16 %v3080, %v3076
      %v3249 = vpack.c.b16 %v3085, %v3081
      %v3250 = vpack.c.b16 %v3086, %v3082
      %v3251 = vpack.c.b16 %v3087, %v3083
      %v3252 = vpack.c.b16 %v3088, %v3084
      %v3253 = vpack.c.b16 %v3093, %v3089
      %v3254 = vpack.c.b16 %v3094, %v3090
      %v3255 = vpack.c.b16 %v3095, %v3091
      %v3256 = vpack.c.b16 %v3096, %v3092
      %v3257 = vpack.c.b16 %v3101, %v3097
      %v3258 = vpack.c.b16 %v3102, %v3098
      %v3259 = vpack.c.b16 %v3103, %v3099
      %v3260 = vpack.c.b16 %v3104, %v3100
      %v3261 = vpack.c.b16 %v3109, %v3105
      %v3262 = vpack.c.b16 %v3110, %v3106
      %v3263 = vpack.c.b16 %v3111, %v3107
      %v3264 = vpack.c.b16 %v3112, %v3108
      %v3265 = vpack.c.b16 %v3117, %v3113
      %v3266 = vpack.c.b16 %v3118, %v3114
      %v3267 = vpack.c.b16 %v3119, %v3115
      %v3268 = vpack.c.b16 %v3120, %v3116
      %v3269 = vpack.c.b16 %v3125, %v3121
      %v3270 = vpack.c.b16 %v3126, %v3122
      %v3271 = vpack.c.b16 %v3127, %v3123
      %v3272 = vpack.c.b16 %v3128, %v3124
      %v3418 = vsel %vm1250, %v2692, 0
      %3420 = vmatprep.subr.bf16.mxu0 %v3158
      %3421 = vmatpush1.bf16.msra.mxu0 %v3157
      %3422 = vmatprep.subr.bf16.mxu0 %v3154
      %3423 = vmatpush1.bf16.msra.mxu0 %v3153
      %3424 = vmatprep.subr.bf16.mxu0 %v3150
      %3425 = vmatpush1.bf16.msra.mxu0 %v3149
      %3426 = vmatprep.subr.bf16.mxu0 %v3146
      %3427 = vmatpush1.bf16.msra.mxu0 %v3145
      %3428 = vmatprep.subr.bf16.mxu0 %v3142
      %3429 = vmatpush1.bf16.msra.mxu0 %v3141
      %3430 = vmatprep.subr.bf16.mxu0 %v3138
      %3431 = vmatpush1.bf16.msra.mxu0 %v3137
      %3432 = vmatprep.subr.bf16.mxu0 %v3134
      %3433 = vmatpush1.bf16.msra.mxu0 %v3133
      %3434 = vmatprep.subr.bf16.mxu0 %v3130
      %3435 = vmatpush1.bf16.msra.mxu0 %v3129
      %3436 = vmatprep.subr.bf16.mxu0 %v3190
      %3437 = vmatpush2.bf16.msra.mxu0 %v3189
      %3438 = vmatprep.subr.bf16.mxu0 %v3186
      %3439 = vmatpush2.bf16.msra.mxu0 %v3185
      %3440 = vmatprep.subr.bf16.mxu0 %v3182
      %3441 = vmatpush2.bf16.msra.mxu0 %v3181
      %3442 = vmatprep.subr.bf16.mxu0 %v3178
      %3443 = vmatpush2.bf16.msra.mxu0 %v3177
      %3444 = vmatprep.subr.bf16.mxu0 %v3174
      %3445 = vmatpush2.bf16.msra.mxu0 %v3173
      %3446 = vmatprep.subr.bf16.mxu0 %v3170
      %3447 = vmatpush2.bf16.msra.mxu0 %v3169
      %3448 = vmatprep.subr.bf16.mxu0 %v3166
      %3449 = vmatpush2.bf16.msra.mxu0 %v3165
      %3450 = vmatprep.subr.bf16.mxu0 %v3162
      %3451 = vmatpush2.bf16.msra.mxu0 %v3161
      %3452 = vmatprep.mubr.bf16.mxu0 %v2671
      %3453 = vmatmul.mubr.bf16.gmra.mxu0 %v2664
      %v3454 = vpop.f32.mrf.mxu0
      %v3455 = vadd.f32 0.0, %v3454
      %v3456 = vpop.f32.mrf.mxu0
      %v3457 = vadd.f32 0.0, %v3456
      %v3458 = vpop.f32.mrf.mxu0
      %v3459 = vpop.f32.mrf.mxu0
      %3460 = vdwg.mxu0
      %3461 = vmatprep.subr.bf16.mxu0 %v3222
      %3462 = vmatpush1.bf16.msra.mxu0 %v3221
      %3463 = vmatprep.subr.bf16.mxu0 %v3218
      %3464 = vmatpush1.bf16.msra.mxu0 %v3217
      %3465 = vmatprep.subr.bf16.mxu0 %v3214
      %3466 = vmatpush1.bf16.msra.mxu0 %v3213
      %3467 = vmatprep.subr.bf16.mxu0 %v3210
      %3468 = vmatpush1.bf16.msra.mxu0 %v3209
      %3469 = vmatprep.subr.bf16.mxu0 %v3206
      %3470 = vmatpush1.bf16.msra.mxu0 %v3205
      %3471 = vmatprep.subr.bf16.mxu0 %v3202
      %3472 = vmatpush1.bf16.msra.mxu0 %v3201
      %3473 = vmatprep.subr.bf16.mxu0 %v3198
      %3474 = vmatpush1.bf16.msra.mxu0 %v3197
      %3475 = vmatprep.subr.bf16.mxu0 %v3194
      %3476 = vmatpush1.bf16.msra.mxu0 %v3193
      %3477 = vmatprep.subr.bf16.mxu0 %v3254
      %3478 = vmatpush2.bf16.msra.mxu0 %v3253
      %3479 = vmatprep.subr.bf16.mxu0 %v3250
      %3480 = vmatpush2.bf16.msra.mxu0 %v3249
      %3481 = vmatprep.subr.bf16.mxu0 %v3246
      %3482 = vmatpush2.bf16.msra.mxu0 %v3245
      %3483 = vmatprep.subr.bf16.mxu0 %v3242
      %3484 = vmatpush2.bf16.msra.mxu0 %v3241
      %3485 = vmatprep.subr.bf16.mxu0 %v3238
      %3486 = vmatpush2.bf16.msra.mxu0 %v3237
      %3487 = vmatprep.subr.bf16.mxu0 %v3234
      %3488 = vmatpush2.bf16.msra.mxu0 %v3233
      %3489 = vmatprep.subr.bf16.mxu0 %v3230
      %3490 = vmatpush2.bf16.msra.mxu0 %v3229
      %3491 = vmatprep.subr.bf16.mxu0 %v3226
      %3492 = vmatpush2.bf16.msra.mxu0 %v3225
      %3493 = vmatprep.mubr.bf16.mxu0 %v2685
      %3494 = vmatmul.mubr.bf16.gmra.mxu0 %v2678
      %v3495 = vpop.f32.mrf.mxu0
      %v3496 = vadd.f32 %v3455, %v3495
      %v3497 = vpop.f32.mrf.mxu0
      %v3498 = vadd.f32 %v3457, %v3497
      %v3499 = vpop.f32.mrf.mxu0
      %v3500 = vpop.f32.mrf.mxu0
      %3501 = vdwg.mxu0
      %3502 = vmatprep.subr.bf16.mxu0 0
      %3503 = vmatpush1.bf16.msra.mxu0 0
      %3504 = vmatprep.subr.bf16.mxu0 0
      %3505 = vmatpush1.bf16.msra.mxu0 0
      %3506 = vmatprep.subr.bf16.mxu0 0
      %3507 = vmatpush1.bf16.msra.mxu0 0
      %3508 = vmatprep.subr.bf16.mxu0 0
      %3509 = vmatpush1.bf16.msra.mxu0 0
      %3510 = vmatprep.subr.bf16.mxu0 %v3270
      %3511 = vmatpush1.bf16.msra.mxu0 %v3269
      %3512 = vmatprep.subr.bf16.mxu0 %v3266
      %3513 = vmatpush1.bf16.msra.mxu0 %v3265
      %3514 = vmatprep.subr.bf16.mxu0 %v3262
      %3515 = vmatpush1.bf16.msra.mxu0 %v3261
      %3516 = vmatprep.subr.bf16.mxu0 %v3258
      %3517 = vmatpush1.bf16.msra.mxu0 %v3257
      %3518 = vmatprep.subr.bf16.mxu0 0
      %3519 = vmatpush2.bf16.msra.mxu0 0
      %3520 = vmatprep.subr.bf16.mxu0 0
      %3521 = vmatpush2.bf16.msra.mxu0 0
      %3522 = vmatprep.subr.bf16.mxu0 0
      %3523 = vmatpush2.bf16.msra.mxu0 0
      %3524 = vmatprep.subr.bf16.mxu0 0
      %3525 = vmatpush2.bf16.msra.mxu0 0
      %3526 = vmatprep.subr.bf16.mxu0 0
      %3527 = vmatpush2.bf16.msra.mxu0 0
      %3528 = vmatprep.subr.bf16.mxu0 0
      %3529 = vmatpush2.bf16.msra.mxu0 0
      %3530 = vmatprep.subr.bf16.mxu0 0
      %3531 = vmatpush2.bf16.msra.mxu0 0
      %3532 = vmatprep.subr.bf16.mxu0 0
      %3533 = vmatpush2.bf16.msra.mxu0 0
      %3534 = vmatprep.mubr.bf16.mxu0 0
      %3535 = vmatmul.mubr.bf16.gmra.mxu0 %v3418
      %v3536 = vpop.f32.mrf.mxu0
      %v3537 = vadd.f32 %v3496, %v3536
      %v3538 = vpop.f32.mrf.mxu0
      %v3539 = vadd.f32 %v3498, %v3538
      %v3540 = vpop.f32.mrf.mxu0
      %v3541 = vpop.f32.mrf.mxu0
      %3542 = vdwg.mxu0
      %3543 = vmatprep.subr.bf16.mxu0 %v3160
      %3544 = vmatpush1.bf16.msra.mxu0 %v3159
      %3545 = vmatprep.subr.bf16.mxu0 %v3156
      %3546 = vmatpush1.bf16.msra.mxu0 %v3155
      %3547 = vmatprep.subr.bf16.mxu0 %v3152
      %3548 = vmatpush1.bf16.msra.mxu0 %v3151
      %3549 = vmatprep.subr.bf16.mxu0 %v3148
      %3550 = vmatpush1.bf16.msra.mxu0 %v3147
      %3551 = vmatprep.subr.bf16.mxu0 %v3144
      %3552 = vmatpush1.bf16.msra.mxu0 %v3143
      %3553 = vmatprep.subr.bf16.mxu0 %v3140
      %3554 = vmatpush1.bf16.msra.mxu0 %v3139
      %3555 = vmatprep.subr.bf16.mxu0 %v3136
      %3556 = vmatpush1.bf16.msra.mxu0 %v3135
      %3557 = vmatprep.subr.bf16.mxu0 %v3132
      %3558 = vmatpush1.bf16.msra.mxu0 %v3131
      %3559 = vmatprep.subr.bf16.mxu0 %v3192
      %3560 = vmatpush2.bf16.msra.mxu0 %v3191
      %3561 = vmatprep.subr.bf16.mxu0 %v3188
      %3562 = vmatpush2.bf16.msra.mxu0 %v3187
      %3563 = vmatprep.subr.bf16.mxu0 %v3184
      %3564 = vmatpush2.bf16.msra.mxu0 %v3183
      %3565 = vmatprep.subr.bf16.mxu0 %v3180
      %3566 = vmatpush2.bf16.msra.mxu0 %v3179
      %3567 = vmatprep.subr.bf16.mxu0 %v3176
      %3568 = vmatpush2.bf16.msra.mxu0 %v3175
      %3569 = vmatprep.subr.bf16.mxu0 %v3172
      %3570 = vmatpush2.bf16.msra.mxu0 %v3171
      %3571 = vmatprep.subr.bf16.mxu0 %v3168
      %3572 = vmatpush2.bf16.msra.mxu0 %v3167
      %3573 = vmatprep.subr.bf16.mxu0 %v3164
      %3574 = vmatpush2.bf16.msra.mxu0 %v3163
      %3575 = vmatprep.mubr.bf16.mxu0 %v2671
      %3576 = vmatmul.mubr.bf16.gmra.mxu0 %v2664
      %v3577 = vpop.f32.mrf.mxu0
      %v3578 = vadd.f32 0.0, %v3577
      %v3579 = vpop.f32.mrf.mxu0
      %v3580 = vadd.f32 0.0, %v3579
      %v3581 = vpop.f32.mrf.mxu0
      %v3582 = vpop.f32.mrf.mxu0
      %3583 = vdwg.mxu0
      %3584 = vmatprep.subr.bf16.mxu0 %v3224
      %3585 = vmatpush1.bf16.msra.mxu0 %v3223
      %3586 = vmatprep.subr.bf16.mxu0 %v3220
      %3587 = vmatpush1.bf16.msra.mxu0 %v3219
      %3588 = vmatprep.subr.bf16.mxu0 %v3216
      %3589 = vmatpush1.bf16.msra.mxu0 %v3215
      %3590 = vmatprep.subr.bf16.mxu0 %v3212
      %3591 = vmatpush1.bf16.msra.mxu0 %v3211
      %3592 = vmatprep.subr.bf16.mxu0 %v3208
      %3593 = vmatpush1.bf16.msra.mxu0 %v3207
      %3594 = vmatprep.subr.bf16.mxu0 %v3204
      %3595 = vmatpush1.bf16.msra.mxu0 %v3203
      %3596 = vmatprep.subr.bf16.mxu0 %v3200
      %3597 = vmatpush1.bf16.msra.mxu0 %v3199
      %3598 = vmatprep.subr.bf16.mxu0 %v3196
      %3599 = vmatpush1.bf16.msra.mxu0 %v3195
      %3600 = vmatprep.subr.bf16.mxu0 %v3256
      %3601 = vmatpush2.bf16.msra.mxu0 %v3255
      %3602 = vmatprep.subr.bf16.mxu0 %v3252
      %3603 = vmatpush2.bf16.msra.mxu0 %v3251
      %3604 = vmatprep.subr.bf16.mxu0 %v3248
      %3605 = vmatpush2.bf16.msra.mxu0 %v3247
      %3606 = vmatprep.subr.bf16.mxu0 %v3244
      %3607 = vmatpush2.bf16.msra.mxu0 %v3243
      %3608 = vmatprep.subr.bf16.mxu0 %v3240
      %3609 = vmatpush2.bf16.msra.mxu0 %v3239
      %3610 = vmatprep.subr.bf16.mxu0 %v3236
      %3611 = vmatpush2.bf16.msra.mxu0 %v3235
      %3612 = vmatprep.subr.bf16.mxu0 %v3232
      %3613 = vmatpush2.bf16.msra.mxu0 %v3231
      %3614 = vmatprep.subr.bf16.mxu0 %v3228
      %3615 = vmatpush2.bf16.msra.mxu0 %v3227
      %3616 = vmatprep.mubr.bf16.mxu0 %v2685
      %3617 = vmatmul.mubr.bf16.gmra.mxu0 %v2678
      %v3618 = vpop.f32.mrf.mxu0
      %v3619 = vadd.f32 %v3578, %v3618
      %v3620 = vpop.f32.mrf.mxu0
      %v3621 = vadd.f32 %v3580, %v3620
      %v3622 = vpop.f32.mrf.mxu0
      %v3623 = vpop.f32.mrf.mxu0
      %3624 = vdwg.mxu0
      %3625 = vmatprep.subr.bf16.mxu0 0
      %3626 = vmatpush1.bf16.msra.mxu0 0
      %3627 = vmatprep.subr.bf16.mxu0 0
      %3628 = vmatpush1.bf16.msra.mxu0 0
      %3629 = vmatprep.subr.bf16.mxu0 0
      %3630 = vmatpush1.bf16.msra.mxu0 0
      %3631 = vmatprep.subr.bf16.mxu0 0
      %3632 = vmatpush1.bf16.msra.mxu0 0
      %3633 = vmatprep.subr.bf16.mxu0 %v3272
      %3634 = vmatpush1.bf16.msra.mxu0 %v3271
      %3635 = vmatprep.subr.bf16.mxu0 %v3268
      %3636 = vmatpush1.bf16.msra.mxu0 %v3267
      %3637 = vmatprep.subr.bf16.mxu0 %v3264
      %3638 = vmatpush1.bf16.msra.mxu0 %v3263
      %3639 = vmatprep.subr.bf16.mxu0 %v3260
      %3640 = vmatpush1.bf16.msra.mxu0 %v3259
      %3641 = vmatprep.subr.bf16.mxu0 0
      %3642 = vmatpush2.bf16.msra.mxu0 0
      %3643 = vmatprep.subr.bf16.mxu0 0
      %3644 = vmatpush2.bf16.msra.mxu0 0
      %3645 = vmatprep.subr.bf16.mxu0 0
      %3646 = vmatpush2.bf16.msra.mxu0 0
      %3647 = vmatprep.subr.bf16.mxu0 0
      %3648 = vmatpush2.bf16.msra.mxu0 0
      %3649 = vmatprep.subr.bf16.mxu0 0
      %3650 = vmatpush2.bf16.msra.mxu0 0
      %3651 = vmatprep.subr.bf16.mxu0 0
      %3652 = vmatpush2.bf16.msra.mxu0 0
      %3653 = vmatprep.subr.bf16.mxu0 0
      %3654 = vmatpush2.bf16.msra.mxu0 0
      %3655 = vmatprep.subr.bf16.mxu0 0
      %3656 = vmatpush2.bf16.msra.mxu0 0
      %3657 = vmatprep.mubr.bf16.mxu0 0
      %3658 = vmatmul.mubr.bf16.gmra.mxu0 %v3418
      %v3659 = vpop.f32.mrf.mxu0
      %v3660 = vadd.f32 %v3619, %v3659
      %v3661 = vpop.f32.mrf.mxu0
      %v3662 = vadd.f32 %v3621, %v3661
      %v3663 = vpop.f32.mrf.mxu0
      %v3664 = vpop.f32.mrf.mxu0
      %3665 = vdwg.mxu0
      %v3666 = vadd.f32 %v2357, %v3537
      %v3667 = vadd.f32 %v2359, %v3539
      %v3668 = vadd.f32 %v2480, %v3660
      %v3669 = vadd.f32 %v2482, %v3662
      %v3670 = vld [vmem:[%s2] sm:$0xf]
      %v3672 = vlaneseq
      %v3673 = vshrl.u32 %v3672, 7
      %v3674 = vsub.s32 0, %v3673
      %v3675 = vrot.slane %v3670, %v3674
      %v3676 = vlaneseq
      %v3677 = vshrl.u32 %v3676, 7
      %v3678 = vsub.s32 1, %v3677
      %v3679 = vrot.slane %v3670, %v3678
      %v3680 = vlaneseq
      %v3681 = vshrl.u32 %v3680, 7
      %v3682 = vsub.s32 2, %v3681
      %v3683 = vrot.slane %v3670, %v3682
      %v3684 = vlaneseq
      %v3685 = vshrl.u32 %v3684, 7
      %v3686 = vsub.s32 3, %v3685
      %v3687 = vrot.slane %v3670, %v3686
      %v3692 = vadd.f32 %v3666, %v3675
      %v3693 = vadd.f32 %v3667, %v3679
      %v3694 = vadd.f32 %v3668, %v3683
      %v3695 = vadd.f32 %v3669, %v3687
      %v3696 = vmax.f32 %v3692, 0.0
      %v3697 = vmax.f32 %v3693, 0.0
      %v3698 = vmax.f32 %v3694, 0.0
      %v3699 = vmax.f32 %v3695, 0.0
      %v3700 = vpack.c.bf16 %v3696, %v3696
      %v3701 = vpack.c.bf16 %v3697, %v3697
      %v3702 = vpack.c.bf16 %v3698, %v3698
      %v3703 = vpack.c.bf16 %v3699, %v3699
      %v3708 = vunpack.c.l.b16 %v3700
      %v3709 = vunpack.c.l.b16 %v3701
      %v3710 = vunpack.c.l.b16 %v3702
      %v3711 = vunpack.c.l.b16 %v3703
      %v3712 = vpack.c.b16 %v3709, %v3708
      %v3713 = vpack.c.b16 %v3711, %v3710
      %3716 = vst [vmem:[%s170] sm:$0xff] %v3712
      %3717 = vst [vmem:[%s170 + $0x8] sm:$0xff] %v3713
      %p3718 = scmp.lt.s32.totalorder %s14, 1
      %s3719 = scalar_select %p3718, %s14, 1
      %s3720 = smul.addr %s3719, 4
      %s3721 = smul.addr %s3720, 4
      %s3722 = scalar_lea.vmem %s3, %s3721
      // Predicated region
      $region33: #{convnet4_forward.6} parent=31 // pred_check
        %p3723 = pneg %p100
      $region34: #{convnet4_forward.6} parent=31 // pred_check_branch
        %3725 = sbr.rel (%p3723) target = $region36
      $region35: #{convnet4_forward.6} parent=31 // pred_region
        _
      $region36: #{convnet4_forward.6} parent=31 // pred_fallthru
        _
    $region32: #{convnet4_forward.6} parent=5 // pred_fallthru
      _
    %p3726 = scmp.le.s32.totalorder 2, %s9
    // Predicated region
    $region37: #{convnet4_forward.6} parent=5 // pred_check
      %p3727 = pneg %p3726
    $region38: #{convnet4_forward.6} parent=5 // pred_check_branch
      %3729 = sbr.rel (%p3727) target = $region40
    $region39: #{convnet4_forward.6} parent=5 // pred_region
      %s3730 = ssub.s32 %s9, 2
      // Predicated region
      $region41: #{convnet4_forward.6} parent=39 // pred_check
        %p3731 = pneg %p106
      $region42: #{convnet4_forward.6} parent=39 // pred_check_branch
        %3733 = sbr.rel (%p3731) target = $region44
      $region43: #{convnet4_forward.6} parent=39 // pred_region
        %p3734 = scmp.lt.s32.totalorder %s15, 1
        %s3735 = scalar_select %p3734, %s15, 1
        %s3736 = smul.addr %s3735, 4
        %s3737 = smul.addr %s3736, 4
        %s3738 = scalar_lea.vmem %s3, %s3737
      $region44: #{convnet4_forward.6} parent=39 // pred_fallthru
        _
    $region40: #{convnet4_forward.6} parent=5 // pred_fallthru
      _
  $region6: #{convnet4_forward.6} parent=0 // loop_footer
    %s13 = sadd.s32 1, %s9
  $region7: #{convnet4_forward.6} parent=0 // loop_footer_branch
    %8 = sbr.rel target = $region3
  $region8: #{convnet4_forward.6} parent=0 // loop_exit
    _

// kernel: convnet4_forward.7
$region0: #{convnet4_forward.7}
  #allocation0 [shape = 'u32[]', space=smem, size = 0x4, offset = 0x4, fixed_abs, tag = 'smem constant byte address 0x4 - core index']
  #allocation1 [shape = 'u32[144,128]{1,0:T(1,128)}', space=vmem, size = 0x12000, scoped, tag = 'internal scratch']
  %s0 = inlined_call_operand.vmem [shape: bf16[2,10,640], index: 0, kind: input, shape index: {}]
  %s1 = inlined_call_operand.vmem [shape: bf16[3,640,512], index: 1, kind: input, shape index: {}]
  %s2 = inlined_call_operand.vmem [shape: f32[1,512], index: 2, kind: input, shape index: {}]
  %s3 = inlined_call_operand.vmem [shape: f32[512,10], index: 3, kind: input, shape index: {}]
  %s4 = inlined_call_operand.vmem [shape: f32[1,10], index: 4, kind: input, shape index: {}]
  %s5 = inlined_call_operand.hbm [shape: f32[2,1,10], index: 5, kind: output, shape index: {}]
  %s6 = sld [smem:[#allocation0]]
  $region53: #{convnet4_forward.7} parent=0
    _
  %s8 = ssub.s32 1, %s6
  %s9 = scalar_select 0, %s8, %s6
  $region1: #{convnet4_forward.7} parent=0
    #allocation2 [shape = 'u8[1024]{0}', space=vmem, size = 0x400, scoped, tag = 'output window, operand 0']
    #allocation3 [shape = 's32[2]{0}', space=sflag, size = 0x8, scoped, tag = 'scoped memory for convnet4_forward.7']
    %10 = vsyncpa [#allocation3], 0
    %s11 = scalar_lea.sflag [#allocation3], 1
    %12 = vsyncpa %s11, 0
    loop: start=0, step=1, limit=4
    $region2: #{convnet4_forward.7} parent=1 // loop_pre_header
      _
    $region3: #{convnet4_forward.7} parent=1 // loop_header
      %s14 = sphi 0, %s18
      %p15 = scmp.ge.s32.totalorder %s14, 4
      %s24 = sphi 0, %s26
      %s27 = sphi 0, %s24
      %s28 = sphi 0, %s27
      %s44 = sphi 0, %s28
      %s48 = sphi 0, %s48
      %s50 = sphi 0, %s48
      %s51 = sphi 0, %s50
      %s65 = sphi 0, %s51
      %s69 = sphi 0, %s69
      %s71 = sphi 0, %s69
      %s72 = sphi 0, %s71
      %s86 = sphi 0, %s72
      %s90 = sphi 0, %s90
      %s92 = sphi 0, %s90
      %s93 = sphi 0, %s92
      %s107 = sphi 0, %s93
      %s111 = sphi 0, %s111
      %s113 = sphi 0, %s111
      %s114 = sphi 0, %s113
      %s128 = sphi 0, %s114
      %s134 = sphi 0, %s136
      %s137 = sphi 0, %s134
      %s138 = sphi 0, %s137
      %s154 = sphi 0, %s138
    $region4: #{convnet4_forward.7} parent=1 // loop_header_branch
      %17 = sbr.rel (%p15) target = $region8
    $region5: #{convnet4_forward.7} parent=1 // loop_body
      %s19 = ssub.s32 %s14, 1
      %s20 = ssub.s32 %s14, 2
      %s21 = sadd.s32 %s14, 1
      %s22 = ssub.s32 %s14, %s21
      %p23 = scmp.eq.s32.totalorder %s22, 0
      %s25 = sadd.s32 %s24, 1
      %s26 = scalar_select %p23, %s24, %s25
      %p29 = pneg %p23
      %p30 = scmp.eq.s32.totalorder %s14, 1
      %p31 = por %p29, %p30
      %p32 = scmp.ne.s32.totalorder %s24, %s27
      %p33 = scmp.eq.s32.totalorder %s14, 0
      %p34 = por %p32, %p33
      %p35 = scmp.ne.s32.totalorder %s24, %s27
      %p36 = scmp.eq.s32.totalorder %s19, 1
      %p37 = por %p35, %p36
      %p38 = scmp.ne.s32.totalorder %s27, %s28
      %p39 = scmp.eq.s32.totalorder %s19, 0
      %p40 = por %p38, %p39
      %p41 = scmp.ne.s32.totalorder %s27, %s28
      %p42 = scmp.eq.s32.totalorder %s20, 1
      %p43 = por %p41, %p42
      %p45 = scmp.ne.s32.totalorder %s28, %s44
      %p46 = scmp.eq.s32.totalorder %s20, 0
      %p47 = por %p45, %p46
      %s49 = sadd.s32 %s48, 1
      %p52 = scmp.eq.s32.totalorder %s14, 1
      %p53 = scmp.ne.s32.totalorder %s48, %s50
      %p54 = scmp.eq.s32.totalorder %s14, 0
      %p55 = por %p53, %p54
      %p56 = scmp.ne.s32.totalorder %s48, %s50
      %p57 = scmp.eq.s32.totalorder %s19, 1
      %p58 = por %p56, %p57
      %p59 = scmp.ne.s32.totalorder %s50, %s51
      %p60 = scmp.eq.s32.totalorder %s19, 0
      %p61 = por %p59, %p60
      %p62 = scmp.ne.s32.totalorder %s50, %s51
      %p63 = scmp.eq.s32.totalorder %s20, 1
      %p64 = por %p62, %p63
      %p66 = scmp.ne.s32.totalorder %s51, %s65
      %p67 = scmp.eq.s32.totalorder %s20, 0
      %p68 = por %p66, %p67
      %s70 = sadd.s32 %s69, 1
      %p73 = scmp.eq.s32.totalorder %s14, 1
      %p74 = scmp.ne.s32.totalorder %s69, %s71
      %p75 = scmp.eq.s32.totalorder %s14, 0
      %p76 = por %p74, %p75
      %p77 = scmp.ne.s32.totalorder %s69, %s71
      %p78 = scmp.eq.s32.totalorder %s19, 1
      %p79 = por %p77, %p78
      %p80 = scmp.ne.s32.totalorder %s71, %s72
      %p81 = scmp.eq.s32.totalorder %s19, 0
      %p82 = por %p80, %p81
      %p83 = scmp.ne.s32.totalorder %s71, %s72
      %p84 = scmp.eq.s32.totalorder %s20, 1
      %p85 = por %p83, %p84
      %p87 = scmp.ne.s32.totalorder %s72, %s86
      %p88 = scmp.eq.s32.totalorder %s20, 0
      %p89 = por %p87, %p88
      %s91 = sadd.s32 %s90, 1
      %p94 = scmp.eq.s32.totalorder %s14, 1
      %p95 = scmp.ne.s32.totalorder %s90, %s92
      %p96 = scmp.eq.s32.totalorder %s14, 0
      %p97 = por %p95, %p96
      %p98 = scmp.ne.s32.totalorder %s90, %s92
      %p99 = scmp.eq.s32.totalorder %s19, 1
      %p100 = por %p98, %p99
      %p101 = scmp.ne.s32.totalorder %s92, %s93
      %p102 = scmp.eq.s32.totalorder %s19, 0
      %p103 = por %p101, %p102
      %p104 = scmp.ne.s32.totalorder %s92, %s93
      %p105 = scmp.eq.s32.totalorder %s20, 1
      %p106 = por %p104, %p105
      %p108 = scmp.ne.s32.totalorder %s93, %s107
      %p109 = scmp.eq.s32.totalorder %s20, 0
      %p110 = por %p108, %p109
      %s112 = sadd.s32 %s111, 1
      %p115 = scmp.eq.s32.totalorder %s14, 1
      %p116 = scmp.ne.s32.totalorder %s111, %s113
      %p117 = scmp.eq.s32.totalorder %s14, 0
      %p118 = por %p116, %p117
      %p119 = scmp.ne.s32.totalorder %s111, %s113
      %p120 = scmp.eq.s32.totalorder %s19, 1
      %p121 = por %p119, %p120
      %p122 = scmp.ne.s32.totalorder %s113, %s114
      %p123 = scmp.eq.s32.totalorder %s19, 0
      %p124 = por %p122, %p123
      %p125 = scmp.ne.s32.totalorder %s113, %s114
      %p126 = scmp.eq.s32.totalorder %s20, 1
      %p127 = por %p125, %p126
      %p129 = scmp.ne.s32.totalorder %s114, %s128
      %p130 = scmp.eq.s32.totalorder %s20, 0
      %p131 = por %p129, %p130
      %s132 = ssub.s32 %s14, %s21
      %p133 = scmp.eq.s32.totalorder %s132, 0
      %s135 = sadd.s32 %s134, 1
      %s136 = scalar_select %p133, %s134, %s135
      %p139 = pneg %p133
      %p140 = scmp.eq.s32.totalorder %s14, 1
      %p141 = por %p139, %p140
      %p142 = scmp.ne.s32.totalorder %s134, %s137
      %p143 = scmp.eq.s32.totalorder %s14, 0
      %p144 = por %p142, %p143
      %p145 = scmp.ne.s32.totalorder %s134, %s137
      %p146 = scmp.eq.s32.totalorder %s19, 1
      %p147 = por %p145, %p146
      %p148 = scmp.ne.s32.totalorder %s137, %s138
      %p149 = scmp.eq.s32.totalorder %s19, 0
      %p150 = por %p148, %p149
      %p151 = scmp.ne.s32.totalorder %s137, %s138
      %p152 = scmp.eq.s32.totalorder %s20, 1
      %p153 = por %p151, %p152
      %p155 = scmp.ne.s32.totalorder %s138, %s154
      %p156 = scmp.eq.s32.totalorder %s20, 0
      %p157 = por %p155, %p156
      %p158 = scmp.le.s32.totalorder 1, %s14
      %p159 = scmp.lt.s32.totalorder %s14, 3
      %p160 = pnand %p158, %p159
      %p161 = pneg %p160
      // Predicated region
      $region9: #{convnet4_forward.7} parent=5 // pred_check
        _
      $region10: #{convnet4_forward.7} parent=5 // pred_check_branch
        %163 = sbr.rel (%p160) target = $region12
      $region11: #{convnet4_forward.7} parent=5 // pred_region
        %s164 = ssub.s32 %s14, 1
        // Predicated region
        $region13: #{convnet4_forward.7} parent=11 // pred_check
          %p165 = pneg %p61
        $region14: #{convnet4_forward.7} parent=11 // pred_check_branch
          %167 = sbr.rel (%p165) target = $region16
        $region15: #{convnet4_forward.7} parent=11 // pred_region
          _
        $region16: #{convnet4_forward.7} parent=11 // pred_fallthru
          _
        // Predicated region
        $region17: #{convnet4_forward.7} parent=11 // pred_check
          %p168 = pneg %p82
        $region18: #{convnet4_forward.7} parent=11 // pred_check_branch
          %170 = sbr.rel (%p168) target = $region20
        $region19: #{convnet4_forward.7} parent=11 // pred_region
          _
        $region20: #{convnet4_forward.7} parent=11 // pred_fallthru
          _
        // Predicated region
        $region21: #{convnet4_forward.7} parent=11 // pred_check
          %p171 = pneg %p103
        $region22: #{convnet4_forward.7} parent=11 // pred_check_branch
          %173 = sbr.rel (%p171) target = $region24
        $region23: #{convnet4_forward.7} parent=11 // pred_region
          _
        $region24: #{convnet4_forward.7} parent=11 // pred_fallthru
          _
        // Predicated region
        $region25: #{convnet4_forward.7} parent=11 // pred_check
          %p174 = pneg %p124
        $region26: #{convnet4_forward.7} parent=11 // pred_check_branch
          %176 = sbr.rel (%p174) target = $region28
        $region27: #{convnet4_forward.7} parent=11 // pred_region
          _
        $region28: #{convnet4_forward.7} parent=11 // pred_fallthru
          _
      $region12: #{convnet4_forward.7} parent=5 // pred_fallthru
        _
      %p177 = scmp.lt.s32.totalorder %s14, 2
      // Predicated region
      $region29: #{convnet4_forward.7} parent=5 // pred_check
        %p178 = pneg %p177
      $region30: #{convnet4_forward.7} parent=5 // pred_check_branch
        %180 = sbr.rel (%p178) target = $region32
      $region31: #{convnet4_forward.7} parent=5 // pred_region
        // Predicated region
        $region33: #{convnet4_forward.7} parent=31 // pred_check
          %p181 = pneg %p34
        $region34: #{convnet4_forward.7} parent=31 // pred_check_branch
          %183 = sbr.rel (%p181) target = $region36
        $region35: #{convnet4_forward.7} parent=31 // pred_region
          %p184 = scmp.lt.s32.totalorder %s14, 1
          %s185 = scalar_select %p184, %s14, 1
          %s186 = smul.addr %s185, 10
          %s187 = smul.addr %s186, 4
          %s188 = scalar_lea.vmem %s0, %s187
        $region36: #{convnet4_forward.7} parent=31 // pred_fallthru
          _
      $region32: #{convnet4_forward.7} parent=5 // pred_fallthru
        _
      %p189 = scmp.le.s32.totalorder 1, %s14
      %p190 = scmp.lt.s32.totalorder %s14, 3
      %p191 = pnand %p189, %p190
      %p192 = pneg %p191
      // Predicated region
      $region37: #{convnet4_forward.7} parent=5 // pred_check
        _
      $region38: #{convnet4_forward.7} parent=5 // pred_check_branch
        %194 = sbr.rel (%p191) target = $region40
      $region39: #{convnet4_forward.7} parent=5 // pred_region
        %s195 = ssub.s32 %s14, 1
        %p196 = scmp.lt.s32.totalorder %s19, 1
        %s197 = scalar_select %p196, %s19, 1
        %s198 = smul.addr %s197, 10
        %s199 = smul.addr %s198, 4
        %s200 = scalar_lea.vmem %s0, %s199
        %p201 = pneg %p40
        %p202 = pneg %p37
        %p203 = pneg %p61
        %p204 = pneg %p58
        %p205 = pneg %p82
        %p206 = pneg %p79
        %p207 = pneg %p103
        %p208 = pneg %p100
        %p209 = pneg %p124
        %p210 = pneg %p121
        %p211 = pneg %p150
        %p212 = pneg %p147
        %s213 = sand.u32 %s137, 1
        %s214 = scalar_lea.sflag [#allocation3], %s213
        %s215 = sand.u32 %s137, 1
        %s216 = scalar_lea.vmem [#allocation2], %s215
        %p217 = scmp.lt.s32.totalorder %s19, 1
        %s218 = scalar_select %p217, %s19, 1
        %s219 = smul.addr %s218, 10
        %s220 = smul.addr %s219, 4
        %s221 = scalar_lea.vmem %s0, %s220
        %v223 = vld [vmem:[%s221] sm:$0x33]
        %v224 = vld [vmem:[%s221 + $0x8] sm:$0x33]
        %v225 = vld [vmem:[%s221 + $0x10] sm:$0x3]
        %v226 = vld [vmem:[%s1] sm:$0xff]
        %v227 = vld [vmem:[%s1 + $0x8] sm:$0xff]
        %v228 = vld [vmem:[%s1 + $0x10] sm:$0xff]
        %v229 = vld [vmem:[%s1 + $0x18] sm:$0xff]
        %v230 = vld [vmem:[%s1 + $0x20] sm:$0xff]
        %v231 = vld [vmem:[%s1 + $0x28] sm:$0xff]
        %v232 = vld [vmem:[%s1 + $0x30] sm:$0xff]
        %v233 = vld [vmem:[%s1 + $0x38] sm:$0xff]
        %v234 = vld [vmem:[%s1 + $0x40] sm:$0xff]
        %v235 = vld [vmem:[%s1 + $0x48] sm:$0xff]
        %v236 = vld [vmem:[%s1 + $0x50] sm:$0xff]
        %v237 = vld [vmem:[%s1 + $0x58] sm:$0xff]
        %v238 = vld [vmem:[%s1 + $0x60] sm:$0xff]
        %v239 = vld [vmem:[%s1 + $0x68] sm:$0xff]
        %v240 = vld [vmem:[%s1 + $0x70] sm:$0xff]
        %v241 = vld [vmem:[%s1 + $0x78] sm:$0xff]
        %v242 = vld [vmem:[%s1 + $0x80] sm:$0xff]
        %v243 = vld [vmem:[%s1 + $0x88] sm:$0xff]
        %v244 = vld [vmem:[%s1 + $0x90] sm:$0xff]
        %v245 = vld [vmem:[%s1 + $0x98] sm:$0xff]
        %v246 = vld [vmem:[%s1 + $0xa0] sm:$0xff]
        %v247 = vld [vmem:[%s1 + $0xa8] sm:$0xff]
        %v248 = vld [vmem:[%s1 + $0xb0] sm:$0xff]
        %v249 = vld [vmem:[%s1 + $0xb8] sm:$0xff]
        %v250 = vld [vmem:[%s1 + $0xc0] sm:$0xff]
        %v251 = vld [vmem:[%s1 + $0xc8] sm:$0xff]
        %v252 = vld [vmem:[%s1 + $0xd0] sm:$0xff]
        %v253 = vld [vmem:[%s1 + $0xd8] sm:$0xff]
        %v254 = vld [vmem:[%s1 + $0xe0] sm:$0xff]
        %v255 = vld [vmem:[%s1 + $0xe8] sm:$0xff]
        %v256 = vld [vmem:[%s1 + $0xf0] sm:$0xff]
        %v257 = vld [vmem:[%s1 + $0xf8] sm:$0xff]
        %v258 = vld [vmem:[%s1 + $0x100] sm:$0xff]
        %v259 = vld [vmem:[%s1 + $0x108] sm:$0xff]
        %v260 = vld [vmem:[%s1 + $0x110] sm:$0xff]
        %v261 = vld [vmem:[%s1 + $0x118] sm:$0xff]
        %v262 = vld [vmem:[%s1 + $0x120] sm:$0xff]
        %v263 = vld [vmem:[%s1 + $0x128] sm:$0xff]
        %v264 = vld [vmem:[%s1 + $0x130] sm:$0xff]
        %v265 = vld [vmem:[%s1 + $0x138] sm:$0xff]
        %v266 = vld [vmem:[%s1 + $0x140] sm:$0xff]
        %v267 = vld [vmem:[%s1 + $0x148] sm:$0xff]
        %v268 = vld [vmem:[%s1 + $0x150] sm:$0xff]
        %v269 = vld [vmem:[%s1 + $0x158] sm:$0xff]
        %v270 = vld [vmem:[%s1 + $0x160] sm:$0xff]
        %v271 = vld [vmem:[%s1 + $0x168] sm:$0xff]
        %v272 = vld [vmem:[%s1 + $0x170] sm:$0xff]
        %v273 = vld [vmem:[%s1 + $0x178] sm:$0xff]
        %v274 = vld [vmem:[%s1 + $0x180] sm:$0xff]
        %v275 = vld [vmem:[%s1 + $0x188] sm:$0xff]
        %v276 = vld [vmem:[%s1 + $0x190] sm:$0xff]
        %v277 = vld [vmem:[%s1 + $0x198] sm:$0xff]
        %v278 = vld [vmem:[%s1 + $0x1a0] sm:$0xff]
        %v279 = vld [vmem:[%s1 + $0x1a8] sm:$0xff]
        %v280 = vld [vmem:[%s1 + $0x1b0] sm:$0xff]
        %v281 = vld [vmem:[%s1 + $0x1b8] sm:$0xff]
        %v282 = vld [vmem:[%s1 + $0x1c0] sm:$0xff]
        %v283 = vld [vmem:[%s1 + $0x1c8] sm:$0xff]
        %v284 = vld [vmem:[%s1 + $0x1d0] sm:$0xff]
        %v285 = vld [vmem:[%s1 + $0x1d8] sm:$0xff]
        %v286 = vld [vmem:[%s1 + $0x1e0] sm:$0xff]
        %v287 = vld [vmem:[%s1 + $0x1e8] sm:$0xff]
        %v288 = vld [vmem:[%s1 + $0x1f0] sm:$0xff]
        %v289 = vld [vmem:[%s1 + $0x1f8] sm:$0xff]
        %v290 = vld [vmem:[%s1 + $0x200] sm:$0xff]
        %v291 = vld [vmem:[%s1 + $0x208] sm:$0xff]
        %v292 = vld [vmem:[%s1 + $0x210] sm:$0xff]
        %v293 = vld [vmem:[%s1 + $0x218] sm:$0xff]
        %v294 = vld [vmem:[%s1 + $0x220] sm:$0xff]
        %v295 = vld [vmem:[%s1 + $0x228] sm:$0xff]
        %v296 = vld [vmem:[%s1 + $0x230] sm:$0xff]
        %v297 = vld [vmem:[%s1 + $0x238] sm:$0xff]
        %v298 = vld [vmem:[%s1 + $0x240] sm:$0xff]
        %v299 = vld [vmem:[%s1 + $0x248] sm:$0xff]
        %v300 = vld [vmem:[%s1 + $0x250] sm:$0xff]
        %v301 = vld [vmem:[%s1 + $0x258] sm:$0xff]
        %v302 = vld [vmem:[%s1 + $0x260] sm:$0xff]
        %v303 = vld [vmem:[%s1 + $0x268] sm:$0xff]
        %v304 = vld [vmem:[%s1 + $0x270] sm:$0xff]
        %v305 = vld [vmem:[%s1 + $0x278] sm:$0xff]
        %v306 = vld [vmem:[%s1 + $0x280] sm:$0xff]
        %v307 = vld [vmem:[%s1 + $0x288] sm:$0xff]
        %v308 = vld [vmem:[%s1 + $0x290] sm:$0xff]
        %v309 = vld [vmem:[%s1 + $0x298] sm:$0xff]
        %v310 = vld [vmem:[%s1 + $0x2a0] sm:$0xff]
        %v311 = vld [vmem:[%s1 + $0x2a8] sm:$0xff]
        %v312 = vld [vmem:[%s1 + $0x2b0] sm:$0xff]
        %v313 = vld [vmem:[%s1 + $0x2b8] sm:$0xff]
        %v314 = vld [vmem:[%s1 + $0x2c0] sm:$0xff]
        %v315 = vld [vmem:[%s1 + $0x2c8] sm:$0xff]
        %v316 = vld [vmem:[%s1 + $0x2d0] sm:$0xff]
        %v317 = vld [vmem:[%s1 + $0x2d8] sm:$0xff]
        %v318 = vld [vmem:[%s1 + $0x2e0] sm:$0xff]
        %v319 = vld [vmem:[%s1 + $0x2e8] sm:$0xff]
        %v320 = vld [vmem:[%s1 + $0x2f0] sm:$0xff]
        %v321 = vld [vmem:[%s1 + $0x2f8] sm:$0xff]
        %v322 = vld [vmem:[%s1 + $0x300] sm:$0xff]
        %v323 = vld [vmem:[%s1 + $0x308] sm:$0xff]
        %v324 = vld [vmem:[%s1 + $0x310] sm:$0xff]
        %v325 = vld [vmem:[%s1 + $0x318] sm:$0xff]
        %v326 = vld [vmem:[%s1 + $0x320] sm:$0xff]
        %v327 = vld [vmem:[%s1 + $0x328] sm:$0xff]
        %v328 = vld [vmem:[%s1 + $0x330] sm:$0xff]
        %v329 = vld [vmem:[%s1 + $0x338] sm:$0xff]
        %v330 = vld [vmem:[%s1 + $0x340] sm:$0xff]
        %v331 = vld [vmem:[%s1 + $0x348] sm:$0xff]
        %v332 = vld [vmem:[%s1 + $0x350] sm:$0xff]
        %v333 = vld [vmem:[%s1 + $0x358] sm:$0xff]
        %v334 = vld [vmem:[%s1 + $0x360] sm:$0xff]
        %v335 = vld [vmem:[%s1 + $0x368] sm:$0xff]
        %v336 = vld [vmem:[%s1 + $0x370] sm:$0xff]
        %v337 = vld [vmem:[%s1 + $0x378] sm:$0xff]
        %v338 = vld [vmem:[%s1 + $0x380] sm:$0xff]
        %v339 = vld [vmem:[%s1 + $0x388] sm:$0xff]
        %v340 = vld [vmem:[%s1 + $0x390] sm:$0xff]
        %v341 = vld [vmem:[%s1 + $0x398] sm:$0xff]
        %v342 = vld [vmem:[%s1 + $0x3a0] sm:$0xff]
        %v343 = vld [vmem:[%s1 + $0x3a8] sm:$0xff]
        %v344 = vld [vmem:[%s1 + $0x3b0] sm:$0xff]
        %v345 = vld [vmem:[%s1 + $0x3b8] sm:$0xff]
        %v346 = vld [vmem:[%s1 + $0x3c0] sm:$0xff]
        %v347 = vld [vmem:[%s1 + $0x3c8] sm:$0xff]
        %v348 = vld [vmem:[%s1 + $0x3d0] sm:$0xff]
        %v349 = vld [vmem:[%s1 + $0x3d8] sm:$0xff]
        %v350 = vld [vmem:[%s1 + $0x3e0] sm:$0xff]
        %v351 = vld [vmem:[%s1 + $0x3e8] sm:$0xff]
        %v352 = vld [vmem:[%s1 + $0x3f0] sm:$0xff]
        %v353 = vld [vmem:[%s1 + $0x3f8] sm:$0xff]
        %v354 = vld [vmem:[%s1 + $0x400] sm:$0xff]
        %v355 = vld [vmem:[%s1 + $0x408] sm:$0xff]
        %v356 = vld [vmem:[%s1 + $0x410] sm:$0xff]
        %v357 = vld [vmem:[%s1 + $0x418] sm:$0xff]
        %v358 = vld [vmem:[%s1 + $0x420] sm:$0xff]
        %v359 = vld [vmem:[%s1 + $0x428] sm:$0xff]
        %v360 = vld [vmem:[%s1 + $0x430] sm:$0xff]
        %v361 = vld [vmem:[%s1 + $0x438] sm:$0xff]
        %v362 = vld [vmem:[%s1 + $0x440] sm:$0xff]
        %v363 = vld [vmem:[%s1 + $0x448] sm:$0xff]
        %v364 = vld [vmem:[%s1 + $0x450] sm:$0xff]
        %v365 = vld [vmem:[%s1 + $0x458] sm:$0xff]
        %v366 = vld [vmem:[%s1 + $0x460] sm:$0xff]
        %v367 = vld [vmem:[%s1 + $0x468] sm:$0xff]
        %v368 = vld [vmem:[%s1 + $0x470] sm:$0xff]
        %v369 = vld [vmem:[%s1 + $0x478] sm:$0xff]
        %v370 = vld [vmem:[%s1 + $0x480] sm:$0xff]
        %v371 = vld [vmem:[%s1 + $0x488] sm:$0xff]
        %v372 = vld [vmem:[%s1 + $0x490] sm:$0xff]
        %v373 = vld [vmem:[%s1 + $0x498] sm:$0xff]
        %v374 = vld [vmem:[%s1 + $0x4a0] sm:$0xff]
        %v375 = vld [vmem:[%s1 + $0x4a8] sm:$0xff]
        %v376 = vld [vmem:[%s1 + $0x4b0] sm:$0xff]
        %v377 = vld [vmem:[%s1 + $0x4b8] sm:$0xff]
        %v378 = vld [vmem:[%s1 + $0x4c0] sm:$0xff]
        %v379 = vld [vmem:[%s1 + $0x4c8] sm:$0xff]
        %v380 = vld [vmem:[%s1 + $0x4d0] sm:$0xff]
        %v381 = vld [vmem:[%s1 + $0x4d8] sm:$0xff]
        %v382 = vld [vmem:[%s1 + $0x4e0] sm:$0xff]
        %v383 = vld [vmem:[%s1 + $0x4e8] sm:$0xff]
        %v384 = vld [vmem:[%s1 + $0x4f0] sm:$0xff]
        %v385 = vld [vmem:[%s1 + $0x4f8] sm:$0xff]
        %v386 = vld [vmem:[%s221] sm:$0xcc]
        %v387 = vld [vmem:[%s221 + $0x8] sm:$0xcc]
        %v388 = vld [vmem:[%s221 + $0x10] sm:$0xc]
        %v389 = vld [vmem:[%s221 + $0x14] sm:$0x11]
        %v390 = vld [vmem:[%s221 + $0x1c] sm:$0x11]
        %v391 = vld [vmem:[%s221 + $0x24] sm:$0x1]
        %s392 = scalar_lea.vmem %s1, 1280
        %v393 = vld [vmem:[%s392] sm:$0xff]
        %v394 = vld [vmem:[%s392 + $0x8] sm:$0xff]
        %v395 = vld [vmem:[%s392 + $0x10] sm:$0xff]
        %v396 = vld [vmem:[%s392 + $0x18] sm:$0xff]
        %v397 = vld [vmem:[%s392 + $0x20] sm:$0xff]
        %v398 = vld [vmem:[%s392 + $0x28] sm:$0xff]
        %v399 = vld [vmem:[%s392 + $0x30] sm:$0xff]
        %v400 = vld [vmem:[%s392 + $0x38] sm:$0xff]
        %v401 = vld [vmem:[%s392 + $0x40] sm:$0xff]
        %v402 = vld [vmem:[%s392 + $0x48] sm:$0xff]
        %v403 = vld [vmem:[%s392 + $0x50] sm:$0xff]
        %v404 = vld [vmem:[%s392 + $0x58] sm:$0xff]
        %v405 = vld [vmem:[%s392 + $0x60] sm:$0xff]
        %v406 = vld [vmem:[%s392 + $0x68] sm:$0xff]
        %v407 = vld [vmem:[%s392 + $0x70] sm:$0xff]
        %v408 = vld [vmem:[%s392 + $0x78] sm:$0xff]
        %v409 = vld [vmem:[%s392 + $0x80] sm:$0xff]
        %v410 = vld [vmem:[%s392 + $0x88] sm:$0xff]
        %v411 = vld [vmem:[%s392 + $0x90] sm:$0xff]
        %v412 = vld [vmem:[%s392 + $0x98] sm:$0xff]
        %v413 = vld [vmem:[%s392 + $0xa0] sm:$0xff]
        %v414 = vld [vmem:[%s392 + $0xa8] sm:$0xff]
        %v415 = vld [vmem:[%s392 + $0xb0] sm:$0xff]
        %v416 = vld [vmem:[%s392 + $0xb8] sm:$0xff]
        %v417 = vld [vmem:[%s392 + $0xc0] sm:$0xff]
        %v418 = vld [vmem:[%s392 + $0xc8] sm:$0xff]
        %v419 = vld [vmem:[%s392 + $0xd0] sm:$0xff]
        %v420 = vld [vmem:[%s392 + $0xd8] sm:$0xff]
        %v421 = vld [vmem:[%s392 + $0xe0] sm:$0xff]
        %v422 = vld [vmem:[%s392 + $0xe8] sm:$0xff]
        %v423 = vld [vmem:[%s392 + $0xf0] sm:$0xff]
        %v424 = vld [vmem:[%s392 + $0xf8] sm:$0xff]
        %v425 = vld [vmem:[%s392 + $0x100] sm:$0xff]
        %v426 = vld [vmem:[%s392 + $0x108] sm:$0xff]
        %v427 = vld [vmem:[%s392 + $0x110] sm:$0xff]
        %v428 = vld [vmem:[%s392 + $0x118] sm:$0xff]
        %v429 = vld [vmem:[%s392 + $0x120] sm:$0xff]
        %v430 = vld [vmem:[%s392 + $0x128] sm:$0xff]
        %v431 = vld [vmem:[%s392 + $0x130] sm:$0xff]
        %v432 = vld [vmem:[%s392 + $0x138] sm:$0xff]
        %v433 = vld [vmem:[%s392 + $0x140] sm:$0xff]
        %v434 = vld [vmem:[%s392 + $0x148] sm:$0xff]
        %v435 = vld [vmem:[%s392 + $0x150] sm:$0xff]
        %v436 = vld [vmem:[%s392 + $0x158] sm:$0xff]
        %v437 = vld [vmem:[%s392 + $0x160] sm:$0xff]
        %v438 = vld [vmem:[%s392 + $0x168] sm:$0xff]
        %v439 = vld [vmem:[%s392 + $0x170] sm:$0xff]
        %v440 = vld [vmem:[%s392 + $0x178] sm:$0xff]
        %v441 = vld [vmem:[%s392 + $0x180] sm:$0xff]
        %v442 = vld [vmem:[%s392 + $0x188] sm:$0xff]
        %v443 = vld [vmem:[%s392 + $0x190] sm:$0xff]
        %v444 = vld [vmem:[%s392 + $0x198] sm:$0xff]
        %v445 = vld [vmem:[%s392 + $0x1a0] sm:$0xff]
        %v446 = vld [vmem:[%s392 + $0x1a8] sm:$0xff]
        %v447 = vld [vmem:[%s392 + $0x1b0] sm:$0xff]
        %v448 = vld [vmem:[%s392 + $0x1b8] sm:$0xff]
        %v449 = vld [vmem:[%s392 + $0x1c0] sm:$0xff]
        %v450 = vld [vmem:[%s392 + $0x1c8] sm:$0xff]
        %v451 = vld [vmem:[%s392 + $0x1d0] sm:$0xff]
        %v452 = vld [vmem:[%s392 + $0x1d8] sm:$0xff]
        %v453 = vld [vmem:[%s392 + $0x1e0] sm:$0xff]
        %v454 = vld [vmem:[%s392 + $0x1e8] sm:$0xff]
        %v455 = vld [vmem:[%s392 + $0x1f0] sm:$0xff]
        %v456 = vld [vmem:[%s392 + $0x1f8] sm:$0xff]
        %v457 = vld [vmem:[%s392 + $0x200] sm:$0xff]
        %v458 = vld [vmem:[%s392 + $0x208] sm:$0xff]
        %v459 = vld [vmem:[%s392 + $0x210] sm:$0xff]
        %v460 = vld [vmem:[%s392 + $0x218] sm:$0xff]
        %v461 = vld [vmem:[%s392 + $0x220] sm:$0xff]
        %v462 = vld [vmem:[%s392 + $0x228] sm:$0xff]
        %v463 = vld [vmem:[%s392 + $0x230] sm:$0xff]
        %v464 = vld [vmem:[%s392 + $0x238] sm:$0xff]
        %v465 = vld [vmem:[%s392 + $0x240] sm:$0xff]
        %v466 = vld [vmem:[%s392 + $0x248] sm:$0xff]
        %v467 = vld [vmem:[%s392 + $0x250] sm:$0xff]
        %v468 = vld [vmem:[%s392 + $0x258] sm:$0xff]
        %v469 = vld [vmem:[%s392 + $0x260] sm:$0xff]
        %v470 = vld [vmem:[%s392 + $0x268] sm:$0xff]
        %v471 = vld [vmem:[%s392 + $0x270] sm:$0xff]
        %v472 = vld [vmem:[%s392 + $0x278] sm:$0xff]
        %v473 = vld [vmem:[%s392 + $0x280] sm:$0xff]
        %v474 = vld [vmem:[%s392 + $0x288] sm:$0xff]
        %v475 = vld [vmem:[%s392 + $0x290] sm:$0xff]
        %v476 = vld [vmem:[%s392 + $0x298] sm:$0xff]
        %v477 = vld [vmem:[%s392 + $0x2a0] sm:$0xff]
        %v478 = vld [vmem:[%s392 + $0x2a8] sm:$0xff]
        %v479 = vld [vmem:[%s392 + $0x2b0] sm:$0xff]
        %v480 = vld [vmem:[%s392 + $0x2b8] sm:$0xff]
        %v481 = vld [vmem:[%s392 + $0x2c0] sm:$0xff]
        %v482 = vld [vmem:[%s392 + $0x2c8] sm:$0xff]
        %v483 = vld [vmem:[%s392 + $0x2d0] sm:$0xff]
        %v484 = vld [vmem:[%s392 + $0x2d8] sm:$0xff]
        %v485 = vld [vmem:[%s392 + $0x2e0] sm:$0xff]
        %v486 = vld [vmem:[%s392 + $0x2e8] sm:$0xff]
        %v487 = vld [vmem:[%s392 + $0x2f0] sm:$0xff]
        %v488 = vld [vmem:[%s392 + $0x2f8] sm:$0xff]
        %v489 = vld [vmem:[%s392 + $0x300] sm:$0xff]
        %v490 = vld [vmem:[%s392 + $0x308] sm:$0xff]
        %v491 = vld [vmem:[%s392 + $0x310] sm:$0xff]
        %v492 = vld [vmem:[%s392 + $0x318] sm:$0xff]
        %v493 = vld [vmem:[%s392 + $0x320] sm:$0xff]
        %v494 = vld [vmem:[%s392 + $0x328] sm:$0xff]
        %v495 = vld [vmem:[%s392 + $0x330] sm:$0xff]
        %v496 = vld [vmem:[%s392 + $0x338] sm:$0xff]
        %v497 = vld [vmem:[%s392 + $0x340] sm:$0xff]
        %v498 = vld [vmem:[%s392 + $0x348] sm:$0xff]
        %v499 = vld [vmem:[%s392 + $0x350] sm:$0xff]
        %v500 = vld [vmem:[%s392 + $0x358] sm:$0xff]
        %v501 = vld [vmem:[%s392 + $0x360] sm:$0xff]
        %v502 = vld [vmem:[%s392 + $0x368] sm:$0xff]
        %v503 = vld [vmem:[%s392 + $0x370] sm:$0xff]
        %v504 = vld [vmem:[%s392 + $0x378] sm:$0xff]
        %v505 = vld [vmem:[%s392 + $0x380] sm:$0xff]
        %v506 = vld [vmem:[%s392 + $0x388] sm:$0xff]
        %v507 = vld [vmem:[%s392 + $0x390] sm:$0xff]
        %v508 = vld [vmem:[%s392 + $0x398] sm:$0xff]
        %v509 = vld [vmem:[%s392 + $0x3a0] sm:$0xff]
        %v510 = vld [vmem:[%s392 + $0x3a8] sm:$0xff]
        %v511 = vld [vmem:[%s392 + $0x3b0] sm:$0xff]
        %v512 = vld [vmem:[%s392 + $0x3b8] sm:$0xff]
        %v513 = vld [vmem:[%s392 + $0x3c0] sm:$0xff]
        %v514 = vld [vmem:[%s392 + $0x3c8] sm:$0xff]
        %v515 = vld [vmem:[%s392 + $0x3d0] sm:$0xff]
        %v516 = vld [vmem:[%s392 + $0x3d8] sm:$0xff]
        %v517 = vld [vmem:[%s392 + $0x3e0] sm:$0xff]
        %v518 = vld [vmem:[%s392 + $0x3e8] sm:$0xff]
        %v519 = vld [vmem:[%s392 + $0x3f0] sm:$0xff]
        %v520 = vld [vmem:[%s392 + $0x3f8] sm:$0xff]
        %v521 = vld [vmem:[%s392 + $0x400] sm:$0xff]
        %v522 = vld [vmem:[%s392 + $0x408] sm:$0xff]
        %v523 = vld [vmem:[%s392 + $0x410] sm:$0xff]
        %v524 = vld [vmem:[%s392 + $0x418] sm:$0xff]
        %v525 = vld [vmem:[%s392 + $0x420] sm:$0xff]
        %v526 = vld [vmem:[%s392 + $0x428] sm:$0xff]
        %v527 = vld [vmem:[%s392 + $0x430] sm:$0xff]
        %v528 = vld [vmem:[%s392 + $0x438] sm:$0xff]
        %v529 = vld [vmem:[%s392 + $0x440] sm:$0xff]
        %v530 = vld [vmem:[%s392 + $0x448] sm:$0xff]
        %v531 = vld [vmem:[%s392 + $0x450] sm:$0xff]
        %v532 = vld [vmem:[%s392 + $0x458] sm:$0xff]
        %v533 = vld [vmem:[%s392 + $0x460] sm:$0xff]
        %v534 = vld [vmem:[%s392 + $0x468] sm:$0xff]
        %v535 = vld [vmem:[%s392 + $0x470] sm:$0xff]
        %v536 = vld [vmem:[%s392 + $0x478] sm:$0xff]
        %v537 = vld [vmem:[%s392 + $0x480] sm:$0xff]
        %v538 = vld [vmem:[%s392 + $0x488] sm:$0xff]
        %v539 = vld [vmem:[%s392 + $0x490] sm:$0xff]
        %v540 = vld [vmem:[%s392 + $0x498] sm:$0xff]
        %v541 = vld [vmem:[%s392 + $0x4a0] sm:$0xff]
        %v542 = vld [vmem:[%s392 + $0x4a8] sm:$0xff]
        %v543 = vld [vmem:[%s392 + $0x4b0] sm:$0xff]
        %v544 = vld [vmem:[%s392 + $0x4b8] sm:$0xff]
        %v545 = vld [vmem:[%s392 + $0x4c0] sm:$0xff]
        %v546 = vld [vmem:[%s392 + $0x4c8] sm:$0xff]
        %v547 = vld [vmem:[%s392 + $0x4d0] sm:$0xff]
        %v548 = vld [vmem:[%s392 + $0x4d8] sm:$0xff]
        %v549 = vld [vmem:[%s392 + $0x4e0] sm:$0xff]
        %v550 = vld [vmem:[%s392 + $0x4e8] sm:$0xff]
        %v551 = vld [vmem:[%s392 + $0x4f0] sm:$0xff]
        %v552 = vld [vmem:[%s392 + $0x4f8] sm:$0xff]
        %v559 = vunpack.c.l.b16 %v386
        %v560 = vunpack.c.h.b16 %v386
        %v561 = vunpack.c.l.b16 %v387
        %v562 = vunpack.c.h.b16 %v387
        %v563 = vunpack.c.l.b16 %v388
        %v564 = vunpack.c.l.b16 %v389
        %v565 = vunpack.c.h.b16 %v389
        %v566 = vunpack.c.l.b16 %v390
        %v567 = vunpack.c.h.b16 %v390
        %v568 = vunpack.c.l.b16 %v391
        %v569 = vpack.c.b16 %v564, %v559
        %v570 = vpack.c.b16 %v565, %v560
        %v571 = vpack.c.b16 %v566, %v561
        %v572 = vpack.c.b16 %v567, %v562
        %v573 = vpack.c.b16 %v568, %v563
        %v575 = vshrl.u32 %v569, 16
        %v577 = vrot.slane %v575, 2
        %v578 = vshll.u32 %v569, 16
        %v580 = vrot.slane %v578, 3
        %v581 = vor.u32 %v577, %v580
        %v583 = vshrl.u32 %v570, 16
        %v585 = vrot.slane %v583, 2
        %v586 = vshll.u32 %v570, 16
        %v588 = vrot.slane %v586, 3
        %v589 = vor.u32 %v585, %v588
        %v591 = vshrl.u32 %v571, 16
        %v593 = vrot.slane %v591, 2
        %v594 = vshll.u32 %v571, 16
        %v596 = vrot.slane %v594, 3
        %v597 = vor.u32 %v593, %v596
        %v599 = vshrl.u32 %v572, 16
        %v601 = vrot.slane %v599, 2
        %v602 = vshll.u32 %v572, 16
        %v604 = vrot.slane %v602, 3
        %v605 = vor.u32 %v601, %v604
        %v607 = vshrl.u32 %v573, 16
        %v609 = vrot.slane %v607, 2
        %v610 = vshll.u32 %v573, 16
        %v612 = vrot.slane %v610, 3
        %v613 = vor.u32 %v609, %v612
        %v779 = vunpack.c.l.b16 %v393
        %v780 = vunpack.c.h.b16 %v393
        %v781 = vunpack.c.l.b16 %v394
        %v782 = vunpack.c.h.b16 %v394
        %v783 = vunpack.c.l.b16 %v395
        %v784 = vunpack.c.h.b16 %v395
        %v785 = vunpack.c.l.b16 %v396
        %v786 = vunpack.c.h.b16 %v396
        %v787 = vunpack.c.l.b16 %v397
        %v788 = vunpack.c.h.b16 %v397
        %v789 = vunpack.c.l.b16 %v398
        %v790 = vunpack.c.h.b16 %v398
        %v791 = vunpack.c.l.b16 %v399
        %v792 = vunpack.c.h.b16 %v399
        %v793 = vunpack.c.l.b16 %v400
        %v794 = vunpack.c.h.b16 %v400
        %v795 = vunpack.c.l.b16 %v401
        %v796 = vunpack.c.h.b16 %v401
        %v797 = vunpack.c.l.b16 %v402
        %v798 = vunpack.c.h.b16 %v402
        %v799 = vunpack.c.l.b16 %v403
        %v800 = vunpack.c.h.b16 %v403
        %v801 = vunpack.c.l.b16 %v404
        %v802 = vunpack.c.h.b16 %v404
        %v803 = vunpack.c.l.b16 %v405
        %v804 = vunpack.c.h.b16 %v405
        %v805 = vunpack.c.l.b16 %v406
        %v806 = vunpack.c.h.b16 %v406
        %v807 = vunpack.c.l.b16 %v407
        %v808 = vunpack.c.h.b16 %v407
        %v809 = vunpack.c.l.b16 %v408
        %v810 = vunpack.c.h.b16 %v408
        %v811 = vunpack.c.l.b16 %v409
        %v812 = vunpack.c.h.b16 %v409
        %v813 = vunpack.c.l.b16 %v410
        %v814 = vunpack.c.h.b16 %v410
        %v815 = vunpack.c.l.b16 %v411
        %v816 = vunpack.c.h.b16 %v411
        %v817 = vunpack.c.l.b16 %v412
        %v818 = vunpack.c.h.b16 %v412
        %v819 = vunpack.c.l.b16 %v413
        %v820 = vunpack.c.h.b16 %v413
        %v821 = vunpack.c.l.b16 %v414
        %v822 = vunpack.c.h.b16 %v414
        %v823 = vunpack.c.l.b16 %v415
        %v824 = vunpack.c.h.b16 %v415
        %v825 = vunpack.c.l.b16 %v416
        %v826 = vunpack.c.h.b16 %v416
        %v827 = vunpack.c.l.b16 %v417
        %v828 = vunpack.c.h.b16 %v417
        %v829 = vunpack.c.l.b16 %v418
        %v830 = vunpack.c.h.b16 %v418
        %v831 = vunpack.c.l.b16 %v419
        %v832 = vunpack.c.h.b16 %v419
        %v833 = vunpack.c.l.b16 %v420
        %v834 = vunpack.c.h.b16 %v420
        %v835 = vunpack.c.l.b16 %v421
        %v836 = vunpack.c.h.b16 %v421
        %v837 = vunpack.c.l.b16 %v422
        %v838 = vunpack.c.h.b16 %v422
        %v839 = vunpack.c.l.b16 %v423
        %v840 = vunpack.c.h.b16 %v423
        %v841 = vunpack.c.l.b16 %v424
        %v842 = vunpack.c.h.b16 %v424
        %v843 = vunpack.c.l.b16 %v425
        %v844 = vunpack.c.h.b16 %v425
        %v845 = vunpack.c.l.b16 %v426
        %v846 = vunpack.c.h.b16 %v426
        %v847 = vunpack.c.l.b16 %v427
        %v848 = vunpack.c.h.b16 %v427
        %v849 = vunpack.c.l.b16 %v428
        %v850 = vunpack.c.h.b16 %v428
        %v851 = vunpack.c.l.b16 %v429
        %v852 = vunpack.c.h.b16 %v429
        %v853 = vunpack.c.l.b16 %v430
        %v854 = vunpack.c.h.b16 %v430
        %v855 = vunpack.c.l.b16 %v431
        %v856 = vunpack.c.h.b16 %v431
        %v857 = vunpack.c.l.b16 %v432
        %v858 = vunpack.c.h.b16 %v432
        %v859 = vunpack.c.l.b16 %v433
        %v860 = vunpack.c.h.b16 %v433
        %v861 = vunpack.c.l.b16 %v434
        %v862 = vunpack.c.h.b16 %v434
        %v863 = vunpack.c.l.b16 %v435
        %v864 = vunpack.c.h.b16 %v435
        %v865 = vunpack.c.l.b16 %v436
        %v866 = vunpack.c.h.b16 %v436
        %v867 = vunpack.c.l.b16 %v437
        %v868 = vunpack.c.h.b16 %v437
        %v869 = vunpack.c.l.b16 %v438
        %v870 = vunpack.c.h.b16 %v438
        %v871 = vunpack.c.l.b16 %v439
        %v872 = vunpack.c.h.b16 %v439
        %v873 = vunpack.c.l.b16 %v440
        %v874 = vunpack.c.h.b16 %v440
        %v875 = vunpack.c.l.b16 %v441
        %v876 = vunpack.c.h.b16 %v441
        %v877 = vunpack.c.l.b16 %v442
        %v878 = vunpack.c.h.b16 %v442
        %v879 = vunpack.c.l.b16 %v443
        %v880 = vunpack.c.h.b16 %v443
        %v881 = vunpack.c.l.b16 %v444
        %v882 = vunpack.c.h.b16 %v444
        %v883 = vunpack.c.l.b16 %v445
        %v884 = vunpack.c.h.b16 %v445
        %v885 = vunpack.c.l.b16 %v446
        %v886 = vunpack.c.h.b16 %v446
        %v887 = vunpack.c.l.b16 %v447
        %v888 = vunpack.c.h.b16 %v447
        %v889 = vunpack.c.l.b16 %v448
        %v890 = vunpack.c.h.b16 %v448
        %v891 = vunpack.c.l.b16 %v449
        %v892 = vunpack.c.h.b16 %v449
        %v893 = vunpack.c.l.b16 %v450
        %v894 = vunpack.c.h.b16 %v450
        %v895 = vunpack.c.l.b16 %v451
        %v896 = vunpack.c.h.b16 %v451
        %v897 = vunpack.c.l.b16 %v452
        %v898 = vunpack.c.h.b16 %v452
        %v899 = vunpack.c.l.b16 %v453
        %v900 = vunpack.c.h.b16 %v453
        %v901 = vunpack.c.l.b16 %v454
        %v902 = vunpack.c.h.b16 %v454
        %v903 = vunpack.c.l.b16 %v455
        %v904 = vunpack.c.h.b16 %v455
        %v905 = vunpack.c.l.b16 %v456
        %v906 = vunpack.c.h.b16 %v456
        %v907 = vunpack.c.l.b16 %v457
        %v908 = vunpack.c.h.b16 %v457
        %v909 = vunpack.c.l.b16 %v458
        %v910 = vunpack.c.h.b16 %v458
        %v911 = vunpack.c.l.b16 %v459
        %v912 = vunpack.c.h.b16 %v459
        %v913 = vunpack.c.l.b16 %v460
        %v914 = vunpack.c.h.b16 %v460
        %v915 = vunpack.c.l.b16 %v461
        %v916 = vunpack.c.h.b16 %v461
        %v917 = vunpack.c.l.b16 %v462
        %v918 = vunpack.c.h.b16 %v462
        %v919 = vunpack.c.l.b16 %v463
        %v920 = vunpack.c.h.b16 %v463
        %v921 = vunpack.c.l.b16 %v464
        %v922 = vunpack.c.h.b16 %v464
        %v923 = vunpack.c.l.b16 %v465
        %v924 = vunpack.c.h.b16 %v465
        %v925 = vunpack.c.l.b16 %v466
        %v926 = vunpack.c.h.b16 %v466
        %v927 = vunpack.c.l.b16 %v467
        %v928 = vunpack.c.h.b16 %v467
        %v929 = vunpack.c.l.b16 %v468
        %v930 = vunpack.c.h.b16 %v468
        %v931 = vunpack.c.l.b16 %v469
        %v932 = vunpack.c.h.b16 %v469
        %v933 = vunpack.c.l.b16 %v470
        %v934 = vunpack.c.h.b16 %v470
        %v935 = vunpack.c.l.b16 %v471
        %v936 = vunpack.c.h.b16 %v471
        %v937 = vunpack.c.l.b16 %v472
        %v938 = vunpack.c.h.b16 %v472
        %v939 = vunpack.c.l.b16 %v473
        %v940 = vunpack.c.h.b16 %v473
        %v941 = vunpack.c.l.b16 %v474
        %v942 = vunpack.c.h.b16 %v474
        %v943 = vunpack.c.l.b16 %v475
        %v944 = vunpack.c.h.b16 %v475
        %v945 = vunpack.c.l.b16 %v476
        %v946 = vunpack.c.h.b16 %v476
        %v947 = vunpack.c.l.b16 %v477
        %v948 = vunpack.c.h.b16 %v477
        %v949 = vunpack.c.l.b16 %v478
        %v950 = vunpack.c.h.b16 %v478
        %v951 = vunpack.c.l.b16 %v479
        %v952 = vunpack.c.h.b16 %v479
        %v953 = vunpack.c.l.b16 %v480
        %v954 = vunpack.c.h.b16 %v480
        %v955 = vunpack.c.l.b16 %v481
        %v956 = vunpack.c.h.b16 %v481
        %v957 = vunpack.c.l.b16 %v482
        %v958 = vunpack.c.h.b16 %v482
        %v959 = vunpack.c.l.b16 %v483
        %v960 = vunpack.c.h.b16 %v483
        %v961 = vunpack.c.l.b16 %v484
        %v962 = vunpack.c.h.b16 %v484
        %v963 = vunpack.c.l.b16 %v485
        %v964 = vunpack.c.h.b16 %v485
        %v965 = vunpack.c.l.b16 %v486
        %v966 = vunpack.c.h.b16 %v486
        %v967 = vunpack.c.l.b16 %v487
        %v968 = vunpack.c.h.b16 %v487
        %v969 = vunpack.c.l.b16 %v488
        %v970 = vunpack.c.h.b16 %v488
        %v971 = vunpack.c.l.b16 %v489
        %v972 = vunpack.c.h.b16 %v489
        %v973 = vunpack.c.l.b16 %v490
        %v974 = vunpack.c.h.b16 %v490
        %v975 = vunpack.c.l.b16 %v491
        %v976 = vunpack.c.h.b16 %v491
        %v977 = vunpack.c.l.b16 %v492
        %v978 = vunpack.c.h.b16 %v492
        %v979 = vunpack.c.l.b16 %v493
        %v980 = vunpack.c.h.b16 %v493
        %v981 = vunpack.c.l.b16 %v494
        %v982 = vunpack.c.h.b16 %v494
        %v983 = vunpack.c.l.b16 %v495
        %v984 = vunpack.c.h.b16 %v495
        %v985 = vunpack.c.l.b16 %v496
        %v986 = vunpack.c.h.b16 %v496
        %v987 = vunpack.c.l.b16 %v497
        %v988 = vunpack.c.h.b16 %v497
        %v989 = vunpack.c.l.b16 %v498
        %v990 = vunpack.c.h.b16 %v498
        %v991 = vunpack.c.l.b16 %v499
        %v992 = vunpack.c.h.b16 %v499
        %v993 = vunpack.c.l.b16 %v500
        %v994 = vunpack.c.h.b16 %v500
        %v995 = vunpack.c.l.b16 %v501
        %v996 = vunpack.c.h.b16 %v501
        %v997 = vunpack.c.l.b16 %v502
        %v998 = vunpack.c.h.b16 %v502
        %v999 = vunpack.c.l.b16 %v503
        %v1000 = vunpack.c.h.b16 %v503
        %v1001 = vunpack.c.l.b16 %v504
        %v1002 = vunpack.c.h.b16 %v504
        %v1003 = vunpack.c.l.b16 %v505
        %v1004 = vunpack.c.h.b16 %v505
        %v1005 = vunpack.c.l.b16 %v506
        %v1006 = vunpack.c.h.b16 %v506
        %v1007 = vunpack.c.l.b16 %v507
        %v1008 = vunpack.c.h.b16 %v507
        %v1009 = vunpack.c.l.b16 %v508
        %v1010 = vunpack.c.h.b16 %v508
        %v1011 = vunpack.c.l.b16 %v509
        %v1012 = vunpack.c.h.b16 %v509
        %v1013 = vunpack.c.l.b16 %v510
        %v1014 = vunpack.c.h.b16 %v510
        %v1015 = vunpack.c.l.b16 %v511
        %v1016 = vunpack.c.h.b16 %v511
        %v1017 = vunpack.c.l.b16 %v512
        %v1018 = vunpack.c.h.b16 %v512
        %v1019 = vunpack.c.l.b16 %v513
        %v1020 = vunpack.c.h.b16 %v513
        %v1021 = vunpack.c.l.b16 %v514
        %v1022 = vunpack.c.h.b16 %v514
        %v1023 = vunpack.c.l.b16 %v515
        %v1024 = vunpack.c.h.b16 %v515
        %v1025 = vunpack.c.l.b16 %v516
        %v1026 = vunpack.c.h.b16 %v516
        %v1027 = vunpack.c.l.b16 %v517
        %v1028 = vunpack.c.h.b16 %v517
        %v1029 = vunpack.c.l.b16 %v518
        %v1030 = vunpack.c.h.b16 %v518
        %v1031 = vunpack.c.l.b16 %v519
        %v1032 = vunpack.c.h.b16 %v519
        %v1033 = vunpack.c.l.b16 %v520
        %v1034 = vunpack.c.h.b16 %v520
        %v1035 = vunpack.c.l.b16 %v521
        %v1036 = vunpack.c.h.b16 %v521
        %v1037 = vunpack.c.l.b16 %v522
        %v1038 = vunpack.c.h.b16 %v522
        %v1039 = vunpack.c.l.b16 %v523
        %v1040 = vunpack.c.h.b16 %v523
        %v1041 = vunpack.c.l.b16 %v524
        %v1042 = vunpack.c.h.b16 %v524
        %v1043 = vunpack.c.l.b16 %v525
        %v1044 = vunpack.c.h.b16 %v525
        %v1045 = vunpack.c.l.b16 %v526
        %v1046 = vunpack.c.h.b16 %v526
        %v1047 = vunpack.c.l.b16 %v527
        %v1048 = vunpack.c.h.b16 %v527
        %v1049 = vunpack.c.l.b16 %v528
        %v1050 = vunpack.c.h.b16 %v528
        %v1051 = vunpack.c.l.b16 %v529
        %v1052 = vunpack.c.h.b16 %v529
        %v1053 = vunpack.c.l.b16 %v530
        %v1054 = vunpack.c.h.b16 %v530
        %v1055 = vunpack.c.l.b16 %v531
        %v1056 = vunpack.c.h.b16 %v531
        %v1057 = vunpack.c.l.b16 %v532
        %v1058 = vunpack.c.h.b16 %v532
        %v1059 = vunpack.c.l.b16 %v533
        %v1060 = vunpack.c.h.b16 %v533
        %v1061 = vunpack.c.l.b16 %v534
        %v1062 = vunpack.c.h.b16 %v534
        %v1063 = vunpack.c.l.b16 %v535
        %v1064 = vunpack.c.h.b16 %v535
        %v1065 = vunpack.c.l.b16 %v536
        %v1066 = vunpack.c.h.b16 %v536
        %v1067 = vunpack.c.l.b16 %v537
        %v1068 = vunpack.c.h.b16 %v537
        %v1069 = vunpack.c.l.b16 %v538
        %v1070 = vunpack.c.h.b16 %v538
        %v1071 = vunpack.c.l.b16 %v539
        %v1072 = vunpack.c.h.b16 %v539
        %v1073 = vunpack.c.l.b16 %v540
        %v1074 = vunpack.c.h.b16 %v540
        %v1075 = vunpack.c.l.b16 %v541
        %v1076 = vunpack.c.h.b16 %v541
        %v1077 = vunpack.c.l.b16 %v542
        %v1078 = vunpack.c.h.b16 %v542
        %v1079 = vunpack.c.l.b16 %v543
        %v1080 = vunpack.c.h.b16 %v543
        %v1081 = vunpack.c.l.b16 %v544
        %v1082 = vunpack.c.h.b16 %v544
        %v1083 = vunpack.c.l.b16 %v545
        %v1084 = vunpack.c.h.b16 %v545
        %v1085 = vunpack.c.l.b16 %v546
        %v1086 = vunpack.c.h.b16 %v546
        %v1087 = vunpack.c.l.b16 %v547
        %v1088 = vunpack.c.h.b16 %v547
        %v1089 = vunpack.c.l.b16 %v548
        %v1090 = vunpack.c.h.b16 %v548
        %v1091 = vunpack.c.l.b16 %v549
        %v1092 = vunpack.c.h.b16 %v549
        %v1093 = vunpack.c.l.b16 %v550
        %v1094 = vunpack.c.h.b16 %v550
        %v1095 = vunpack.c.l.b16 %v551
        %v1096 = vunpack.c.h.b16 %v551
        %v1097 = vunpack.c.l.b16 %v552
        %v1098 = vunpack.c.h.b16 %v552
        %v1099 = vpack.c.b16 %v783, %v779
        %v1100 = vpack.c.b16 %v784, %v780
        %v1101 = vpack.c.b16 %v785, %v781
        %v1102 = vpack.c.b16 %v786, %v782
        %v1103 = vpack.c.b16 %v791, %v787
        %v1104 = vpack.c.b16 %v792, %v788
        %v1105 = vpack.c.b16 %v793, %v789
        %v1106 = vpack.c.b16 %v794, %v790
        %v1107 = vpack.c.b16 %v799, %v795
        %v1108 = vpack.c.b16 %v800, %v796
        %v1109 = vpack.c.b16 %v801, %v797
        %v1110 = vpack.c.b16 %v802, %v798
        %v1111 = vpack.c.b16 %v807, %v803
        %v1112 = vpack.c.b16 %v808, %v804
        %v1113 = vpack.c.b16 %v809, %v805
        %v1114 = vpack.c.b16 %v810, %v806
        %v1115 = vpack.c.b16 %v815, %v811
        %v1116 = vpack.c.b16 %v816, %v812
        %v1117 = vpack.c.b16 %v817, %v813
        %v1118 = vpack.c.b16 %v818, %v814
        %v1119 = vpack.c.b16 %v823, %v819
        %v1120 = vpack.c.b16 %v824, %v820
        %v1121 = vpack.c.b16 %v825, %v821
        %v1122 = vpack.c.b16 %v826, %v822
        %v1123 = vpack.c.b16 %v831, %v827
        %v1124 = vpack.c.b16 %v832, %v828
        %v1125 = vpack.c.b16 %v833, %v829
        %v1126 = vpack.c.b16 %v834, %v830
        %v1127 = vpack.c.b16 %v839, %v835
        %v1128 = vpack.c.b16 %v840, %v836
        %v1129 = vpack.c.b16 %v841, %v837
        %v1130 = vpack.c.b16 %v842, %v838
        %v1131 = vpack.c.b16 %v847, %v843
        %v1132 = vpack.c.b16 %v848, %v844
        %v1133 = vpack.c.b16 %v849, %v845
        %v1134 = vpack.c.b16 %v850, %v846
        %v1135 = vpack.c.b16 %v855, %v851
        %v1136 = vpack.c.b16 %v856, %v852
        %v1137 = vpack.c.b16 %v857, %v853
        %v1138 = vpack.c.b16 %v858, %v854
        %v1139 = vpack.c.b16 %v863, %v859
        %v1140 = vpack.c.b16 %v864, %v860
        %v1141 = vpack.c.b16 %v865, %v861
        %v1142 = vpack.c.b16 %v866, %v862
        %v1143 = vpack.c.b16 %v871, %v867
        %v1144 = vpack.c.b16 %v872, %v868
        %v1145 = vpack.c.b16 %v873, %v869
        %v1146 = vpack.c.b16 %v874, %v870
        %v1147 = vpack.c.b16 %v879, %v875
        %v1148 = vpack.c.b16 %v880, %v876
        %v1149 = vpack.c.b16 %v881, %v877
        %v1150 = vpack.c.b16 %v882, %v878
        %v1151 = vpack.c.b16 %v887, %v883
        %v1152 = vpack.c.b16 %v888, %v884
        %v1153 = vpack.c.b16 %v889, %v885
        %v1154 = vpack.c.b16 %v890, %v886
        %v1155 = vpack.c.b16 %v895, %v891
        %v1156 = vpack.c.b16 %v896, %v892
        %v1157 = vpack.c.b16 %v897, %v893
        %v1158 = vpack.c.b16 %v898, %v894
        %v1159 = vpack.c.b16 %v903, %v899
        %v1160 = vpack.c.b16 %v904, %v900
        %v1161 = vpack.c.b16 %v905, %v901
        %v1162 = vpack.c.b16 %v906, %v902
        %v1163 = vpack.c.b16 %v911, %v907
        %v1164 = vpack.c.b16 %v912, %v908
        %v1165 = vpack.c.b16 %v913, %v909
        %v1166 = vpack.c.b16 %v914, %v910
        %v1167 = vpack.c.b16 %v919, %v915
        %v1168 = vpack.c.b16 %v920, %v916
        %v1169 = vpack.c.b16 %v921, %v917
        %v1170 = vpack.c.b16 %v922, %v918
        %v1171 = vpack.c.b16 %v927, %v923
        %v1172 = vpack.c.b16 %v928, %v924
        %v1173 = vpack.c.b16 %v929, %v925
        %v1174 = vpack.c.b16 %v930, %v926
        %v1175 = vpack.c.b16 %v935, %v931
        %v1176 = vpack.c.b16 %v936, %v932
        %v1177 = vpack.c.b16 %v937, %v933
        %v1178 = vpack.c.b16 %v938, %v934
        %v1179 = vpack.c.b16 %v943, %v939
        %v1180 = vpack.c.b16 %v944, %v940
        %v1181 = vpack.c.b16 %v945, %v941
        %v1182 = vpack.c.b16 %v946, %v942
        %v1183 = vpack.c.b16 %v951, %v947
        %v1184 = vpack.c.b16 %v952, %v948
        %v1185 = vpack.c.b16 %v953, %v949
        %v1186 = vpack.c.b16 %v954, %v950
        %v1187 = vpack.c.b16 %v959, %v955
        %v1188 = vpack.c.b16 %v960, %v956
        %v1189 = vpack.c.b16 %v961, %v957
        %v1190 = vpack.c.b16 %v962, %v958
        %v1191 = vpack.c.b16 %v967, %v963
        %v1192 = vpack.c.b16 %v968, %v964
        %v1193 = vpack.c.b16 %v969, %v965
        %v1194 = vpack.c.b16 %v970, %v966
        %v1195 = vpack.c.b16 %v975, %v971
        %v1196 = vpack.c.b16 %v976, %v972
        %v1197 = vpack.c.b16 %v977, %v973
        %v1198 = vpack.c.b16 %v978, %v974
        %v1199 = vpack.c.b16 %v983, %v979
        %v1200 = vpack.c.b16 %v984, %v980
        %v1201 = vpack.c.b16 %v985, %v981
        %v1202 = vpack.c.b16 %v986, %v982
        %v1203 = vpack.c.b16 %v991, %v987
        %v1204 = vpack.c.b16 %v992, %v988
        %v1205 = vpack.c.b16 %v993, %v989
        %v1206 = vpack.c.b16 %v994, %v990
        %v1207 = vpack.c.b16 %v999, %v995
        %v1208 = vpack.c.b16 %v1000, %v996
        %v1209 = vpack.c.b16 %v1001, %v997
        %v1210 = vpack.c.b16 %v1002, %v998
        %v1211 = vpack.c.b16 %v1007, %v1003
        %v1212 = vpack.c.b16 %v1008, %v1004
        %v1213 = vpack.c.b16 %v1009, %v1005
        %v1214 = vpack.c.b16 %v1010, %v1006
        %v1215 = vpack.c.b16 %v1015, %v1011
        %v1216 = vpack.c.b16 %v1016, %v1012
        %v1217 = vpack.c.b16 %v1017, %v1013
        %v1218 = vpack.c.b16 %v1018, %v1014
        %v1219 = vpack.c.b16 %v1023, %v1019
        %v1220 = vpack.c.b16 %v1024, %v1020
        %v1221 = vpack.c.b16 %v1025, %v1021
        %v1222 = vpack.c.b16 %v1026, %v1022
        %v1223 = vpack.c.b16 %v1031, %v1027
        %v1224 = vpack.c.b16 %v1032, %v1028
        %v1225 = vpack.c.b16 %v1033, %v1029
        %v1226 = vpack.c.b16 %v1034, %v1030
        %v1227 = vpack.c.b16 %v1039, %v1035
        %v1228 = vpack.c.b16 %v1040, %v1036
        %v1229 = vpack.c.b16 %v1041, %v1037
        %v1230 = vpack.c.b16 %v1042, %v1038
        %v1231 = vpack.c.b16 %v1047, %v1043
        %v1232 = vpack.c.b16 %v1048, %v1044
        %v1233 = vpack.c.b16 %v1049, %v1045
        %v1234 = vpack.c.b16 %v1050, %v1046
        %v1235 = vpack.c.b16 %v1055, %v1051
        %v1236 = vpack.c.b16 %v1056, %v1052
        %v1237 = vpack.c.b16 %v1057, %v1053
        %v1238 = vpack.c.b16 %v1058, %v1054
        %v1239 = vpack.c.b16 %v1063, %v1059
        %v1240 = vpack.c.b16 %v1064, %v1060
        %v1241 = vpack.c.b16 %v1065, %v1061
        %v1242 = vpack.c.b16 %v1066, %v1062
        %v1243 = vpack.c.b16 %v1071, %v1067
        %v1244 = vpack.c.b16 %v1072, %v1068
        %v1245 = vpack.c.b16 %v1073, %v1069
        %v1246 = vpack.c.b16 %v1074, %v1070
        %v1247 = vpack.c.b16 %v1079, %v1075
        %v1248 = vpack.c.b16 %v1080, %v1076
        %v1249 = vpack.c.b16 %v1081, %v1077
        %v1250 = vpack.c.b16 %v1082, %v1078
        %v1251 = vpack.c.b16 %v1087, %v1083
        %v1252 = vpack.c.b16 %v1088, %v1084
        %v1253 = vpack.c.b16 %v1089, %v1085
        %v1254 = vpack.c.b16 %v1090, %v1086
        %v1255 = vpack.c.b16 %v1095, %v1091
        %v1256 = vpack.c.b16 %v1096, %v1092
        %v1257 = vpack.c.b16 %v1097, %v1093
        %v1258 = vpack.c.b16 %v1098, %v1094
        %1419 = vmatprep.subr.bf16.mxu0 %v1128
        %1420 = vmatpush1.bf16.msra.mxu0 %v1127
        %1421 = vmatprep.subr.bf16.mxu0 %v1124
        %1422 = vmatpush1.bf16.msra.mxu0 %v1123
        %1423 = vmatprep.subr.bf16.mxu0 %v1120
        %1424 = vmatpush1.bf16.msra.mxu0 %v1119
        %1425 = vmatprep.subr.bf16.mxu0 %v1116
        %1426 = vmatpush1.bf16.msra.mxu0 %v1115
        %1427 = vmatprep.subr.bf16.mxu0 %v1112
        %1428 = vmatpush1.bf16.msra.mxu0 %v1111
        %1429 = vmatprep.subr.bf16.mxu0 %v1108
        %1430 = vmatpush1.bf16.msra.mxu0 %v1107
        %1431 = vmatprep.subr.bf16.mxu0 %v1104
        %1432 = vmatpush1.bf16.msra.mxu0 %v1103
        %1433 = vmatprep.subr.bf16.mxu0 %v1100
        %1434 = vmatpush1.bf16.msra.mxu0 %v1099
        %1435 = vmatprep.subr.bf16.mxu0 %v1160
        %1436 = vmatpush2.bf16.msra.mxu0 %v1159
        %1437 = vmatprep.subr.bf16.mxu0 %v1156
        %1438 = vmatpush2.bf16.msra.mxu0 %v1155
        %1439 = vmatprep.subr.bf16.mxu0 %v1152
        %1440 = vmatpush2.bf16.msra.mxu0 %v1151
        %1441 = vmatprep.subr.bf16.mxu0 %v1148
        %1442 = vmatpush2.bf16.msra.mxu0 %v1147
        %1443 = vmatprep.subr.bf16.mxu0 %v1144
        %1444 = vmatpush2.bf16.msra.mxu0 %v1143
        %1445 = vmatprep.subr.bf16.mxu0 %v1140
        %1446 = vmatpush2.bf16.msra.mxu0 %v1139
        %1447 = vmatprep.subr.bf16.mxu0 %v1136
        %1448 = vmatpush2.bf16.msra.mxu0 %v1135
        %1449 = vmatprep.subr.bf16.mxu0 %v1132
        %1450 = vmatpush2.bf16.msra.mxu0 %v1131
        %1451 = vmatprep.mubr.bf16.mxu0 %v589
        %1452 = vmatmul.mubr.bf16.gmra.mxu0 %v581
        %v1453 = vpop.f32.mrf.mxu0
        %v1454 = vadd.f32 0.0, %v1453
        %v1455 = vpop.f32.mrf.mxu0
        %v1456 = vadd.f32 0.0, %v1455
        %v1457 = vpop.f32.mrf.mxu0
        %v1458 = vpop.f32.mrf.mxu0
        %1459 = vdwg.mxu0
        %1460 = vmatprep.subr.bf16.mxu0 %v1192
        %1461 = vmatpush1.bf16.msra.mxu0 %v1191
        %1462 = vmatprep.subr.bf16.mxu0 %v1188
        %1463 = vmatpush1.bf16.msra.mxu0 %v1187
        %1464 = vmatprep.subr.bf16.mxu0 %v1184
        %1465 = vmatpush1.bf16.msra.mxu0 %v1183
        %1466 = vmatprep.subr.bf16.mxu0 %v1180
        %1467 = vmatpush1.bf16.msra.mxu0 %v1179
        %1468 = vmatprep.subr.bf16.mxu0 %v1176
        %1469 = vmatpush1.bf16.msra.mxu0 %v1175
        %1470 = vmatprep.subr.bf16.mxu0 %v1172
        %1471 = vmatpush1.bf16.msra.mxu0 %v1171
        %1472 = vmatprep.subr.bf16.mxu0 %v1168
        %1473 = vmatpush1.bf16.msra.mxu0 %v1167
        %1474 = vmatprep.subr.bf16.mxu0 %v1164
        %1475 = vmatpush1.bf16.msra.mxu0 %v1163
        %1476 = vmatprep.subr.bf16.mxu0 %v1224
        %1477 = vmatpush2.bf16.msra.mxu0 %v1223
        %1478 = vmatprep.subr.bf16.mxu0 %v1220
        %1479 = vmatpush2.bf16.msra.mxu0 %v1219
        %1480 = vmatprep.subr.bf16.mxu0 %v1216
        %1481 = vmatpush2.bf16.msra.mxu0 %v1215
        %1482 = vmatprep.subr.bf16.mxu0 %v1212
        %1483 = vmatpush2.bf16.msra.mxu0 %v1211
        %1484 = vmatprep.subr.bf16.mxu0 %v1208
        %1485 = vmatpush2.bf16.msra.mxu0 %v1207
        %1486 = vmatprep.subr.bf16.mxu0 %v1204
        %1487 = vmatpush2.bf16.msra.mxu0 %v1203
        %1488 = vmatprep.subr.bf16.mxu0 %v1200
        %1489 = vmatpush2.bf16.msra.mxu0 %v1199
        %1490 = vmatprep.subr.bf16.mxu0 %v1196
        %1491 = vmatpush2.bf16.msra.mxu0 %v1195
        %1492 = vmatprep.mubr.bf16.mxu0 %v605
        %1493 = vmatmul.mubr.bf16.gmra.mxu0 %v597
        %v1494 = vpop.f32.mrf.mxu0
        %v1495 = vadd.f32 %v1454, %v1494
        %v1496 = vpop.f32.mrf.mxu0
        %v1497 = vadd.f32 %v1456, %v1496
        %v1498 = vpop.f32.mrf.mxu0
        %v1499 = vpop.f32.mrf.mxu0
        %1500 = vdwg.mxu0
        %1501 = vmatprep.subr.bf16.mxu0 %v1256
        %1502 = vmatpush1.bf16.msra.mxu0 %v1255
        %1503 = vmatprep.subr.bf16.mxu0 %v1252
        %1504 = vmatpush1.bf16.msra.mxu0 %v1251
        %1505 = vmatprep.subr.bf16.mxu0 %v1248
        %1506 = vmatpush1.bf16.msra.mxu0 %v1247
        %1507 = vmatprep.subr.bf16.mxu0 %v1244
        %1508 = vmatpush1.bf16.msra.mxu0 %v1243
        %1509 = vmatprep.subr.bf16.mxu0 %v1240
        %1510 = vmatpush1.bf16.msra.mxu0 %v1239
        %1511 = vmatprep.subr.bf16.mxu0 %v1236
        %1512 = vmatpush1.bf16.msra.mxu0 %v1235
        %1513 = vmatprep.subr.bf16.mxu0 %v1232
        %1514 = vmatpush1.bf16.msra.mxu0 %v1231
        %1515 = vmatprep.subr.bf16.mxu0 %v1228
        %1516 = vmatpush1.bf16.msra.mxu0 %v1227
        %1517 = vmatprep.subr.bf16.mxu0 0
        %1518 = vmatpush2.bf16.msra.mxu0 0
        %1519 = vmatprep.subr.bf16.mxu0 0
        %1520 = vmatpush2.bf16.msra.mxu0 0
        %1521 = vmatprep.subr.bf16.mxu0 0
        %1522 = vmatpush2.bf16.msra.mxu0 0
        %1523 = vmatprep.subr.bf16.mxu0 0
        %1524 = vmatpush2.bf16.msra.mxu0 0
        %1525 = vmatprep.subr.bf16.mxu0 0
        %1526 = vmatpush2.bf16.msra.mxu0 0
        %1527 = vmatprep.subr.bf16.mxu0 0
        %1528 = vmatpush2.bf16.msra.mxu0 0
        %1529 = vmatprep.subr.bf16.mxu0 0
        %1530 = vmatpush2.bf16.msra.mxu0 0
        %1531 = vmatprep.subr.bf16.mxu0 0
        %1532 = vmatpush2.bf16.msra.mxu0 0
        %1533 = vmatprep.mubr.bf16.mxu0 0
        %1534 = vmatmul.mubr.bf16.gmra.mxu0 %v613
        %v1535 = vpop.f32.mrf.mxu0
        %v1536 = vadd.f32 %v1495, %v1535
        %v1537 = vpop.f32.mrf.mxu0
        %v1538 = vadd.f32 %v1497, %v1537
        %v1539 = vpop.f32.mrf.mxu0
        %v1540 = vpop.f32.mrf.mxu0
        %1541 = vdwg.mxu0
        %1542 = vmatprep.subr.bf16.mxu0 %v1130
        %1543 = vmatpush1.bf16.msra.mxu0 %v1129
        %1544 = vmatprep.subr.bf16.mxu0 %v1126
        %1545 = vmatpush1.bf16.msra.mxu0 %v1125
        %1546 = vmatprep.subr.bf16.mxu0 %v1122
        %1547 = vmatpush1.bf16.msra.mxu0 %v1121
        %1548 = vmatprep.subr.bf16.mxu0 %v1118
        %1549 = vmatpush1.bf16.msra.mxu0 %v1117
        %1550 = vmatprep.subr.bf16.mxu0 %v1114
        %1551 = vmatpush1.bf16.msra.mxu0 %v1113
        %1552 = vmatprep.subr.bf16.mxu0 %v1110
        %1553 = vmatpush1.bf16.msra.mxu0 %v1109
        %1554 = vmatprep.subr.bf16.mxu0 %v1106
        %1555 = vmatpush1.bf16.msra.mxu0 %v1105
        %1556 = vmatprep.subr.bf16.mxu0 %v1102
        %1557 = vmatpush1.bf16.msra.mxu0 %v1101
        %1558 = vmatprep.subr.bf16.mxu0 %v1162
        %1559 = vmatpush2.bf16.msra.mxu0 %v1161
        %1560 = vmatprep.subr.bf16.mxu0 %v1158
        %1561 = vmatpush2.bf16.msra.mxu0 %v1157
        %1562 = vmatprep.subr.bf16.mxu0 %v1154
        %1563 = vmatpush2.bf16.msra.mxu0 %v1153
        %1564 = vmatprep.subr.bf16.mxu0 %v1150
        %1565 = vmatpush2.bf16.msra.mxu0 %v1149
        %1566 = vmatprep.subr.bf16.mxu0 %v1146
        %1567 = vmatpush2.bf16.msra.mxu0 %v1145
        %1568 = vmatprep.subr.bf16.mxu0 %v1142
        %1569 = vmatpush2.bf16.msra.mxu0 %v1141
        %1570 = vmatprep.subr.bf16.mxu0 %v1138
        %1571 = vmatpush2.bf16.msra.mxu0 %v1137
        %1572 = vmatprep.subr.bf16.mxu0 %v1134
        %1573 = vmatpush2.bf16.msra.mxu0 %v1133
        %1574 = vmatprep.mubr.bf16.mxu0 %v589
        %1575 = vmatmul.mubr.bf16.gmra.mxu0 %v581
        %v1576 = vpop.f32.mrf.mxu0
        %v1577 = vadd.f32 0.0, %v1576
        %v1578 = vpop.f32.mrf.mxu0
        %v1579 = vadd.f32 0.0, %v1578
        %v1580 = vpop.f32.mrf.mxu0
        %v1581 = vpop.f32.mrf.mxu0
        %1582 = vdwg.mxu0
        %1583 = vmatprep.subr.bf16.mxu0 %v1194
        %1584 = vmatpush1.bf16.msra.mxu0 %v1193
        %1585 = vmatprep.subr.bf16.mxu0 %v1190
        %1586 = vmatpush1.bf16.msra.mxu0 %v1189
        %1587 = vmatprep.subr.bf16.mxu0 %v1186
        %1588 = vmatpush1.bf16.msra.mxu0 %v1185
        %1589 = vmatprep.subr.bf16.mxu0 %v1182
        %1590 = vmatpush1.bf16.msra.mxu0 %v1181
        %1591 = vmatprep.subr.bf16.mxu0 %v1178
        %1592 = vmatpush1.bf16.msra.mxu0 %v1177
        %1593 = vmatprep.subr.bf16.mxu0 %v1174
        %1594 = vmatpush1.bf16.msra.mxu0 %v1173
        %1595 = vmatprep.subr.bf16.mxu0 %v1170
        %1596 = vmatpush1.bf16.msra.mxu0 %v1169
        %1597 = vmatprep.subr.bf16.mxu0 %v1166
        %1598 = vmatpush1.bf16.msra.mxu0 %v1165
        %1599 = vmatprep.subr.bf16.mxu0 %v1226
        %1600 = vmatpush2.bf16.msra.mxu0 %v1225
        %1601 = vmatprep.subr.bf16.mxu0 %v1222
        %1602 = vmatpush2.bf16.msra.mxu0 %v1221
        %1603 = vmatprep.subr.bf16.mxu0 %v1218
        %1604 = vmatpush2.bf16.msra.mxu0 %v1217
        %1605 = vmatprep.subr.bf16.mxu0 %v1214
        %1606 = vmatpush2.bf16.msra.mxu0 %v1213
        %1607 = vmatprep.subr.bf16.mxu0 %v1210
        %1608 = vmatpush2.bf16.msra.mxu0 %v1209
        %1609 = vmatprep.subr.bf16.mxu0 %v1206
        %1610 = vmatpush2.bf16.msra.mxu0 %v1205
        %1611 = vmatprep.subr.bf16.mxu0 %v1202
        %1612 = vmatpush2.bf16.msra.mxu0 %v1201
        %1613 = vmatprep.subr.bf16.mxu0 %v1198
        %1614 = vmatpush2.bf16.msra.mxu0 %v1197
        %1615 = vmatprep.mubr.bf16.mxu0 %v605
        %1616 = vmatmul.mubr.bf16.gmra.mxu0 %v597
        %v1617 = vpop.f32.mrf.mxu0
        %v1618 = vadd.f32 %v1577, %v1617
        %v1619 = vpop.f32.mrf.mxu0
        %v1620 = vadd.f32 %v1579, %v1619
        %v1621 = vpop.f32.mrf.mxu0
        %v1622 = vpop.f32.mrf.mxu0
        %1623 = vdwg.mxu0
        %1624 = vmatprep.subr.bf16.mxu0 %v1258
        %1625 = vmatpush1.bf16.msra.mxu0 %v1257
        %1626 = vmatprep.subr.bf16.mxu0 %v1254
        %1627 = vmatpush1.bf16.msra.mxu0 %v1253
        %1628 = vmatprep.subr.bf16.mxu0 %v1250
        %1629 = vmatpush1.bf16.msra.mxu0 %v1249
        %1630 = vmatprep.subr.bf16.mxu0 %v1246
        %1631 = vmatpush1.bf16.msra.mxu0 %v1245
        %1632 = vmatprep.subr.bf16.mxu0 %v1242
        %1633 = vmatpush1.bf16.msra.mxu0 %v1241
        %1634 = vmatprep.subr.bf16.mxu0 %v1238
        %1635 = vmatpush1.bf16.msra.mxu0 %v1237
        %1636 = vmatprep.subr.bf16.mxu0 %v1234
        %1637 = vmatpush1.bf16.msra.mxu0 %v1233
        %1638 = vmatprep.subr.bf16.mxu0 %v1230
        %1639 = vmatpush1.bf16.msra.mxu0 %v1229
        %1640 = vmatprep.subr.bf16.mxu0 0
        %1641 = vmatpush2.bf16.msra.mxu0 0
        %1642 = vmatprep.subr.bf16.mxu0 0
        %1643 = vmatpush2.bf16.msra.mxu0 0
        %1644 = vmatprep.subr.bf16.mxu0 0
        %1645 = vmatpush2.bf16.msra.mxu0 0
        %1646 = vmatprep.subr.bf16.mxu0 0
        %1647 = vmatpush2.bf16.msra.mxu0 0
        %1648 = vmatprep.subr.bf16.mxu0 0
        %1649 = vmatpush2.bf16.msra.mxu0 0
        %1650 = vmatprep.subr.bf16.mxu0 0
        %1651 = vmatpush2.bf16.msra.mxu0 0
        %1652 = vmatprep.subr.bf16.mxu0 0
        %1653 = vmatpush2.bf16.msra.mxu0 0
        %1654 = vmatprep.subr.bf16.mxu0 0
        %1655 = vmatpush2.bf16.msra.mxu0 0
        %1656 = vmatprep.mubr.bf16.mxu0 0
        %1657 = vmatmul.mubr.bf16.gmra.mxu0 %v613
        %v1658 = vpop.f32.mrf.mxu0
        %v1659 = vadd.f32 %v1618, %v1658
        %v1660 = vpop.f32.mrf.mxu0
        %v1661 = vadd.f32 %v1620, %v1660
        %v1662 = vpop.f32.mrf.mxu0
        %v1663 = vpop.f32.mrf.mxu0
        %1664 = vdwg.mxu0
        %v1668 = vunpack.c.l.b16 %v223
        %v1669 = vunpack.c.h.b16 %v223
        %v1670 = vunpack.c.l.b16 %v224
        %v1671 = vunpack.c.h.b16 %v224
        %v1672 = vunpack.c.l.b16 %v225
        %v1673 = vpack.c.b16 %v1668, %v1668
        %v1674 = vpack.c.b16 %v1669, %v1669
        %v1675 = vpack.c.b16 %v1670, %v1670
        %v1676 = vpack.c.b16 %v1671, %v1671
        %v1677 = vpack.c.b16 %v1672, %v1672
        %v1843 = vunpack.c.l.b16 %v226
        %v1844 = vunpack.c.h.b16 %v226
        %v1845 = vunpack.c.l.b16 %v227
        %v1846 = vunpack.c.h.b16 %v227
        %v1847 = vunpack.c.l.b16 %v228
        %v1848 = vunpack.c.h.b16 %v228
        %v1849 = vunpack.c.l.b16 %v229
        %v1850 = vunpack.c.h.b16 %v229
        %v1851 = vunpack.c.l.b16 %v230
        %v1852 = vunpack.c.h.b16 %v230
        %v1853 = vunpack.c.l.b16 %v231
        %v1854 = vunpack.c.h.b16 %v231
        %v1855 = vunpack.c.l.b16 %v232
        %v1856 = vunpack.c.h.b16 %v232
        %v1857 = vunpack.c.l.b16 %v233
        %v1858 = vunpack.c.h.b16 %v233
        %v1859 = vunpack.c.l.b16 %v234
        %v1860 = vunpack.c.h.b16 %v234
        %v1861 = vunpack.c.l.b16 %v235
        %v1862 = vunpack.c.h.b16 %v235
        %v1863 = vunpack.c.l.b16 %v236
        %v1864 = vunpack.c.h.b16 %v236
        %v1865 = vunpack.c.l.b16 %v237
        %v1866 = vunpack.c.h.b16 %v237
        %v1867 = vunpack.c.l.b16 %v238
        %v1868 = vunpack.c.h.b16 %v238
        %v1869 = vunpack.c.l.b16 %v239
        %v1870 = vunpack.c.h.b16 %v239
        %v1871 = vunpack.c.l.b16 %v240
        %v1872 = vunpack.c.h.b16 %v240
        %v1873 = vunpack.c.l.b16 %v241
        %v1874 = vunpack.c.h.b16 %v241
        %v1875 = vunpack.c.l.b16 %v242
        %v1876 = vunpack.c.h.b16 %v242
        %v1877 = vunpack.c.l.b16 %v243
        %v1878 = vunpack.c.h.b16 %v243
        %v1879 = vunpack.c.l.b16 %v244
        %v1880 = vunpack.c.h.b16 %v244
        %v1881 = vunpack.c.l.b16 %v245
        %v1882 = vunpack.c.h.b16 %v245
        %v1883 = vunpack.c.l.b16 %v246
        %v1884 = vunpack.c.h.b16 %v246
        %v1885 = vunpack.c.l.b16 %v247
        %v1886 = vunpack.c.h.b16 %v247
        %v1887 = vunpack.c.l.b16 %v248
        %v1888 = vunpack.c.h.b16 %v248
        %v1889 = vunpack.c.l.b16 %v249
        %v1890 = vunpack.c.h.b16 %v249
        %v1891 = vunpack.c.l.b16 %v250
        %v1892 = vunpack.c.h.b16 %v250
        %v1893 = vunpack.c.l.b16 %v251
        %v1894 = vunpack.c.h.b16 %v251
        %v1895 = vunpack.c.l.b16 %v252
        %v1896 = vunpack.c.h.b16 %v252
        %v1897 = vunpack.c.l.b16 %v253
        %v1898 = vunpack.c.h.b16 %v253
        %v1899 = vunpack.c.l.b16 %v254
        %v1900 = vunpack.c.h.b16 %v254
        %v1901 = vunpack.c.l.b16 %v255
        %v1902 = vunpack.c.h.b16 %v255
        %v1903 = vunpack.c.l.b16 %v256
        %v1904 = vunpack.c.h.b16 %v256
        %v1905 = vunpack.c.l.b16 %v257
        %v1906 = vunpack.c.h.b16 %v257
        %v1907 = vunpack.c.l.b16 %v258
        %v1908 = vunpack.c.h.b16 %v258
        %v1909 = vunpack.c.l.b16 %v259
        %v1910 = vunpack.c.h.b16 %v259
        %v1911 = vunpack.c.l.b16 %v260
        %v1912 = vunpack.c.h.b16 %v260
        %v1913 = vunpack.c.l.b16 %v261
        %v1914 = vunpack.c.h.b16 %v261
        %v1915 = vunpack.c.l.b16 %v262
        %v1916 = vunpack.c.h.b16 %v262
        %v1917 = vunpack.c.l.b16 %v263
        %v1918 = vunpack.c.h.b16 %v263
        %v1919 = vunpack.c.l.b16 %v264
        %v1920 = vunpack.c.h.b16 %v264
        %v1921 = vunpack.c.l.b16 %v265
        %v1922 = vunpack.c.h.b16 %v265
        %v1923 = vunpack.c.l.b16 %v266
        %v1924 = vunpack.c.h.b16 %v266
        %v1925 = vunpack.c.l.b16 %v267
        %v1926 = vunpack.c.h.b16 %v267
        %v1927 = vunpack.c.l.b16 %v268
        %v1928 = vunpack.c.h.b16 %v268
        %v1929 = vunpack.c.l.b16 %v269
        %v1930 = vunpack.c.h.b16 %v269
        %v1931 = vunpack.c.l.b16 %v270
        %v1932 = vunpack.c.h.b16 %v270
        %v1933 = vunpack.c.l.b16 %v271
        %v1934 = vunpack.c.h.b16 %v271
        %v1935 = vunpack.c.l.b16 %v272
        %v1936 = vunpack.c.h.b16 %v272
        %v1937 = vunpack.c.l.b16 %v273
        %v1938 = vunpack.c.h.b16 %v273
        %v1939 = vunpack.c.l.b16 %v274
        %v1940 = vunpack.c.h.b16 %v274
        %v1941 = vunpack.c.l.b16 %v275
        %v1942 = vunpack.c.h.b16 %v275
        %v1943 = vunpack.c.l.b16 %v276
        %v1944 = vunpack.c.h.b16 %v276
        %v1945 = vunpack.c.l.b16 %v277
        %v1946 = vunpack.c.h.b16 %v277
        %v1947 = vunpack.c.l.b16 %v278
        %v1948 = vunpack.c.h.b16 %v278
        %v1949 = vunpack.c.l.b16 %v279
        %v1950 = vunpack.c.h.b16 %v279
        %v1951 = vunpack.c.l.b16 %v280
        %v1952 = vunpack.c.h.b16 %v280
        %v1953 = vunpack.c.l.b16 %v281
        %v1954 = vunpack.c.h.b16 %v281
        %v1955 = vunpack.c.l.b16 %v282
        %v1956 = vunpack.c.h.b16 %v282
        %v1957 = vunpack.c.l.b16 %v283
        %v1958 = vunpack.c.h.b16 %v283
        %v1959 = vunpack.c.l.b16 %v284
        %v1960 = vunpack.c.h.b16 %v284
        %v1961 = vunpack.c.l.b16 %v285
        %v1962 = vunpack.c.h.b16 %v285
        %v1963 = vunpack.c.l.b16 %v286
        %v1964 = vunpack.c.h.b16 %v286
        %v1965 = vunpack.c.l.b16 %v287
        %v1966 = vunpack.c.h.b16 %v287
        %v1967 = vunpack.c.l.b16 %v288
        %v1968 = vunpack.c.h.b16 %v288
        %v1969 = vunpack.c.l.b16 %v289
        %v1970 = vunpack.c.h.b16 %v289
        %v1971 = vunpack.c.l.b16 %v290
        %v1972 = vunpack.c.h.b16 %v290
        %v1973 = vunpack.c.l.b16 %v291
        %v1974 = vunpack.c.h.b16 %v291
        %v1975 = vunpack.c.l.b16 %v292
        %v1976 = vunpack.c.h.b16 %v292
        %v1977 = vunpack.c.l.b16 %v293
        %v1978 = vunpack.c.h.b16 %v293
        %v1979 = vunpack.c.l.b16 %v294
        %v1980 = vunpack.c.h.b16 %v294
        %v1981 = vunpack.c.l.b16 %v295
        %v1982 = vunpack.c.h.b16 %v295
        %v1983 = vunpack.c.l.b16 %v296
        %v1984 = vunpack.c.h.b16 %v296
        %v1985 = vunpack.c.l.b16 %v297
        %v1986 = vunpack.c.h.b16 %v297
        %v1987 = vunpack.c.l.b16 %v298
        %v1988 = vunpack.c.h.b16 %v298
        %v1989 = vunpack.c.l.b16 %v299
        %v1990 = vunpack.c.h.b16 %v299
        %v1991 = vunpack.c.l.b16 %v300
        %v1992 = vunpack.c.h.b16 %v300
        %v1993 = vunpack.c.l.b16 %v301
        %v1994 = vunpack.c.h.b16 %v301
        %v1995 = vunpack.c.l.b16 %v302
        %v1996 = vunpack.c.h.b16 %v302
        %v1997 = vunpack.c.l.b16 %v303
        %v1998 = vunpack.c.h.b16 %v303
        %v1999 = vunpack.c.l.b16 %v304
        %v2000 = vunpack.c.h.b16 %v304
        %v2001 = vunpack.c.l.b16 %v305
        %v2002 = vunpack.c.h.b16 %v305
        %v2003 = vunpack.c.l.b16 %v306
        %v2004 = vunpack.c.h.b16 %v306
        %v2005 = vunpack.c.l.b16 %v307
        %v2006 = vunpack.c.h.b16 %v307
        %v2007 = vunpack.c.l.b16 %v308
        %v2008 = vunpack.c.h.b16 %v308
        %v2009 = vunpack.c.l.b16 %v309
        %v2010 = vunpack.c.h.b16 %v309
        %v2011 = vunpack.c.l.b16 %v310
        %v2012 = vunpack.c.h.b16 %v310
        %v2013 = vunpack.c.l.b16 %v311
        %v2014 = vunpack.c.h.b16 %v311
        %v2015 = vunpack.c.l.b16 %v312
        %v2016 = vunpack.c.h.b16 %v312
        %v2017 = vunpack.c.l.b16 %v313
        %v2018 = vunpack.c.h.b16 %v313
        %v2019 = vunpack.c.l.b16 %v314
        %v2020 = vunpack.c.h.b16 %v314
        %v2021 = vunpack.c.l.b16 %v315
        %v2022 = vunpack.c.h.b16 %v315
        %v2023 = vunpack.c.l.b16 %v316
        %v2024 = vunpack.c.h.b16 %v316
        %v2025 = vunpack.c.l.b16 %v317
        %v2026 = vunpack.c.h.b16 %v317
        %v2027 = vunpack.c.l.b16 %v318
        %v2028 = vunpack.c.h.b16 %v318
        %v2029 = vunpack.c.l.b16 %v319
        %v2030 = vunpack.c.h.b16 %v319
        %v2031 = vunpack.c.l.b16 %v320
        %v2032 = vunpack.c.h.b16 %v320
        %v2033 = vunpack.c.l.b16 %v321
        %v2034 = vunpack.c.h.b16 %v321
        %v2035 = vunpack.c.l.b16 %v322
        %v2036 = vunpack.c.h.b16 %v322
        %v2037 = vunpack.c.l.b16 %v323
        %v2038 = vunpack.c.h.b16 %v323
        %v2039 = vunpack.c.l.b16 %v324
        %v2040 = vunpack.c.h.b16 %v324
        %v2041 = vunpack.c.l.b16 %v325
        %v2042 = vunpack.c.h.b16 %v325
        %v2043 = vunpack.c.l.b16 %v326
        %v2044 = vunpack.c.h.b16 %v326
        %v2045 = vunpack.c.l.b16 %v327
        %v2046 = vunpack.c.h.b16 %v327
        %v2047 = vunpack.c.l.b16 %v328
        %v2048 = vunpack.c.h.b16 %v328
        %v2049 = vunpack.c.l.b16 %v329
        %v2050 = vunpack.c.h.b16 %v329
        %v2051 = vunpack.c.l.b16 %v330
        %v2052 = vunpack.c.h.b16 %v330
        %v2053 = vunpack.c.l.b16 %v331
        %v2054 = vunpack.c.h.b16 %v331
        %v2055 = vunpack.c.l.b16 %v332
        %v2056 = vunpack.c.h.b16 %v332
        %v2057 = vunpack.c.l.b16 %v333
        %v2058 = vunpack.c.h.b16 %v333
        %v2059 = vunpack.c.l.b16 %v334
        %v2060 = vunpack.c.h.b16 %v334
        %v2061 = vunpack.c.l.b16 %v335
        %v2062 = vunpack.c.h.b16 %v335
        %v2063 = vunpack.c.l.b16 %v336
        %v2064 = vunpack.c.h.b16 %v336
        %v2065 = vunpack.c.l.b16 %v337
        %v2066 = vunpack.c.h.b16 %v337
        %v2067 = vunpack.c.l.b16 %v338
        %v2068 = vunpack.c.h.b16 %v338
        %v2069 = vunpack.c.l.b16 %v339
        %v2070 = vunpack.c.h.b16 %v339
        %v2071 = vunpack.c.l.b16 %v340
        %v2072 = vunpack.c.h.b16 %v340
        %v2073 = vunpack.c.l.b16 %v341
        %v2074 = vunpack.c.h.b16 %v341
        %v2075 = vunpack.c.l.b16 %v342
        %v2076 = vunpack.c.h.b16 %v342
        %v2077 = vunpack.c.l.b16 %v343
        %v2078 = vunpack.c.h.b16 %v343
        %v2079 = vunpack.c.l.b16 %v344
        %v2080 = vunpack.c.h.b16 %v344
        %v2081 = vunpack.c.l.b16 %v345
        %v2082 = vunpack.c.h.b16 %v345
        %v2083 = vunpack.c.l.b16 %v346
        %v2084 = vunpack.c.h.b16 %v346
        %v2085 = vunpack.c.l.b16 %v347
        %v2086 = vunpack.c.h.b16 %v347
        %v2087 = vunpack.c.l.b16 %v348
        %v2088 = vunpack.c.h.b16 %v348
        %v2089 = vunpack.c.l.b16 %v349
        %v2090 = vunpack.c.h.b16 %v349
        %v2091 = vunpack.c.l.b16 %v350
        %v2092 = vunpack.c.h.b16 %v350
        %v2093 = vunpack.c.l.b16 %v351
        %v2094 = vunpack.c.h.b16 %v351
        %v2095 = vunpack.c.l.b16 %v352
        %v2096 = vunpack.c.h.b16 %v352
        %v2097 = vunpack.c.l.b16 %v353
        %v2098 = vunpack.c.h.b16 %v353
        %v2099 = vunpack.c.l.b16 %v354
        %v2100 = vunpack.c.h.b16 %v354
        %v2101 = vunpack.c.l.b16 %v355
        %v2102 = vunpack.c.h.b16 %v355
        %v2103 = vunpack.c.l.b16 %v356
        %v2104 = vunpack.c.h.b16 %v356
        %v2105 = vunpack.c.l.b16 %v357
        %v2106 = vunpack.c.h.b16 %v357
        %v2107 = vunpack.c.l.b16 %v358
        %v2108 = vunpack.c.h.b16 %v358
        %v2109 = vunpack.c.l.b16 %v359
        %v2110 = vunpack.c.h.b16 %v359
        %v2111 = vunpack.c.l.b16 %v360
        %v2112 = vunpack.c.h.b16 %v360
        %v2113 = vunpack.c.l.b16 %v361
        %v2114 = vunpack.c.h.b16 %v361
        %v2115 = vunpack.c.l.b16 %v362
        %v2116 = vunpack.c.h.b16 %v362
        %v2117 = vunpack.c.l.b16 %v363
        %v2118 = vunpack.c.h.b16 %v363
        %v2119 = vunpack.c.l.b16 %v364
        %v2120 = vunpack.c.h.b16 %v364
        %v2121 = vunpack.c.l.b16 %v365
        %v2122 = vunpack.c.h.b16 %v365
        %v2123 = vunpack.c.l.b16 %v366
        %v2124 = vunpack.c.h.b16 %v366
        %v2125 = vunpack.c.l.b16 %v367
        %v2126 = vunpack.c.h.b16 %v367
        %v2127 = vunpack.c.l.b16 %v368
        %v2128 = vunpack.c.h.b16 %v368
        %v2129 = vunpack.c.l.b16 %v369
        %v2130 = vunpack.c.h.b16 %v369
        %v2131 = vunpack.c.l.b16 %v370
        %v2132 = vunpack.c.h.b16 %v370
        %v2133 = vunpack.c.l.b16 %v371
        %v2134 = vunpack.c.h.b16 %v371
        %v2135 = vunpack.c.l.b16 %v372
        %v2136 = vunpack.c.h.b16 %v372
        %v2137 = vunpack.c.l.b16 %v373
        %v2138 = vunpack.c.h.b16 %v373
        %v2139 = vunpack.c.l.b16 %v374
        %v2140 = vunpack.c.h.b16 %v374
        %v2141 = vunpack.c.l.b16 %v375
        %v2142 = vunpack.c.h.b16 %v375
        %v2143 = vunpack.c.l.b16 %v376
        %v2144 = vunpack.c.h.b16 %v376
        %v2145 = vunpack.c.l.b16 %v377
        %v2146 = vunpack.c.h.b16 %v377
        %v2147 = vunpack.c.l.b16 %v378
        %v2148 = vunpack.c.h.b16 %v378
        %v2149 = vunpack.c.l.b16 %v379
        %v2150 = vunpack.c.h.b16 %v379
        %v2151 = vunpack.c.l.b16 %v380
        %v2152 = vunpack.c.h.b16 %v380
        %v2153 = vunpack.c.l.b16 %v381
        %v2154 = vunpack.c.h.b16 %v381
        %v2155 = vunpack.c.l.b16 %v382
        %v2156 = vunpack.c.h.b16 %v382
        %v2157 = vunpack.c.l.b16 %v383
        %v2158 = vunpack.c.h.b16 %v383
        %v2159 = vunpack.c.l.b16 %v384
        %v2160 = vunpack.c.h.b16 %v384
        %v2161 = vunpack.c.l.b16 %v385
        %v2162 = vunpack.c.h.b16 %v385
        %v2163 = vpack.c.b16 %v1847, %v1843
        %v2164 = vpack.c.b16 %v1848, %v1844
        %v2165 = vpack.c.b16 %v1849, %v1845
        %v2166 = vpack.c.b16 %v1850, %v1846
        %v2167 = vpack.c.b16 %v1855, %v1851
        %v2168 = vpack.c.b16 %v1856, %v1852
        %v2169 = vpack.c.b16 %v1857, %v1853
        %v2170 = vpack.c.b16 %v1858, %v1854
        %v2171 = vpack.c.b16 %v1863, %v1859
        %v2172 = vpack.c.b16 %v1864, %v1860
        %v2173 = vpack.c.b16 %v1865, %v1861
        %v2174 = vpack.c.b16 %v1866, %v1862
        %v2175 = vpack.c.b16 %v1871, %v1867
        %v2176 = vpack.c.b16 %v1872, %v1868
        %v2177 = vpack.c.b16 %v1873, %v1869
        %v2178 = vpack.c.b16 %v1874, %v1870
        %v2179 = vpack.c.b16 %v1879, %v1875
        %v2180 = vpack.c.b16 %v1880, %v1876
        %v2181 = vpack.c.b16 %v1881, %v1877
        %v2182 = vpack.c.b16 %v1882, %v1878
        %v2183 = vpack.c.b16 %v1887, %v1883
        %v2184 = vpack.c.b16 %v1888, %v1884
        %v2185 = vpack.c.b16 %v1889, %v1885
        %v2186 = vpack.c.b16 %v1890, %v1886
        %v2187 = vpack.c.b16 %v1895, %v1891
        %v2188 = vpack.c.b16 %v1896, %v1892
        %v2189 = vpack.c.b16 %v1897, %v1893
        %v2190 = vpack.c.b16 %v1898, %v1894
        %v2191 = vpack.c.b16 %v1903, %v1899
        %v2192 = vpack.c.b16 %v1904, %v1900
        %v2193 = vpack.c.b16 %v1905, %v1901
        %v2194 = vpack.c.b16 %v1906, %v1902
        %v2195 = vpack.c.b16 %v1911, %v1907
        %v2196 = vpack.c.b16 %v1912, %v1908
        %v2197 = vpack.c.b16 %v1913, %v1909
        %v2198 = vpack.c.b16 %v1914, %v1910
        %v2199 = vpack.c.b16 %v1919, %v1915
        %v2200 = vpack.c.b16 %v1920, %v1916
        %v2201 = vpack.c.b16 %v1921, %v1917
        %v2202 = vpack.c.b16 %v1922, %v1918
        %v2203 = vpack.c.b16 %v1927, %v1923
        %v2204 = vpack.c.b16 %v1928, %v1924
        %v2205 = vpack.c.b16 %v1929, %v1925
        %v2206 = vpack.c.b16 %v1930, %v1926
        %v2207 = vpack.c.b16 %v1935, %v1931
        %v2208 = vpack.c.b16 %v1936, %v1932
        %v2209 = vpack.c.b16 %v1937, %v1933
        %v2210 = vpack.c.b16 %v1938, %v1934
        %v2211 = vpack.c.b16 %v1943, %v1939
        %v2212 = vpack.c.b16 %v1944, %v1940
        %v2213 = vpack.c.b16 %v1945, %v1941
        %v2214 = vpack.c.b16 %v1946, %v1942
        %v2215 = vpack.c.b16 %v1951, %v1947
        %v2216 = vpack.c.b16 %v1952, %v1948
        %v2217 = vpack.c.b16 %v1953, %v1949
        %v2218 = vpack.c.b16 %v1954, %v1950
        %v2219 = vpack.c.b16 %v1959, %v1955
        %v2220 = vpack.c.b16 %v1960, %v1956
        %v2221 = vpack.c.b16 %v1961, %v1957
        %v2222 = vpack.c.b16 %v1962, %v1958
        %v2223 = vpack.c.b16 %v1967, %v1963
        %v2224 = vpack.c.b16 %v1968, %v1964
        %v2225 = vpack.c.b16 %v1969, %v1965
        %v2226 = vpack.c.b16 %v1970, %v1966
        %v2227 = vpack.c.b16 %v1975, %v1971
        %v2228 = vpack.c.b16 %v1976, %v1972
        %v2229 = vpack.c.b16 %v1977, %v1973
        %v2230 = vpack.c.b16 %v1978, %v1974
        %v2231 = vpack.c.b16 %v1983, %v1979
        %v2232 = vpack.c.b16 %v1984, %v1980
        %v2233 = vpack.c.b16 %v1985, %v1981
        %v2234 = vpack.c.b16 %v1986, %v1982
        %v2235 = vpack.c.b16 %v1991, %v1987
        %v2236 = vpack.c.b16 %v1992, %v1988
        %v2237 = vpack.c.b16 %v1993, %v1989
        %v2238 = vpack.c.b16 %v1994, %v1990
        %v2239 = vpack.c.b16 %v1999, %v1995
        %v2240 = vpack.c.b16 %v2000, %v1996
        %v2241 = vpack.c.b16 %v2001, %v1997
        %v2242 = vpack.c.b16 %v2002, %v1998
        %v2243 = vpack.c.b16 %v2007, %v2003
        %v2244 = vpack.c.b16 %v2008, %v2004
        %v2245 = vpack.c.b16 %v2009, %v2005
        %v2246 = vpack.c.b16 %v2010, %v2006
        %v2247 = vpack.c.b16 %v2015, %v2011
        %v2248 = vpack.c.b16 %v2016, %v2012
        %v2249 = vpack.c.b16 %v2017, %v2013
        %v2250 = vpack.c.b16 %v2018, %v2014
        %v2251 = vpack.c.b16 %v2023, %v2019
        %v2252 = vpack.c.b16 %v2024, %v2020
        %v2253 = vpack.c.b16 %v2025, %v2021
        %v2254 = vpack.c.b16 %v2026, %v2022
        %v2255 = vpack.c.b16 %v2031, %v2027
        %v2256 = vpack.c.b16 %v2032, %v2028
        %v2257 = vpack.c.b16 %v2033, %v2029
        %v2258 = vpack.c.b16 %v2034, %v2030
        %v2259 = vpack.c.b16 %v2039, %v2035
        %v2260 = vpack.c.b16 %v2040, %v2036
        %v2261 = vpack.c.b16 %v2041, %v2037
        %v2262 = vpack.c.b16 %v2042, %v2038
        %v2263 = vpack.c.b16 %v2047, %v2043
        %v2264 = vpack.c.b16 %v2048, %v2044
        %v2265 = vpack.c.b16 %v2049, %v2045
        %v2266 = vpack.c.b16 %v2050, %v2046
        %v2267 = vpack.c.b16 %v2055, %v2051
        %v2268 = vpack.c.b16 %v2056, %v2052
        %v2269 = vpack.c.b16 %v2057, %v2053
        %v2270 = vpack.c.b16 %v2058, %v2054
        %v2271 = vpack.c.b16 %v2063, %v2059
        %v2272 = vpack.c.b16 %v2064, %v2060
        %v2273 = vpack.c.b16 %v2065, %v2061
        %v2274 = vpack.c.b16 %v2066, %v2062
        %v2275 = vpack.c.b16 %v2071, %v2067
        %v2276 = vpack.c.b16 %v2072, %v2068
        %v2277 = vpack.c.b16 %v2073, %v2069
        %v2278 = vpack.c.b16 %v2074, %v2070
        %v2279 = vpack.c.b16 %v2079, %v2075
        %v2280 = vpack.c.b16 %v2080, %v2076
        %v2281 = vpack.c.b16 %v2081, %v2077
        %v2282 = vpack.c.b16 %v2082, %v2078
        %v2283 = vpack.c.b16 %v2087, %v2083
        %v2284 = vpack.c.b16 %v2088, %v2084
        %v2285 = vpack.c.b16 %v2089, %v2085
        %v2286 = vpack.c.b16 %v2090, %v2086
        %v2287 = vpack.c.b16 %v2095, %v2091
        %v2288 = vpack.c.b16 %v2096, %v2092
        %v2289 = vpack.c.b16 %v2097, %v2093
        %v2290 = vpack.c.b16 %v2098, %v2094
        %v2291 = vpack.c.b16 %v2103, %v2099
        %v2292 = vpack.c.b16 %v2104, %v2100
        %v2293 = vpack.c.b16 %v2105, %v2101
        %v2294 = vpack.c.b16 %v2106, %v2102
        %v2295 = vpack.c.b16 %v2111, %v2107
        %v2296 = vpack.c.b16 %v2112, %v2108
        %v2297 = vpack.c.b16 %v2113, %v2109
        %v2298 = vpack.c.b16 %v2114, %v2110
        %v2299 = vpack.c.b16 %v2119, %v2115
        %v2300 = vpack.c.b16 %v2120, %v2116
        %v2301 = vpack.c.b16 %v2121, %v2117
        %v2302 = vpack.c.b16 %v2122, %v2118
        %v2303 = vpack.c.b16 %v2127, %v2123
        %v2304 = vpack.c.b16 %v2128, %v2124
        %v2305 = vpack.c.b16 %v2129, %v2125
        %v2306 = vpack.c.b16 %v2130, %v2126
        %v2307 = vpack.c.b16 %v2135, %v2131
        %v2308 = vpack.c.b16 %v2136, %v2132
        %v2309 = vpack.c.b16 %v2137, %v2133
        %v2310 = vpack.c.b16 %v2138, %v2134
        %v2311 = vpack.c.b16 %v2143, %v2139
        %v2312 = vpack.c.b16 %v2144, %v2140
        %v2313 = vpack.c.b16 %v2145, %v2141
        %v2314 = vpack.c.b16 %v2146, %v2142
        %v2315 = vpack.c.b16 %v2151, %v2147
        %v2316 = vpack.c.b16 %v2152, %v2148
        %v2317 = vpack.c.b16 %v2153, %v2149
        %v2318 = vpack.c.b16 %v2154, %v2150
        %v2319 = vpack.c.b16 %v2159, %v2155
        %v2320 = vpack.c.b16 %v2160, %v2156
        %v2321 = vpack.c.b16 %v2161, %v2157
        %v2322 = vpack.c.b16 %v2162, %v2158
        %2483 = vmatprep.subr.bf16.mxu0 %v2192
        %2484 = vmatpush1.bf16.msra.mxu0 %v2191
        %2485 = vmatprep.subr.bf16.mxu0 %v2188
        %2486 = vmatpush1.bf16.msra.mxu0 %v2187
        %2487 = vmatprep.subr.bf16.mxu0 %v2184
        %2488 = vmatpush1.bf16.msra.mxu0 %v2183
        %2489 = vmatprep.subr.bf16.mxu0 %v2180
        %2490 = vmatpush1.bf16.msra.mxu0 %v2179
        %2491 = vmatprep.subr.bf16.mxu0 %v2176
        %2492 = vmatpush1.bf16.msra.mxu0 %v2175
        %2493 = vmatprep.subr.bf16.mxu0 %v2172
        %2494 = vmatpush1.bf16.msra.mxu0 %v2171
        %2495 = vmatprep.subr.bf16.mxu0 %v2168
        %2496 = vmatpush1.bf16.msra.mxu0 %v2167
        %2497 = vmatprep.subr.bf16.mxu0 %v2164
        %2498 = vmatpush1.bf16.msra.mxu0 %v2163
        %2499 = vmatprep.subr.bf16.mxu0 %v2224
        %2500 = vmatpush2.bf16.msra.mxu0 %v2223
        %2501 = vmatprep.subr.bf16.mxu0 %v2220
        %2502 = vmatpush2.bf16.msra.mxu0 %v2219
        %2503 = vmatprep.subr.bf16.mxu0 %v2216
        %2504 = vmatpush2.bf16.msra.mxu0 %v2215
        %2505 = vmatprep.subr.bf16.mxu0 %v2212
        %2506 = vmatpush2.bf16.msra.mxu0 %v2211
        %2507 = vmatprep.subr.bf16.mxu0 %v2208
        %2508 = vmatpush2.bf16.msra.mxu0 %v2207
        %2509 = vmatprep.subr.bf16.mxu0 %v2204
        %2510 = vmatpush2.bf16.msra.mxu0 %v2203
        %2511 = vmatprep.subr.bf16.mxu0 %v2200
        %2512 = vmatpush2.bf16.msra.mxu0 %v2199
        %2513 = vmatprep.subr.bf16.mxu0 %v2196
        %2514 = vmatpush2.bf16.msra.mxu0 %v2195
        %2515 = vmatprep.mubr.bf16.mxu0 %v1674
        %2516 = vmatmul.mubr.bf16.gmra.mxu0 %v1673
        %v2517 = vpop.f32.mrf.mxu0
        %v2518 = vadd.f32 %v1536, %v2517
        %v2519 = vpop.f32.mrf.mxu0
        %v2520 = vadd.f32 %v1538, %v2519
        %v2521 = vpop.f32.mrf.mxu0
        %v2522 = vpop.f32.mrf.mxu0
        %2523 = vdwg.mxu0
        %2524 = vmatprep.subr.bf16.mxu0 %v2256
        %2525 = vmatpush1.bf16.msra.mxu0 %v2255
        %2526 = vmatprep.subr.bf16.mxu0 %v2252
        %2527 = vmatpush1.bf16.msra.mxu0 %v2251
        %2528 = vmatprep.subr.bf16.mxu0 %v2248
        %2529 = vmatpush1.bf16.msra.mxu0 %v2247
        %2530 = vmatprep.subr.bf16.mxu0 %v2244
        %2531 = vmatpush1.bf16.msra.mxu0 %v2243
        %2532 = vmatprep.subr.bf16.mxu0 %v2240
        %2533 = vmatpush1.bf16.msra.mxu0 %v2239
        %2534 = vmatprep.subr.bf16.mxu0 %v2236
        %2535 = vmatpush1.bf16.msra.mxu0 %v2235
        %2536 = vmatprep.subr.bf16.mxu0 %v2232
        %2537 = vmatpush1.bf16.msra.mxu0 %v2231
        %2538 = vmatprep.subr.bf16.mxu0 %v2228
        %2539 = vmatpush1.bf16.msra.mxu0 %v2227
        %2540 = vmatprep.subr.bf16.mxu0 %v2288
        %2541 = vmatpush2.bf16.msra.mxu0 %v2287
        %2542 = vmatprep.subr.bf16.mxu0 %v2284
        %2543 = vmatpush2.bf16.msra.mxu0 %v2283
        %2544 = vmatprep.subr.bf16.mxu0 %v2280
        %2545 = vmatpush2.bf16.msra.mxu0 %v2279
        %2546 = vmatprep.subr.bf16.mxu0 %v2276
        %2547 = vmatpush2.bf16.msra.mxu0 %v2275
        %2548 = vmatprep.subr.bf16.mxu0 %v2272
        %2549 = vmatpush2.bf16.msra.mxu0 %v2271
        %2550 = vmatprep.subr.bf16.mxu0 %v2268
        %2551 = vmatpush2.bf16.msra.mxu0 %v2267
        %2552 = vmatprep.subr.bf16.mxu0 %v2264
        %2553 = vmatpush2.bf16.msra.mxu0 %v2263
        %2554 = vmatprep.subr.bf16.mxu0 %v2260
        %2555 = vmatpush2.bf16.msra.mxu0 %v2259
        %2556 = vmatprep.mubr.bf16.mxu0 %v1676
        %2557 = vmatmul.mubr.bf16.gmra.mxu0 %v1675
        %v2558 = vpop.f32.mrf.mxu0
        %v2559 = vadd.f32 %v2518, %v2558
        %v2560 = vpop.f32.mrf.mxu0
        %v2561 = vadd.f32 %v2520, %v2560
        %v2562 = vpop.f32.mrf.mxu0
        %v2563 = vpop.f32.mrf.mxu0
        %2564 = vdwg.mxu0
        %2565 = vmatprep.subr.bf16.mxu0 %v2320
        %2566 = vmatpush1.bf16.msra.mxu0 %v2319
        %2567 = vmatprep.subr.bf16.mxu0 %v2316
        %2568 = vmatpush1.bf16.msra.mxu0 %v2315
        %2569 = vmatprep.subr.bf16.mxu0 %v2312
        %2570 = vmatpush1.bf16.msra.mxu0 %v2311
        %2571 = vmatprep.subr.bf16.mxu0 %v2308
        %2572 = vmatpush1.bf16.msra.mxu0 %v2307
        %2573 = vmatprep.subr.bf16.mxu0 %v2304
        %2574 = vmatpush1.bf16.msra.mxu0 %v2303
        %2575 = vmatprep.subr.bf16.mxu0 %v2300
        %2576 = vmatpush1.bf16.msra.mxu0 %v2299
        %2577 = vmatprep.subr.bf16.mxu0 %v2296
        %2578 = vmatpush1.bf16.msra.mxu0 %v2295
        %2579 = vmatprep.subr.bf16.mxu0 %v2292
        %2580 = vmatpush1.bf16.msra.mxu0 %v2291
        %2581 = vmatprep.subr.bf16.mxu0 0
        %2582 = vmatpush2.bf16.msra.mxu0 0
        %2583 = vmatprep.subr.bf16.mxu0 0
        %2584 = vmatpush2.bf16.msra.mxu0 0
        %2585 = vmatprep.subr.bf16.mxu0 0
        %2586 = vmatpush2.bf16.msra.mxu0 0
        %2587 = vmatprep.subr.bf16.mxu0 0
        %2588 = vmatpush2.bf16.msra.mxu0 0
        %2589 = vmatprep.subr.bf16.mxu0 0
        %2590 = vmatpush2.bf16.msra.mxu0 0
        %2591 = vmatprep.subr.bf16.mxu0 0
        %2592 = vmatpush2.bf16.msra.mxu0 0
        %2593 = vmatprep.subr.bf16.mxu0 0
        %2594 = vmatpush2.bf16.msra.mxu0 0
        %2595 = vmatprep.subr.bf16.mxu0 0
        %2596 = vmatpush2.bf16.msra.mxu0 0
        %2597 = vmatprep.mubr.bf16.mxu0 0
        %2598 = vmatmul.mubr.bf16.gmra.mxu0 %v1677
        %v2599 = vpop.f32.mrf.mxu0
        %v2600 = vadd.f32 %v2559, %v2599
        %v2601 = vpop.f32.mrf.mxu0
        %v2602 = vadd.f32 %v2561, %v2601
        %v2603 = vpop.f32.mrf.mxu0
        %v2604 = vpop.f32.mrf.mxu0
        %2605 = vdwg.mxu0
        %2606 = vmatprep.subr.bf16.mxu0 %v2194
        %2607 = vmatpush1.bf16.msra.mxu0 %v2193
        %2608 = vmatprep.subr.bf16.mxu0 %v2190
        %2609 = vmatpush1.bf16.msra.mxu0 %v2189
        %2610 = vmatprep.subr.bf16.mxu0 %v2186
        %2611 = vmatpush1.bf16.msra.mxu0 %v2185
        %2612 = vmatprep.subr.bf16.mxu0 %v2182
        %2613 = vmatpush1.bf16.msra.mxu0 %v2181
        %2614 = vmatprep.subr.bf16.mxu0 %v2178
        %2615 = vmatpush1.bf16.msra.mxu0 %v2177
        %2616 = vmatprep.subr.bf16.mxu0 %v2174
        %2617 = vmatpush1.bf16.msra.mxu0 %v2173
        %2618 = vmatprep.subr.bf16.mxu0 %v2170
        %2619 = vmatpush1.bf16.msra.mxu0 %v2169
        %2620 = vmatprep.subr.bf16.mxu0 %v2166
        %2621 = vmatpush1.bf16.msra.mxu0 %v2165
        %2622 = vmatprep.subr.bf16.mxu0 %v2226
        %2623 = vmatpush2.bf16.msra.mxu0 %v2225
        %2624 = vmatprep.subr.bf16.mxu0 %v2222
        %2625 = vmatpush2.bf16.msra.mxu0 %v2221
        %2626 = vmatprep.subr.bf16.mxu0 %v2218
        %2627 = vmatpush2.bf16.msra.mxu0 %v2217
        %2628 = vmatprep.subr.bf16.mxu0 %v2214
        %2629 = vmatpush2.bf16.msra.mxu0 %v2213
        %2630 = vmatprep.subr.bf16.mxu0 %v2210
        %2631 = vmatpush2.bf16.msra.mxu0 %v2209
        %2632 = vmatprep.subr.bf16.mxu0 %v2206
        %2633 = vmatpush2.bf16.msra.mxu0 %v2205
        %2634 = vmatprep.subr.bf16.mxu0 %v2202
        %2635 = vmatpush2.bf16.msra.mxu0 %v2201
        %2636 = vmatprep.subr.bf16.mxu0 %v2198
        %2637 = vmatpush2.bf16.msra.mxu0 %v2197
        %2638 = vmatprep.mubr.bf16.mxu0 %v1674
        %2639 = vmatmul.mubr.bf16.gmra.mxu0 %v1673
        %v2640 = vpop.f32.mrf.mxu0
        %v2641 = vadd.f32 %v1659, %v2640
        %v2642 = vpop.f32.mrf.mxu0
        %v2643 = vadd.f32 %v1661, %v2642
        %v2644 = vpop.f32.mrf.mxu0
        %v2645 = vpop.f32.mrf.mxu0
        %2646 = vdwg.mxu0
        %2647 = vmatprep.subr.bf16.mxu0 %v2258
        %2648 = vmatpush1.bf16.msra.mxu0 %v2257
        %2649 = vmatprep.subr.bf16.mxu0 %v2254
        %2650 = vmatpush1.bf16.msra.mxu0 %v2253
        %2651 = vmatprep.subr.bf16.mxu0 %v2250
        %2652 = vmatpush1.bf16.msra.mxu0 %v2249
        %2653 = vmatprep.subr.bf16.mxu0 %v2246
        %2654 = vmatpush1.bf16.msra.mxu0 %v2245
        %2655 = vmatprep.subr.bf16.mxu0 %v2242
        %2656 = vmatpush1.bf16.msra.mxu0 %v2241
        %2657 = vmatprep.subr.bf16.mxu0 %v2238
        %2658 = vmatpush1.bf16.msra.mxu0 %v2237
        %2659 = vmatprep.subr.bf16.mxu0 %v2234
        %2660 = vmatpush1.bf16.msra.mxu0 %v2233
        %2661 = vmatprep.subr.bf16.mxu0 %v2230
        %2662 = vmatpush1.bf16.msra.mxu0 %v2229
        %2663 = vmatprep.subr.bf16.mxu0 %v2290
        %2664 = vmatpush2.bf16.msra.mxu0 %v2289
        %2665 = vmatprep.subr.bf16.mxu0 %v2286
        %2666 = vmatpush2.bf16.msra.mxu0 %v2285
        %2667 = vmatprep.subr.bf16.mxu0 %v2282
        %2668 = vmatpush2.bf16.msra.mxu0 %v2281
        %2669 = vmatprep.subr.bf16.mxu0 %v2278
        %2670 = vmatpush2.bf16.msra.mxu0 %v2277
        %2671 = vmatprep.subr.bf16.mxu0 %v2274
        %2672 = vmatpush2.bf16.msra.mxu0 %v2273
        %2673 = vmatprep.subr.bf16.mxu0 %v2270
        %2674 = vmatpush2.bf16.msra.mxu0 %v2269
        %2675 = vmatprep.subr.bf16.mxu0 %v2266
        %2676 = vmatpush2.bf16.msra.mxu0 %v2265
        %2677 = vmatprep.subr.bf16.mxu0 %v2262
        %2678 = vmatpush2.bf16.msra.mxu0 %v2261
        %2679 = vmatprep.mubr.bf16.mxu0 %v1676
        %2680 = vmatmul.mubr.bf16.gmra.mxu0 %v1675
        %v2681 = vpop.f32.mrf.mxu0
        %v2682 = vadd.f32 %v2641, %v2681
        %v2683 = vpop.f32.mrf.mxu0
        %v2684 = vadd.f32 %v2643, %v2683
        %v2685 = vpop.f32.mrf.mxu0
        %v2686 = vpop.f32.mrf.mxu0
        %2687 = vdwg.mxu0
        %2688 = vmatprep.subr.bf16.mxu0 %v2322
        %2689 = vmatpush1.bf16.msra.mxu0 %v2321
        %2690 = vmatprep.subr.bf16.mxu0 %v2318
        %2691 = vmatpush1.bf16.msra.mxu0 %v2317
        %2692 = vmatprep.subr.bf16.mxu0 %v2314
        %2693 = vmatpush1.bf16.msra.mxu0 %v2313
        %2694 = vmatprep.subr.bf16.mxu0 %v2310
        %2695 = vmatpush1.bf16.msra.mxu0 %v2309
        %2696 = vmatprep.subr.bf16.mxu0 %v2306
        %2697 = vmatpush1.bf16.msra.mxu0 %v2305
        %2698 = vmatprep.subr.bf16.mxu0 %v2302
        %2699 = vmatpush1.bf16.msra.mxu0 %v2301
        %2700 = vmatprep.subr.bf16.mxu0 %v2298
        %2701 = vmatpush1.bf16.msra.mxu0 %v2297
        %2702 = vmatprep.subr.bf16.mxu0 %v2294
        %2703 = vmatpush1.bf16.msra.mxu0 %v2293
        %2704 = vmatprep.subr.bf16.mxu0 0
        %2705 = vmatpush2.bf16.msra.mxu0 0
        %2706 = vmatprep.subr.bf16.mxu0 0
        %2707 = vmatpush2.bf16.msra.mxu0 0
        %2708 = vmatprep.subr.bf16.mxu0 0
        %2709 = vmatpush2.bf16.msra.mxu0 0
        %2710 = vmatprep.subr.bf16.mxu0 0
        %2711 = vmatpush2.bf16.msra.mxu0 0
        %2712 = vmatprep.subr.bf16.mxu0 0
        %2713 = vmatpush2.bf16.msra.mxu0 0
        %2714 = vmatprep.subr.bf16.mxu0 0
        %2715 = vmatpush2.bf16.msra.mxu0 0
        %2716 = vmatprep.subr.bf16.mxu0 0
        %2717 = vmatpush2.bf16.msra.mxu0 0
        %2718 = vmatprep.subr.bf16.mxu0 0
        %2719 = vmatpush2.bf16.msra.mxu0 0
        %2720 = vmatprep.mubr.bf16.mxu0 0
        %2721 = vmatmul.mubr.bf16.gmra.mxu0 %v1677
        %v2722 = vpop.f32.mrf.mxu0
        %v2723 = vadd.f32 %v2682, %v2722
        %v2724 = vpop.f32.mrf.mxu0
        %v2725 = vadd.f32 %v2684, %v2724
        %v2726 = vpop.f32.mrf.mxu0
        %v2727 = vpop.f32.mrf.mxu0
        %2728 = vdwg.mxu0
        %v2729 = vld [vmem:[%s221] sm:$0x77]
        %v2730 = vld [vmem:[%s221 + $0x8] sm:$0x77]
        %v2731 = vld [vmem:[%s221 + $0x10] sm:$0x7]
        %s2732 = scalar_lea.vmem %s1, 2560
        %v2733 = vld [vmem:[%s2732] sm:$0xff]
        %v2734 = vld [vmem:[%s2732 + $0x8] sm:$0xff]
        %v2735 = vld [vmem:[%s2732 + $0x10] sm:$0xff]
        %v2736 = vld [vmem:[%s2732 + $0x18] sm:$0xff]
        %v2737 = vld [vmem:[%s2732 + $0x20] sm:$0xff]
        %v2738 = vld [vmem:[%s2732 + $0x28] sm:$0xff]
        %v2739 = vld [vmem:[%s2732 + $0x30] sm:$0xff]
        %v2740 = vld [vmem:[%s2732 + $0x38] sm:$0xff]
        %v2741 = vld [vmem:[%s2732 + $0x40] sm:$0xff]
        %v2742 = vld [vmem:[%s2732 + $0x48] sm:$0xff]
        %v2743 = vld [vmem:[%s2732 + $0x50] sm:$0xff]
        %v2744 = vld [vmem:[%s2732 + $0x58] sm:$0xff]
        %v2745 = vld [vmem:[%s2732 + $0x60] sm:$0xff]
        %v2746 = vld [vmem:[%s2732 + $0x68] sm:$0xff]
        %v2747 = vld [vmem:[%s2732 + $0x70] sm:$0xff]
        %v2748 = vld [vmem:[%s2732 + $0x78] sm:$0xff]
        %v2749 = vld [vmem:[%s2732 + $0x80] sm:$0xff]
        %v2750 = vld [vmem:[%s2732 + $0x88] sm:$0xff]
        %v2751 = vld [vmem:[%s2732 + $0x90] sm:$0xff]
        %v2752 = vld [vmem:[%s2732 + $0x98] sm:$0xff]
        %v2753 = vld [vmem:[%s2732 + $0xa0] sm:$0xff]
        %v2754 = vld [vmem:[%s2732 + $0xa8] sm:$0xff]
        %v2755 = vld [vmem:[%s2732 + $0xb0] sm:$0xff]
        %v2756 = vld [vmem:[%s2732 + $0xb8] sm:$0xff]
        %v2757 = vld [vmem:[%s2732 + $0xc0] sm:$0xff]
        %v2758 = vld [vmem:[%s2732 + $0xc8] sm:$0xff]
        %v2759 = vld [vmem:[%s2732 + $0xd0] sm:$0xff]
        %v2760 = vld [vmem:[%s2732 + $0xd8] sm:$0xff]
        %v2761 = vld [vmem:[%s2732 + $0xe0] sm:$0xff]
        %v2762 = vld [vmem:[%s2732 + $0xe8] sm:$0xff]
        %v2763 = vld [vmem:[%s2732 + $0xf0] sm:$0xff]
        %v2764 = vld [vmem:[%s2732 + $0xf8] sm:$0xff]
        %v2765 = vld [vmem:[%s2732 + $0x100] sm:$0xff]
        %v2766 = vld [vmem:[%s2732 + $0x108] sm:$0xff]
        %v2767 = vld [vmem:[%s2732 + $0x110] sm:$0xff]
        %v2768 = vld [vmem:[%s2732 + $0x118] sm:$0xff]
        %v2769 = vld [vmem:[%s2732 + $0x120] sm:$0xff]
        %v2770 = vld [vmem:[%s2732 + $0x128] sm:$0xff]
        %v2771 = vld [vmem:[%s2732 + $0x130] sm:$0xff]
        %v2772 = vld [vmem:[%s2732 + $0x138] sm:$0xff]
        %v2773 = vld [vmem:[%s2732 + $0x140] sm:$0xff]
        %v2774 = vld [vmem:[%s2732 + $0x148] sm:$0xff]
        %v2775 = vld [vmem:[%s2732 + $0x150] sm:$0xff]
        %v2776 = vld [vmem:[%s2732 + $0x158] sm:$0xff]
        %v2777 = vld [vmem:[%s2732 + $0x160] sm:$0xff]
        %v2778 = vld [vmem:[%s2732 + $0x168] sm:$0xff]
        %v2779 = vld [vmem:[%s2732 + $0x170] sm:$0xff]
        %v2780 = vld [vmem:[%s2732 + $0x178] sm:$0xff]
        %v2781 = vld [vmem:[%s2732 + $0x180] sm:$0xff]
        %v2782 = vld [vmem:[%s2732 + $0x188] sm:$0xff]
        %v2783 = vld [vmem:[%s2732 + $0x190] sm:$0xff]
        %v2784 = vld [vmem:[%s2732 + $0x198] sm:$0xff]
        %v2785 = vld [vmem:[%s2732 + $0x1a0] sm:$0xff]
        %v2786 = vld [vmem:[%s2732 + $0x1a8] sm:$0xff]
        %v2787 = vld [vmem:[%s2732 + $0x1b0] sm:$0xff]
        %v2788 = vld [vmem:[%s2732 + $0x1b8] sm:$0xff]
        %v2789 = vld [vmem:[%s2732 + $0x1c0] sm:$0xff]
        %v2790 = vld [vmem:[%s2732 + $0x1c8] sm:$0xff]
        %v2791 = vld [vmem:[%s2732 + $0x1d0] sm:$0xff]
        %v2792 = vld [vmem:[%s2732 + $0x1d8] sm:$0xff]
        %v2793 = vld [vmem:[%s2732 + $0x1e0] sm:$0xff]
        %v2794 = vld [vmem:[%s2732 + $0x1e8] sm:$0xff]
        %v2795 = vld [vmem:[%s2732 + $0x1f0] sm:$0xff]
        %v2796 = vld [vmem:[%s2732 + $0x1f8] sm:$0xff]
        %v2797 = vld [vmem:[%s2732 + $0x200] sm:$0xff]
        %v2798 = vld [vmem:[%s2732 + $0x208] sm:$0xff]
        %v2799 = vld [vmem:[%s2732 + $0x210] sm:$0xff]
        %v2800 = vld [vmem:[%s2732 + $0x218] sm:$0xff]
        %v2801 = vld [vmem:[%s2732 + $0x220] sm:$0xff]
        %v2802 = vld [vmem:[%s2732 + $0x228] sm:$0xff]
        %v2803 = vld [vmem:[%s2732 + $0x230] sm:$0xff]
        %v2804 = vld [vmem:[%s2732 + $0x238] sm:$0xff]
        %v2805 = vld [vmem:[%s2732 + $0x240] sm:$0xff]
        %v2806 = vld [vmem:[%s2732 + $0x248] sm:$0xff]
        %v2807 = vld [vmem:[%s2732 + $0x250] sm:$0xff]
        %v2808 = vld [vmem:[%s2732 + $0x258] sm:$0xff]
        %v2809 = vld [vmem:[%s2732 + $0x260] sm:$0xff]
        %v2810 = vld [vmem:[%s2732 + $0x268] sm:$0xff]
        %v2811 = vld [vmem:[%s2732 + $0x270] sm:$0xff]
        %v2812 = vld [vmem:[%s2732 + $0x278] sm:$0xff]
        %v2813 = vld [vmem:[%s2732 + $0x280] sm:$0xff]
        %v2814 = vld [vmem:[%s2732 + $0x288] sm:$0xff]
        %v2815 = vld [vmem:[%s2732 + $0x290] sm:$0xff]
        %v2816 = vld [vmem:[%s2732 + $0x298] sm:$0xff]
        %v2817 = vld [vmem:[%s2732 + $0x2a0] sm:$0xff]
        %v2818 = vld [vmem:[%s2732 + $0x2a8] sm:$0xff]
        %v2819 = vld [vmem:[%s2732 + $0x2b0] sm:$0xff]
        %v2820 = vld [vmem:[%s2732 + $0x2b8] sm:$0xff]
        %v2821 = vld [vmem:[%s2732 + $0x2c0] sm:$0xff]
        %v2822 = vld [vmem:[%s2732 + $0x2c8] sm:$0xff]
        %v2823 = vld [vmem:[%s2732 + $0x2d0] sm:$0xff]
        %v2824 = vld [vmem:[%s2732 + $0x2d8] sm:$0xff]
        %v2825 = vld [vmem:[%s2732 + $0x2e0] sm:$0xff]
        %v2826 = vld [vmem:[%s2732 + $0x2e8] sm:$0xff]
        %v2827 = vld [vmem:[%s2732 + $0x2f0] sm:$0xff]
        %v2828 = vld [vmem:[%s2732 + $0x2f8] sm:$0xff]
        %v2829 = vld [vmem:[%s2732 + $0x300] sm:$0xff]
        %v2830 = vld [vmem:[%s2732 + $0x308] sm:$0xff]
        %v2831 = vld [vmem:[%s2732 + $0x310] sm:$0xff]
        %v2832 = vld [vmem:[%s2732 + $0x318] sm:$0xff]
        %v2833 = vld [vmem:[%s2732 + $0x320] sm:$0xff]
        %v2834 = vld [vmem:[%s2732 + $0x328] sm:$0xff]
        %v2835 = vld [vmem:[%s2732 + $0x330] sm:$0xff]
        %v2836 = vld [vmem:[%s2732 + $0x338] sm:$0xff]
        %v2837 = vld [vmem:[%s2732 + $0x340] sm:$0xff]
        %v2838 = vld [vmem:[%s2732 + $0x348] sm:$0xff]
        %v2839 = vld [vmem:[%s2732 + $0x350] sm:$0xff]
        %v2840 = vld [vmem:[%s2732 + $0x358] sm:$0xff]
        %v2841 = vld [vmem:[%s2732 + $0x360] sm:$0xff]
        %v2842 = vld [vmem:[%s2732 + $0x368] sm:$0xff]
        %v2843 = vld [vmem:[%s2732 + $0x370] sm:$0xff]
        %v2844 = vld [vmem:[%s2732 + $0x378] sm:$0xff]
        %v2845 = vld [vmem:[%s2732 + $0x380] sm:$0xff]
        %v2846 = vld [vmem:[%s2732 + $0x388] sm:$0xff]
        %v2847 = vld [vmem:[%s2732 + $0x390] sm:$0xff]
        %v2848 = vld [vmem:[%s2732 + $0x398] sm:$0xff]
        %v2849 = vld [vmem:[%s2732 + $0x3a0] sm:$0xff]
        %v2850 = vld [vmem:[%s2732 + $0x3a8] sm:$0xff]
        %v2851 = vld [vmem:[%s2732 + $0x3b0] sm:$0xff]
        %v2852 = vld [vmem:[%s2732 + $0x3b8] sm:$0xff]
        %v2853 = vld [vmem:[%s2732 + $0x3c0] sm:$0xff]
        %v2854 = vld [vmem:[%s2732 + $0x3c8] sm:$0xff]
        %v2855 = vld [vmem:[%s2732 + $0x3d0] sm:$0xff]
        %v2856 = vld [vmem:[%s2732 + $0x3d8] sm:$0xff]
        %v2857 = vld [vmem:[%s2732 + $0x3e0] sm:$0xff]
        %v2858 = vld [vmem:[%s2732 + $0x3e8] sm:$0xff]
        %v2859 = vld [vmem:[%s2732 + $0x3f0] sm:$0xff]
        %v2860 = vld [vmem:[%s2732 + $0x3f8] sm:$0xff]
        %v2861 = vld [vmem:[%s2732 + $0x400] sm:$0xff]
        %v2862 = vld [vmem:[%s2732 + $0x408] sm:$0xff]
        %v2863 = vld [vmem:[%s2732 + $0x410] sm:$0xff]
        %v2864 = vld [vmem:[%s2732 + $0x418] sm:$0xff]
        %v2865 = vld [vmem:[%s2732 + $0x420] sm:$0xff]
        %v2866 = vld [vmem:[%s2732 + $0x428] sm:$0xff]
        %v2867 = vld [vmem:[%s2732 + $0x430] sm:$0xff]
        %v2868 = vld [vmem:[%s2732 + $0x438] sm:$0xff]
        %v2869 = vld [vmem:[%s2732 + $0x440] sm:$0xff]
        %v2870 = vld [vmem:[%s2732 + $0x448] sm:$0xff]
        %v2871 = vld [vmem:[%s2732 + $0x450] sm:$0xff]
        %v2872 = vld [vmem:[%s2732 + $0x458] sm:$0xff]
        %v2873 = vld [vmem:[%s2732 + $0x460] sm:$0xff]
        %v2874 = vld [vmem:[%s2732 + $0x468] sm:$0xff]
        %v2875 = vld [vmem:[%s2732 + $0x470] sm:$0xff]
        %v2876 = vld [vmem:[%s2732 + $0x478] sm:$0xff]
        %v2877 = vld [vmem:[%s2732 + $0x480] sm:$0xff]
        %v2878 = vld [vmem:[%s2732 + $0x488] sm:$0xff]
        %v2879 = vld [vmem:[%s2732 + $0x490] sm:$0xff]
        %v2880 = vld [vmem:[%s2732 + $0x498] sm:$0xff]
        %v2881 = vld [vmem:[%s2732 + $0x4a0] sm:$0xff]
        %v2882 = vld [vmem:[%s2732 + $0x4a8] sm:$0xff]
        %v2883 = vld [vmem:[%s2732 + $0x4b0] sm:$0xff]
        %v2884 = vld [vmem:[%s2732 + $0x4b8] sm:$0xff]
        %v2885 = vld [vmem:[%s2732 + $0x4c0] sm:$0xff]
        %v2886 = vld [vmem:[%s2732 + $0x4c8] sm:$0xff]
        %v2887 = vld [vmem:[%s2732 + $0x4d0] sm:$0xff]
        %v2888 = vld [vmem:[%s2732 + $0x4d8] sm:$0xff]
        %v2889 = vld [vmem:[%s2732 + $0x4e0] sm:$0xff]
        %v2890 = vld [vmem:[%s2732 + $0x4e8] sm:$0xff]
        %v2891 = vld [vmem:[%s2732 + $0x4f0] sm:$0xff]
        %v2892 = vld [vmem:[%s2732 + $0x4f8] sm:$0xff]
        %v2896 = vunpack.c.l.b16 %v2729
        %v2897 = vunpack.c.h.b16 %v2729
        %v2898 = vunpack.c.l.b16 %v2730
        %v2899 = vunpack.c.h.b16 %v2730
        %v2900 = vunpack.c.l.b16 %v2731
        %v2901 = vpack.c.b16 %v2896, %v2896
        %v2902 = vpack.c.b16 %v2897, %v2897
        %v2903 = vpack.c.b16 %v2898, %v2898
        %v2904 = vpack.c.b16 %v2899, %v2899
        %v2905 = vpack.c.b16 %v2900, %v2900
        %v2907 = vshrl.u32 %v2901, 16
        %v2909 = vshll.u32 %v2901, 16
        %v2911 = vrot.slane %v2909, 1
        %v2912 = vor.u32 %v2907, %v2911
        %v2914 = vshrl.u32 %v2902, 16
        %v2916 = vshll.u32 %v2902, 16
        %v2918 = vrot.slane %v2916, 1
        %v2919 = vor.u32 %v2914, %v2918
        %v2921 = vshrl.u32 %v2903, 16
        %v2923 = vshll.u32 %v2903, 16
        %v2925 = vrot.slane %v2923, 1
        %v2926 = vor.u32 %v2921, %v2925
        %v2928 = vshrl.u32 %v2904, 16
        %v2930 = vshll.u32 %v2904, 16
        %v2932 = vrot.slane %v2930, 1
        %v2933 = vor.u32 %v2928, %v2932
        %v2935 = vshrl.u32 %v2905, 16
        %v2937 = vshll.u32 %v2905, 16
        %v2939 = vrot.slane %v2937, 1
        %v2940 = vor.u32 %v2935, %v2939
        %v3106 = vunpack.c.l.b16 %v2733
        %v3107 = vunpack.c.h.b16 %v2733
        %v3108 = vunpack.c.l.b16 %v2734
        %v3109 = vunpack.c.h.b16 %v2734
        %v3110 = vunpack.c.l.b16 %v2735
        %v3111 = vunpack.c.h.b16 %v2735
        %v3112 = vunpack.c.l.b16 %v2736
        %v3113 = vunpack.c.h.b16 %v2736
        %v3114 = vunpack.c.l.b16 %v2737
        %v3115 = vunpack.c.h.b16 %v2737
        %v3116 = vunpack.c.l.b16 %v2738
        %v3117 = vunpack.c.h.b16 %v2738
        %v3118 = vunpack.c.l.b16 %v2739
        %v3119 = vunpack.c.h.b16 %v2739
        %v3120 = vunpack.c.l.b16 %v2740
        %v3121 = vunpack.c.h.b16 %v2740
        %v3122 = vunpack.c.l.b16 %v2741
        %v3123 = vunpack.c.h.b16 %v2741
        %v3124 = vunpack.c.l.b16 %v2742
        %v3125 = vunpack.c.h.b16 %v2742
        %v3126 = vunpack.c.l.b16 %v2743
        %v3127 = vunpack.c.h.b16 %v2743
        %v3128 = vunpack.c.l.b16 %v2744
        %v3129 = vunpack.c.h.b16 %v2744
        %v3130 = vunpack.c.l.b16 %v2745
        %v3131 = vunpack.c.h.b16 %v2745
        %v3132 = vunpack.c.l.b16 %v2746
        %v3133 = vunpack.c.h.b16 %v2746
        %v3134 = vunpack.c.l.b16 %v2747
        %v3135 = vunpack.c.h.b16 %v2747
        %v3136 = vunpack.c.l.b16 %v2748
        %v3137 = vunpack.c.h.b16 %v2748
        %v3138 = vunpack.c.l.b16 %v2749
        %v3139 = vunpack.c.h.b16 %v2749
        %v3140 = vunpack.c.l.b16 %v2750
        %v3141 = vunpack.c.h.b16 %v2750
        %v3142 = vunpack.c.l.b16 %v2751
        %v3143 = vunpack.c.h.b16 %v2751
        %v3144 = vunpack.c.l.b16 %v2752
        %v3145 = vunpack.c.h.b16 %v2752
        %v3146 = vunpack.c.l.b16 %v2753
        %v3147 = vunpack.c.h.b16 %v2753
        %v3148 = vunpack.c.l.b16 %v2754
        %v3149 = vunpack.c.h.b16 %v2754
        %v3150 = vunpack.c.l.b16 %v2755
        %v3151 = vunpack.c.h.b16 %v2755
        %v3152 = vunpack.c.l.b16 %v2756
        %v3153 = vunpack.c.h.b16 %v2756
        %v3154 = vunpack.c.l.b16 %v2757
        %v3155 = vunpack.c.h.b16 %v2757
        %v3156 = vunpack.c.l.b16 %v2758
        %v3157 = vunpack.c.h.b16 %v2758
        %v3158 = vunpack.c.l.b16 %v2759
        %v3159 = vunpack.c.h.b16 %v2759
        %v3160 = vunpack.c.l.b16 %v2760
        %v3161 = vunpack.c.h.b16 %v2760
        %v3162 = vunpack.c.l.b16 %v2761
        %v3163 = vunpack.c.h.b16 %v2761
        %v3164 = vunpack.c.l.b16 %v2762
        %v3165 = vunpack.c.h.b16 %v2762
        %v3166 = vunpack.c.l.b16 %v2763
        %v3167 = vunpack.c.h.b16 %v2763
        %v3168 = vunpack.c.l.b16 %v2764
        %v3169 = vunpack.c.h.b16 %v2764
        %v3170 = vunpack.c.l.b16 %v2765
        %v3171 = vunpack.c.h.b16 %v2765
        %v3172 = vunpack.c.l.b16 %v2766
        %v3173 = vunpack.c.h.b16 %v2766
        %v3174 = vunpack.c.l.b16 %v2767
        %v3175 = vunpack.c.h.b16 %v2767
        %v3176 = vunpack.c.l.b16 %v2768
        %v3177 = vunpack.c.h.b16 %v2768
        %v3178 = vunpack.c.l.b16 %v2769
        %v3179 = vunpack.c.h.b16 %v2769
        %v3180 = vunpack.c.l.b16 %v2770
        %v3181 = vunpack.c.h.b16 %v2770
        %v3182 = vunpack.c.l.b16 %v2771
        %v3183 = vunpack.c.h.b16 %v2771
        %v3184 = vunpack.c.l.b16 %v2772
        %v3185 = vunpack.c.h.b16 %v2772
        %v3186 = vunpack.c.l.b16 %v2773
        %v3187 = vunpack.c.h.b16 %v2773
        %v3188 = vunpack.c.l.b16 %v2774
        %v3189 = vunpack.c.h.b16 %v2774
        %v3190 = vunpack.c.l.b16 %v2775
        %v3191 = vunpack.c.h.b16 %v2775
        %v3192 = vunpack.c.l.b16 %v2776
        %v3193 = vunpack.c.h.b16 %v2776
        %v3194 = vunpack.c.l.b16 %v2777
        %v3195 = vunpack.c.h.b16 %v2777
        %v3196 = vunpack.c.l.b16 %v2778
        %v3197 = vunpack.c.h.b16 %v2778
        %v3198 = vunpack.c.l.b16 %v2779
        %v3199 = vunpack.c.h.b16 %v2779
        %v3200 = vunpack.c.l.b16 %v2780
        %v3201 = vunpack.c.h.b16 %v2780
        %v3202 = vunpack.c.l.b16 %v2781
        %v3203 = vunpack.c.h.b16 %v2781
        %v3204 = vunpack.c.l.b16 %v2782
        %v3205 = vunpack.c.h.b16 %v2782
        %v3206 = vunpack.c.l.b16 %v2783
        %v3207 = vunpack.c.h.b16 %v2783
        %v3208 = vunpack.c.l.b16 %v2784
        %v3209 = vunpack.c.h.b16 %v2784
        %v3210 = vunpack.c.l.b16 %v2785
        %v3211 = vunpack.c.h.b16 %v2785
        %v3212 = vunpack.c.l.b16 %v2786
        %v3213 = vunpack.c.h.b16 %v2786
        %v3214 = vunpack.c.l.b16 %v2787
        %v3215 = vunpack.c.h.b16 %v2787
        %v3216 = vunpack.c.l.b16 %v2788
        %v3217 = vunpack.c.h.b16 %v2788
        %v3218 = vunpack.c.l.b16 %v2789
        %v3219 = vunpack.c.h.b16 %v2789
        %v3220 = vunpack.c.l.b16 %v2790
        %v3221 = vunpack.c.h.b16 %v2790
        %v3222 = vunpack.c.l.b16 %v2791
        %v3223 = vunpack.c.h.b16 %v2791
        %v3224 = vunpack.c.l.b16 %v2792
        %v3225 = vunpack.c.h.b16 %v2792
        %v3226 = vunpack.c.l.b16 %v2793
        %v3227 = vunpack.c.h.b16 %v2793
        %v3228 = vunpack.c.l.b16 %v2794
        %v3229 = vunpack.c.h.b16 %v2794
        %v3230 = vunpack.c.l.b16 %v2795
        %v3231 = vunpack.c.h.b16 %v2795
        %v3232 = vunpack.c.l.b16 %v2796
        %v3233 = vunpack.c.h.b16 %v2796
        %v3234 = vunpack.c.l.b16 %v2797
        %v3235 = vunpack.c.h.b16 %v2797
        %v3236 = vunpack.c.l.b16 %v2798
        %v3237 = vunpack.c.h.b16 %v2798
        %v3238 = vunpack.c.l.b16 %v2799
        %v3239 = vunpack.c.h.b16 %v2799
        %v3240 = vunpack.c.l.b16 %v2800
        %v3241 = vunpack.c.h.b16 %v2800
        %v3242 = vunpack.c.l.b16 %v2801
        %v3243 = vunpack.c.h.b16 %v2801
        %v3244 = vunpack.c.l.b16 %v2802
        %v3245 = vunpack.c.h.b16 %v2802
        %v3246 = vunpack.c.l.b16 %v2803
        %v3247 = vunpack.c.h.b16 %v2803
        %v3248 = vunpack.c.l.b16 %v2804
        %v3249 = vunpack.c.h.b16 %v2804
        %v3250 = vunpack.c.l.b16 %v2805
        %v3251 = vunpack.c.h.b16 %v2805
        %v3252 = vunpack.c.l.b16 %v2806
        %v3253 = vunpack.c.h.b16 %v2806
        %v3254 = vunpack.c.l.b16 %v2807
        %v3255 = vunpack.c.h.b16 %v2807
        %v3256 = vunpack.c.l.b16 %v2808
        %v3257 = vunpack.c.h.b16 %v2808
        %v3258 = vunpack.c.l.b16 %v2809
        %v3259 = vunpack.c.h.b16 %v2809
        %v3260 = vunpack.c.l.b16 %v2810
        %v3261 = vunpack.c.h.b16 %v2810
        %v3262 = vunpack.c.l.b16 %v2811
        %v3263 = vunpack.c.h.b16 %v2811
        %v3264 = vunpack.c.l.b16 %v2812
        %v3265 = vunpack.c.h.b16 %v2812
        %v3266 = vunpack.c.l.b16 %v2813
        %v3267 = vunpack.c.h.b16 %v2813
        %v3268 = vunpack.c.l.b16 %v2814
        %v3269 = vunpack.c.h.b16 %v2814
        %v3270 = vunpack.c.l.b16 %v2815
        %v3271 = vunpack.c.h.b16 %v2815
        %v3272 = vunpack.c.l.b16 %v2816
        %v3273 = vunpack.c.h.b16 %v2816
        %v3274 = vunpack.c.l.b16 %v2817
        %v3275 = vunpack.c.h.b16 %v2817
        %v3276 = vunpack.c.l.b16 %v2818
        %v3277 = vunpack.c.h.b16 %v2818
        %v3278 = vunpack.c.l.b16 %v2819
        %v3279 = vunpack.c.h.b16 %v2819
        %v3280 = vunpack.c.l.b16 %v2820
        %v3281 = vunpack.c.h.b16 %v2820
        %v3282 = vunpack.c.l.b16 %v2821
        %v3283 = vunpack.c.h.b16 %v2821
        %v3284 = vunpack.c.l.b16 %v2822
        %v3285 = vunpack.c.h.b16 %v2822
        %v3286 = vunpack.c.l.b16 %v2823
        %v3287 = vunpack.c.h.b16 %v2823
        %v3288 = vunpack.c.l.b16 %v2824
        %v3289 = vunpack.c.h.b16 %v2824
        %v3290 = vunpack.c.l.b16 %v2825
        %v3291 = vunpack.c.h.b16 %v2825
        %v3292 = vunpack.c.l.b16 %v2826
        %v3293 = vunpack.c.h.b16 %v2826
        %v3294 = vunpack.c.l.b16 %v2827
        %v3295 = vunpack.c.h.b16 %v2827
        %v3296 = vunpack.c.l.b16 %v2828
        %v3297 = vunpack.c.h.b16 %v2828
        %v3298 = vunpack.c.l.b16 %v2829
        %v3299 = vunpack.c.h.b16 %v2829
        %v3300 = vunpack.c.l.b16 %v2830
        %v3301 = vunpack.c.h.b16 %v2830
        %v3302 = vunpack.c.l.b16 %v2831
        %v3303 = vunpack.c.h.b16 %v2831
        %v3304 = vunpack.c.l.b16 %v2832
        %v3305 = vunpack.c.h.b16 %v2832
        %v3306 = vunpack.c.l.b16 %v2833
        %v3307 = vunpack.c.h.b16 %v2833
        %v3308 = vunpack.c.l.b16 %v2834
        %v3309 = vunpack.c.h.b16 %v2834
        %v3310 = vunpack.c.l.b16 %v2835
        %v3311 = vunpack.c.h.b16 %v2835
        %v3312 = vunpack.c.l.b16 %v2836
        %v3313 = vunpack.c.h.b16 %v2836
        %v3314 = vunpack.c.l.b16 %v2837
        %v3315 = vunpack.c.h.b16 %v2837
        %v3316 = vunpack.c.l.b16 %v2838
        %v3317 = vunpack.c.h.b16 %v2838
        %v3318 = vunpack.c.l.b16 %v2839
        %v3319 = vunpack.c.h.b16 %v2839
        %v3320 = vunpack.c.l.b16 %v2840
        %v3321 = vunpack.c.h.b16 %v2840
        %v3322 = vunpack.c.l.b16 %v2841
        %v3323 = vunpack.c.h.b16 %v2841
        %v3324 = vunpack.c.l.b16 %v2842
        %v3325 = vunpack.c.h.b16 %v2842
        %v3326 = vunpack.c.l.b16 %v2843
        %v3327 = vunpack.c.h.b16 %v2843
        %v3328 = vunpack.c.l.b16 %v2844
        %v3329 = vunpack.c.h.b16 %v2844
        %v3330 = vunpack.c.l.b16 %v2845
        %v3331 = vunpack.c.h.b16 %v2845
        %v3332 = vunpack.c.l.b16 %v2846
        %v3333 = vunpack.c.h.b16 %v2846
        %v3334 = vunpack.c.l.b16 %v2847
        %v3335 = vunpack.c.h.b16 %v2847
        %v3336 = vunpack.c.l.b16 %v2848
        %v3337 = vunpack.c.h.b16 %v2848
        %v3338 = vunpack.c.l.b16 %v2849
        %v3339 = vunpack.c.h.b16 %v2849
        %v3340 = vunpack.c.l.b16 %v2850
        %v3341 = vunpack.c.h.b16 %v2850
        %v3342 = vunpack.c.l.b16 %v2851
        %v3343 = vunpack.c.h.b16 %v2851
        %v3344 = vunpack.c.l.b16 %v2852
        %v3345 = vunpack.c.h.b16 %v2852
        %v3346 = vunpack.c.l.b16 %v2853
        %v3347 = vunpack.c.h.b16 %v2853
        %v3348 = vunpack.c.l.b16 %v2854
        %v3349 = vunpack.c.h.b16 %v2854
        %v3350 = vunpack.c.l.b16 %v2855
        %v3351 = vunpack.c.h.b16 %v2855
        %v3352 = vunpack.c.l.b16 %v2856
        %v3353 = vunpack.c.h.b16 %v2856
        %v3354 = vunpack.c.l.b16 %v2857
        %v3355 = vunpack.c.h.b16 %v2857
        %v3356 = vunpack.c.l.b16 %v2858
        %v3357 = vunpack.c.h.b16 %v2858
        %v3358 = vunpack.c.l.b16 %v2859
        %v3359 = vunpack.c.h.b16 %v2859
        %v3360 = vunpack.c.l.b16 %v2860
        %v3361 = vunpack.c.h.b16 %v2860
        %v3362 = vunpack.c.l.b16 %v2861
        %v3363 = vunpack.c.h.b16 %v2861
        %v3364 = vunpack.c.l.b16 %v2862
        %v3365 = vunpack.c.h.b16 %v2862
        %v3366 = vunpack.c.l.b16 %v2863
        %v3367 = vunpack.c.h.b16 %v2863
        %v3368 = vunpack.c.l.b16 %v2864
        %v3369 = vunpack.c.h.b16 %v2864
        %v3370 = vunpack.c.l.b16 %v2865
        %v3371 = vunpack.c.h.b16 %v2865
        %v3372 = vunpack.c.l.b16 %v2866
        %v3373 = vunpack.c.h.b16 %v2866
        %v3374 = vunpack.c.l.b16 %v2867
        %v3375 = vunpack.c.h.b16 %v2867
        %v3376 = vunpack.c.l.b16 %v2868
        %v3377 = vunpack.c.h.b16 %v2868
        %v3378 = vunpack.c.l.b16 %v2869
        %v3379 = vunpack.c.h.b16 %v2869
        %v3380 = vunpack.c.l.b16 %v2870
        %v3381 = vunpack.c.h.b16 %v2870
        %v3382 = vunpack.c.l.b16 %v2871
        %v3383 = vunpack.c.h.b16 %v2871
        %v3384 = vunpack.c.l.b16 %v2872
        %v3385 = vunpack.c.h.b16 %v2872
        %v3386 = vunpack.c.l.b16 %v2873
        %v3387 = vunpack.c.h.b16 %v2873
        %v3388 = vunpack.c.l.b16 %v2874
        %v3389 = vunpack.c.h.b16 %v2874
        %v3390 = vunpack.c.l.b16 %v2875
        %v3391 = vunpack.c.h.b16 %v2875
        %v3392 = vunpack.c.l.b16 %v2876
        %v3393 = vunpack.c.h.b16 %v2876
        %v3394 = vunpack.c.l.b16 %v2877
        %v3395 = vunpack.c.h.b16 %v2877
        %v3396 = vunpack.c.l.b16 %v2878
        %v3397 = vunpack.c.h.b16 %v2878
        %v3398 = vunpack.c.l.b16 %v2879
        %v3399 = vunpack.c.h.b16 %v2879
        %v3400 = vunpack.c.l.b16 %v2880
        %v3401 = vunpack.c.h.b16 %v2880
        %v3402 = vunpack.c.l.b16 %v2881
        %v3403 = vunpack.c.h.b16 %v2881
        %v3404 = vunpack.c.l.b16 %v2882
        %v3405 = vunpack.c.h.b16 %v2882
        %v3406 = vunpack.c.l.b16 %v2883
        %v3407 = vunpack.c.h.b16 %v2883
        %v3408 = vunpack.c.l.b16 %v2884
        %v3409 = vunpack.c.h.b16 %v2884
        %v3410 = vunpack.c.l.b16 %v2885
        %v3411 = vunpack.c.h.b16 %v2885
        %v3412 = vunpack.c.l.b16 %v2886
        %v3413 = vunpack.c.h.b16 %v2886
        %v3414 = vunpack.c.l.b16 %v2887
        %v3415 = vunpack.c.h.b16 %v2887
        %v3416 = vunpack.c.l.b16 %v2888
        %v3417 = vunpack.c.h.b16 %v2888
        %v3418 = vunpack.c.l.b16 %v2889
        %v3419 = vunpack.c.h.b16 %v2889
        %v3420 = vunpack.c.l.b16 %v2890
        %v3421 = vunpack.c.h.b16 %v2890
        %v3422 = vunpack.c.l.b16 %v2891
        %v3423 = vunpack.c.h.b16 %v2891
        %v3424 = vunpack.c.l.b16 %v2892
        %v3425 = vunpack.c.h.b16 %v2892
        %v3426 = vpack.c.b16 %v3110, %v3106
        %v3427 = vpack.c.b16 %v3111, %v3107
        %v3428 = vpack.c.b16 %v3112, %v3108
        %v3429 = vpack.c.b16 %v3113, %v3109
        %v3430 = vpack.c.b16 %v3118, %v3114
        %v3431 = vpack.c.b16 %v3119, %v3115
        %v3432 = vpack.c.b16 %v3120, %v3116
        %v3433 = vpack.c.b16 %v3121, %v3117
        %v3434 = vpack.c.b16 %v3126, %v3122
        %v3435 = vpack.c.b16 %v3127, %v3123
        %v3436 = vpack.c.b16 %v3128, %v3124
        %v3437 = vpack.c.b16 %v3129, %v3125
        %v3438 = vpack.c.b16 %v3134, %v3130
        %v3439 = vpack.c.b16 %v3135, %v3131
        %v3440 = vpack.c.b16 %v3136, %v3132
        %v3441 = vpack.c.b16 %v3137, %v3133
        %v3442 = vpack.c.b16 %v3142, %v3138
        %v3443 = vpack.c.b16 %v3143, %v3139
        %v3444 = vpack.c.b16 %v3144, %v3140
        %v3445 = vpack.c.b16 %v3145, %v3141
        %v3446 = vpack.c.b16 %v3150, %v3146
        %v3447 = vpack.c.b16 %v3151, %v3147
        %v3448 = vpack.c.b16 %v3152, %v3148
        %v3449 = vpack.c.b16 %v3153, %v3149
        %v3450 = vpack.c.b16 %v3158, %v3154
        %v3451 = vpack.c.b16 %v3159, %v3155
        %v3452 = vpack.c.b16 %v3160, %v3156
        %v3453 = vpack.c.b16 %v3161, %v3157
        %v3454 = vpack.c.b16 %v3166, %v3162
        %v3455 = vpack.c.b16 %v3167, %v3163
        %v3456 = vpack.c.b16 %v3168, %v3164
        %v3457 = vpack.c.b16 %v3169, %v3165
        %v3458 = vpack.c.b16 %v3174, %v3170
        %v3459 = vpack.c.b16 %v3175, %v3171
        %v3460 = vpack.c.b16 %v3176, %v3172
        %v3461 = vpack.c.b16 %v3177, %v3173
        %v3462 = vpack.c.b16 %v3182, %v3178
        %v3463 = vpack.c.b16 %v3183, %v3179
        %v3464 = vpack.c.b16 %v3184, %v3180
        %v3465 = vpack.c.b16 %v3185, %v3181
        %v3466 = vpack.c.b16 %v3190, %v3186
        %v3467 = vpack.c.b16 %v3191, %v3187
        %v3468 = vpack.c.b16 %v3192, %v3188
        %v3469 = vpack.c.b16 %v3193, %v3189
        %v3470 = vpack.c.b16 %v3198, %v3194
        %v3471 = vpack.c.b16 %v3199, %v3195
        %v3472 = vpack.c.b16 %v3200, %v3196
        %v3473 = vpack.c.b16 %v3201, %v3197
        %v3474 = vpack.c.b16 %v3206, %v3202
        %v3475 = vpack.c.b16 %v3207, %v3203
        %v3476 = vpack.c.b16 %v3208, %v3204
        %v3477 = vpack.c.b16 %v3209, %v3205
        %v3478 = vpack.c.b16 %v3214, %v3210
        %v3479 = vpack.c.b16 %v3215, %v3211
        %v3480 = vpack.c.b16 %v3216, %v3212
        %v3481 = vpack.c.b16 %v3217, %v3213
        %v3482 = vpack.c.b16 %v3222, %v3218
        %v3483 = vpack.c.b16 %v3223, %v3219
        %v3484 = vpack.c.b16 %v3224, %v3220
        %v3485 = vpack.c.b16 %v3225, %v3221
        %v3486 = vpack.c.b16 %v3230, %v3226
        %v3487 = vpack.c.b16 %v3231, %v3227
        %v3488 = vpack.c.b16 %v3232, %v3228
        %v3489 = vpack.c.b16 %v3233, %v3229
        %v3490 = vpack.c.b16 %v3238, %v3234
        %v3491 = vpack.c.b16 %v3239, %v3235
        %v3492 = vpack.c.b16 %v3240, %v3236
        %v3493 = vpack.c.b16 %v3241, %v3237
        %v3494 = vpack.c.b16 %v3246, %v3242
        %v3495 = vpack.c.b16 %v3247, %v3243
        %v3496 = vpack.c.b16 %v3248, %v3244
        %v3497 = vpack.c.b16 %v3249, %v3245
        %v3498 = vpack.c.b16 %v3254, %v3250
        %v3499 = vpack.c.b16 %v3255, %v3251
        %v3500 = vpack.c.b16 %v3256, %v3252
        %v3501 = vpack.c.b16 %v3257, %v3253
        %v3502 = vpack.c.b16 %v3262, %v3258
        %v3503 = vpack.c.b16 %v3263, %v3259
        %v3504 = vpack.c.b16 %v3264, %v3260
        %v3505 = vpack.c.b16 %v3265, %v3261
        %v3506 = vpack.c.b16 %v3270, %v3266
        %v3507 = vpack.c.b16 %v3271, %v3267
        %v3508 = vpack.c.b16 %v3272, %v3268
        %v3509 = vpack.c.b16 %v3273, %v3269
        %v3510 = vpack.c.b16 %v3278, %v3274
        %v3511 = vpack.c.b16 %v3279, %v3275
        %v3512 = vpack.c.b16 %v3280, %v3276
        %v3513 = vpack.c.b16 %v3281, %v3277
        %v3514 = vpack.c.b16 %v3286, %v3282
        %v3515 = vpack.c.b16 %v3287, %v3283
        %v3516 = vpack.c.b16 %v3288, %v3284
        %v3517 = vpack.c.b16 %v3289, %v3285
        %v3518 = vpack.c.b16 %v3294, %v3290
        %v3519 = vpack.c.b16 %v3295, %v3291
        %v3520 = vpack.c.b16 %v3296, %v3292
        %v3521 = vpack.c.b16 %v3297, %v3293
        %v3522 = vpack.c.b16 %v3302, %v3298
        %v3523 = vpack.c.b16 %v3303, %v3299
        %v3524 = vpack.c.b16 %v3304, %v3300
        %v3525 = vpack.c.b16 %v3305, %v3301
        %v3526 = vpack.c.b16 %v3310, %v3306
        %v3527 = vpack.c.b16 %v3311, %v3307
        %v3528 = vpack.c.b16 %v3312, %v3308
        %v3529 = vpack.c.b16 %v3313, %v3309
        %v3530 = vpack.c.b16 %v3318, %v3314
        %v3531 = vpack.c.b16 %v3319, %v3315
        %v3532 = vpack.c.b16 %v3320, %v3316
        %v3533 = vpack.c.b16 %v3321, %v3317
        %v3534 = vpack.c.b16 %v3326, %v3322
        %v3535 = vpack.c.b16 %v3327, %v3323
        %v3536 = vpack.c.b16 %v3328, %v3324
        %v3537 = vpack.c.b16 %v3329, %v3325
        %v3538 = vpack.c.b16 %v3334, %v3330
        %v3539 = vpack.c.b16 %v3335, %v3331
        %v3540 = vpack.c.b16 %v3336, %v3332
        %v3541 = vpack.c.b16 %v3337, %v3333
        %v3542 = vpack.c.b16 %v3342, %v3338
        %v3543 = vpack.c.b16 %v3343, %v3339
        %v3544 = vpack.c.b16 %v3344, %v3340
        %v3545 = vpack.c.b16 %v3345, %v3341
        %v3546 = vpack.c.b16 %v3350, %v3346
        %v3547 = vpack.c.b16 %v3351, %v3347
        %v3548 = vpack.c.b16 %v3352, %v3348
        %v3549 = vpack.c.b16 %v3353, %v3349
        %v3550 = vpack.c.b16 %v3358, %v3354
        %v3551 = vpack.c.b16 %v3359, %v3355
        %v3552 = vpack.c.b16 %v3360, %v3356
        %v3553 = vpack.c.b16 %v3361, %v3357
        %v3554 = vpack.c.b16 %v3366, %v3362
        %v3555 = vpack.c.b16 %v3367, %v3363
        %v3556 = vpack.c.b16 %v3368, %v3364
        %v3557 = vpack.c.b16 %v3369, %v3365
        %v3558 = vpack.c.b16 %v3374, %v3370
        %v3559 = vpack.c.b16 %v3375, %v3371
        %v3560 = vpack.c.b16 %v3376, %v3372
        %v3561 = vpack.c.b16 %v3377, %v3373
        %v3562 = vpack.c.b16 %v3382, %v3378
        %v3563 = vpack.c.b16 %v3383, %v3379
        %v3564 = vpack.c.b16 %v3384, %v3380
        %v3565 = vpack.c.b16 %v3385, %v3381
        %v3566 = vpack.c.b16 %v3390, %v3386
        %v3567 = vpack.c.b16 %v3391, %v3387
        %v3568 = vpack.c.b16 %v3392, %v3388
        %v3569 = vpack.c.b16 %v3393, %v3389
        %v3570 = vpack.c.b16 %v3398, %v3394
        %v3571 = vpack.c.b16 %v3399, %v3395
        %v3572 = vpack.c.b16 %v3400, %v3396
        %v3573 = vpack.c.b16 %v3401, %v3397
        %v3574 = vpack.c.b16 %v3406, %v3402
        %v3575 = vpack.c.b16 %v3407, %v3403
        %v3576 = vpack.c.b16 %v3408, %v3404
        %v3577 = vpack.c.b16 %v3409, %v3405
        %v3578 = vpack.c.b16 %v3414, %v3410
        %v3579 = vpack.c.b16 %v3415, %v3411
        %v3580 = vpack.c.b16 %v3416, %v3412
        %v3581 = vpack.c.b16 %v3417, %v3413
        %v3582 = vpack.c.b16 %v3422, %v3418
        %v3583 = vpack.c.b16 %v3423, %v3419
        %v3584 = vpack.c.b16 %v3424, %v3420
        %v3585 = vpack.c.b16 %v3425, %v3421
        %3746 = vmatprep.subr.bf16.mxu0 %v3455
        %3747 = vmatpush1.bf16.msra.mxu0 %v3454
        %3748 = vmatprep.subr.bf16.mxu0 %v3451
        %3749 = vmatpush1.bf16.msra.mxu0 %v3450
        %3750 = vmatprep.subr.bf16.mxu0 %v3447
        %3751 = vmatpush1.bf16.msra.mxu0 %v3446
        %3752 = vmatprep.subr.bf16.mxu0 %v3443
        %3753 = vmatpush1.bf16.msra.mxu0 %v3442
        %3754 = vmatprep.subr.bf16.mxu0 %v3439
        %3755 = vmatpush1.bf16.msra.mxu0 %v3438
        %3756 = vmatprep.subr.bf16.mxu0 %v3435
        %3757 = vmatpush1.bf16.msra.mxu0 %v3434
        %3758 = vmatprep.subr.bf16.mxu0 %v3431
        %3759 = vmatpush1.bf16.msra.mxu0 %v3430
        %3760 = vmatprep.subr.bf16.mxu0 %v3427
        %3761 = vmatpush1.bf16.msra.mxu0 %v3426
        %3762 = vmatprep.subr.bf16.mxu0 %v3487
        %3763 = vmatpush2.bf16.msra.mxu0 %v3486
        %3764 = vmatprep.subr.bf16.mxu0 %v3483
        %3765 = vmatpush2.bf16.msra.mxu0 %v3482
        %3766 = vmatprep.subr.bf16.mxu0 %v3479
        %3767 = vmatpush2.bf16.msra.mxu0 %v3478
        %3768 = vmatprep.subr.bf16.mxu0 %v3475
        %3769 = vmatpush2.bf16.msra.mxu0 %v3474
        %3770 = vmatprep.subr.bf16.mxu0 %v3471
        %3771 = vmatpush2.bf16.msra.mxu0 %v3470
        %3772 = vmatprep.subr.bf16.mxu0 %v3467
        %3773 = vmatpush2.bf16.msra.mxu0 %v3466
        %3774 = vmatprep.subr.bf16.mxu0 %v3463
        %3775 = vmatpush2.bf16.msra.mxu0 %v3462
        %3776 = vmatprep.subr.bf16.mxu0 %v3459
        %3777 = vmatpush2.bf16.msra.mxu0 %v3458
        %3778 = vmatprep.mubr.bf16.mxu0 %v2919
        %3779 = vmatmul.mubr.bf16.gmra.mxu0 %v2912
        %v3780 = vpop.f32.mrf.mxu0
        %v3781 = vadd.f32 0.0, %v3780
        %v3782 = vpop.f32.mrf.mxu0
        %v3783 = vadd.f32 0.0, %v3782
        %v3784 = vpop.f32.mrf.mxu0
        %v3785 = vpop.f32.mrf.mxu0
        %3786 = vdwg.mxu0
        %3787 = vmatprep.subr.bf16.mxu0 %v3519
        %3788 = vmatpush1.bf16.msra.mxu0 %v3518
        %3789 = vmatprep.subr.bf16.mxu0 %v3515
        %3790 = vmatpush1.bf16.msra.mxu0 %v3514
        %3791 = vmatprep.subr.bf16.mxu0 %v3511
        %3792 = vmatpush1.bf16.msra.mxu0 %v3510
        %3793 = vmatprep.subr.bf16.mxu0 %v3507
        %3794 = vmatpush1.bf16.msra.mxu0 %v3506
        %3795 = vmatprep.subr.bf16.mxu0 %v3503
        %3796 = vmatpush1.bf16.msra.mxu0 %v3502
        %3797 = vmatprep.subr.bf16.mxu0 %v3499
        %3798 = vmatpush1.bf16.msra.mxu0 %v3498
        %3799 = vmatprep.subr.bf16.mxu0 %v3495
        %3800 = vmatpush1.bf16.msra.mxu0 %v3494
        %3801 = vmatprep.subr.bf16.mxu0 %v3491
        %3802 = vmatpush1.bf16.msra.mxu0 %v3490
        %3803 = vmatprep.subr.bf16.mxu0 %v3551
        %3804 = vmatpush2.bf16.msra.mxu0 %v3550
        %3805 = vmatprep.subr.bf16.mxu0 %v3547
        %3806 = vmatpush2.bf16.msra.mxu0 %v3546
        %3807 = vmatprep.subr.bf16.mxu0 %v3543
        %3808 = vmatpush2.bf16.msra.mxu0 %v3542
        %3809 = vmatprep.subr.bf16.mxu0 %v3539
        %3810 = vmatpush2.bf16.msra.mxu0 %v3538
        %3811 = vmatprep.subr.bf16.mxu0 %v3535
        %3812 = vmatpush2.bf16.msra.mxu0 %v3534
        %3813 = vmatprep.subr.bf16.mxu0 %v3531
        %3814 = vmatpush2.bf16.msra.mxu0 %v3530
        %3815 = vmatprep.subr.bf16.mxu0 %v3527
        %3816 = vmatpush2.bf16.msra.mxu0 %v3526
        %3817 = vmatprep.subr.bf16.mxu0 %v3523
        %3818 = vmatpush2.bf16.msra.mxu0 %v3522
        %3819 = vmatprep.mubr.bf16.mxu0 %v2933
        %3820 = vmatmul.mubr.bf16.gmra.mxu0 %v2926
        %v3821 = vpop.f32.mrf.mxu0
        %v3822 = vadd.f32 %v3781, %v3821
        %v3823 = vpop.f32.mrf.mxu0
        %v3824 = vadd.f32 %v3783, %v3823
        %v3825 = vpop.f32.mrf.mxu0
        %v3826 = vpop.f32.mrf.mxu0
        %3827 = vdwg.mxu0
        %3828 = vmatprep.subr.bf16.mxu0 %v3583
        %3829 = vmatpush1.bf16.msra.mxu0 %v3582
        %3830 = vmatprep.subr.bf16.mxu0 %v3579
        %3831 = vmatpush1.bf16.msra.mxu0 %v3578
        %3832 = vmatprep.subr.bf16.mxu0 %v3575
        %3833 = vmatpush1.bf16.msra.mxu0 %v3574
        %3834 = vmatprep.subr.bf16.mxu0 %v3571
        %3835 = vmatpush1.bf16.msra.mxu0 %v3570
        %3836 = vmatprep.subr.bf16.mxu0 %v3567
        %3837 = vmatpush1.bf16.msra.mxu0 %v3566
        %3838 = vmatprep.subr.bf16.mxu0 %v3563
        %3839 = vmatpush1.bf16.msra.mxu0 %v3562
        %3840 = vmatprep.subr.bf16.mxu0 %v3559
        %3841 = vmatpush1.bf16.msra.mxu0 %v3558
        %3842 = vmatprep.subr.bf16.mxu0 %v3555
        %3843 = vmatpush1.bf16.msra.mxu0 %v3554
        %3844 = vmatprep.subr.bf16.mxu0 0
        %3845 = vmatpush2.bf16.msra.mxu0 0
        %3846 = vmatprep.subr.bf16.mxu0 0
        %3847 = vmatpush2.bf16.msra.mxu0 0
        %3848 = vmatprep.subr.bf16.mxu0 0
        %3849 = vmatpush2.bf16.msra.mxu0 0
        %3850 = vmatprep.subr.bf16.mxu0 0
        %3851 = vmatpush2.bf16.msra.mxu0 0
        %3852 = vmatprep.subr.bf16.mxu0 0
        %3853 = vmatpush2.bf16.msra.mxu0 0
        %3854 = vmatprep.subr.bf16.mxu0 0
        %3855 = vmatpush2.bf16.msra.mxu0 0
        %3856 = vmatprep.subr.bf16.mxu0 0
        %3857 = vmatpush2.bf16.msra.mxu0 0
        %3858 = vmatprep.subr.bf16.mxu0 0
        %3859 = vmatpush2.bf16.msra.mxu0 0
        %3860 = vmatprep.mubr.bf16.mxu0 0
        %3861 = vmatmul.mubr.bf16.gmra.mxu0 %v2940
        %v3862 = vpop.f32.mrf.mxu0
        %v3863 = vadd.f32 %v3822, %v3862
        %v3864 = vpop.f32.mrf.mxu0
        %v3865 = vadd.f32 %v3824, %v3864
        %v3866 = vpop.f32.mrf.mxu0
        %v3867 = vpop.f32.mrf.mxu0
        %3868 = vdwg.mxu0
        %3869 = vmatprep.subr.bf16.mxu0 %v3457
        %3870 = vmatpush1.bf16.msra.mxu0 %v3456
        %3871 = vmatprep.subr.bf16.mxu0 %v3453
        %3872 = vmatpush1.bf16.msra.mxu0 %v3452
        %3873 = vmatprep.subr.bf16.mxu0 %v3449
        %3874 = vmatpush1.bf16.msra.mxu0 %v3448
        %3875 = vmatprep.subr.bf16.mxu0 %v3445
        %3876 = vmatpush1.bf16.msra.mxu0 %v3444
        %3877 = vmatprep.subr.bf16.mxu0 %v3441
        %3878 = vmatpush1.bf16.msra.mxu0 %v3440
        %3879 = vmatprep.subr.bf16.mxu0 %v3437
        %3880 = vmatpush1.bf16.msra.mxu0 %v3436
        %3881 = vmatprep.subr.bf16.mxu0 %v3433
        %3882 = vmatpush1.bf16.msra.mxu0 %v3432
        %3883 = vmatprep.subr.bf16.mxu0 %v3429
        %3884 = vmatpush1.bf16.msra.mxu0 %v3428
        %3885 = vmatprep.subr.bf16.mxu0 %v3489
        %3886 = vmatpush2.bf16.msra.mxu0 %v3488
        %3887 = vmatprep.subr.bf16.mxu0 %v3485
        %3888 = vmatpush2.bf16.msra.mxu0 %v3484
        %3889 = vmatprep.subr.bf16.mxu0 %v3481
        %3890 = vmatpush2.bf16.msra.mxu0 %v3480
        %3891 = vmatprep.subr.bf16.mxu0 %v3477
        %3892 = vmatpush2.bf16.msra.mxu0 %v3476
        %3893 = vmatprep.subr.bf16.mxu0 %v3473
        %3894 = vmatpush2.bf16.msra.mxu0 %v3472
        %3895 = vmatprep.subr.bf16.mxu0 %v3469
        %3896 = vmatpush2.bf16.msra.mxu0 %v3468
        %3897 = vmatprep.subr.bf16.mxu0 %v3465
        %3898 = vmatpush2.bf16.msra.mxu0 %v3464
        %3899 = vmatprep.subr.bf16.mxu0 %v3461
        %3900 = vmatpush2.bf16.msra.mxu0 %v3460
        %3901 = vmatprep.mubr.bf16.mxu0 %v2919
        %3902 = vmatmul.mubr.bf16.gmra.mxu0 %v2912
        %v3903 = vpop.f32.mrf.mxu0
        %v3904 = vadd.f32 0.0, %v3903
        %v3905 = vpop.f32.mrf.mxu0
        %v3906 = vadd.f32 0.0, %v3905
        %v3907 = vpop.f32.mrf.mxu0
        %v3908 = vpop.f32.mrf.mxu0
        %3909 = vdwg.mxu0
        %3910 = vmatprep.subr.bf16.mxu0 %v3521
        %3911 = vmatpush1.bf16.msra.mxu0 %v3520
        %3912 = vmatprep.subr.bf16.mxu0 %v3517
        %3913 = vmatpush1.bf16.msra.mxu0 %v3516
        %3914 = vmatprep.subr.bf16.mxu0 %v3513
        %3915 = vmatpush1.bf16.msra.mxu0 %v3512
        %3916 = vmatprep.subr.bf16.mxu0 %v3509
        %3917 = vmatpush1.bf16.msra.mxu0 %v3508
        %3918 = vmatprep.subr.bf16.mxu0 %v3505
        %3919 = vmatpush1.bf16.msra.mxu0 %v3504
        %3920 = vmatprep.subr.bf16.mxu0 %v3501
        %3921 = vmatpush1.bf16.msra.mxu0 %v3500
        %3922 = vmatprep.subr.bf16.mxu0 %v3497
        %3923 = vmatpush1.bf16.msra.mxu0 %v3496
        %3924 = vmatprep.subr.bf16.mxu0 %v3493
        %3925 = vmatpush1.bf16.msra.mxu0 %v3492
        %3926 = vmatprep.subr.bf16.mxu0 %v3553
        %3927 = vmatpush2.bf16.msra.mxu0 %v3552
        %3928 = vmatprep.subr.bf16.mxu0 %v3549
        %3929 = vmatpush2.bf16.msra.mxu0 %v3548
        %3930 = vmatprep.subr.bf16.mxu0 %v3545
        %3931 = vmatpush2.bf16.msra.mxu0 %v3544
        %3932 = vmatprep.subr.bf16.mxu0 %v3541
        %3933 = vmatpush2.bf16.msra.mxu0 %v3540
        %3934 = vmatprep.subr.bf16.mxu0 %v3537
        %3935 = vmatpush2.bf16.msra.mxu0 %v3536
        %3936 = vmatprep.subr.bf16.mxu0 %v3533
        %3937 = vmatpush2.bf16.msra.mxu0 %v3532
        %3938 = vmatprep.subr.bf16.mxu0 %v3529
        %3939 = vmatpush2.bf16.msra.mxu0 %v3528
        %3940 = vmatprep.subr.bf16.mxu0 %v3525
        %3941 = vmatpush2.bf16.msra.mxu0 %v3524
        %3942 = vmatprep.mubr.bf16.mxu0 %v2933
        %3943 = vmatmul.mubr.bf16.gmra.mxu0 %v2926
        %v3944 = vpop.f32.mrf.mxu0
        %v3945 = vadd.f32 %v3904, %v3944
        %v3946 = vpop.f32.mrf.mxu0
        %v3947 = vadd.f32 %v3906, %v3946
        %v3948 = vpop.f32.mrf.mxu0
        %v3949 = vpop.f32.mrf.mxu0
        %3950 = vdwg.mxu0
        %3951 = vmatprep.subr.bf16.mxu0 %v3585
        %3952 = vmatpush1.bf16.msra.mxu0 %v3584
        %3953 = vmatprep.subr.bf16.mxu0 %v3581
        %3954 = vmatpush1.bf16.msra.mxu0 %v3580
        %3955 = vmatprep.subr.bf16.mxu0 %v3577
        %3956 = vmatpush1.bf16.msra.mxu0 %v3576
        %3957 = vmatprep.subr.bf16.mxu0 %v3573
        %3958 = vmatpush1.bf16.msra.mxu0 %v3572
        %3959 = vmatprep.subr.bf16.mxu0 %v3569
        %3960 = vmatpush1.bf16.msra.mxu0 %v3568
        %3961 = vmatprep.subr.bf16.mxu0 %v3565
        %3962 = vmatpush1.bf16.msra.mxu0 %v3564
        %3963 = vmatprep.subr.bf16.mxu0 %v3561
        %3964 = vmatpush1.bf16.msra.mxu0 %v3560
        %3965 = vmatprep.subr.bf16.mxu0 %v3557
        %3966 = vmatpush1.bf16.msra.mxu0 %v3556
        %3967 = vmatprep.subr.bf16.mxu0 0
        %3968 = vmatpush2.bf16.msra.mxu0 0
        %3969 = vmatprep.subr.bf16.mxu0 0
        %3970 = vmatpush2.bf16.msra.mxu0 0
        %3971 = vmatprep.subr.bf16.mxu0 0
        %3972 = vmatpush2.bf16.msra.mxu0 0
        %3973 = vmatprep.subr.bf16.mxu0 0
        %3974 = vmatpush2.bf16.msra.mxu0 0
        %3975 = vmatprep.subr.bf16.mxu0 0
        %3976 = vmatpush2.bf16.msra.mxu0 0
        %3977 = vmatprep.subr.bf16.mxu0 0
        %3978 = vmatpush2.bf16.msra.mxu0 0
        %3979 = vmatprep.subr.bf16.mxu0 0
        %3980 = vmatpush2.bf16.msra.mxu0 0
        %3981 = vmatprep.subr.bf16.mxu0 0
        %3982 = vmatpush2.bf16.msra.mxu0 0
        %3983 = vmatprep.mubr.bf16.mxu0 0
        %3984 = vmatmul.mubr.bf16.gmra.mxu0 %v2940
        %v3985 = vpop.f32.mrf.mxu0
        %v3986 = vadd.f32 %v3945, %v3985
        %v3987 = vpop.f32.mrf.mxu0
        %v3988 = vadd.f32 %v3947, %v3987
        %v3989 = vpop.f32.mrf.mxu0
        %v3990 = vpop.f32.mrf.mxu0
        %3991 = vdwg.mxu0
        %v3992 = vadd.f32 %v2600, %v3863
        %v3993 = vadd.f32 %v2602, %v3865
        %v3994 = vadd.f32 %v2723, %v3986
        %v3995 = vadd.f32 %v2725, %v3988
        %v3996 = vld [vmem:[%s2] sm:$0xf]
        %v3998 = vlaneseq
        %v3999 = vshrl.u32 %v3998, 7
        %v4000 = vsub.s32 0, %v3999
        %v4001 = vrot.slane %v3996, %v4000
        %v4002 = vlaneseq
        %v4003 = vshrl.u32 %v4002, 7
        %v4004 = vsub.s32 1, %v4003
        %v4005 = vrot.slane %v3996, %v4004
        %v4006 = vlaneseq
        %v4007 = vshrl.u32 %v4006, 7
        %v4008 = vsub.s32 2, %v4007
        %v4009 = vrot.slane %v3996, %v4008
        %v4010 = vlaneseq
        %v4011 = vshrl.u32 %v4010, 7
        %v4012 = vsub.s32 3, %v4011
        %v4013 = vrot.slane %v3996, %v4012
        %v4018 = vadd.f32 %v3992, %v4001
        %v4019 = vadd.f32 %v3993, %v4005
        %v4020 = vadd.f32 %v3994, %v4009
        %v4021 = vadd.f32 %v3995, %v4013
        %v4022 = vmax.f32 %v4018, 0.0
        %v4023 = vmax.f32 %v4019, 0.0
        %v4024 = vmax.f32 %v4020, 0.0
        %v4025 = vmax.f32 %v4021, 0.0
        %v4026 = vld [vmem:[%s3] sm:$0xff]
        %v4027 = vld [vmem:[%s3 + $0x8] sm:$0xff]
        %v4028 = vld [vmem:[%s3 + $0x10] sm:$0xff]
        %v4029 = vld [vmem:[%s3 + $0x18] sm:$0xff]
        %v4030 = vld [vmem:[%s3 + $0x20] sm:$0xff]
        %v4031 = vld [vmem:[%s3 + $0x28] sm:$0xff]
        %v4032 = vld [vmem:[%s3 + $0x30] sm:$0xff]
        %v4033 = vld [vmem:[%s3 + $0x38] sm:$0xff]
        %v4034 = vld [vmem:[%s3 + $0x40] sm:$0xff]
        %v4035 = vld [vmem:[%s3 + $0x48] sm:$0xff]
        %v4036 = vld [vmem:[%s3 + $0x50] sm:$0xff]
        %v4037 = vld [vmem:[%s3 + $0x58] sm:$0xff]
        %v4038 = vld [vmem:[%s3 + $0x60] sm:$0xff]
        %v4039 = vld [vmem:[%s3 + $0x68] sm:$0xff]
        %v4040 = vld [vmem:[%s3 + $0x70] sm:$0xff]
        %v4041 = vld [vmem:[%s3 + $0x78] sm:$0xff]
        %v4042 = vld [vmem:[%s3 + $0x80] sm:$0xff]
        %v4043 = vld [vmem:[%s3 + $0x88] sm:$0xff]
        %v4044 = vld [vmem:[%s3 + $0x90] sm:$0xff]
        %v4045 = vld [vmem:[%s3 + $0x98] sm:$0xff]
        %v4046 = vld [vmem:[%s3 + $0xa0] sm:$0xff]
        %v4047 = vld [vmem:[%s3 + $0xa8] sm:$0xff]
        %v4048 = vld [vmem:[%s3 + $0xb0] sm:$0xff]
        %v4049 = vld [vmem:[%s3 + $0xb8] sm:$0xff]
        %v4050 = vld [vmem:[%s3 + $0xc0] sm:$0xff]
        %v4051 = vld [vmem:[%s3 + $0xc8] sm:$0xff]
        %v4052 = vld [vmem:[%s3 + $0xd0] sm:$0xff]
        %v4053 = vld [vmem:[%s3 + $0xd8] sm:$0xff]
        %v4054 = vld [vmem:[%s3 + $0xe0] sm:$0xff]
        %v4055 = vld [vmem:[%s3 + $0xe8] sm:$0xff]
        %v4056 = vld [vmem:[%s3 + $0xf0] sm:$0xff]
        %v4057 = vld [vmem:[%s3 + $0xf8] sm:$0xff]
        %v4058 = vld [vmem:[%s3 + $0x100] sm:$0xff]
        %v4059 = vld [vmem:[%s3 + $0x108] sm:$0xff]
        %v4060 = vld [vmem:[%s3 + $0x110] sm:$0xff]
        %v4061 = vld [vmem:[%s3 + $0x118] sm:$0xff]
        %v4062 = vld [vmem:[%s3 + $0x120] sm:$0xff]
        %v4063 = vld [vmem:[%s3 + $0x128] sm:$0xff]
        %v4064 = vld [vmem:[%s3 + $0x130] sm:$0xff]
        %v4065 = vld [vmem:[%s3 + $0x138] sm:$0xff]
        %v4066 = vld [vmem:[%s3 + $0x140] sm:$0xff]
        %v4067 = vld [vmem:[%s3 + $0x148] sm:$0xff]
        %v4068 = vld [vmem:[%s3 + $0x150] sm:$0xff]
        %v4069 = vld [vmem:[%s3 + $0x158] sm:$0xff]
        %v4070 = vld [vmem:[%s3 + $0x160] sm:$0xff]
        %v4071 = vld [vmem:[%s3 + $0x168] sm:$0xff]
        %v4072 = vld [vmem:[%s3 + $0x170] sm:$0xff]
        %v4073 = vld [vmem:[%s3 + $0x178] sm:$0xff]
        %v4074 = vld [vmem:[%s3 + $0x180] sm:$0xff]
        %v4075 = vld [vmem:[%s3 + $0x188] sm:$0xff]
        %v4076 = vld [vmem:[%s3 + $0x190] sm:$0xff]
        %v4077 = vld [vmem:[%s3 + $0x198] sm:$0xff]
        %v4078 = vld [vmem:[%s3 + $0x1a0] sm:$0xff]
        %v4079 = vld [vmem:[%s3 + $0x1a8] sm:$0xff]
        %v4080 = vld [vmem:[%s3 + $0x1b0] sm:$0xff]
        %v4081 = vld [vmem:[%s3 + $0x1b8] sm:$0xff]
        %v4082 = vld [vmem:[%s3 + $0x1c0] sm:$0xff]
        %v4083 = vld [vmem:[%s3 + $0x1c8] sm:$0xff]
        %v4084 = vld [vmem:[%s3 + $0x1d0] sm:$0xff]
        %v4085 = vld [vmem:[%s3 + $0x1d8] sm:$0xff]
        %v4086 = vld [vmem:[%s3 + $0x1e0] sm:$0xff]
        %v4087 = vld [vmem:[%s3 + $0x1e8] sm:$0xff]
        %v4088 = vld [vmem:[%s3 + $0x1f0] sm:$0xff]
        %v4089 = vld [vmem:[%s3 + $0x1f8] sm:$0xff]
        %4090 = vmatprep.subr.mxu0 0.0
        %4091 = vmatpush1.msra.mxu0 %v4041
        %4092 = vmatprep.subr.mxu0 0.0
        %4093 = vmatpush1.msra.mxu0 %v4040
        %4094 = vmatprep.subr.mxu0 0.0
        %4095 = vmatpush1.msra.mxu0 %v4039
        %4096 = vmatprep.subr.mxu0 0.0
        %4097 = vmatpush1.msra.mxu0 %v4038
        %4098 = vmatprep.subr.mxu0 0.0
        %4099 = vmatpush1.msra.mxu0 %v4037
        %4100 = vmatprep.subr.mxu0 0.0
        %4101 = vmatpush1.msra.mxu0 %v4036
        %4102 = vmatprep.subr.mxu0 0.0
        %4103 = vmatpush1.msra.mxu0 %v4035
        %4104 = vmatprep.subr.mxu0 0.0
        %4105 = vmatpush1.msra.mxu0 %v4034
        %4106 = vmatprep.subr.mxu0 0.0
        %4107 = vmatpush1.msra.mxu0 %v4033
        %4108 = vmatprep.subr.mxu0 0.0
        %4109 = vmatpush1.msra.mxu0 %v4032
        %4110 = vmatprep.subr.mxu0 0.0
        %4111 = vmatpush1.msra.mxu0 %v4031
        %4112 = vmatprep.subr.mxu0 0.0
        %4113 = vmatpush1.msra.mxu0 %v4030
        %4114 = vmatprep.subr.mxu0 0.0
        %4115 = vmatpush1.msra.mxu0 %v4029
        %4116 = vmatprep.subr.mxu0 0.0
        %4117 = vmatpush1.msra.mxu0 %v4028
        %4118 = vmatprep.subr.mxu0 0.0
        %4119 = vmatpush1.msra.mxu0 %v4027
        %4120 = vmatprep.subr.mxu0 0.0
        %4121 = vmatpush1.msra.mxu0 %v4026
        %4122 = vmatprep.subr.mxu0 0.0
        %4123 = vmatpush2.msra.mxu0 %v4057
        %4124 = vmatprep.subr.mxu0 0.0
        %4125 = vmatpush2.msra.mxu0 %v4056
        %4126 = vmatprep.subr.mxu0 0.0
        %4127 = vmatpush2.msra.mxu0 %v4055
        %4128 = vmatprep.subr.mxu0 0.0
        %4129 = vmatpush2.msra.mxu0 %v4054
        %4130 = vmatprep.subr.mxu0 0.0
        %4131 = vmatpush2.msra.mxu0 %v4053
        %4132 = vmatprep.subr.mxu0 0.0
        %4133 = vmatpush2.msra.mxu0 %v4052
        %4134 = vmatprep.subr.mxu0 0.0
        %4135 = vmatpush2.msra.mxu0 %v4051
        %4136 = vmatprep.subr.mxu0 0.0
        %4137 = vmatpush2.msra.mxu0 %v4050
        %4138 = vmatprep.subr.mxu0 0.0
        %4139 = vmatpush2.msra.mxu0 %v4049
        %4140 = vmatprep.subr.mxu0 0.0
        %4141 = vmatpush2.msra.mxu0 %v4048
        %4142 = vmatprep.subr.mxu0 0.0
        %4143 = vmatpush2.msra.mxu0 %v4047
        %4144 = vmatprep.subr.mxu0 0.0
        %4145 = vmatpush2.msra.mxu0 %v4046
        %4146 = vmatprep.subr.mxu0 0.0
        %4147 = vmatpush2.msra.mxu0 %v4045
        %4148 = vmatprep.subr.mxu0 0.0
        %4149 = vmatpush2.msra.mxu0 %v4044
        %4150 = vmatprep.subr.mxu0 0.0
        %4151 = vmatpush2.msra.mxu0 %v4043
        %4152 = vmatprep.subr.mxu0 0.0
        %4153 = vmatpush2.msra.mxu0 %v4042
        %4154 = vmatprep.mubr.f32.mxu0 %v4023
        %4155 = vmatmul.mubr.f32.gmra.mxu0 %v4022
        %v4156 = vpop.f32.mrf.mxu0
        %v4157 = vadd.f32 0.0, %v4156
        %v4158 = vpop.f32.mrf.mxu0
        %4159 = vdwg.mxu0
        %4160 = vmatprep.subr.mxu0 0.0
        %4161 = vmatpush1.msra.mxu0 %v4073
        %4162 = vmatprep.subr.mxu0 0.0
        %4163 = vmatpush1.msra.mxu0 %v4072
        %4164 = vmatprep.subr.mxu0 0.0
        %4165 = vmatpush1.msra.mxu0 %v4071
        %4166 = vmatprep.subr.mxu0 0.0
        %4167 = vmatpush1.msra.mxu0 %v4070
        %4168 = vmatprep.subr.mxu0 0.0
        %4169 = vmatpush1.msra.mxu0 %v4069
        %4170 = vmatprep.subr.mxu0 0.0
        %4171 = vmatpush1.msra.mxu0 %v4068
        %4172 = vmatprep.subr.mxu0 0.0
        %4173 = vmatpush1.msra.mxu0 %v4067
        %4174 = vmatprep.subr.mxu0 0.0
        %4175 = vmatpush1.msra.mxu0 %v4066
        %4176 = vmatprep.subr.mxu0 0.0
        %4177 = vmatpush1.msra.mxu0 %v4065
        %4178 = vmatprep.subr.mxu0 0.0
        %4179 = vmatpush1.msra.mxu0 %v4064
        %4180 = vmatprep.subr.mxu0 0.0
        %4181 = vmatpush1.msra.mxu0 %v4063
        %4182 = vmatprep.subr.mxu0 0.0
        %4183 = vmatpush1.msra.mxu0 %v4062
        %4184 = vmatprep.subr.mxu0 0.0
        %4185 = vmatpush1.msra.mxu0 %v4061
        %4186 = vmatprep.subr.mxu0 0.0
        %4187 = vmatpush1.msra.mxu0 %v4060
        %4188 = vmatprep.subr.mxu0 0.0
        %4189 = vmatpush1.msra.mxu0 %v4059
        %4190 = vmatprep.subr.mxu0 0.0
        %4191 = vmatpush1.msra.mxu0 %v4058
        %4192 = vmatprep.subr.mxu0 0.0
        %4193 = vmatpush2.msra.mxu0 %v4089
        %4194 = vmatprep.subr.mxu0 0.0
        %4195 = vmatpush2.msra.mxu0 %v4088
        %4196 = vmatprep.subr.mxu0 0.0
        %4197 = vmatpush2.msra.mxu0 %v4087
        %4198 = vmatprep.subr.mxu0 0.0
        %4199 = vmatpush2.msra.mxu0 %v4086
        %4200 = vmatprep.subr.mxu0 0.0
        %4201 = vmatpush2.msra.mxu0 %v4085
        %4202 = vmatprep.subr.mxu0 0.0
        %4203 = vmatpush2.msra.mxu0 %v4084
        %4204 = vmatprep.subr.mxu0 0.0
        %4205 = vmatpush2.msra.mxu0 %v4083
        %4206 = vmatprep.subr.mxu0 0.0
        %4207 = vmatpush2.msra.mxu0 %v4082
        %4208 = vmatprep.subr.mxu0 0.0
        %4209 = vmatpush2.msra.mxu0 %v4081
        %4210 = vmatprep.subr.mxu0 0.0
        %4211 = vmatpush2.msra.mxu0 %v4080
        %4212 = vmatprep.subr.mxu0 0.0
        %4213 = vmatpush2.msra.mxu0 %v4079
        %4214 = vmatprep.subr.mxu0 0.0
        %4215 = vmatpush2.msra.mxu0 %v4078
        %4216 = vmatprep.subr.mxu0 0.0
        %4217 = vmatpush2.msra.mxu0 %v4077
        %4218 = vmatprep.subr.mxu0 0.0
        %4219 = vmatpush2.msra.mxu0 %v4076
        %4220 = vmatprep.subr.mxu0 0.0
        %4221 = vmatpush2.msra.mxu0 %v4075
        %4222 = vmatprep.subr.mxu0 0.0
        %4223 = vmatpush2.msra.mxu0 %v4074
        %4224 = vmatprep.mubr.f32.mxu0 %v4025
        %4225 = vmatmul.mubr.f32.gmra.mxu0 %v4024
        %v4226 = vpop.f32.mrf.mxu0
        %v4227 = vadd.f32 %v4157, %v4226
        %v4228 = vpop.f32.mrf.mxu0
        %4229 = vdwg.mxu0
        %vm4230 = vcmask 76800
        %v4231 = vsel %vm4230, %v4227, 0.0
        %v4232 = vrot.slane %v4231, 4
        %v4233 = vadd.f32 %v4231, %v4232
        %v4234 = vrot.slane %v4233, 2
        %v4235 = vadd.f32 %v4233, %v4234
        %v4236 = vrot.slane %v4235, 1
        %v4237 = vadd.f32 %v4235, %v4236
        %v4238 = vmul.f32 %v4237, 0.0625
        %v4239 = vld [vmem:[%s4] sm:$0x1]
        %v4240 = vadd.f32 %v4238, %v4239
        %vm4241 = vcmask 73728
        %4242 = vst.msk [vmem:[%s216] sm:$0x1] %vm4241, %v4240
        %s4243 = sand.u32 %s137, 1
        %s4244 = scalar_lea.sflag [#allocation3], %s4243
        %s4245 = sand.u32 %s137, 1
        %s4246 = scalar_lea.vmem [#allocation2], %s4245
        // Predicated region
        $region41: #{convnet4_forward.7} parent=39 // pred_check
          %p4247 = pneg %p147
        $region42: #{convnet4_forward.7} parent=39 // pred_check_branch
          %4249 = sbr.rel (%p4247) target = $region44
        $region43: #{convnet4_forward.7} parent=39 // pred_region
          %s4251 = ssub.s32 16, 16
          %4252 = vsyncadd %s4244, %s4251
          %s4253 = smul.addr %s19, 16
          %s4254 = scalar_lea.hbm %s5, %s4253
          %s4256 = sshll.u32 %s4246, 4
          %s4257 = int_to_ptr.vmem [resolvable:$true] %s4256
          %4259 = dma.vmem_to_hbm [thread:$0]  %s4257, 16, %s4254, %s4244
        $region44: #{convnet4_forward.7} parent=39 // pred_fallthru
          _
      $region40: #{convnet4_forward.7} parent=5 // pred_fallthru
        _
      %p4260 = scmp.le.s32.totalorder 2, %s14
      // Predicated region
      $region45: #{convnet4_forward.7} parent=5 // pred_check
        %p4261 = pneg %p4260
      $region46: #{convnet4_forward.7} parent=5 // pred_check_branch
        %4263 = sbr.rel (%p4261) target = $region48
      $region47: #{convnet4_forward.7} parent=5 // pred_region
        %s4264 = ssub.s32 %s14, 2
        // Predicated region
        $region49: #{convnet4_forward.7} parent=47 // pred_check
          %p4265 = pneg %p153
        $region50: #{convnet4_forward.7} parent=47 // pred_check_branch
          %4267 = sbr.rel (%p4265) target = $region52
        $region51: #{convnet4_forward.7} parent=47 // pred_region
          %s4268 = sand.u32 %s138, 1
          %s4269 = scalar_lea.sflag [#allocation3], %s4268
          %s4270 = sand.u32 %s138, 1
          %s4271 = scalar_lea.vmem [#allocation2], %s4270
          %4272 = dma.done %s4269, 16
        $region52: #{convnet4_forward.7} parent=47 // pred_fallthru
          _
      $region48: #{convnet4_forward.7} parent=5 // pred_fallthru
        _
    $region6: #{convnet4_forward.7} parent=1 // loop_footer
      %s18 = sadd.s32 1, %s14
    $region7: #{convnet4_forward.7} parent=1 // loop_footer_branch
      %13 = sbr.rel target = $region3
    $region8: #{convnet4_forward.7} parent=1 // loop_exit
      _
    %4273 = vsyncpa [#allocation3], 1
    %s4274 = scalar_lea.sflag [#allocation3], 1
    %4275 = vsyncpa %s4274, 1

</llo_original>
